<compile_context>
chip_gen: v6e
topology: v6e:2x2x1
jax: 0.10.0
libtpu: 0.0.40
codegen_flags: <defaults>
</compile_context>

<pallas_src>
import jax
import jax.numpy as jnp
import numpy as np
from jax.experimental import pallas as pl
from jax.experimental.pallas import tpu as pltpu


# --------------------------------------------------------------------------- #
# Fused Pallas kernel: all 5 conv layers for one block of B images per step.
# --------------------------------------------------------------------------- #
def _fused_image_conv_kernel(x_ref, *refs):
    """refs = [g_0, w_0, b_0, ..., g_4, w_4, b_4, out_ref] with
      g_l : (9*Mp_l, Sp_l)           bf16  row-stacked 0/1 spatial-gather matrices
      w_l : (9, B*Cinp_l, B*Cout_l)  bf16  per-tap weights, block-diag over batch
      b_l : (1, B*Cout_l)            f32   bias tiled across the batch lane blocks
    Activation layout: (spatial, B*channels).  Everything stays in VMEM."""
    out_ref = refs[-1]
    layer_refs = refs[:-1]
    n_layers = len(layer_refs) // 3

    a = x_ref[...]                                        # (Sp_0, B*Cp_0) bf16
    act = None
    for l in range(n_layers):
        g_ref = layer_refs[3 * l + 0]
        w_ref = layer_refs[3 * l + 1]
        b_ref = layer_refs[3 * l + 2]
        mp = g_ref.shape[0] // 9

        # Stage 1: stride-2 / pad-1 spatial gather for all nine 3x3 taps in a
        # single bf16 MXU dot (exact: each G row holds at most a single 1.0).
        p = jnp.dot(g_ref[...], a,
                    preferred_element_type=jnp.float32)   # (9*Mp, B*Cin)
        p = p.astype(jnp.bfloat16).reshape(9, mp, p.shape[1])

        # Stage 2: per-tap weight application as ONE tap-batched contraction
        # (bf16 operands, f32 accumulation), then tap-sum + bias + ReLU on the
        # VPU.  The 9 matmuls pipeline back-to-back in the MXU; only the cheap
        # vector adds trail them.
        q = jnp.einsum('tmc,tck->tmk', p, w_ref[...],
                       preferred_element_type=jnp.float32)  # (9, Mp, B*Cout)
        act = jnp.maximum(q.sum(axis=0) + b_ref[...], 0.0)  # (Mp, B*Cout) f32
        a = act.astype(jnp.bfloat16)                         # next layer's input

    # NOTE: padded spatial rows hold ReLU(bias) (harmless: killed by the next
    # layer's zero G columns / sliced off in the wrapper).
    out_ref[...] = act.astype(out_ref.dtype)


# ------------------------ kernel parameter preparation ---------------------- #
def _conv_out(n):  # 3x3 conv, stride 2, pad 1
    return (n + 2 - 3) // 2 + 1


def _round_up(n, m):
    return ((n + m - 1) // m) * m


def _selection_matrices(h_in, w_in, h_out, w_out, m_pad, s_pad):
    """0/1 gather matrices G_t (one per 3x3 tap).  Taps landing in the zero
    padding give all-zero rows; rows/cols beyond the valid M/S stay zero."""
    g = np.zeros((9, m_pad, s_pad), np.float32)
    for ki in range(3):
        for kj in range(3):
            t = ki * 3 + kj
            for i in range(h_out):
                for j in range(w_out):
                    hh = 2 * i + ki - 1
                    ww = 2 * j + kj - 1
                    if 0 <= hh < h_in and 0 <= ww < w_in:
                        g[t, i * w_out + j, hh * w_in + ww] = 1.0
    return g


def build_image_conv(params, height, width, channels, b_blk=8,
                     mxu_dtype=jnp.bfloat16):
    """Precomputes kernel-side parameter layouts and returns a jitted forward.

    params: list of (w_torch (Cout, Cin, 3, 3), bias (Cout,)) in torch layout.
    Forward input: (N, height, width, channels) -- exactly what
    ImageConv.forward receives before its permute(0, 3, 1, 2)."""
    # Pad layer-0 channels so the lane width B*Cp0 is >= 128 (lane-dense loads).
    cp0 = max(_round_up(channels, 8), _round_up(max(1, 128 // b_blk), 8))
    s0 = height * width
    s0_pad = _round_up(s0, 8)

    layer_args = []
    in_specs = [pl.BlockSpec((s0_pad, b_blk * cp0), lambda gi: (gi, 0))]

    h, w, s_pad, cin_pad = height, width, s0_pad, cp0
    cout = channels
    for (w_torch, bias) in params:
        w_np = np.asarray(w_torch, np.float32)
        cout, cin, kh, kw = w_np.shape
        assert (kh, kw) == (3, 3) and cin <= cin_pad and cout % 8 == 0
        ho, wo = _conv_out(h), _conv_out(w)
        m_pad = _round_up(ho * wo, 8)

        # (9, Mp, Sp) -> row-stacked (9*Mp, Sp), bf16 (0/1 is exact in bf16).
        g = _selection_matrices(h, w, ho, wo, m_pad, s_pad)
        g = jnp.asarray(g.reshape(9 * m_pad, s_pad), mxu_dtype)

        # (Cout, Cin, 3, 3) -> per-tap (9, Cin, Cout), then block-diagonal over
        # the batch so lanes stay (batch-major, channel-minor):
        #   wbd[t, b*Cinp + c, b*Cout + k] = W[t, c, k]
        w_taps = np.transpose(w_np, (2, 3, 1, 0)).reshape(9, cin, cout)
        w_taps = np.pad(w_taps, ((0, 0), (0, cin_pad - cin), (0, 0)))
        wbd = np.zeros((9, b_blk * cin_pad, b_blk * cout), np.float32)
        for b in range(b_blk):
            wbd[:, b * cin_pad:(b + 1) * cin_pad,
                b * cout:(b + 1) * cout] = w_taps
        wbd = jnp.asarray(wbd, mxu_dtype)

        # bias tiled across the batch lane blocks: b2d[0, b*Cout + k] = bias[k]
        b2d = jnp.tile(jnp.asarray(bias, jnp.float32).reshape(1, cout),
                       (1, b_blk))

        layer_args += [g, wbd, b2d]
        in_specs += [
            pl.BlockSpec(g.shape, lambda gi: (0, 0)),       # resident params
            pl.BlockSpec(wbd.shape, lambda gi: (0, 0, 0)),
            pl.BlockSpec(b2d.shape, lambda gi: (0, 0)),
        ]
        h, w, s_pad, cin_pad = ho, wo, m_pad, cout

    hf, wf = h, w
    m_final, mp_final, cout_f = hf * wf, s_pad, cout

    # VMEM budget: params (conservatively double-buffered) + activations + I/O,
    # clamped to 56 MiB so the same build fits v7x's 64 MiB physical VMEM.
    param_bytes = sum(int(np.prod(a.shape)) * a.dtype.itemsize
                      for a in layer_args)
    vmem_limit = int(min(56 << 20, max(32 << 20, 2 * param_bytes + (8 << 20))))

    def forward(x):
        n = x.shape[0]
        nb = -(-n // b_blk)
        n_pad = nb * b_blk
        x2 = x.reshape(n, height * width, channels)
        x2 = jnp.pad(x2, ((0, n_pad - n), (0, s0_pad - height * width),
                          (0, cp0 - channels)))
        # (nb, B, S, C) -> (nb*S, B*C): spatial rows, batch-major/channel-minor
        # lanes; cast to bf16 so the streamed input DMA is half width.
        x2 = x2.reshape(nb, b_blk, s0_pad, cp0).transpose(0, 2, 1, 3)
        x2 = x2.reshape(nb * s0_pad, b_blk * cp0).astype(mxu_dtype)

        y = pl.pallas_call(
            _fused_image_conv_kernel,
            out_shape=jax.ShapeDtypeStruct((nb * mp_final, b_blk * cout_f),
                                           jnp.float32),
            grid=(nb,),                                    # batch blocks
            in_specs=in_specs,
            out_specs=pl.BlockSpec((mp_final, b_blk * cout_f),
                                   lambda gi: (gi, 0)),
            compiler_params=pltpu.CompilerParams(
                dimension_semantics=("parallel",),
                vmem_limit_bytes=vmem_limit),
        )(x2, *layer_args)

        # (nb*Mpf, B*Cout) -> (n, Cout, M) -> torch Flatten order (NCHW).
        y = y.reshape(nb, mp_final, b_blk, cout_f).transpose(0, 2, 3, 1)
        y = y.reshape(n_pad, cout_f, mp_final)[:n, :, :m_final]
        return y.reshape(n, cout_f * m_final)

    return jax.jit(forward)


# ------------------------- deterministic parameters ------------------------- #
def orthogonal_init(key, rows, cols, gain):
    """Matches torch.nn.init.orthogonal_ semantics (QR of a normal matrix)."""
    n, m = max(rows, cols), min(rows, cols)
    a = jax.random.normal(key, (n, m), dtype=jnp.float32)
    q, r = jnp.linalg.qr(a)
    q = q * jnp.sign(jnp.diagonal(r))[None, :]
    if rows < cols:
        q = q.T
    return gain * q[:rows, :cols]


def make_image_conv_params(key, channels, filters=32, n_layers=5):
    gain = float(np.sqrt(2.0))                      # calculate_gain('relu')
    params = []
    cin = channels
    for _ in range(n_layers):
        key, sub = jax.random.split(key)
        w2d = orthogonal_init(sub, filters, cin * 9, gain)   # (Cout, Cin*9)
        w_torch = w2d.reshape(filters, cin, 3, 3)            # (Cout, Cin, 3, 3)
        b = jnp.zeros((filters,), jnp.float32)               # constant_(bias, 0)
        params.append((w_torch, b))
        cin = filters
    return params


# ------------------------------- reference --------------------------------- #
def reference_forward(x, params):
    """Pure-JAX f32 reference (XLA conv) matching the torch module."""
    h = x.astype(jnp.float32)
    for (w_torch, b) in params:
        w_hwio = jnp.transpose(w_torch, (2, 3, 1, 0))        # (kh, kw, Cin, Cout)
        h = jax.lax.conv_general_dilated(
            h, w_hwio, window_strides=(2, 2), padding=((1, 1), (1, 1)),
            dimension_numbers=("NHWC", "HWIO", "NHWC"))
        h = jnp.maximum(h + b, 0.0)
    h_nchw = jnp.transpose(h, (0, 3, 1, 2))
    return h_nchw.reshape(h_nchw.shape[0], -1)


if __name__ == "__main__":
    key = jax.random.PRNGKey(0)
    k_x, k_w = jax.random.split(key)

    # image_shape = (channels=4, w=16, h=16); batch N = 2
    N, H, W, C = 2, 16, 16, 4
    x = jax.random.uniform(k_x, (N, H, W, C), dtype=jnp.float32)

    params = make_image_conv_params(k_w, channels=C, filters=32, n_layers=5)
    forward = build_image_conv(params, height=H, width=W, channels=C, b_blk=8)

    out = jax.block_until_ready(forward(x))
    # out_dim = 32 * ceil5(w) * ceil5(h) = 32 * 1 * 1
    assert out.shape == (N, 32), out.shape

    ref = jax.block_until_ready(reference_forward(x, params))
    # bf16 MXU operands / bf16 activations between layers (f32 accumulation)
    # -> tolerance loosened vs an all-f32 kernel.
    np.testing.assert_allclose(np.asarray(out), np.asarray(ref),
                               rtol=3e-2, atol=3e-2)
    print("KERNEL_OK")
</pallas_src>

<mosaic_0001>
module attributes {stable_mosaic.version = 11 : i64} {
  func.func @_fused_image_conv_kernel(%arg0: i32, %arg1: memref<256x128xbf16, #tpu.memory_space<vmem>>, %arg2: memref<576x256xbf16, #tpu.memory_space<vmem>>, %arg3: memref<9x128x256xbf16, #tpu.memory_space<vmem>>, %arg4: memref<1x256xf32, #tpu.memory_space<vmem>>, %arg5: memref<144x64xbf16, #tpu.memory_space<vmem>>, %arg6: memref<9x256x256xbf16, #tpu.memory_space<vmem>>, %arg7: memref<1x256xf32, #tpu.memory_space<vmem>>, %arg8: memref<72x16xbf16, #tpu.memory_space<vmem>>, %arg9: memref<9x256x256xbf16, #tpu.memory_space<vmem>>, %arg10: memref<1x256xf32, #tpu.memory_space<vmem>>, %arg11: memref<72x8xbf16, #tpu.memory_space<vmem>>, %arg12: memref<9x256x256xbf16, #tpu.memory_space<vmem>>, %arg13: memref<1x256xf32, #tpu.memory_space<vmem>>, %arg14: memref<72x8xbf16, #tpu.memory_space<vmem>>, %arg15: memref<9x256x256xbf16, #tpu.memory_space<vmem>>, %arg16: memref<1x256xf32, #tpu.memory_space<vmem>>, %arg17: memref<8x256xf32, #tpu.memory_space<vmem>>) attributes {dimension_semantics = [#tpu.dimension_semantics<parallel>], iteration_bounds = array<i64: 1>, scalar_prefetch = 0 : i64, scratch_operands = 0 : i64, tpu.core_type = #tpu.core_type<tc>, window_params = [{transform_indices = @transform_0, window_bounds = array<i64: 256, 128>}, {pipeline_mode = #tpu.pipeline_mode<synchronous>, transform_indices = @transform_1, window_bounds = array<i64: 576, 256>}, {pipeline_mode = #tpu.pipeline_mode<synchronous>, transform_indices = @transform_2, window_bounds = array<i64: 9, 128, 256>}, {pipeline_mode = #tpu.pipeline_mode<synchronous>, transform_indices = @transform_3, window_bounds = array<i64: 1, 256>}, {pipeline_mode = #tpu.pipeline_mode<synchronous>, transform_indices = @transform_4, window_bounds = array<i64: 144, 64>}, {pipeline_mode = #tpu.pipeline_mode<synchronous>, transform_indices = @transform_5, window_bounds = array<i64: 9, 256, 256>}, {pipeline_mode = #tpu.pipeline_mode<synchronous>, transform_indices = @transform_6, window_bounds = array<i64: 1, 256>}, {pipeline_mode = #tpu.pipeline_mode<synchronous>, transform_indices = @transform_7, window_bounds = array<i64: 72, 16>}, {pipeline_mode = #tpu.pipeline_mode<synchronous>, transform_indices = @transform_8, window_bounds = array<i64: 9, 256, 256>}, {pipeline_mode = #tpu.pipeline_mode<synchronous>, transform_indices = @transform_9, window_bounds = array<i64: 1, 256>}, {pipeline_mode = #tpu.pipeline_mode<synchronous>, transform_indices = @transform_10, window_bounds = array<i64: 72, 8>}, {pipeline_mode = #tpu.pipeline_mode<synchronous>, transform_indices = @transform_11, window_bounds = array<i64: 9, 256, 256>}, {pipeline_mode = #tpu.pipeline_mode<synchronous>, transform_indices = @transform_12, window_bounds = array<i64: 1, 256>}, {pipeline_mode = #tpu.pipeline_mode<synchronous>, transform_indices = @transform_13, window_bounds = array<i64: 72, 8>}, {pipeline_mode = #tpu.pipeline_mode<synchronous>, transform_indices = @transform_14, window_bounds = array<i64: 9, 256, 256>}, {pipeline_mode = #tpu.pipeline_mode<synchronous>, transform_indices = @transform_15, window_bounds = array<i64: 1, 256>}, {transform_indices = @transform_16, window_bounds = array<i64: 8, 256>}]} {
    %c0 = arith.constant 0 : index
    %c0_0 = arith.constant 0 : index
    %0 = vector.load %arg1[%c0, %c0_0] : memref<256x128xbf16, #tpu.memory_space<vmem>>, vector<256x128xbf16>
    %c0_1 = arith.constant 0 : index
    %c0_2 = arith.constant 0 : index
    %1 = vector.load %arg2[%c0_1, %c0_2] : memref<576x256xbf16, #tpu.memory_space<vmem>>, vector<576x256xbf16>
    %cst = arith.constant dense<0.000000e+00> : vector<576x128xf32>
    %2 = tpu.matmul %1, %0, %cst {dimension_numbers = #tpu.dot_dimension_numbers<[1], [0], [0], [1], [0, 0, 1, 1], [], []>} : vector<576x256xbf16>, vector<256x128xbf16>, vector<576x128xf32> -> vector<576x128xf32>
    %3 = arith.truncf %2 : vector<576x128xf32> to vector<576x128xbf16>
    %4 = vector.shape_cast %3 : vector<576x128xbf16> to vector<9x64x128xbf16>
    %c0_3 = arith.constant 0 : index
    %c0_4 = arith.constant 0 : index
    %c0_5 = arith.constant 0 : index
    %5 = vector.load %arg3[%c0_3, %c0_4, %c0_5] : memref<9x128x256xbf16, #tpu.memory_space<vmem>>, vector<9x128x256xbf16>
    "tpu.trace_start"() <{level = 10 : i32, message = "tmc,tck->tmk"}> : () -> ()
    %cst_6 = arith.constant dense<0.000000e+00> : vector<9x64x256xf32>
    %6 = tpu.matmul %4, %5, %cst_6 {dimension_numbers = #tpu.dot_dimension_numbers<[2], [1], [1], [2], [0, 0, 0, 1, 1, 2], [0], [0]>} : vector<9x64x128xbf16>, vector<9x128x256xbf16>, vector<9x64x256xf32> -> vector<9x64x256xf32>
    "tpu.trace_stop"() : () -> ()
    %cst_7 = arith.constant dense<0.000000e+00> : vector<64x256xf32>
    %7 = vector.multi_reduction <add>, %6, %cst_7 [0] : vector<9x64x256xf32> to vector<64x256xf32>
    %c0_8 = arith.constant 0 : index
    %c0_9 = arith.constant 0 : index
    %8 = vector.load %arg4[%c0_8, %c0_9] : memref<1x256xf32, #tpu.memory_space<vmem>>, vector<1x256xf32>
    %9 = vector.broadcast %8 : vector<1x256xf32> to vector<64x256xf32>
    %10 = arith.addf %7, %9 : vector<64x256xf32>
    %cst_10 = arith.constant 0.000000e+00 : f32
    %11 = vector.broadcast %cst_10 : f32 to vector<64x256xf32>
    %12 = arith.maximumf %10, %11 : vector<64x256xf32>
    %13 = arith.truncf %12 : vector<64x256xf32> to vector<64x256xbf16>
    %c0_11 = arith.constant 0 : index
    %c0_12 = arith.constant 0 : index
    %14 = vector.load %arg5[%c0_11, %c0_12] : memref<144x64xbf16, #tpu.memory_space<vmem>>, vector<144x64xbf16>
    %cst_13 = arith.constant dense<0.000000e+00> : vector<144x256xf32>
    %15 = tpu.matmul %14, %13, %cst_13 {dimension_numbers = #tpu.dot_dimension_numbers<[1], [0], [0], [1], [0, 0, 1, 1], [], []>} : vector<144x64xbf16>, vector<64x256xbf16>, vector<144x256xf32> -> vector<144x256xf32>
    %16 = arith.truncf %15 : vector<144x256xf32> to vector<144x256xbf16>
    %17 = vector.shape_cast %16 : vector<144x256xbf16> to vector<9x16x256xbf16>
    %c0_14 = arith.constant 0 : index
    %c0_15 = arith.constant 0 : index
    %c0_16 = arith.constant 0 : index
    %18 = vector.load %arg6[%c0_14, %c0_15, %c0_16] : memref<9x256x256xbf16, #tpu.memory_space<vmem>>, vector<9x256x256xbf16>
    "tpu.trace_start"() <{level = 10 : i32, message = "tmc,tck->tmk"}> : () -> ()
    %cst_17 = arith.constant dense<0.000000e+00> : vector<9x16x256xf32>
    %19 = tpu.matmul %17, %18, %cst_17 {dimension_numbers = #tpu.dot_dimension_numbers<[2], [1], [1], [2], [0, 0, 0, 1, 1, 2], [0], [0]>} : vector<9x16x256xbf16>, vector<9x256x256xbf16>, vector<9x16x256xf32> -> vector<9x16x256xf32>
    "tpu.trace_stop"() : () -> ()
    %cst_18 = arith.constant dense<0.000000e+00> : vector<16x256xf32>
    %20 = vector.multi_reduction <add>, %19, %cst_18 [0] : vector<9x16x256xf32> to vector<16x256xf32>
    %c0_19 = arith.constant 0 : index
    %c0_20 = arith.constant 0 : index
    %21 = vector.load %arg7[%c0_19, %c0_20] : memref<1x256xf32, #tpu.memory_space<vmem>>, vector<1x256xf32>
    %22 = vector.broadcast %21 : vector<1x256xf32> to vector<16x256xf32>
    %23 = arith.addf %20, %22 : vector<16x256xf32>
    %cst_21 = arith.constant 0.000000e+00 : f32
    %24 = vector.broadcast %cst_21 : f32 to vector<16x256xf32>
    %25 = arith.maximumf %23, %24 : vector<16x256xf32>
    %26 = arith.truncf %25 : vector<16x256xf32> to vector<16x256xbf16>
    %c0_22 = arith.constant 0 : index
    %c0_23 = arith.constant 0 : index
    %27 = vector.load %arg8[%c0_22, %c0_23] : memref<72x16xbf16, #tpu.memory_space<vmem>>, vector<72x16xbf16>
    %cst_24 = arith.constant dense<0.000000e+00> : vector<72x256xf32>
    %28 = tpu.matmul %27, %26, %cst_24 {dimension_numbers = #tpu.dot_dimension_numbers<[1], [0], [0], [1], [0, 0, 1, 1], [], []>} : vector<72x16xbf16>, vector<16x256xbf16>, vector<72x256xf32> -> vector<72x256xf32>
    %29 = arith.truncf %28 : vector<72x256xf32> to vector<72x256xbf16>
    %30 = vector.shape_cast %29 : vector<72x256xbf16> to vector<9x8x256xbf16>
    %c0_25 = arith.constant 0 : index
    %c0_26 = arith.constant 0 : index
    %c0_27 = arith.constant 0 : index
    %31 = vector.load %arg9[%c0_25, %c0_26, %c0_27] : memref<9x256x256xbf16, #tpu.memory_space<vmem>>, vector<9x256x256xbf16>
    "tpu.trace_start"() <{level = 10 : i32, message = "tmc,tck->tmk"}> : () -> ()
    %cst_28 = arith.constant dense<0.000000e+00> : vector<9x8x256xf32>
    %32 = tpu.matmul %30, %31, %cst_28 {dimension_numbers = #tpu.dot_dimension_numbers<[2], [1], [1], [2], [0, 0, 0, 1, 1, 2], [0], [0]>} : vector<9x8x256xbf16>, vector<9x256x256xbf16>, vector<9x8x256xf32> -> vector<9x8x256xf32>
    "tpu.trace_stop"() : () -> ()
    %cst_29 = arith.constant dense<0.000000e+00> : vector<8x256xf32>
    %33 = vector.multi_reduction <add>, %32, %cst_29 [0] : vector<9x8x256xf32> to vector<8x256xf32>
    %c0_30 = arith.constant 0 : index
    %c0_31 = arith.constant 0 : index
    %34 = vector.load %arg10[%c0_30, %c0_31] : memref<1x256xf32, #tpu.memory_space<vmem>>, vector<1x256xf32>
    %35 = vector.broadcast %34 : vector<1x256xf32> to vector<8x256xf32>
    %36 = arith.addf %33, %35 : vector<8x256xf32>
    %cst_32 = arith.constant 0.000000e+00 : f32
    %37 = vector.broadcast %cst_32 : f32 to vector<8x256xf32>
    %38 = arith.maximumf %36, %37 : vector<8x256xf32>
    %39 = arith.truncf %38 : vector<8x256xf32> to vector<8x256xbf16>
    %c0_33 = arith.constant 0 : index
    %c0_34 = arith.constant 0 : index
    %40 = vector.load %arg11[%c0_33, %c0_34] : memref<72x8xbf16, #tpu.memory_space<vmem>>, vector<72x8xbf16>
    %cst_35 = arith.constant dense<0.000000e+00> : vector<72x256xf32>
    %41 = tpu.matmul %40, %39, %cst_35 {dimension_numbers = #tpu.dot_dimension_numbers<[1], [0], [0], [1], [0, 0, 1, 1], [], []>} : vector<72x8xbf16>, vector<8x256xbf16>, vector<72x256xf32> -> vector<72x256xf32>
    %42 = arith.truncf %41 : vector<72x256xf32> to vector<72x256xbf16>
    %43 = vector.shape_cast %42 : vector<72x256xbf16> to vector<9x8x256xbf16>
    %c0_36 = arith.constant 0 : index
    %c0_37 = arith.constant 0 : index
    %c0_38 = arith.constant 0 : index
    %44 = vector.load %arg12[%c0_36, %c0_37, %c0_38] : memref<9x256x256xbf16, #tpu.memory_space<vmem>>, vector<9x256x256xbf16>
    "tpu.trace_start"() <{level = 10 : i32, message = "tmc,tck->tmk"}> : () -> ()
    %cst_39 = arith.constant dense<0.000000e+00> : vector<9x8x256xf32>
    %45 = tpu.matmul %43, %44, %cst_39 {dimension_numbers = #tpu.dot_dimension_numbers<[2], [1], [1], [2], [0, 0, 0, 1, 1, 2], [0], [0]>} : vector<9x8x256xbf16>, vector<9x256x256xbf16>, vector<9x8x256xf32> -> vector<9x8x256xf32>
    "tpu.trace_stop"() : () -> ()
    %cst_40 = arith.constant dense<0.000000e+00> : vector<8x256xf32>
    %46 = vector.multi_reduction <add>, %45, %cst_40 [0] : vector<9x8x256xf32> to vector<8x256xf32>
    %c0_41 = arith.constant 0 : index
    %c0_42 = arith.constant 0 : index
    %47 = vector.load %arg13[%c0_41, %c0_42] : memref<1x256xf32, #tpu.memory_space<vmem>>, vector<1x256xf32>
    %48 = vector.broadcast %47 : vector<1x256xf32> to vector<8x256xf32>
    %49 = arith.addf %46, %48 : vector<8x256xf32>
    %cst_43 = arith.constant 0.000000e+00 : f32
    %50 = vector.broadcast %cst_43 : f32 to vector<8x256xf32>
    %51 = arith.maximumf %49, %50 : vector<8x256xf32>
    %52 = arith.truncf %51 : vector<8x256xf32> to vector<8x256xbf16>
    %c0_44 = arith.constant 0 : index
    %c0_45 = arith.constant 0 : index
    %53 = vector.load %arg14[%c0_44, %c0_45] : memref<72x8xbf16, #tpu.memory_space<vmem>>, vector<72x8xbf16>
    %cst_46 = arith.constant dense<0.000000e+00> : vector<72x256xf32>
    %54 = tpu.matmul %53, %52, %cst_46 {dimension_numbers = #tpu.dot_dimension_numbers<[1], [0], [0], [1], [0, 0, 1, 1], [], []>} : vector<72x8xbf16>, vector<8x256xbf16>, vector<72x256xf32> -> vector<72x256xf32>
    %55 = arith.truncf %54 : vector<72x256xf32> to vector<72x256xbf16>
    %56 = vector.shape_cast %55 : vector<72x256xbf16> to vector<9x8x256xbf16>
    %c0_47 = arith.constant 0 : index
    %c0_48 = arith.constant 0 : index
    %c0_49 = arith.constant 0 : index
    %57 = vector.load %arg15[%c0_47, %c0_48, %c0_49] : memref<9x256x256xbf16, #tpu.memory_space<vmem>>, vector<9x256x256xbf16>
    "tpu.trace_start"() <{level = 10 : i32, message = "tmc,tck->tmk"}> : () -> ()
    %cst_50 = arith.constant dense<0.000000e+00> : vector<9x8x256xf32>
    %58 = tpu.matmul %56, %57, %cst_50 {dimension_numbers = #tpu.dot_dimension_numbers<[2], [1], [1], [2], [0, 0, 0, 1, 1, 2], [0], [0]>} : vector<9x8x256xbf16>, vector<9x256x256xbf16>, vector<9x8x256xf32> -> vector<9x8x256xf32>
    "tpu.trace_stop"() : () -> ()
    %cst_51 = arith.constant dense<0.000000e+00> : vector<8x256xf32>
    %59 = vector.multi_reduction <add>, %58, %cst_51 [0] : vector<9x8x256xf32> to vector<8x256xf32>
    %c0_52 = arith.constant 0 : index
    %c0_53 = arith.constant 0 : index
    %60 = vector.load %arg16[%c0_52, %c0_53] : memref<1x256xf32, #tpu.memory_space<vmem>>, vector<1x256xf32>
    %61 = vector.broadcast %60 : vector<1x256xf32> to vector<8x256xf32>
    %62 = arith.addf %59, %61 : vector<8x256xf32>
    %cst_54 = arith.constant 0.000000e+00 : f32
    %63 = vector.broadcast %cst_54 : f32 to vector<8x256xf32>
    %64 = arith.maximumf %62, %63 : vector<8x256xf32>
    %c0_55 = arith.constant 0 : index
    %c0_56 = arith.constant 0 : index
    %65 = vector.load %arg17[%c0_55, %c0_56] : memref<8x256xf32, #tpu.memory_space<vmem>>, vector<8x256xf32>
    tpu.vector_store %arg17[%c0_55, %c0_56], %64 {strides = array<i32>} : memref<8x256xf32, #tpu.memory_space<vmem>>, vector<8x256xf32>,
    return
  }
  func.func @transform_0(%arg0: i32) -> (i32, i32) {
    %c0_i32 = arith.constant 0 : i32
    %c0_i32_0 = arith.constant 0 : i32
    return %arg0, %c0_i32 : i32, i32
  }
  func.func @transform_1(%arg0: i32) -> (i32, i32) {
    %c0_i32 = arith.constant 0 : i32
    %c0_i32_0 = arith.constant 0 : i32
    %c0_i32_1 = arith.constant 0 : i32
    return %c0_i32, %c0_i32_0 : i32, i32
  }
  func.func @transform_2(%arg0: i32) -> (i32, i32, i32) {
    %c0_i32 = arith.constant 0 : i32
    %c0_i32_0 = arith.constant 0 : i32
    %c0_i32_1 = arith.constant 0 : i32
    %c0_i32_2 = arith.constant 0 : i32
    return %c0_i32, %c0_i32_0, %c0_i32_1 : i32, i32, i32
  }
  func.func @transform_3(%arg0: i32) -> (i32, i32) {
    %c0_i32 = arith.constant 0 : i32
    %c0_i32_0 = arith.constant 0 : i32
    %c0_i32_1 = arith.constant 0 : i32
    return %c0_i32, %c0_i32_0 : i32, i32
  }
  func.func @transform_4(%arg0: i32) -> (i32, i32) {
    %c0_i32 = arith.constant 0 : i32
    %c0_i32_0 = arith.constant 0 : i32
    %c0_i32_1 = arith.constant 0 : i32
    return %c0_i32, %c0_i32_0 : i32, i32
  }
  func.func @transform_5(%arg0: i32) -> (i32, i32, i32) {
    %c0_i32 = arith.constant 0 : i32
    %c0_i32_0 = arith.constant 0 : i32
    %c0_i32_1 = arith.constant 0 : i32
    %c0_i32_2 = arith.constant 0 : i32
    return %c0_i32, %c0_i32_0, %c0_i32_1 : i32, i32, i32
  }
  func.func @transform_6(%arg0: i32) -> (i32, i32) {
    %c0_i32 = arith.constant 0 : i32
    %c0_i32_0 = arith.constant 0 : i32
    %c0_i32_1 = arith.constant 0 : i32
    return %c0_i32, %c0_i32_0 : i32, i32
  }
  func.func @transform_7(%arg0: i32) -> (i32, i32) {
    %c0_i32 = arith.constant 0 : i32
    %c0_i32_0 = arith.constant 0 : i32
    %c0_i32_1 = arith.constant 0 : i32
    return %c0_i32, %c0_i32_0 : i32, i32
  }
  func.func @transform_8(%arg0: i32) -> (i32, i32, i32) {
    %c0_i32 = arith.constant 0 : i32
    %c0_i32_0 = arith.constant 0 : i32
    %c0_i32_1 = arith.constant 0 : i32
    %c0_i32_2 = arith.constant 0 : i32
    return %c0_i32, %c0_i32_0, %c0_i32_1 : i32, i32, i32
  }
  func.func @transform_9(%arg0: i32) -> (i32, i32) {
    %c0_i32 = arith.constant 0 : i32
    %c0_i32_0 = arith.constant 0 : i32
    %c0_i32_1 = arith.constant 0 : i32
    return %c0_i32, %c0_i32_0 : i32, i32
  }
  func.func @transform_10(%arg0: i32) -> (i32, i32) {
    %c0_i32 = arith.constant 0 : i32
    %c0_i32_0 = arith.constant 0 : i32
    %c0_i32_1 = arith.constant 0 : i32
    return %c0_i32, %c0_i32_0 : i32, i32
  }
  func.func @transform_11(%arg0: i32) -> (i32, i32, i32) {
    %c0_i32 = arith.constant 0 : i32
    %c0_i32_0 = arith.constant 0 : i32
    %c0_i32_1 = arith.constant 0 : i32
    %c0_i32_2 = arith.constant 0 : i32
    return %c0_i32, %c0_i32_0, %c0_i32_1 : i32, i32, i32
  }
  func.func @transform_12(%arg0: i32) -> (i32, i32) {
    %c0_i32 = arith.constant 0 : i32
    %c0_i32_0 = arith.constant 0 : i32
    %c0_i32_1 = arith.constant 0 : i32
    return %c0_i32, %c0_i32_0 : i32, i32
  }
  func.func @transform_13(%arg0: i32) -> (i32, i32) {
    %c0_i32 = arith.constant 0 : i32
    %c0_i32_0 = arith.constant 0 : i32
    %c0_i32_1 = arith.constant 0 : i32
    return %c0_i32, %c0_i32_0 : i32, i32
  }
  func.func @transform_14(%arg0: i32) -> (i32, i32, i32) {
    %c0_i32 = arith.constant 0 : i32
    %c0_i32_0 = arith.constant 0 : i32
    %c0_i32_1 = arith.constant 0 : i32
    %c0_i32_2 = arith.constant 0 : i32
    return %c0_i32, %c0_i32_0, %c0_i32_1 : i32, i32, i32
  }
  func.func @transform_15(%arg0: i32) -> (i32, i32) {
    %c0_i32 = arith.constant 0 : i32
    %c0_i32_0 = arith.constant 0 : i32
    %c0_i32_1 = arith.constant 0 : i32
    return %c0_i32, %c0_i32_0 : i32, i32
  }
  func.func @transform_16(%arg0: i32) -> (i32, i32) {
    %c0_i32 = arith.constant 0 : i32
    %c0_i32_0 = arith.constant 0 : i32
    return %arg0, %c0_i32 : i32, i32
  }
}

</mosaic_0001>

<llo_original>
// kernel: forward.1
$region0: #{forward.1}
  #allocation0 [shape = 'u32[]', space=smem, size = 0x4, offset = 0x4, fixed_abs, tag = 'smem constant byte address 0x4 - core index']
  #allocation1 [shape = 'u32[144,128]{1,0:T(1,128)}', space=vmem, size = 0x12000, scoped, tag = 'internal scratch']
  %s0 = inlined_call_operand.vmem [shape: bf16[256,128], index: 0, kind: input, shape index: {}]
  %s1 = inlined_call_operand.hbm [shape: bf16[576,256], index: 1, kind: input, shape index: {}]
  %s2 = inlined_call_operand.hbm [shape: bf16[9,128,256], index: 2, kind: input, shape index: {}]
  %s3 = inlined_call_operand.vmem [shape: f32[1,256], index: 3, kind: input, shape index: {}, may-alias: {3,6,9,12,15}]
  %s4 = inlined_call_operand.hbm [shape: bf16[144,64], index: 4, kind: input, shape index: {}]
  %s5 = inlined_call_operand.hbm [shape: bf16[9,256,256], index: 5, kind: input, shape index: {}]
  %s6 = inlined_call_operand.vmem [shape: f32[1,256], index: 6, kind: input, shape index: {}, may-alias: {3,6,9,12,15}]
  %s7 = inlined_call_operand.hbm [shape: bf16[72,16], index: 7, kind: input, shape index: {}]
  %s8 = inlined_call_operand.hbm [shape: bf16[9,256,256], index: 8, kind: input, shape index: {}]
  %s9 = inlined_call_operand.vmem [shape: f32[1,256], index: 9, kind: input, shape index: {}, may-alias: {3,6,9,12,15}]
  %s10 = inlined_call_operand.hbm [shape: bf16[72,8], index: 10, kind: input, shape index: {}]
  %s11 = inlined_call_operand.hbm [shape: bf16[9,256,256], index: 11, kind: input, shape index: {}]
  %s12 = inlined_call_operand.vmem [shape: f32[1,256], index: 12, kind: input, shape index: {}, may-alias: {3,6,9,12,15}]
  %s13 = inlined_call_operand.hbm [shape: bf16[72,8], index: 13, kind: input, shape index: {}]
  %s14 = inlined_call_operand.hbm [shape: bf16[9,256,256], index: 14, kind: input, shape index: {}]
  %s15 = inlined_call_operand.vmem [shape: f32[1,256], index: 15, kind: input, shape index: {}, may-alias: {3,6,9,12,15}]
  %s16 = inlined_call_operand.vmem [shape: f32[8,256], index: 16, kind: output, shape index: {}]
  %s17 = sld [smem:[#allocation0]]
  $region114: #{forward.1} parent=0
    _
  %s19 = ssub.s32 1, %s17
  %s20 = scalar_select 0, %s19, %s17
  $region1: #{forward.1} parent=0
    #allocation2 [shape = 'u8[294912]{0}', space=vmem, size = 0x48000, scoped, tag = 'input window, operand 1, single buffered']
    #allocation3 [shape = 's32[1]{0}', space=sflag, size = 0x4, scoped, tag = 'scoped memory for forward.1']
    #allocation4 [shape = 'u8[589824]{0}', space=vmem, size = 0x90000, scoped, tag = 'input window, operand 2, single buffered']
    #allocation5 [shape = 's32[1]{0}', space=sflag, size = 0x4, scoped, tag = 'scoped memory for forward.1']
    #allocation6 [shape = 'u8[36864]{0}', space=vmem, size = 0x9000, scoped, tag = 'input window, operand 4, single buffered']
    #allocation7 [shape = 'u8[1179648]{0}', space=vmem, size = 0x120000, scoped, tag = 'input window, operand 5, single buffered']
    #allocation8 [shape = 's32[1]{0}', space=sflag, size = 0x4, scoped, tag = 'scoped memory for forward.1']
    #allocation9 [shape = 'u8[18432]{0}', space=vmem, size = 0x4800, scoped, tag = 'input window, operand 7, single buffered']
    #allocation10 [shape = 'u8[1179648]{0}', space=vmem, size = 0x120000, scoped, tag = 'input window, operand 8, single buffered']
    #allocation11 [shape = 's32[1]{0}', space=sflag, size = 0x4, scoped, tag = 'scoped memory for forward.1']
    #allocation12 [shape = 'u8[18432]{0}', space=vmem, size = 0x4800, scoped, tag = 'input window, operand 10, single buffered']
    #allocation13 [shape = 'u8[1179648]{0}', space=vmem, size = 0x120000, scoped, tag = 'input window, operand 11, single buffered']
    #allocation14 [shape = 's32[1]{0}', space=sflag, size = 0x4, scoped, tag = 'scoped memory for forward.1']
    #allocation15 [shape = 'u8[18432]{0}', space=vmem, size = 0x4800, scoped, tag = 'input window, operand 13, single buffered']
    #allocation16 [shape = 'u8[1179648]{0}', space=vmem, size = 0x120000, scoped, tag = 'input window, operand 14, single buffered']
    #allocation17 [shape = 's32[1]{0}', space=sflag, size = 0x4, scoped, tag = 'scoped memory for forward.1']
    %21 = vsyncpa [#allocation3], 0
    %22 = vsyncpa [#allocation5], 0
    %23 = vsyncpa [#allocation8], 0
    %24 = vsyncpa [#allocation11], 0
    %25 = vsyncpa [#allocation14], 0
    %26 = vsyncpa [#allocation17], 0
    // Predicated region
    $region2: #{forward.1} parent=1 // pred_check
      _
    $region3: #{forward.1} parent=1 // pred_check_branch
      %28 = sbr.rel (0) target = $region5
    $region4: #{forward.1} parent=1 // pred_region
      _
    $region5: #{forward.1} parent=1 // pred_fallthru
      _
    // Predicated region
    $region6: #{forward.1} parent=1 // pred_check
      _
    $region7: #{forward.1} parent=1 // pred_check_branch
      %30 = sbr.rel (0) target = $region9
    $region8: #{forward.1} parent=1 // pred_region
      %s32 = ssub.s32 9216, 9216
      %33 = vsyncadd [#allocation3], %s32
      %s34 = sshll.u32 [#allocation2], 4
      %s35 = int_to_ptr.vmem [resolvable:$true] %s34
      %40 = dma.hbm_to_vmem [thread:$0]  %s1, 9216, %s35, [#allocation3], 128, 128, 8
    $region9: #{forward.1} parent=1 // pred_fallthru
      _
    // Predicated region
    $region10: #{forward.1} parent=1 // pred_check
      _
    $region11: #{forward.1} parent=1 // pred_check_branch
      %42 = sbr.rel (0) target = $region13
    $region12: #{forward.1} parent=1 // pred_region
      %s44 = ssub.s32 18432, 18432
      %45 = vsyncadd [#allocation5], %s44
      %s46 = sshll.u32 [#allocation4], 4
      %s47 = int_to_ptr.vmem [resolvable:$true] %s46
      %52 = dma.hbm_to_vmem [thread:$0]  %s2, 18432, %s47, [#allocation5], 128, 128, 8
    $region13: #{forward.1} parent=1 // pred_fallthru
      _
    // Predicated region
    $region14: #{forward.1} parent=1 // pred_check
      _
    $region15: #{forward.1} parent=1 // pred_check_branch
      %54 = sbr.rel (0) target = $region17
    $region16: #{forward.1} parent=1 // pred_region
      _
    $region17: #{forward.1} parent=1 // pred_fallthru
      _
    // Predicated region
    $region18: #{forward.1} parent=1 // pred_check
      _
    $region19: #{forward.1} parent=1 // pred_check_branch
      %56 = sbr.rel (0) target = $region21
    $region20: #{forward.1} parent=1 // pred_region
      %s58 = ssub.s32 1152, 1152
      %59 = vsyncadd [#allocation5], %s58
      %s60 = sshll.u32 [#allocation6], 4
      %s61 = int_to_ptr.vmem [resolvable:$true] %s60
      %66 = dma.hbm_to_vmem [thread:$0]  %s4, 1152, %s61, [#allocation5], 64, 64, 4
    $region21: #{forward.1} parent=1 // pred_fallthru
      _
    // Predicated region
    $region22: #{forward.1} parent=1 // pred_check
      _
    $region23: #{forward.1} parent=1 // pred_check_branch
      %68 = sbr.rel (0) target = $region25
    $region24: #{forward.1} parent=1 // pred_region
      %s70 = ssub.s32 36864, 36864
      %71 = vsyncadd [#allocation8], %s70
      %s72 = sshll.u32 [#allocation7], 4
      %s73 = int_to_ptr.vmem [resolvable:$true] %s72
      %78 = dma.hbm_to_vmem [thread:$0]  %s5, 36864, %s73, [#allocation8], 128, 128, 8
    $region25: #{forward.1} parent=1 // pred_fallthru
      _
    // Predicated region
    $region26: #{forward.1} parent=1 // pred_check
      _
    $region27: #{forward.1} parent=1 // pred_check_branch
      %80 = sbr.rel (0) target = $region29
    $region28: #{forward.1} parent=1 // pred_region
      _
    $region29: #{forward.1} parent=1 // pred_fallthru
      _
    // Predicated region
    $region30: #{forward.1} parent=1 // pred_check
      _
    $region31: #{forward.1} parent=1 // pred_check_branch
      %82 = sbr.rel (0) target = $region33
    $region32: #{forward.1} parent=1 // pred_region
      %s84 = ssub.s32 576, 576
      %85 = vsyncadd [#allocation8], %s84
      %s86 = sshll.u32 [#allocation9], 4
      %s87 = int_to_ptr.vmem [resolvable:$true] %s86
      %92 = dma.hbm_to_vmem [thread:$0]  %s7, 576, %s87, [#allocation8], 64, 64, 4
    $region33: #{forward.1} parent=1 // pred_fallthru
      _
    // Predicated region
    $region34: #{forward.1} parent=1 // pred_check
      _
    $region35: #{forward.1} parent=1 // pred_check_branch
      %94 = sbr.rel (0) target = $region37
    $region36: #{forward.1} parent=1 // pred_region
      %s96 = ssub.s32 36864, 36864
      %97 = vsyncadd [#allocation11], %s96
      %s98 = sshll.u32 [#allocation10], 4
      %s99 = int_to_ptr.vmem [resolvable:$true] %s98
      %104 = dma.hbm_to_vmem [thread:$0]  %s8, 36864, %s99, [#allocation11], 128, 128, 8
    $region37: #{forward.1} parent=1 // pred_fallthru
      _
    // Predicated region
    $region38: #{forward.1} parent=1 // pred_check
      _
    $region39: #{forward.1} parent=1 // pred_check_branch
      %106 = sbr.rel (0) target = $region41
    $region40: #{forward.1} parent=1 // pred_region
      _
    $region41: #{forward.1} parent=1 // pred_fallthru
      _
    // Predicated region
    $region42: #{forward.1} parent=1 // pred_check
      _
    $region43: #{forward.1} parent=1 // pred_check_branch
      %108 = sbr.rel (0) target = $region45
    $region44: #{forward.1} parent=1 // pred_region
      %s110 = ssub.s32 576, 576
      %111 = vsyncadd [#allocation11], %s110
      %s112 = sshll.u32 [#allocation12], 4
      %s113 = int_to_ptr.vmem [resolvable:$true] %s112
      %118 = dma.hbm_to_vmem [thread:$0]  %s10, 576, %s113, [#allocation11], 64, 64, 4
    $region45: #{forward.1} parent=1 // pred_fallthru
      _
    // Predicated region
    $region46: #{forward.1} parent=1 // pred_check
      _
    $region47: #{forward.1} parent=1 // pred_check_branch
      %120 = sbr.rel (0) target = $region49
    $region48: #{forward.1} parent=1 // pred_region
      %s122 = ssub.s32 36864, 36864
      %123 = vsyncadd [#allocation14], %s122
      %s124 = sshll.u32 [#allocation13], 4
      %s125 = int_to_ptr.vmem [resolvable:$true] %s124
      %130 = dma.hbm_to_vmem [thread:$0]  %s11, 36864, %s125, [#allocation14], 128, 128, 8
    $region49: #{forward.1} parent=1 // pred_fallthru
      _
    // Predicated region
    $region50: #{forward.1} parent=1 // pred_check
      _
    $region51: #{forward.1} parent=1 // pred_check_branch
      %132 = sbr.rel (0) target = $region53
    $region52: #{forward.1} parent=1 // pred_region
      _
    $region53: #{forward.1} parent=1 // pred_fallthru
      _
    // Predicated region
    $region54: #{forward.1} parent=1 // pred_check
      _
    $region55: #{forward.1} parent=1 // pred_check_branch
      %134 = sbr.rel (0) target = $region57
    $region56: #{forward.1} parent=1 // pred_region
      %s136 = ssub.s32 576, 576
      %137 = vsyncadd [#allocation14], %s136
      %s138 = sshll.u32 [#allocation15], 4
      %s139 = int_to_ptr.vmem [resolvable:$true] %s138
      %144 = dma.hbm_to_vmem [thread:$0]  %s13, 576, %s139, [#allocation14], 64, 64, 4
    $region57: #{forward.1} parent=1 // pred_fallthru
      _
    // Predicated region
    $region58: #{forward.1} parent=1 // pred_check
      _
    $region59: #{forward.1} parent=1 // pred_check_branch
      %146 = sbr.rel (0) target = $region61
    $region60: #{forward.1} parent=1 // pred_region
      %s148 = ssub.s32 36864, 36864
      %149 = vsyncadd [#allocation17], %s148
      %s150 = sshll.u32 [#allocation16], 4
      %s151 = int_to_ptr.vmem [resolvable:$true] %s150
      %156 = dma.hbm_to_vmem [thread:$0]  %s14, 36864, %s151, [#allocation17], 128, 128, 8
    $region61: #{forward.1} parent=1 // pred_fallthru
      _
    // Predicated region
    $region62: #{forward.1} parent=1 // pred_check
      _
    $region63: #{forward.1} parent=1 // pred_check_branch
      %158 = sbr.rel (0) target = $region65
    $region64: #{forward.1} parent=1 // pred_region
      _
    $region65: #{forward.1} parent=1 // pred_fallthru
      _
    // Predicated region
    $region66: #{forward.1} parent=1 // pred_check
      _
    $region67: #{forward.1} parent=1 // pred_check_branch
      %160 = sbr.rel (0) target = $region69
    $region68: #{forward.1} parent=1 // pred_region
      %161 = dma.done [#allocation3], 9216
    $region69: #{forward.1} parent=1 // pred_fallthru
      _
    // Predicated region
    $region70: #{forward.1} parent=1 // pred_check
      _
    $region71: #{forward.1} parent=1 // pred_check_branch
      %163 = sbr.rel (0) target = $region73
    $region72: #{forward.1} parent=1 // pred_region
      %164 = dma.done [#allocation5], 18432
    $region73: #{forward.1} parent=1 // pred_fallthru
      _
    // Predicated region
    $region74: #{forward.1} parent=1 // pred_check
      _
    $region75: #{forward.1} parent=1 // pred_check_branch
      %166 = sbr.rel (0) target = $region77
    $region76: #{forward.1} parent=1 // pred_region
      %167 = dma.done [#allocation5], 1152
    $region77: #{forward.1} parent=1 // pred_fallthru
      _
    // Predicated region
    $region78: #{forward.1} parent=1 // pred_check
      _
    $region79: #{forward.1} parent=1 // pred_check_branch
      %169 = sbr.rel (0) target = $region81
    $region80: #{forward.1} parent=1 // pred_region
      %170 = dma.done [#allocation8], 36864
    $region81: #{forward.1} parent=1 // pred_fallthru
      _
    // Predicated region
    $region82: #{forward.1} parent=1 // pred_check
      _
    $region83: #{forward.1} parent=1 // pred_check_branch
      %172 = sbr.rel (0) target = $region85
    $region84: #{forward.1} parent=1 // pred_region
      %173 = dma.done [#allocation8], 576
    $region85: #{forward.1} parent=1 // pred_fallthru
      _
    // Predicated region
    $region86: #{forward.1} parent=1 // pred_check
      _
    $region87: #{forward.1} parent=1 // pred_check_branch
      %175 = sbr.rel (0) target = $region89
    $region88: #{forward.1} parent=1 // pred_region
      %176 = dma.done [#allocation11], 36864
    $region89: #{forward.1} parent=1 // pred_fallthru
      _
    // Predicated region
    $region90: #{forward.1} parent=1 // pred_check
      _
    $region91: #{forward.1} parent=1 // pred_check_branch
      %178 = sbr.rel (0) target = $region93
    $region92: #{forward.1} parent=1 // pred_region
      %179 = dma.done [#allocation11], 576
    $region93: #{forward.1} parent=1 // pred_fallthru
      _
    // Predicated region
    $region94: #{forward.1} parent=1 // pred_check
      _
    $region95: #{forward.1} parent=1 // pred_check_branch
      %181 = sbr.rel (0) target = $region97
    $region96: #{forward.1} parent=1 // pred_region
      %182 = dma.done [#allocation14], 36864
    $region97: #{forward.1} parent=1 // pred_fallthru
      _
    // Predicated region
    $region98: #{forward.1} parent=1 // pred_check
      _
    $region99: #{forward.1} parent=1 // pred_check_branch
      %184 = sbr.rel (0) target = $region101
    $region100: #{forward.1} parent=1 // pred_region
      %185 = dma.done [#allocation14], 576
    $region101: #{forward.1} parent=1 // pred_fallthru
      _
    // Predicated region
    $region102: #{forward.1} parent=1 // pred_check
      _
    $region103: #{forward.1} parent=1 // pred_check_branch
      %187 = sbr.rel (0) target = $region105
    $region104: #{forward.1} parent=1 // pred_region
      %188 = dma.done [#allocation17], 36864
    $region105: #{forward.1} parent=1 // pred_fallthru
      _
    %v190 = vld [vmem:[%s0] sm:$0xf]
    %v191 = vld [vmem:[%s0 + $0x4] sm:$0xf]
    %v192 = vld [vmem:[%s0 + $0x8] sm:$0xf]
    %v193 = vld [vmem:[%s0 + $0xc] sm:$0xf]
    %v194 = vld [vmem:[%s0 + $0x10] sm:$0xf]
    %v195 = vld [vmem:[%s0 + $0x14] sm:$0xf]
    %v196 = vld [vmem:[%s0 + $0x18] sm:$0xf]
    %v197 = vld [vmem:[%s0 + $0x1c] sm:$0xf]
    %v198 = vld [vmem:[%s0 + $0x20] sm:$0xf]
    %v199 = vld [vmem:[%s0 + $0x24] sm:$0xf]
    %v200 = vld [vmem:[%s0 + $0x28] sm:$0xf]
    %v201 = vld [vmem:[%s0 + $0x2c] sm:$0xf]
    %v202 = vld [vmem:[%s0 + $0x30] sm:$0xf]
    %v203 = vld [vmem:[%s0 + $0x34] sm:$0xf]
    %v204 = vld [vmem:[%s0 + $0x38] sm:$0xf]
    %v205 = vld [vmem:[%s0 + $0x3c] sm:$0xf]
    %v206 = vld [vmem:[%s0 + $0x40] sm:$0xf]
    %v207 = vld [vmem:[%s0 + $0x44] sm:$0xf]
    %v208 = vld [vmem:[%s0 + $0x48] sm:$0xf]
    %v209 = vld [vmem:[%s0 + $0x4c] sm:$0xf]
    %v210 = vld [vmem:[%s0 + $0x50] sm:$0xf]
    %v211 = vld [vmem:[%s0 + $0x54] sm:$0xf]
    %v212 = vld [vmem:[%s0 + $0x58] sm:$0xf]
    %v213 = vld [vmem:[%s0 + $0x5c] sm:$0xf]
    %v214 = vld [vmem:[%s0 + $0x60] sm:$0xf]
    %v215 = vld [vmem:[%s0 + $0x64] sm:$0xf]
    %v216 = vld [vmem:[%s0 + $0x68] sm:$0xf]
    %v217 = vld [vmem:[%s0 + $0x6c] sm:$0xf]
    %v218 = vld [vmem:[%s0 + $0x70] sm:$0xf]
    %v219 = vld [vmem:[%s0 + $0x74] sm:$0xf]
    %v220 = vld [vmem:[%s0 + $0x78] sm:$0xf]
    %v221 = vld [vmem:[%s0 + $0x7c] sm:$0xf]
    %v222 = vld [vmem:[#allocation2] sm:$0xff]
    %v223 = vld [vmem:[#allocation2 + $0x8] sm:$0xff]
    %v224 = vld [vmem:[#allocation2 + $0x10] sm:$0xff]
    %v225 = vld [vmem:[#allocation2 + $0x18] sm:$0xff]
    %v226 = vld [vmem:[#allocation2 + $0x20] sm:$0xff]
    %v227 = vld [vmem:[#allocation2 + $0x28] sm:$0xff]
    %v228 = vld [vmem:[#allocation2 + $0x30] sm:$0xff]
    %v229 = vld [vmem:[#allocation2 + $0x38] sm:$0xff]
    %v230 = vld [vmem:[#allocation2 + $0x40] sm:$0xff]
    %v231 = vld [vmem:[#allocation2 + $0x48] sm:$0xff]
    %v232 = vld [vmem:[#allocation2 + $0x50] sm:$0xff]
    %v233 = vld [vmem:[#allocation2 + $0x58] sm:$0xff]
    %v234 = vld [vmem:[#allocation2 + $0x60] sm:$0xff]
    %v235 = vld [vmem:[#allocation2 + $0x68] sm:$0xff]
    %v236 = vld [vmem:[#allocation2 + $0x70] sm:$0xff]
    %v237 = vld [vmem:[#allocation2 + $0x78] sm:$0xff]
    %v238 = vld [vmem:[#allocation2 + $0x80] sm:$0xff]
    %v239 = vld [vmem:[#allocation2 + $0x88] sm:$0xff]
    %v240 = vld [vmem:[#allocation2 + $0x90] sm:$0xff]
    %v241 = vld [vmem:[#allocation2 + $0x98] sm:$0xff]
    %v242 = vld [vmem:[#allocation2 + $0xa0] sm:$0xff]
    %v243 = vld [vmem:[#allocation2 + $0xa8] sm:$0xff]
    %v244 = vld [vmem:[#allocation2 + $0xb0] sm:$0xff]
    %v245 = vld [vmem:[#allocation2 + $0xb8] sm:$0xff]
    %v246 = vld [vmem:[#allocation2 + $0xc0] sm:$0xff]
    %v247 = vld [vmem:[#allocation2 + $0xc8] sm:$0xff]
    %v248 = vld [vmem:[#allocation2 + $0xd0] sm:$0xff]
    %v249 = vld [vmem:[#allocation2 + $0xd8] sm:$0xff]
    %v250 = vld [vmem:[#allocation2 + $0xe0] sm:$0xff]
    %v251 = vld [vmem:[#allocation2 + $0xe8] sm:$0xff]
    %v252 = vld [vmem:[#allocation2 + $0xf0] sm:$0xff]
    %v253 = vld [vmem:[#allocation2 + $0xf8] sm:$0xff]
    %v254 = vld [vmem:[#allocation2 + $0x100] sm:$0xff]
    %v255 = vld [vmem:[#allocation2 + $0x108] sm:$0xff]
    %v256 = vld [vmem:[#allocation2 + $0x110] sm:$0xff]
    %v257 = vld [vmem:[#allocation2 + $0x118] sm:$0xff]
    %v258 = vld [vmem:[#allocation2 + $0x120] sm:$0xff]
    %v259 = vld [vmem:[#allocation2 + $0x128] sm:$0xff]
    %v260 = vld [vmem:[#allocation2 + $0x130] sm:$0xff]
    %v261 = vld [vmem:[#allocation2 + $0x138] sm:$0xff]
    %v262 = vld [vmem:[#allocation2 + $0x140] sm:$0xff]
    %v263 = vld [vmem:[#allocation2 + $0x148] sm:$0xff]
    %v264 = vld [vmem:[#allocation2 + $0x150] sm:$0xff]
    %v265 = vld [vmem:[#allocation2 + $0x158] sm:$0xff]
    %v266 = vld [vmem:[#allocation2 + $0x160] sm:$0xff]
    %v267 = vld [vmem:[#allocation2 + $0x168] sm:$0xff]
    %v268 = vld [vmem:[#allocation2 + $0x170] sm:$0xff]
    %v269 = vld [vmem:[#allocation2 + $0x178] sm:$0xff]
    %v270 = vld [vmem:[#allocation2 + $0x180] sm:$0xff]
    %v271 = vld [vmem:[#allocation2 + $0x188] sm:$0xff]
    %v272 = vld [vmem:[#allocation2 + $0x190] sm:$0xff]
    %v273 = vld [vmem:[#allocation2 + $0x198] sm:$0xff]
    %v274 = vld [vmem:[#allocation2 + $0x1a0] sm:$0xff]
    %v275 = vld [vmem:[#allocation2 + $0x1a8] sm:$0xff]
    %v276 = vld [vmem:[#allocation2 + $0x1b0] sm:$0xff]
    %v277 = vld [vmem:[#allocation2 + $0x1b8] sm:$0xff]
    %v278 = vld [vmem:[#allocation2 + $0x1c0] sm:$0xff]
    %v279 = vld [vmem:[#allocation2 + $0x1c8] sm:$0xff]
    %v280 = vld [vmem:[#allocation2 + $0x1d0] sm:$0xff]
    %v281 = vld [vmem:[#allocation2 + $0x1d8] sm:$0xff]
    %v282 = vld [vmem:[#allocation2 + $0x1e0] sm:$0xff]
    %v283 = vld [vmem:[#allocation2 + $0x1e8] sm:$0xff]
    %v284 = vld [vmem:[#allocation2 + $0x1f0] sm:$0xff]
    %v285 = vld [vmem:[#allocation2 + $0x1f8] sm:$0xff]
    %v286 = vld [vmem:[#allocation2 + $0x200] sm:$0xff]
    %v287 = vld [vmem:[#allocation2 + $0x208] sm:$0xff]
    %v288 = vld [vmem:[#allocation2 + $0x210] sm:$0xff]
    %v289 = vld [vmem:[#allocation2 + $0x218] sm:$0xff]
    %v290 = vld [vmem:[#allocation2 + $0x220] sm:$0xff]
    %v291 = vld [vmem:[#allocation2 + $0x228] sm:$0xff]
    %v292 = vld [vmem:[#allocation2 + $0x230] sm:$0xff]
    %v293 = vld [vmem:[#allocation2 + $0x238] sm:$0xff]
    %v366 = vunpack.c.l.b16 %v222
    %v367 = vunpack.c.h.b16 %v222
    %v368 = vunpack.c.l.b16 %v223
    %v369 = vunpack.c.h.b16 %v223
    %v370 = vunpack.c.l.b16 %v224
    %v371 = vunpack.c.h.b16 %v224
    %v372 = vunpack.c.l.b16 %v225
    %v373 = vunpack.c.h.b16 %v225
    %v374 = vunpack.c.l.b16 %v226
    %v375 = vunpack.c.h.b16 %v226
    %v376 = vunpack.c.l.b16 %v227
    %v377 = vunpack.c.h.b16 %v227
    %v378 = vunpack.c.l.b16 %v228
    %v379 = vunpack.c.h.b16 %v228
    %v380 = vunpack.c.l.b16 %v229
    %v381 = vunpack.c.h.b16 %v229
    %v382 = vunpack.c.l.b16 %v230
    %v383 = vunpack.c.h.b16 %v230
    %v384 = vunpack.c.l.b16 %v231
    %v385 = vunpack.c.h.b16 %v231
    %v386 = vunpack.c.l.b16 %v232
    %v387 = vunpack.c.h.b16 %v232
    %v388 = vunpack.c.l.b16 %v233
    %v389 = vunpack.c.h.b16 %v233
    %v390 = vunpack.c.l.b16 %v234
    %v391 = vunpack.c.h.b16 %v234
    %v392 = vunpack.c.l.b16 %v235
    %v393 = vunpack.c.h.b16 %v235
    %v394 = vunpack.c.l.b16 %v236
    %v395 = vunpack.c.h.b16 %v236
    %v396 = vunpack.c.l.b16 %v237
    %v397 = vunpack.c.h.b16 %v237
    %v398 = vunpack.c.l.b16 %v238
    %v399 = vunpack.c.h.b16 %v238
    %v400 = vunpack.c.l.b16 %v239
    %v401 = vunpack.c.h.b16 %v239
    %v402 = vunpack.c.l.b16 %v240
    %v403 = vunpack.c.h.b16 %v240
    %v404 = vunpack.c.l.b16 %v241
    %v405 = vunpack.c.h.b16 %v241
    %v406 = vunpack.c.l.b16 %v242
    %v407 = vunpack.c.h.b16 %v242
    %v408 = vunpack.c.l.b16 %v243
    %v409 = vunpack.c.h.b16 %v243
    %v410 = vunpack.c.l.b16 %v244
    %v411 = vunpack.c.h.b16 %v244
    %v412 = vunpack.c.l.b16 %v245
    %v413 = vunpack.c.h.b16 %v245
    %v414 = vunpack.c.l.b16 %v246
    %v415 = vunpack.c.h.b16 %v246
    %v416 = vunpack.c.l.b16 %v247
    %v417 = vunpack.c.h.b16 %v247
    %v418 = vunpack.c.l.b16 %v248
    %v419 = vunpack.c.h.b16 %v248
    %v420 = vunpack.c.l.b16 %v249
    %v421 = vunpack.c.h.b16 %v249
    %v422 = vunpack.c.l.b16 %v250
    %v423 = vunpack.c.h.b16 %v250
    %v424 = vunpack.c.l.b16 %v251
    %v425 = vunpack.c.h.b16 %v251
    %v426 = vunpack.c.l.b16 %v252
    %v427 = vunpack.c.h.b16 %v252
    %v428 = vunpack.c.l.b16 %v253
    %v429 = vunpack.c.h.b16 %v253
    %v430 = vunpack.c.l.b16 %v254
    %v431 = vunpack.c.h.b16 %v254
    %v432 = vunpack.c.l.b16 %v255
    %v433 = vunpack.c.h.b16 %v255
    %v434 = vunpack.c.l.b16 %v256
    %v435 = vunpack.c.h.b16 %v256
    %v436 = vunpack.c.l.b16 %v257
    %v437 = vunpack.c.h.b16 %v257
    %v438 = vunpack.c.l.b16 %v258
    %v439 = vunpack.c.h.b16 %v258
    %v440 = vunpack.c.l.b16 %v259
    %v441 = vunpack.c.h.b16 %v259
    %v442 = vunpack.c.l.b16 %v260
    %v443 = vunpack.c.h.b16 %v260
    %v444 = vunpack.c.l.b16 %v261
    %v445 = vunpack.c.h.b16 %v261
    %v446 = vunpack.c.l.b16 %v262
    %v447 = vunpack.c.h.b16 %v262
    %v448 = vunpack.c.l.b16 %v263
    %v449 = vunpack.c.h.b16 %v263
    %v450 = vunpack.c.l.b16 %v264
    %v451 = vunpack.c.h.b16 %v264
    %v452 = vunpack.c.l.b16 %v265
    %v453 = vunpack.c.h.b16 %v265
    %v454 = vunpack.c.l.b16 %v266
    %v455 = vunpack.c.h.b16 %v266
    %v456 = vunpack.c.l.b16 %v267
    %v457 = vunpack.c.h.b16 %v267
    %v458 = vunpack.c.l.b16 %v268
    %v459 = vunpack.c.h.b16 %v268
    %v460 = vunpack.c.l.b16 %v269
    %v461 = vunpack.c.h.b16 %v269
    %v462 = vunpack.c.l.b16 %v270
    %v463 = vunpack.c.h.b16 %v270
    %v464 = vunpack.c.l.b16 %v271
    %v465 = vunpack.c.h.b16 %v271
    %v466 = vunpack.c.l.b16 %v272
    %v467 = vunpack.c.h.b16 %v272
    %v468 = vunpack.c.l.b16 %v273
    %v469 = vunpack.c.h.b16 %v273
    %v470 = vunpack.c.l.b16 %v274
    %v471 = vunpack.c.h.b16 %v274
    %v472 = vunpack.c.l.b16 %v275
    %v473 = vunpack.c.h.b16 %v275
    %v474 = vunpack.c.l.b16 %v276
    %v475 = vunpack.c.h.b16 %v276
    %v476 = vunpack.c.l.b16 %v277
    %v477 = vunpack.c.h.b16 %v277
    %v478 = vunpack.c.l.b16 %v278
    %v479 = vunpack.c.h.b16 %v278
    %v480 = vunpack.c.l.b16 %v279
    %v481 = vunpack.c.h.b16 %v279
    %v482 = vunpack.c.l.b16 %v280
    %v483 = vunpack.c.h.b16 %v280
    %v484 = vunpack.c.l.b16 %v281
    %v485 = vunpack.c.h.b16 %v281
    %v486 = vunpack.c.l.b16 %v282
    %v487 = vunpack.c.h.b16 %v282
    %v488 = vunpack.c.l.b16 %v283
    %v489 = vunpack.c.h.b16 %v283
    %v490 = vunpack.c.l.b16 %v284
    %v491 = vunpack.c.h.b16 %v284
    %v492 = vunpack.c.l.b16 %v285
    %v493 = vunpack.c.h.b16 %v285
    %v494 = vunpack.c.l.b16 %v286
    %v495 = vunpack.c.h.b16 %v286
    %v496 = vunpack.c.l.b16 %v287
    %v497 = vunpack.c.h.b16 %v287
    %v498 = vunpack.c.l.b16 %v288
    %v499 = vunpack.c.h.b16 %v288
    %v500 = vunpack.c.l.b16 %v289
    %v501 = vunpack.c.h.b16 %v289
    %v502 = vunpack.c.l.b16 %v290
    %v503 = vunpack.c.h.b16 %v290
    %v504 = vunpack.c.l.b16 %v291
    %v505 = vunpack.c.h.b16 %v291
    %v506 = vunpack.c.l.b16 %v292
    %v507 = vunpack.c.h.b16 %v292
    %v508 = vunpack.c.l.b16 %v293
    %v509 = vunpack.c.h.b16 %v293
    %v510 = vpack.c.b16 %v368, %v366
    %v511 = vpack.c.b16 %v369, %v367
    %v512 = vpack.c.b16 %v372, %v370
    %v513 = vpack.c.b16 %v373, %v371
    %v514 = vpack.c.b16 %v376, %v374
    %v515 = vpack.c.b16 %v377, %v375
    %v516 = vpack.c.b16 %v380, %v378
    %v517 = vpack.c.b16 %v381, %v379
    %v518 = vpack.c.b16 %v384, %v382
    %v519 = vpack.c.b16 %v385, %v383
    %v520 = vpack.c.b16 %v388, %v386
    %v521 = vpack.c.b16 %v389, %v387
    %v522 = vpack.c.b16 %v392, %v390
    %v523 = vpack.c.b16 %v393, %v391
    %v524 = vpack.c.b16 %v396, %v394
    %v525 = vpack.c.b16 %v397, %v395
    %v526 = vpack.c.b16 %v400, %v398
    %v527 = vpack.c.b16 %v401, %v399
    %v528 = vpack.c.b16 %v404, %v402
    %v529 = vpack.c.b16 %v405, %v403
    %v530 = vpack.c.b16 %v408, %v406
    %v531 = vpack.c.b16 %v409, %v407
    %v532 = vpack.c.b16 %v412, %v410
    %v533 = vpack.c.b16 %v413, %v411
    %v534 = vpack.c.b16 %v416, %v414
    %v535 = vpack.c.b16 %v417, %v415
    %v536 = vpack.c.b16 %v420, %v418
    %v537 = vpack.c.b16 %v421, %v419
    %v538 = vpack.c.b16 %v424, %v422
    %v539 = vpack.c.b16 %v425, %v423
    %v540 = vpack.c.b16 %v428, %v426
    %v541 = vpack.c.b16 %v429, %v427
    %v542 = vpack.c.b16 %v432, %v430
    %v543 = vpack.c.b16 %v433, %v431
    %v544 = vpack.c.b16 %v436, %v434
    %v545 = vpack.c.b16 %v437, %v435
    %v546 = vpack.c.b16 %v440, %v438
    %v547 = vpack.c.b16 %v441, %v439
    %v548 = vpack.c.b16 %v444, %v442
    %v549 = vpack.c.b16 %v445, %v443
    %v550 = vpack.c.b16 %v448, %v446
    %v551 = vpack.c.b16 %v449, %v447
    %v552 = vpack.c.b16 %v452, %v450
    %v553 = vpack.c.b16 %v453, %v451
    %v554 = vpack.c.b16 %v456, %v454
    %v555 = vpack.c.b16 %v457, %v455
    %v556 = vpack.c.b16 %v460, %v458
    %v557 = vpack.c.b16 %v461, %v459
    %v558 = vpack.c.b16 %v464, %v462
    %v559 = vpack.c.b16 %v465, %v463
    %v560 = vpack.c.b16 %v468, %v466
    %v561 = vpack.c.b16 %v469, %v467
    %v562 = vpack.c.b16 %v472, %v470
    %v563 = vpack.c.b16 %v473, %v471
    %v564 = vpack.c.b16 %v476, %v474
    %v565 = vpack.c.b16 %v477, %v475
    %v566 = vpack.c.b16 %v480, %v478
    %v567 = vpack.c.b16 %v481, %v479
    %v568 = vpack.c.b16 %v484, %v482
    %v569 = vpack.c.b16 %v485, %v483
    %v570 = vpack.c.b16 %v488, %v486
    %v571 = vpack.c.b16 %v489, %v487
    %v572 = vpack.c.b16 %v492, %v490
    %v573 = vpack.c.b16 %v493, %v491
    %v574 = vpack.c.b16 %v496, %v494
    %v575 = vpack.c.b16 %v497, %v495
    %v576 = vpack.c.b16 %v500, %v498
    %v577 = vpack.c.b16 %v501, %v499
    %v578 = vpack.c.b16 %v504, %v502
    %v579 = vpack.c.b16 %v505, %v503
    %v580 = vpack.c.b16 %v508, %v506
    %v581 = vpack.c.b16 %v509, %v507
    %v686 = vunpack.c.l.b16 %v190
    %v687 = vunpack.c.l.b16 %v191
    %v688 = vunpack.c.l.b16 %v192
    %v689 = vunpack.c.l.b16 %v193
    %v690 = vunpack.c.l.b16 %v194
    %v691 = vunpack.c.l.b16 %v195
    %v692 = vunpack.c.l.b16 %v196
    %v693 = vunpack.c.l.b16 %v197
    %v694 = vunpack.c.l.b16 %v198
    %v695 = vunpack.c.l.b16 %v199
    %v696 = vunpack.c.l.b16 %v200
    %v697 = vunpack.c.l.b16 %v201
    %v698 = vunpack.c.l.b16 %v202
    %v699 = vunpack.c.l.b16 %v203
    %v700 = vunpack.c.l.b16 %v204
    %v701 = vunpack.c.l.b16 %v205
    %v702 = vunpack.c.l.b16 %v206
    %v703 = vunpack.c.l.b16 %v207
    %v704 = vunpack.c.l.b16 %v208
    %v705 = vunpack.c.l.b16 %v209
    %v706 = vunpack.c.l.b16 %v210
    %v707 = vunpack.c.l.b16 %v211
    %v708 = vunpack.c.l.b16 %v212
    %v709 = vunpack.c.l.b16 %v213
    %v710 = vunpack.c.l.b16 %v214
    %v711 = vunpack.c.l.b16 %v215
    %v712 = vunpack.c.l.b16 %v216
    %v713 = vunpack.c.l.b16 %v217
    %v714 = vunpack.c.l.b16 %v218
    %v715 = vunpack.c.l.b16 %v219
    %v716 = vunpack.c.l.b16 %v220
    %v717 = vunpack.c.l.b16 %v221
    %v718 = vpack.c.b16 %v687, %v686
    %v719 = vpack.c.b16 %v689, %v688
    %v720 = vpack.c.b16 %v691, %v690
    %v721 = vpack.c.b16 %v693, %v692
    %v722 = vpack.c.b16 %v695, %v694
    %v723 = vpack.c.b16 %v697, %v696
    %v724 = vpack.c.b16 %v699, %v698
    %v725 = vpack.c.b16 %v701, %v700
    %v726 = vpack.c.b16 %v703, %v702
    %v727 = vpack.c.b16 %v705, %v704
    %v728 = vpack.c.b16 %v707, %v706
    %v729 = vpack.c.b16 %v709, %v708
    %v730 = vpack.c.b16 %v711, %v710
    %v731 = vpack.c.b16 %v713, %v712
    %v732 = vpack.c.b16 %v715, %v714
    %v733 = vpack.c.b16 %v717, %v716
    %750 = vmatprep.subr.bf16.mxu0 0
    %751 = vmatpush1.bf16.msra.mxu0 %v725
    %752 = vmatprep.subr.bf16.mxu0 0
    %753 = vmatpush1.bf16.msra.mxu0 %v724
    %754 = vmatprep.subr.bf16.mxu0 0
    %755 = vmatpush1.bf16.msra.mxu0 %v723
    %756 = vmatprep.subr.bf16.mxu0 0
    %757 = vmatpush1.bf16.msra.mxu0 %v722
    %758 = vmatprep.subr.bf16.mxu0 0
    %759 = vmatpush1.bf16.msra.mxu0 %v721
    %760 = vmatprep.subr.bf16.mxu0 0
    %761 = vmatpush1.bf16.msra.mxu0 %v720
    %762 = vmatprep.subr.bf16.mxu0 0
    %763 = vmatpush1.bf16.msra.mxu0 %v719
    %764 = vmatprep.subr.bf16.mxu0 0
    %765 = vmatpush1.bf16.msra.mxu0 %v718
    %766 = vmatprep.subr.bf16.mxu0 0
    %767 = vmatpush2.bf16.msra.mxu0 %v733
    %768 = vmatprep.subr.bf16.mxu0 0
    %769 = vmatpush2.bf16.msra.mxu0 %v732
    %770 = vmatprep.subr.bf16.mxu0 0
    %771 = vmatpush2.bf16.msra.mxu0 %v731
    %772 = vmatprep.subr.bf16.mxu0 0
    %773 = vmatpush2.bf16.msra.mxu0 %v730
    %774 = vmatprep.subr.bf16.mxu0 0
    %775 = vmatpush2.bf16.msra.mxu0 %v729
    %776 = vmatprep.subr.bf16.mxu0 0
    %777 = vmatpush2.bf16.msra.mxu0 %v728
    %778 = vmatprep.subr.bf16.mxu0 0
    %779 = vmatpush2.bf16.msra.mxu0 %v727
    %780 = vmatprep.subr.bf16.mxu0 0
    %781 = vmatpush2.bf16.msra.mxu0 %v726
    %782 = vmatprep.mubr.bf16.mxu0 %v511
    %783 = vmatmul.mubr.bf16.gmra.mxu0 %v510
    %v784 = vpop.f32.mrf.mxu0
    %v785 = vadd.f32 0.0, %v784
    %v786 = vpop.f32.mrf.mxu0
    %v787 = vpop.f32.mrf.mxu0
    %v788 = vadd.f32 0.0, %v787
    %v789 = vpop.f32.mrf.mxu0
    %790 = vmatprep.mubr.bf16.mxu0 %v513
    %791 = vmatmul.mubr.bf16.gmra.mxu0 %v512
    %v792 = vpop.f32.mrf.mxu0
    %v793 = vadd.f32 0.0, %v792
    %v794 = vpop.f32.mrf.mxu0
    %v795 = vpop.f32.mrf.mxu0
    %v796 = vadd.f32 0.0, %v795
    %v797 = vpop.f32.mrf.mxu0
    %798 = vmatprep.mubr.bf16.mxu0 %v515
    %799 = vmatmul.mubr.bf16.gmra.mxu0 %v514
    %v800 = vpop.f32.mrf.mxu0
    %v801 = vadd.f32 0.0, %v800
    %v802 = vpop.f32.mrf.mxu0
    %v803 = vpop.f32.mrf.mxu0
    %v804 = vadd.f32 0.0, %v803
    %v805 = vpop.f32.mrf.mxu0
    %806 = vmatprep.mubr.bf16.mxu0 %v517
    %807 = vmatmul.mubr.bf16.gmra.mxu0 %v516
    %v808 = vpop.f32.mrf.mxu0
    %v809 = vadd.f32 0.0, %v808
    %v810 = vpop.f32.mrf.mxu0
    %v811 = vpop.f32.mrf.mxu0
    %v812 = vadd.f32 0.0, %v811
    %v813 = vpop.f32.mrf.mxu0
    %814 = vmatprep.mubr.bf16.mxu0 %v519
    %815 = vmatmul.mubr.bf16.gmra.mxu0 %v518
    %v816 = vpop.f32.mrf.mxu0
    %v817 = vadd.f32 0.0, %v816
    %v818 = vpop.f32.mrf.mxu0
    %v819 = vpop.f32.mrf.mxu0
    %v820 = vadd.f32 0.0, %v819
    %v821 = vpop.f32.mrf.mxu0
    %822 = vmatprep.mubr.bf16.mxu0 %v521
    %823 = vmatmul.mubr.bf16.gmra.mxu0 %v520
    %v824 = vpop.f32.mrf.mxu0
    %v825 = vadd.f32 0.0, %v824
    %v826 = vpop.f32.mrf.mxu0
    %v827 = vpop.f32.mrf.mxu0
    %v828 = vadd.f32 0.0, %v827
    %v829 = vpop.f32.mrf.mxu0
    %830 = vmatprep.mubr.bf16.mxu0 %v523
    %831 = vmatmul.mubr.bf16.gmra.mxu0 %v522
    %v832 = vpop.f32.mrf.mxu0
    %v833 = vadd.f32 0.0, %v832
    %v834 = vpop.f32.mrf.mxu0
    %v835 = vpop.f32.mrf.mxu0
    %v836 = vadd.f32 0.0, %v835
    %v837 = vpop.f32.mrf.mxu0
    %838 = vmatprep.mubr.bf16.mxu0 %v525
    %839 = vmatmul.mubr.bf16.gmra.mxu0 %v524
    %v840 = vpop.f32.mrf.mxu0
    %v841 = vadd.f32 0.0, %v840
    %v842 = vpop.f32.mrf.mxu0
    %v843 = vpop.f32.mrf.mxu0
    %v844 = vadd.f32 0.0, %v843
    %v845 = vpop.f32.mrf.mxu0
    %846 = vmatprep.mubr.bf16.mxu0 %v527
    %847 = vmatmul.mubr.bf16.gmra.mxu0 %v526
    %v848 = vpop.f32.mrf.mxu0
    %v849 = vadd.f32 0.0, %v848
    %v850 = vpop.f32.mrf.mxu0
    %v851 = vpop.f32.mrf.mxu0
    %v852 = vadd.f32 0.0, %v851
    %v853 = vpop.f32.mrf.mxu0
    %854 = vmatprep.mubr.bf16.mxu0 %v529
    %855 = vmatmul.mubr.bf16.gmra.mxu0 %v528
    %v856 = vpop.f32.mrf.mxu0
    %v857 = vadd.f32 0.0, %v856
    %v858 = vpop.f32.mrf.mxu0
    %v859 = vpop.f32.mrf.mxu0
    %v860 = vadd.f32 0.0, %v859
    %v861 = vpop.f32.mrf.mxu0
    %862 = vmatprep.mubr.bf16.mxu0 %v531
    %863 = vmatmul.mubr.bf16.gmra.mxu0 %v530
    %v864 = vpop.f32.mrf.mxu0
    %v865 = vadd.f32 0.0, %v864
    %v866 = vpop.f32.mrf.mxu0
    %v867 = vpop.f32.mrf.mxu0
    %v868 = vadd.f32 0.0, %v867
    %v869 = vpop.f32.mrf.mxu0
    %870 = vmatprep.mubr.bf16.mxu0 %v533
    %871 = vmatmul.mubr.bf16.gmra.mxu0 %v532
    %v872 = vpop.f32.mrf.mxu0
    %v873 = vadd.f32 0.0, %v872
    %v874 = vpop.f32.mrf.mxu0
    %v875 = vpop.f32.mrf.mxu0
    %v876 = vadd.f32 0.0, %v875
    %v877 = vpop.f32.mrf.mxu0
    %878 = vmatprep.mubr.bf16.mxu0 %v535
    %879 = vmatmul.mubr.bf16.gmra.mxu0 %v534
    %v880 = vpop.f32.mrf.mxu0
    %v881 = vadd.f32 0.0, %v880
    %v882 = vpop.f32.mrf.mxu0
    %v883 = vpop.f32.mrf.mxu0
    %v884 = vadd.f32 0.0, %v883
    %v885 = vpop.f32.mrf.mxu0
    %886 = vmatprep.mubr.bf16.mxu0 %v537
    %887 = vmatmul.mubr.bf16.gmra.mxu0 %v536
    %v888 = vpop.f32.mrf.mxu0
    %v889 = vadd.f32 0.0, %v888
    %v890 = vpop.f32.mrf.mxu0
    %v891 = vpop.f32.mrf.mxu0
    %v892 = vadd.f32 0.0, %v891
    %v893 = vpop.f32.mrf.mxu0
    %894 = vmatprep.mubr.bf16.mxu0 %v539
    %895 = vmatmul.mubr.bf16.gmra.mxu0 %v538
    %v896 = vpop.f32.mrf.mxu0
    %v897 = vadd.f32 0.0, %v896
    %v898 = vpop.f32.mrf.mxu0
    %v899 = vpop.f32.mrf.mxu0
    %v900 = vadd.f32 0.0, %v899
    %v901 = vpop.f32.mrf.mxu0
    %902 = vmatprep.mubr.bf16.mxu0 %v541
    %903 = vmatmul.mubr.bf16.gmra.mxu0 %v540
    %v904 = vpop.f32.mrf.mxu0
    %v905 = vadd.f32 0.0, %v904
    %v906 = vpop.f32.mrf.mxu0
    %v907 = vpop.f32.mrf.mxu0
    %v908 = vadd.f32 0.0, %v907
    %v909 = vpop.f32.mrf.mxu0
    %910 = vmatprep.mubr.bf16.mxu0 %v543
    %911 = vmatmul.mubr.bf16.gmra.mxu0 %v542
    %v912 = vpop.f32.mrf.mxu0
    %v913 = vadd.f32 0.0, %v912
    %v914 = vpop.f32.mrf.mxu0
    %v915 = vpop.f32.mrf.mxu0
    %v916 = vadd.f32 0.0, %v915
    %v917 = vpop.f32.mrf.mxu0
    %918 = vmatprep.mubr.bf16.mxu0 %v545
    %919 = vmatmul.mubr.bf16.gmra.mxu0 %v544
    %v920 = vpop.f32.mrf.mxu0
    %v921 = vadd.f32 0.0, %v920
    %v922 = vpop.f32.mrf.mxu0
    %v923 = vpop.f32.mrf.mxu0
    %v924 = vadd.f32 0.0, %v923
    %v925 = vpop.f32.mrf.mxu0
    %926 = vmatprep.mubr.bf16.mxu0 %v547
    %927 = vmatmul.mubr.bf16.gmra.mxu0 %v546
    %v928 = vpop.f32.mrf.mxu0
    %v929 = vadd.f32 0.0, %v928
    %v930 = vpop.f32.mrf.mxu0
    %v931 = vpop.f32.mrf.mxu0
    %v932 = vadd.f32 0.0, %v931
    %v933 = vpop.f32.mrf.mxu0
    %934 = vmatprep.mubr.bf16.mxu0 %v549
    %935 = vmatmul.mubr.bf16.gmra.mxu0 %v548
    %v936 = vpop.f32.mrf.mxu0
    %v937 = vadd.f32 0.0, %v936
    %v938 = vpop.f32.mrf.mxu0
    %v939 = vpop.f32.mrf.mxu0
    %v940 = vadd.f32 0.0, %v939
    %v941 = vpop.f32.mrf.mxu0
    %942 = vmatprep.mubr.bf16.mxu0 %v551
    %943 = vmatmul.mubr.bf16.gmra.mxu0 %v550
    %v944 = vpop.f32.mrf.mxu0
    %v945 = vadd.f32 0.0, %v944
    %v946 = vpop.f32.mrf.mxu0
    %v947 = vpop.f32.mrf.mxu0
    %v948 = vadd.f32 0.0, %v947
    %v949 = vpop.f32.mrf.mxu0
    %950 = vmatprep.mubr.bf16.mxu0 %v553
    %951 = vmatmul.mubr.bf16.gmra.mxu0 %v552
    %v952 = vpop.f32.mrf.mxu0
    %v953 = vadd.f32 0.0, %v952
    %v954 = vpop.f32.mrf.mxu0
    %v955 = vpop.f32.mrf.mxu0
    %v956 = vadd.f32 0.0, %v955
    %v957 = vpop.f32.mrf.mxu0
    %958 = vmatprep.mubr.bf16.mxu0 %v555
    %959 = vmatmul.mubr.bf16.gmra.mxu0 %v554
    %v960 = vpop.f32.mrf.mxu0
    %v961 = vadd.f32 0.0, %v960
    %v962 = vpop.f32.mrf.mxu0
    %v963 = vpop.f32.mrf.mxu0
    %v964 = vadd.f32 0.0, %v963
    %v965 = vpop.f32.mrf.mxu0
    %966 = vmatprep.mubr.bf16.mxu0 %v557
    %967 = vmatmul.mubr.bf16.gmra.mxu0 %v556
    %v968 = vpop.f32.mrf.mxu0
    %v969 = vadd.f32 0.0, %v968
    %v970 = vpop.f32.mrf.mxu0
    %v971 = vpop.f32.mrf.mxu0
    %v972 = vadd.f32 0.0, %v971
    %v973 = vpop.f32.mrf.mxu0
    %974 = vmatprep.mubr.bf16.mxu0 %v559
    %975 = vmatmul.mubr.bf16.gmra.mxu0 %v558
    %v976 = vpop.f32.mrf.mxu0
    %v977 = vadd.f32 0.0, %v976
    %v978 = vpop.f32.mrf.mxu0
    %v979 = vpop.f32.mrf.mxu0
    %v980 = vadd.f32 0.0, %v979
    %v981 = vpop.f32.mrf.mxu0
    %982 = vmatprep.mubr.bf16.mxu0 %v561
    %983 = vmatmul.mubr.bf16.gmra.mxu0 %v560
    %v984 = vpop.f32.mrf.mxu0
    %v985 = vadd.f32 0.0, %v984
    %v986 = vpop.f32.mrf.mxu0
    %v987 = vpop.f32.mrf.mxu0
    %v988 = vadd.f32 0.0, %v987
    %v989 = vpop.f32.mrf.mxu0
    %990 = vmatprep.mubr.bf16.mxu0 %v563
    %991 = vmatmul.mubr.bf16.gmra.mxu0 %v562
    %v992 = vpop.f32.mrf.mxu0
    %v993 = vadd.f32 0.0, %v992
    %v994 = vpop.f32.mrf.mxu0
    %v995 = vpop.f32.mrf.mxu0
    %v996 = vadd.f32 0.0, %v995
    %v997 = vpop.f32.mrf.mxu0
    %998 = vmatprep.mubr.bf16.mxu0 %v565
    %999 = vmatmul.mubr.bf16.gmra.mxu0 %v564
    %v1000 = vpop.f32.mrf.mxu0
    %v1001 = vadd.f32 0.0, %v1000
    %v1002 = vpop.f32.mrf.mxu0
    %v1003 = vpop.f32.mrf.mxu0
    %v1004 = vadd.f32 0.0, %v1003
    %v1005 = vpop.f32.mrf.mxu0
    %1006 = vmatprep.mubr.bf16.mxu0 %v567
    %1007 = vmatmul.mubr.bf16.gmra.mxu0 %v566
    %v1008 = vpop.f32.mrf.mxu0
    %v1009 = vadd.f32 0.0, %v1008
    %v1010 = vpop.f32.mrf.mxu0
    %v1011 = vpop.f32.mrf.mxu0
    %v1012 = vadd.f32 0.0, %v1011
    %v1013 = vpop.f32.mrf.mxu0
    %1014 = vmatprep.mubr.bf16.mxu0 %v569
    %1015 = vmatmul.mubr.bf16.gmra.mxu0 %v568
    %v1016 = vpop.f32.mrf.mxu0
    %v1017 = vadd.f32 0.0, %v1016
    %v1018 = vpop.f32.mrf.mxu0
    %v1019 = vpop.f32.mrf.mxu0
    %v1020 = vadd.f32 0.0, %v1019
    %v1021 = vpop.f32.mrf.mxu0
    %1022 = vmatprep.mubr.bf16.mxu0 %v571
    %1023 = vmatmul.mubr.bf16.gmra.mxu0 %v570
    %v1024 = vpop.f32.mrf.mxu0
    %v1025 = vadd.f32 0.0, %v1024
    %v1026 = vpop.f32.mrf.mxu0
    %v1027 = vpop.f32.mrf.mxu0
    %v1028 = vadd.f32 0.0, %v1027
    %v1029 = vpop.f32.mrf.mxu0
    %1030 = vmatprep.mubr.bf16.mxu0 %v573
    %1031 = vmatmul.mubr.bf16.gmra.mxu0 %v572
    %v1032 = vpop.f32.mrf.mxu0
    %v1033 = vadd.f32 0.0, %v1032
    %v1034 = vpop.f32.mrf.mxu0
    %v1035 = vpop.f32.mrf.mxu0
    %v1036 = vadd.f32 0.0, %v1035
    %v1037 = vpop.f32.mrf.mxu0
    %1038 = vmatprep.mubr.bf16.mxu0 %v575
    %1039 = vmatmul.mubr.bf16.gmra.mxu0 %v574
    %v1040 = vpop.f32.mrf.mxu0
    %v1041 = vadd.f32 0.0, %v1040
    %v1042 = vpop.f32.mrf.mxu0
    %v1043 = vpop.f32.mrf.mxu0
    %v1044 = vadd.f32 0.0, %v1043
    %v1045 = vpop.f32.mrf.mxu0
    %1046 = vmatprep.mubr.bf16.mxu0 %v577
    %1047 = vmatmul.mubr.bf16.gmra.mxu0 %v576
    %v1048 = vpop.f32.mrf.mxu0
    %v1049 = vadd.f32 0.0, %v1048
    %v1050 = vpop.f32.mrf.mxu0
    %v1051 = vpop.f32.mrf.mxu0
    %v1052 = vadd.f32 0.0, %v1051
    %v1053 = vpop.f32.mrf.mxu0
    %1054 = vmatprep.mubr.bf16.mxu0 %v579
    %1055 = vmatmul.mubr.bf16.gmra.mxu0 %v578
    %v1056 = vpop.f32.mrf.mxu0
    %v1057 = vadd.f32 0.0, %v1056
    %v1058 = vpop.f32.mrf.mxu0
    %v1059 = vpop.f32.mrf.mxu0
    %v1060 = vadd.f32 0.0, %v1059
    %v1061 = vpop.f32.mrf.mxu0
    %1062 = vmatprep.mubr.bf16.mxu0 %v581
    %1063 = vmatmul.mubr.bf16.gmra.mxu0 %v580
    %v1064 = vpop.f32.mrf.mxu0
    %v1065 = vadd.f32 0.0, %v1064
    %v1066 = vpop.f32.mrf.mxu0
    %v1067 = vpop.f32.mrf.mxu0
    %v1068 = vadd.f32 0.0, %v1067
    %v1069 = vpop.f32.mrf.mxu0
    %1070 = vdwg.mxu0
    %v1071 = vpack.c.bf16 %v788, %v785
    %v1072 = vpack.c.bf16 %v796, %v793
    %v1073 = vpack.c.bf16 %v804, %v801
    %v1074 = vpack.c.bf16 %v812, %v809
    %v1075 = vpack.c.bf16 %v820, %v817
    %v1076 = vpack.c.bf16 %v828, %v825
    %v1077 = vpack.c.bf16 %v836, %v833
    %v1078 = vpack.c.bf16 %v844, %v841
    %v1079 = vpack.c.bf16 %v852, %v849
    %v1080 = vpack.c.bf16 %v860, %v857
    %v1081 = vpack.c.bf16 %v868, %v865
    %v1082 = vpack.c.bf16 %v876, %v873
    %v1083 = vpack.c.bf16 %v884, %v881
    %v1084 = vpack.c.bf16 %v892, %v889
    %v1085 = vpack.c.bf16 %v900, %v897
    %v1086 = vpack.c.bf16 %v908, %v905
    %v1087 = vpack.c.bf16 %v916, %v913
    %v1088 = vpack.c.bf16 %v924, %v921
    %v1089 = vpack.c.bf16 %v932, %v929
    %v1090 = vpack.c.bf16 %v940, %v937
    %v1091 = vpack.c.bf16 %v948, %v945
    %v1092 = vpack.c.bf16 %v956, %v953
    %v1093 = vpack.c.bf16 %v964, %v961
    %v1094 = vpack.c.bf16 %v972, %v969
    %v1095 = vpack.c.bf16 %v980, %v977
    %v1096 = vpack.c.bf16 %v988, %v985
    %v1097 = vpack.c.bf16 %v996, %v993
    %v1098 = vpack.c.bf16 %v1004, %v1001
    %v1099 = vpack.c.bf16 %v1012, %v1009
    %v1100 = vpack.c.bf16 %v1020, %v1017
    %v1101 = vpack.c.bf16 %v1028, %v1025
    %v1102 = vpack.c.bf16 %v1036, %v1033
    %v1103 = vpack.c.bf16 %v1044, %v1041
    %v1104 = vpack.c.bf16 %v1052, %v1049
    %v1105 = vpack.c.bf16 %v1060, %v1057
    %v1106 = vpack.c.bf16 %v1068, %v1065
    %v1107 = vld [vmem:[#allocation4] sm:$0xff]
    %v1108 = vld [vmem:[#allocation4 + $0x8] sm:$0xff]
    %v1109 = vld [vmem:[#allocation4 + $0x10] sm:$0xff]
    %v1110 = vld [vmem:[#allocation4 + $0x18] sm:$0xff]
    %v1111 = vld [vmem:[#allocation4 + $0x20] sm:$0xff]
    %v1112 = vld [vmem:[#allocation4 + $0x28] sm:$0xff]
    %v1113 = vld [vmem:[#allocation4 + $0x30] sm:$0xff]
    %v1114 = vld [vmem:[#allocation4 + $0x38] sm:$0xff]
    %v1115 = vld [vmem:[#allocation4 + $0x40] sm:$0xff]
    %v1116 = vld [vmem:[#allocation4 + $0x48] sm:$0xff]
    %v1117 = vld [vmem:[#allocation4 + $0x50] sm:$0xff]
    %v1118 = vld [vmem:[#allocation4 + $0x58] sm:$0xff]
    %v1119 = vld [vmem:[#allocation4 + $0x60] sm:$0xff]
    %v1120 = vld [vmem:[#allocation4 + $0x68] sm:$0xff]
    %v1121 = vld [vmem:[#allocation4 + $0x70] sm:$0xff]
    %v1122 = vld [vmem:[#allocation4 + $0x78] sm:$0xff]
    %v1123 = vld [vmem:[#allocation4 + $0x80] sm:$0xff]
    %v1124 = vld [vmem:[#allocation4 + $0x88] sm:$0xff]
    %v1125 = vld [vmem:[#allocation4 + $0x90] sm:$0xff]
    %v1126 = vld [vmem:[#allocation4 + $0x98] sm:$0xff]
    %v1127 = vld [vmem:[#allocation4 + $0xa0] sm:$0xff]
    %v1128 = vld [vmem:[#allocation4 + $0xa8] sm:$0xff]
    %v1129 = vld [vmem:[#allocation4 + $0xb0] sm:$0xff]
    %v1130 = vld [vmem:[#allocation4 + $0xb8] sm:$0xff]
    %v1131 = vld [vmem:[#allocation4 + $0xc0] sm:$0xff]
    %v1132 = vld [vmem:[#allocation4 + $0xc8] sm:$0xff]
    %v1133 = vld [vmem:[#allocation4 + $0xd0] sm:$0xff]
    %v1134 = vld [vmem:[#allocation4 + $0xd8] sm:$0xff]
    %v1135 = vld [vmem:[#allocation4 + $0xe0] sm:$0xff]
    %v1136 = vld [vmem:[#allocation4 + $0xe8] sm:$0xff]
    %v1137 = vld [vmem:[#allocation4 + $0xf0] sm:$0xff]
    %v1138 = vld [vmem:[#allocation4 + $0xf8] sm:$0xff]
    %v1139 = vld [vmem:[#allocation4 + $0x100] sm:$0xff]
    %v1140 = vld [vmem:[#allocation4 + $0x108] sm:$0xff]
    %v1141 = vld [vmem:[#allocation4 + $0x110] sm:$0xff]
    %v1142 = vld [vmem:[#allocation4 + $0x118] sm:$0xff]
    %v1143 = vld [vmem:[#allocation4 + $0x120] sm:$0xff]
    %v1144 = vld [vmem:[#allocation4 + $0x128] sm:$0xff]
    %v1145 = vld [vmem:[#allocation4 + $0x130] sm:$0xff]
    %v1146 = vld [vmem:[#allocation4 + $0x138] sm:$0xff]
    %v1147 = vld [vmem:[#allocation4 + $0x140] sm:$0xff]
    %v1148 = vld [vmem:[#allocation4 + $0x148] sm:$0xff]
    %v1149 = vld [vmem:[#allocation4 + $0x150] sm:$0xff]
    %v1150 = vld [vmem:[#allocation4 + $0x158] sm:$0xff]
    %v1151 = vld [vmem:[#allocation4 + $0x160] sm:$0xff]
    %v1152 = vld [vmem:[#allocation4 + $0x168] sm:$0xff]
    %v1153 = vld [vmem:[#allocation4 + $0x170] sm:$0xff]
    %v1154 = vld [vmem:[#allocation4 + $0x178] sm:$0xff]
    %v1155 = vld [vmem:[#allocation4 + $0x180] sm:$0xff]
    %v1156 = vld [vmem:[#allocation4 + $0x188] sm:$0xff]
    %v1157 = vld [vmem:[#allocation4 + $0x190] sm:$0xff]
    %v1158 = vld [vmem:[#allocation4 + $0x198] sm:$0xff]
    %v1159 = vld [vmem:[#allocation4 + $0x1a0] sm:$0xff]
    %v1160 = vld [vmem:[#allocation4 + $0x1a8] sm:$0xff]
    %v1161 = vld [vmem:[#allocation4 + $0x1b0] sm:$0xff]
    %v1162 = vld [vmem:[#allocation4 + $0x1b8] sm:$0xff]
    %v1163 = vld [vmem:[#allocation4 + $0x1c0] sm:$0xff]
    %v1164 = vld [vmem:[#allocation4 + $0x1c8] sm:$0xff]
    %v1165 = vld [vmem:[#allocation4 + $0x1d0] sm:$0xff]
    %v1166 = vld [vmem:[#allocation4 + $0x1d8] sm:$0xff]
    %v1167 = vld [vmem:[#allocation4 + $0x1e0] sm:$0xff]
    %v1168 = vld [vmem:[#allocation4 + $0x1e8] sm:$0xff]
    %v1169 = vld [vmem:[#allocation4 + $0x1f0] sm:$0xff]
    %v1170 = vld [vmem:[#allocation4 + $0x1f8] sm:$0xff]
    %v1171 = vld [vmem:[#allocation4 + $0x200] sm:$0xff]
    %v1172 = vld [vmem:[#allocation4 + $0x208] sm:$0xff]
    %v1173 = vld [vmem:[#allocation4 + $0x210] sm:$0xff]
    %v1174 = vld [vmem:[#allocation4 + $0x218] sm:$0xff]
    %v1175 = vld [vmem:[#allocation4 + $0x220] sm:$0xff]
    %v1176 = vld [vmem:[#allocation4 + $0x228] sm:$0xff]
    %v1177 = vld [vmem:[#allocation4 + $0x230] sm:$0xff]
    %v1178 = vld [vmem:[#allocation4 + $0x238] sm:$0xff]
    %v1179 = vld [vmem:[#allocation4 + $0x240] sm:$0xff]
    %v1180 = vld [vmem:[#allocation4 + $0x248] sm:$0xff]
    %v1181 = vld [vmem:[#allocation4 + $0x250] sm:$0xff]
    %v1182 = vld [vmem:[#allocation4 + $0x258] sm:$0xff]
    %v1183 = vld [vmem:[#allocation4 + $0x260] sm:$0xff]
    %v1184 = vld [vmem:[#allocation4 + $0x268] sm:$0xff]
    %v1185 = vld [vmem:[#allocation4 + $0x270] sm:$0xff]
    %v1186 = vld [vmem:[#allocation4 + $0x278] sm:$0xff]
    %v1187 = vld [vmem:[#allocation4 + $0x280] sm:$0xff]
    %v1188 = vld [vmem:[#allocation4 + $0x288] sm:$0xff]
    %v1189 = vld [vmem:[#allocation4 + $0x290] sm:$0xff]
    %v1190 = vld [vmem:[#allocation4 + $0x298] sm:$0xff]
    %v1191 = vld [vmem:[#allocation4 + $0x2a0] sm:$0xff]
    %v1192 = vld [vmem:[#allocation4 + $0x2a8] sm:$0xff]
    %v1193 = vld [vmem:[#allocation4 + $0x2b0] sm:$0xff]
    %v1194 = vld [vmem:[#allocation4 + $0x2b8] sm:$0xff]
    %v1195 = vld [vmem:[#allocation4 + $0x2c0] sm:$0xff]
    %v1196 = vld [vmem:[#allocation4 + $0x2c8] sm:$0xff]
    %v1197 = vld [vmem:[#allocation4 + $0x2d0] sm:$0xff]
    %v1198 = vld [vmem:[#allocation4 + $0x2d8] sm:$0xff]
    %v1199 = vld [vmem:[#allocation4 + $0x2e0] sm:$0xff]
    %v1200 = vld [vmem:[#allocation4 + $0x2e8] sm:$0xff]
    %v1201 = vld [vmem:[#allocation4 + $0x2f0] sm:$0xff]
    %v1202 = vld [vmem:[#allocation4 + $0x2f8] sm:$0xff]
    %v1203 = vld [vmem:[#allocation4 + $0x300] sm:$0xff]
    %v1204 = vld [vmem:[#allocation4 + $0x308] sm:$0xff]
    %v1205 = vld [vmem:[#allocation4 + $0x310] sm:$0xff]
    %v1206 = vld [vmem:[#allocation4 + $0x318] sm:$0xff]
    %v1207 = vld [vmem:[#allocation4 + $0x320] sm:$0xff]
    %v1208 = vld [vmem:[#allocation4 + $0x328] sm:$0xff]
    %v1209 = vld [vmem:[#allocation4 + $0x330] sm:$0xff]
    %v1210 = vld [vmem:[#allocation4 + $0x338] sm:$0xff]
    %v1211 = vld [vmem:[#allocation4 + $0x340] sm:$0xff]
    %v1212 = vld [vmem:[#allocation4 + $0x348] sm:$0xff]
    %v1213 = vld [vmem:[#allocation4 + $0x350] sm:$0xff]
    %v1214 = vld [vmem:[#allocation4 + $0x358] sm:$0xff]
    %v1215 = vld [vmem:[#allocation4 + $0x360] sm:$0xff]
    %v1216 = vld [vmem:[#allocation4 + $0x368] sm:$0xff]
    %v1217 = vld [vmem:[#allocation4 + $0x370] sm:$0xff]
    %v1218 = vld [vmem:[#allocation4 + $0x378] sm:$0xff]
    %v1219 = vld [vmem:[#allocation4 + $0x380] sm:$0xff]
    %v1220 = vld [vmem:[#allocation4 + $0x388] sm:$0xff]
    %v1221 = vld [vmem:[#allocation4 + $0x390] sm:$0xff]
    %v1222 = vld [vmem:[#allocation4 + $0x398] sm:$0xff]
    %v1223 = vld [vmem:[#allocation4 + $0x3a0] sm:$0xff]
    %v1224 = vld [vmem:[#allocation4 + $0x3a8] sm:$0xff]
    %v1225 = vld [vmem:[#allocation4 + $0x3b0] sm:$0xff]
    %v1226 = vld [vmem:[#allocation4 + $0x3b8] sm:$0xff]
    %v1227 = vld [vmem:[#allocation4 + $0x3c0] sm:$0xff]
    %v1228 = vld [vmem:[#allocation4 + $0x3c8] sm:$0xff]
    %v1229 = vld [vmem:[#allocation4 + $0x3d0] sm:$0xff]
    %v1230 = vld [vmem:[#allocation4 + $0x3d8] sm:$0xff]
    %v1231 = vld [vmem:[#allocation4 + $0x3e0] sm:$0xff]
    %v1232 = vld [vmem:[#allocation4 + $0x3e8] sm:$0xff]
    %v1233 = vld [vmem:[#allocation4 + $0x3f0] sm:$0xff]
    %v1234 = vld [vmem:[#allocation4 + $0x3f8] sm:$0xff]
    %v1235 = vld [vmem:[#allocation4 + $0x400] sm:$0xff]
    %v1236 = vld [vmem:[#allocation4 + $0x408] sm:$0xff]
    %v1237 = vld [vmem:[#allocation4 + $0x410] sm:$0xff]
    %v1238 = vld [vmem:[#allocation4 + $0x418] sm:$0xff]
    %v1239 = vld [vmem:[#allocation4 + $0x420] sm:$0xff]
    %v1240 = vld [vmem:[#allocation4 + $0x428] sm:$0xff]
    %v1241 = vld [vmem:[#allocation4 + $0x430] sm:$0xff]
    %v1242 = vld [vmem:[#allocation4 + $0x438] sm:$0xff]
    %v1243 = vld [vmem:[#allocation4 + $0x440] sm:$0xff]
    %v1244 = vld [vmem:[#allocation4 + $0x448] sm:$0xff]
    %v1245 = vld [vmem:[#allocation4 + $0x450] sm:$0xff]
    %v1246 = vld [vmem:[#allocation4 + $0x458] sm:$0xff]
    %v1247 = vld [vmem:[#allocation4 + $0x460] sm:$0xff]
    %v1248 = vld [vmem:[#allocation4 + $0x468] sm:$0xff]
    %v1249 = vld [vmem:[#allocation4 + $0x470] sm:$0xff]
    %v1250 = vld [vmem:[#allocation4 + $0x478] sm:$0xff]
    %v1267 = vunpack.c.l.b16 %v1107
    %v1268 = vunpack.c.h.b16 %v1107
    %v1269 = vunpack.c.l.b16 %v1108
    %v1270 = vunpack.c.h.b16 %v1108
    %v1271 = vunpack.c.l.b16 %v1109
    %v1272 = vunpack.c.h.b16 %v1109
    %v1273 = vunpack.c.l.b16 %v1110
    %v1274 = vunpack.c.h.b16 %v1110
    %v1275 = vunpack.c.l.b16 %v1111
    %v1276 = vunpack.c.h.b16 %v1111
    %v1277 = vunpack.c.l.b16 %v1112
    %v1278 = vunpack.c.h.b16 %v1112
    %v1279 = vunpack.c.l.b16 %v1113
    %v1280 = vunpack.c.h.b16 %v1113
    %v1281 = vunpack.c.l.b16 %v1114
    %v1282 = vunpack.c.h.b16 %v1114
    %v1283 = vunpack.c.l.b16 %v1115
    %v1284 = vunpack.c.h.b16 %v1115
    %v1285 = vunpack.c.l.b16 %v1116
    %v1286 = vunpack.c.h.b16 %v1116
    %v1287 = vunpack.c.l.b16 %v1117
    %v1288 = vunpack.c.h.b16 %v1117
    %v1289 = vunpack.c.l.b16 %v1118
    %v1290 = vunpack.c.h.b16 %v1118
    %v1291 = vunpack.c.l.b16 %v1119
    %v1292 = vunpack.c.h.b16 %v1119
    %v1293 = vunpack.c.l.b16 %v1120
    %v1294 = vunpack.c.h.b16 %v1120
    %v1295 = vunpack.c.l.b16 %v1121
    %v1296 = vunpack.c.h.b16 %v1121
    %v1297 = vunpack.c.l.b16 %v1122
    %v1298 = vunpack.c.h.b16 %v1122
    %v1299 = vpack.c.b16 %v1269, %v1267
    %v1300 = vpack.c.b16 %v1270, %v1268
    %v1301 = vpack.c.b16 %v1273, %v1271
    %v1302 = vpack.c.b16 %v1274, %v1272
    %v1303 = vpack.c.b16 %v1277, %v1275
    %v1304 = vpack.c.b16 %v1278, %v1276
    %v1305 = vpack.c.b16 %v1281, %v1279
    %v1306 = vpack.c.b16 %v1282, %v1280
    %v1307 = vpack.c.b16 %v1285, %v1283
    %v1308 = vpack.c.b16 %v1286, %v1284
    %v1309 = vpack.c.b16 %v1289, %v1287
    %v1310 = vpack.c.b16 %v1290, %v1288
    %v1311 = vpack.c.b16 %v1293, %v1291
    %v1312 = vpack.c.b16 %v1294, %v1292
    %v1313 = vpack.c.b16 %v1297, %v1295
    %v1314 = vpack.c.b16 %v1298, %v1296
    %1331 = vmatprep.subr.bf16.mxu0 %v1314
    %1332 = vmatpush1.bf16.msra.mxu0 %v1313
    %1333 = vmatprep.subr.bf16.mxu0 %v1312
    %1334 = vmatpush1.bf16.msra.mxu0 %v1311
    %1335 = vmatprep.subr.bf16.mxu0 %v1310
    %1336 = vmatpush1.bf16.msra.mxu0 %v1309
    %1337 = vmatprep.subr.bf16.mxu0 %v1308
    %1338 = vmatpush1.bf16.msra.mxu0 %v1307
    %1339 = vmatprep.subr.bf16.mxu0 %v1306
    %1340 = vmatpush1.bf16.msra.mxu0 %v1305
    %1341 = vmatprep.subr.bf16.mxu0 %v1304
    %1342 = vmatpush1.bf16.msra.mxu0 %v1303
    %1343 = vmatprep.subr.bf16.mxu0 %v1302
    %1344 = vmatpush1.bf16.msra.mxu0 %v1301
    %1345 = vmatprep.subr.bf16.mxu0 %v1300
    %1346 = vmatpush1.bf16.msra.mxu0 %v1299
    %1347 = vmatprep.subr.bf16.mxu0 0
    %1348 = vmatpush2.bf16.msra.mxu0 0
    %1349 = vmatprep.subr.bf16.mxu0 0
    %1350 = vmatpush2.bf16.msra.mxu0 0
    %1351 = vmatprep.subr.bf16.mxu0 0
    %1352 = vmatpush2.bf16.msra.mxu0 0
    %1353 = vmatprep.subr.bf16.mxu0 0
    %1354 = vmatpush2.bf16.msra.mxu0 0
    %1355 = vmatprep.subr.bf16.mxu0 0
    %1356 = vmatpush2.bf16.msra.mxu0 0
    %1357 = vmatprep.subr.bf16.mxu0 0
    %1358 = vmatpush2.bf16.msra.mxu0 0
    %1359 = vmatprep.subr.bf16.mxu0 0
    %1360 = vmatpush2.bf16.msra.mxu0 0
    %1361 = vmatprep.subr.bf16.mxu0 0
    %1362 = vmatpush2.bf16.msra.mxu0 0
    %1363 = vmatprep.mubr.bf16.mxu0 0
    %1364 = vmatmul.mubr.bf16.gmra.mxu0 %v1071
    %v1365 = vpop.f32.mrf.mxu0
    %v1366 = vadd.f32 0.0, %v1365
    %v1367 = vpop.f32.mrf.mxu0
    %v1368 = vadd.f32 0.0, %v1367
    %v1369 = vpop.f32.mrf.mxu0
    %v1370 = vadd.f32 0.0, %v1369
    %v1371 = vpop.f32.mrf.mxu0
    %v1372 = vadd.f32 0.0, %v1371
    %1373 = vmatprep.mubr.bf16.mxu0 0
    %1374 = vmatmul.mubr.bf16.gmra.mxu0 %v1072
    %v1375 = vpop.f32.mrf.mxu0
    %v1376 = vadd.f32 0.0, %v1375
    %v1377 = vpop.f32.mrf.mxu0
    %v1378 = vadd.f32 0.0, %v1377
    %v1379 = vpop.f32.mrf.mxu0
    %v1380 = vadd.f32 0.0, %v1379
    %v1381 = vpop.f32.mrf.mxu0
    %v1382 = vadd.f32 0.0, %v1381
    %1383 = vmatprep.mubr.bf16.mxu0 0
    %1384 = vmatmul.mubr.bf16.gmra.mxu0 %v1073
    %v1385 = vpop.f32.mrf.mxu0
    %v1386 = vadd.f32 0.0, %v1385
    %v1387 = vpop.f32.mrf.mxu0
    %v1388 = vadd.f32 0.0, %v1387
    %v1389 = vpop.f32.mrf.mxu0
    %v1390 = vadd.f32 0.0, %v1389
    %v1391 = vpop.f32.mrf.mxu0
    %v1392 = vadd.f32 0.0, %v1391
    %1393 = vmatprep.mubr.bf16.mxu0 0
    %1394 = vmatmul.mubr.bf16.gmra.mxu0 %v1074
    %v1395 = vpop.f32.mrf.mxu0
    %v1396 = vadd.f32 0.0, %v1395
    %v1397 = vpop.f32.mrf.mxu0
    %v1398 = vadd.f32 0.0, %v1397
    %v1399 = vpop.f32.mrf.mxu0
    %v1400 = vadd.f32 0.0, %v1399
    %v1401 = vpop.f32.mrf.mxu0
    %v1402 = vadd.f32 0.0, %v1401
    %1403 = vdwg.mxu0
    %v1420 = vunpack.c.l.b16 %v1123
    %v1421 = vunpack.c.h.b16 %v1123
    %v1422 = vunpack.c.l.b16 %v1124
    %v1423 = vunpack.c.h.b16 %v1124
    %v1424 = vunpack.c.l.b16 %v1125
    %v1425 = vunpack.c.h.b16 %v1125
    %v1426 = vunpack.c.l.b16 %v1126
    %v1427 = vunpack.c.h.b16 %v1126
    %v1428 = vunpack.c.l.b16 %v1127
    %v1429 = vunpack.c.h.b16 %v1127
    %v1430 = vunpack.c.l.b16 %v1128
    %v1431 = vunpack.c.h.b16 %v1128
    %v1432 = vunpack.c.l.b16 %v1129
    %v1433 = vunpack.c.h.b16 %v1129
    %v1434 = vunpack.c.l.b16 %v1130
    %v1435 = vunpack.c.h.b16 %v1130
    %v1436 = vunpack.c.l.b16 %v1131
    %v1437 = vunpack.c.h.b16 %v1131
    %v1438 = vunpack.c.l.b16 %v1132
    %v1439 = vunpack.c.h.b16 %v1132
    %v1440 = vunpack.c.l.b16 %v1133
    %v1441 = vunpack.c.h.b16 %v1133
    %v1442 = vunpack.c.l.b16 %v1134
    %v1443 = vunpack.c.h.b16 %v1134
    %v1444 = vunpack.c.l.b16 %v1135
    %v1445 = vunpack.c.h.b16 %v1135
    %v1446 = vunpack.c.l.b16 %v1136
    %v1447 = vunpack.c.h.b16 %v1136
    %v1448 = vunpack.c.l.b16 %v1137
    %v1449 = vunpack.c.h.b16 %v1137
    %v1450 = vunpack.c.l.b16 %v1138
    %v1451 = vunpack.c.h.b16 %v1138
    %v1452 = vpack.c.b16 %v1422, %v1420
    %v1453 = vpack.c.b16 %v1423, %v1421
    %v1454 = vpack.c.b16 %v1426, %v1424
    %v1455 = vpack.c.b16 %v1427, %v1425
    %v1456 = vpack.c.b16 %v1430, %v1428
    %v1457 = vpack.c.b16 %v1431, %v1429
    %v1458 = vpack.c.b16 %v1434, %v1432
    %v1459 = vpack.c.b16 %v1435, %v1433
    %v1460 = vpack.c.b16 %v1438, %v1436
    %v1461 = vpack.c.b16 %v1439, %v1437
    %v1462 = vpack.c.b16 %v1442, %v1440
    %v1463 = vpack.c.b16 %v1443, %v1441
    %v1464 = vpack.c.b16 %v1446, %v1444
    %v1465 = vpack.c.b16 %v1447, %v1445
    %v1466 = vpack.c.b16 %v1450, %v1448
    %v1467 = vpack.c.b16 %v1451, %v1449
    %1484 = vmatprep.subr.bf16.mxu0 %v1467
    %1485 = vmatpush1.bf16.msra.mxu0 %v1466
    %1486 = vmatprep.subr.bf16.mxu0 %v1465
    %1487 = vmatpush1.bf16.msra.mxu0 %v1464
    %1488 = vmatprep.subr.bf16.mxu0 %v1463
    %1489 = vmatpush1.bf16.msra.mxu0 %v1462
    %1490 = vmatprep.subr.bf16.mxu0 %v1461
    %1491 = vmatpush1.bf16.msra.mxu0 %v1460
    %1492 = vmatprep.subr.bf16.mxu0 %v1459
    %1493 = vmatpush1.bf16.msra.mxu0 %v1458
    %1494 = vmatprep.subr.bf16.mxu0 %v1457
    %1495 = vmatpush1.bf16.msra.mxu0 %v1456
    %1496 = vmatprep.subr.bf16.mxu0 %v1455
    %1497 = vmatpush1.bf16.msra.mxu0 %v1454
    %1498 = vmatprep.subr.bf16.mxu0 %v1453
    %1499 = vmatpush1.bf16.msra.mxu0 %v1452
    %1500 = vmatprep.subr.bf16.mxu0 0
    %1501 = vmatpush2.bf16.msra.mxu0 0
    %1502 = vmatprep.subr.bf16.mxu0 0
    %1503 = vmatpush2.bf16.msra.mxu0 0
    %1504 = vmatprep.subr.bf16.mxu0 0
    %1505 = vmatpush2.bf16.msra.mxu0 0
    %1506 = vmatprep.subr.bf16.mxu0 0
    %1507 = vmatpush2.bf16.msra.mxu0 0
    %1508 = vmatprep.subr.bf16.mxu0 0
    %1509 = vmatpush2.bf16.msra.mxu0 0
    %1510 = vmatprep.subr.bf16.mxu0 0
    %1511 = vmatpush2.bf16.msra.mxu0 0
    %1512 = vmatprep.subr.bf16.mxu0 0
    %1513 = vmatpush2.bf16.msra.mxu0 0
    %1514 = vmatprep.subr.bf16.mxu0 0
    %1515 = vmatpush2.bf16.msra.mxu0 0
    %1516 = vmatprep.mubr.bf16.mxu0 0
    %1517 = vmatmul.mubr.bf16.gmra.mxu0 %v1075
    %v1518 = vpop.f32.mrf.mxu0
    %v1519 = vadd.f32 0.0, %v1518
    %v1520 = vpop.f32.mrf.mxu0
    %v1521 = vadd.f32 0.0, %v1520
    %v1522 = vpop.f32.mrf.mxu0
    %v1523 = vadd.f32 0.0, %v1522
    %v1524 = vpop.f32.mrf.mxu0
    %v1525 = vadd.f32 0.0, %v1524
    %1526 = vmatprep.mubr.bf16.mxu0 0
    %1527 = vmatmul.mubr.bf16.gmra.mxu0 %v1076
    %v1528 = vpop.f32.mrf.mxu0
    %v1529 = vadd.f32 0.0, %v1528
    %v1530 = vpop.f32.mrf.mxu0
    %v1531 = vadd.f32 0.0, %v1530
    %v1532 = vpop.f32.mrf.mxu0
    %v1533 = vadd.f32 0.0, %v1532
    %v1534 = vpop.f32.mrf.mxu0
    %v1535 = vadd.f32 0.0, %v1534
    %1536 = vmatprep.mubr.bf16.mxu0 0
    %1537 = vmatmul.mubr.bf16.gmra.mxu0 %v1077
    %v1538 = vpop.f32.mrf.mxu0
    %v1539 = vadd.f32 0.0, %v1538
    %v1540 = vpop.f32.mrf.mxu0
    %v1541 = vadd.f32 0.0, %v1540
    %v1542 = vpop.f32.mrf.mxu0
    %v1543 = vadd.f32 0.0, %v1542
    %v1544 = vpop.f32.mrf.mxu0
    %v1545 = vadd.f32 0.0, %v1544
    %1546 = vmatprep.mubr.bf16.mxu0 0
    %1547 = vmatmul.mubr.bf16.gmra.mxu0 %v1078
    %v1548 = vpop.f32.mrf.mxu0
    %v1549 = vadd.f32 0.0, %v1548
    %v1550 = vpop.f32.mrf.mxu0
    %v1551 = vadd.f32 0.0, %v1550
    %v1552 = vpop.f32.mrf.mxu0
    %v1553 = vadd.f32 0.0, %v1552
    %v1554 = vpop.f32.mrf.mxu0
    %v1555 = vadd.f32 0.0, %v1554
    %1556 = vdwg.mxu0
    %v1573 = vunpack.c.l.b16 %v1139
    %v1574 = vunpack.c.h.b16 %v1139
    %v1575 = vunpack.c.l.b16 %v1140
    %v1576 = vunpack.c.h.b16 %v1140
    %v1577 = vunpack.c.l.b16 %v1141
    %v1578 = vunpack.c.h.b16 %v1141
    %v1579 = vunpack.c.l.b16 %v1142
    %v1580 = vunpack.c.h.b16 %v1142
    %v1581 = vunpack.c.l.b16 %v1143
    %v1582 = vunpack.c.h.b16 %v1143
    %v1583 = vunpack.c.l.b16 %v1144
    %v1584 = vunpack.c.h.b16 %v1144
    %v1585 = vunpack.c.l.b16 %v1145
    %v1586 = vunpack.c.h.b16 %v1145
    %v1587 = vunpack.c.l.b16 %v1146
    %v1588 = vunpack.c.h.b16 %v1146
    %v1589 = vunpack.c.l.b16 %v1147
    %v1590 = vunpack.c.h.b16 %v1147
    %v1591 = vunpack.c.l.b16 %v1148
    %v1592 = vunpack.c.h.b16 %v1148
    %v1593 = vunpack.c.l.b16 %v1149
    %v1594 = vunpack.c.h.b16 %v1149
    %v1595 = vunpack.c.l.b16 %v1150
    %v1596 = vunpack.c.h.b16 %v1150
    %v1597 = vunpack.c.l.b16 %v1151
    %v1598 = vunpack.c.h.b16 %v1151
    %v1599 = vunpack.c.l.b16 %v1152
    %v1600 = vunpack.c.h.b16 %v1152
    %v1601 = vunpack.c.l.b16 %v1153
    %v1602 = vunpack.c.h.b16 %v1153
    %v1603 = vunpack.c.l.b16 %v1154
    %v1604 = vunpack.c.h.b16 %v1154
    %v1605 = vpack.c.b16 %v1575, %v1573
    %v1606 = vpack.c.b16 %v1576, %v1574
    %v1607 = vpack.c.b16 %v1579, %v1577
    %v1608 = vpack.c.b16 %v1580, %v1578
    %v1609 = vpack.c.b16 %v1583, %v1581
    %v1610 = vpack.c.b16 %v1584, %v1582
    %v1611 = vpack.c.b16 %v1587, %v1585
    %v1612 = vpack.c.b16 %v1588, %v1586
    %v1613 = vpack.c.b16 %v1591, %v1589
    %v1614 = vpack.c.b16 %v1592, %v1590
    %v1615 = vpack.c.b16 %v1595, %v1593
    %v1616 = vpack.c.b16 %v1596, %v1594
    %v1617 = vpack.c.b16 %v1599, %v1597
    %v1618 = vpack.c.b16 %v1600, %v1598
    %v1619 = vpack.c.b16 %v1603, %v1601
    %v1620 = vpack.c.b16 %v1604, %v1602
    %1637 = vmatprep.subr.bf16.mxu0 %v1620
    %1638 = vmatpush1.bf16.msra.mxu0 %v1619
    %1639 = vmatprep.subr.bf16.mxu0 %v1618
    %1640 = vmatpush1.bf16.msra.mxu0 %v1617
    %1641 = vmatprep.subr.bf16.mxu0 %v1616
    %1642 = vmatpush1.bf16.msra.mxu0 %v1615
    %1643 = vmatprep.subr.bf16.mxu0 %v1614
    %1644 = vmatpush1.bf16.msra.mxu0 %v1613
    %1645 = vmatprep.subr.bf16.mxu0 %v1612
    %1646 = vmatpush1.bf16.msra.mxu0 %v1611
    %1647 = vmatprep.subr.bf16.mxu0 %v1610
    %1648 = vmatpush1.bf16.msra.mxu0 %v1609
    %1649 = vmatprep.subr.bf16.mxu0 %v1608
    %1650 = vmatpush1.bf16.msra.mxu0 %v1607
    %1651 = vmatprep.subr.bf16.mxu0 %v1606
    %1652 = vmatpush1.bf16.msra.mxu0 %v1605
    %1653 = vmatprep.subr.bf16.mxu0 0
    %1654 = vmatpush2.bf16.msra.mxu0 0
    %1655 = vmatprep.subr.bf16.mxu0 0
    %1656 = vmatpush2.bf16.msra.mxu0 0
    %1657 = vmatprep.subr.bf16.mxu0 0
    %1658 = vmatpush2.bf16.msra.mxu0 0
    %1659 = vmatprep.subr.bf16.mxu0 0
    %1660 = vmatpush2.bf16.msra.mxu0 0
    %1661 = vmatprep.subr.bf16.mxu0 0
    %1662 = vmatpush2.bf16.msra.mxu0 0
    %1663 = vmatprep.subr.bf16.mxu0 0
    %1664 = vmatpush2.bf16.msra.mxu0 0
    %1665 = vmatprep.subr.bf16.mxu0 0
    %1666 = vmatpush2.bf16.msra.mxu0 0
    %1667 = vmatprep.subr.bf16.mxu0 0
    %1668 = vmatpush2.bf16.msra.mxu0 0
    %1669 = vmatprep.mubr.bf16.mxu0 0
    %1670 = vmatmul.mubr.bf16.gmra.mxu0 %v1079
    %v1671 = vpop.f32.mrf.mxu0
    %v1672 = vadd.f32 0.0, %v1671
    %v1673 = vpop.f32.mrf.mxu0
    %v1674 = vadd.f32 0.0, %v1673
    %v1675 = vpop.f32.mrf.mxu0
    %v1676 = vadd.f32 0.0, %v1675
    %v1677 = vpop.f32.mrf.mxu0
    %v1678 = vadd.f32 0.0, %v1677
    %1679 = vmatprep.mubr.bf16.mxu0 0
    %1680 = vmatmul.mubr.bf16.gmra.mxu0 %v1080
    %v1681 = vpop.f32.mrf.mxu0
    %v1682 = vadd.f32 0.0, %v1681
    %v1683 = vpop.f32.mrf.mxu0
    %v1684 = vadd.f32 0.0, %v1683
    %v1685 = vpop.f32.mrf.mxu0
    %v1686 = vadd.f32 0.0, %v1685
    %v1687 = vpop.f32.mrf.mxu0
    %v1688 = vadd.f32 0.0, %v1687
    %1689 = vmatprep.mubr.bf16.mxu0 0
    %1690 = vmatmul.mubr.bf16.gmra.mxu0 %v1081
    %v1691 = vpop.f32.mrf.mxu0
    %v1692 = vadd.f32 0.0, %v1691
    %v1693 = vpop.f32.mrf.mxu0
    %v1694 = vadd.f32 0.0, %v1693
    %v1695 = vpop.f32.mrf.mxu0
    %v1696 = vadd.f32 0.0, %v1695
    %v1697 = vpop.f32.mrf.mxu0
    %v1698 = vadd.f32 0.0, %v1697
    %1699 = vmatprep.mubr.bf16.mxu0 0
    %1700 = vmatmul.mubr.bf16.gmra.mxu0 %v1082
    %v1701 = vpop.f32.mrf.mxu0
    %v1702 = vadd.f32 0.0, %v1701
    %v1703 = vpop.f32.mrf.mxu0
    %v1704 = vadd.f32 0.0, %v1703
    %v1705 = vpop.f32.mrf.mxu0
    %v1706 = vadd.f32 0.0, %v1705
    %v1707 = vpop.f32.mrf.mxu0
    %v1708 = vadd.f32 0.0, %v1707
    %1709 = vdwg.mxu0
    %v1726 = vunpack.c.l.b16 %v1155
    %v1727 = vunpack.c.h.b16 %v1155
    %v1728 = vunpack.c.l.b16 %v1156
    %v1729 = vunpack.c.h.b16 %v1156
    %v1730 = vunpack.c.l.b16 %v1157
    %v1731 = vunpack.c.h.b16 %v1157
    %v1732 = vunpack.c.l.b16 %v1158
    %v1733 = vunpack.c.h.b16 %v1158
    %v1734 = vunpack.c.l.b16 %v1159
    %v1735 = vunpack.c.h.b16 %v1159
    %v1736 = vunpack.c.l.b16 %v1160
    %v1737 = vunpack.c.h.b16 %v1160
    %v1738 = vunpack.c.l.b16 %v1161
    %v1739 = vunpack.c.h.b16 %v1161
    %v1740 = vunpack.c.l.b16 %v1162
    %v1741 = vunpack.c.h.b16 %v1162
    %v1742 = vunpack.c.l.b16 %v1163
    %v1743 = vunpack.c.h.b16 %v1163
    %v1744 = vunpack.c.l.b16 %v1164
    %v1745 = vunpack.c.h.b16 %v1164
    %v1746 = vunpack.c.l.b16 %v1165
    %v1747 = vunpack.c.h.b16 %v1165
    %v1748 = vunpack.c.l.b16 %v1166
    %v1749 = vunpack.c.h.b16 %v1166
    %v1750 = vunpack.c.l.b16 %v1167
    %v1751 = vunpack.c.h.b16 %v1167
    %v1752 = vunpack.c.l.b16 %v1168
    %v1753 = vunpack.c.h.b16 %v1168
    %v1754 = vunpack.c.l.b16 %v1169
    %v1755 = vunpack.c.h.b16 %v1169
    %v1756 = vunpack.c.l.b16 %v1170
    %v1757 = vunpack.c.h.b16 %v1170
    %v1758 = vpack.c.b16 %v1728, %v1726
    %v1759 = vpack.c.b16 %v1729, %v1727
    %v1760 = vpack.c.b16 %v1732, %v1730
    %v1761 = vpack.c.b16 %v1733, %v1731
    %v1762 = vpack.c.b16 %v1736, %v1734
    %v1763 = vpack.c.b16 %v1737, %v1735
    %v1764 = vpack.c.b16 %v1740, %v1738
    %v1765 = vpack.c.b16 %v1741, %v1739
    %v1766 = vpack.c.b16 %v1744, %v1742
    %v1767 = vpack.c.b16 %v1745, %v1743
    %v1768 = vpack.c.b16 %v1748, %v1746
    %v1769 = vpack.c.b16 %v1749, %v1747
    %v1770 = vpack.c.b16 %v1752, %v1750
    %v1771 = vpack.c.b16 %v1753, %v1751
    %v1772 = vpack.c.b16 %v1756, %v1754
    %v1773 = vpack.c.b16 %v1757, %v1755
    %1790 = vmatprep.subr.bf16.mxu0 %v1773
    %1791 = vmatpush1.bf16.msra.mxu0 %v1772
    %1792 = vmatprep.subr.bf16.mxu0 %v1771
    %1793 = vmatpush1.bf16.msra.mxu0 %v1770
    %1794 = vmatprep.subr.bf16.mxu0 %v1769
    %1795 = vmatpush1.bf16.msra.mxu0 %v1768
    %1796 = vmatprep.subr.bf16.mxu0 %v1767
    %1797 = vmatpush1.bf16.msra.mxu0 %v1766
    %1798 = vmatprep.subr.bf16.mxu0 %v1765
    %1799 = vmatpush1.bf16.msra.mxu0 %v1764
    %1800 = vmatprep.subr.bf16.mxu0 %v1763
    %1801 = vmatpush1.bf16.msra.mxu0 %v1762
    %1802 = vmatprep.subr.bf16.mxu0 %v1761
    %1803 = vmatpush1.bf16.msra.mxu0 %v1760
    %1804 = vmatprep.subr.bf16.mxu0 %v1759
    %1805 = vmatpush1.bf16.msra.mxu0 %v1758
    %1806 = vmatprep.subr.bf16.mxu0 0
    %1807 = vmatpush2.bf16.msra.mxu0 0
    %1808 = vmatprep.subr.bf16.mxu0 0
    %1809 = vmatpush2.bf16.msra.mxu0 0
    %1810 = vmatprep.subr.bf16.mxu0 0
    %1811 = vmatpush2.bf16.msra.mxu0 0
    %1812 = vmatprep.subr.bf16.mxu0 0
    %1813 = vmatpush2.bf16.msra.mxu0 0
    %1814 = vmatprep.subr.bf16.mxu0 0
    %1815 = vmatpush2.bf16.msra.mxu0 0
    %1816 = vmatprep.subr.bf16.mxu0 0
    %1817 = vmatpush2.bf16.msra.mxu0 0
    %1818 = vmatprep.subr.bf16.mxu0 0
    %1819 = vmatpush2.bf16.msra.mxu0 0
    %1820 = vmatprep.subr.bf16.mxu0 0
    %1821 = vmatpush2.bf16.msra.mxu0 0
    %1822 = vmatprep.mubr.bf16.mxu0 0
    %1823 = vmatmul.mubr.bf16.gmra.mxu0 %v1083
    %v1824 = vpop.f32.mrf.mxu0
    %v1825 = vadd.f32 0.0, %v1824
    %v1826 = vpop.f32.mrf.mxu0
    %v1827 = vadd.f32 0.0, %v1826
    %v1828 = vpop.f32.mrf.mxu0
    %v1829 = vadd.f32 0.0, %v1828
    %v1830 = vpop.f32.mrf.mxu0
    %v1831 = vadd.f32 0.0, %v1830
    %1832 = vmatprep.mubr.bf16.mxu0 0
    %1833 = vmatmul.mubr.bf16.gmra.mxu0 %v1084
    %v1834 = vpop.f32.mrf.mxu0
    %v1835 = vadd.f32 0.0, %v1834
    %v1836 = vpop.f32.mrf.mxu0
    %v1837 = vadd.f32 0.0, %v1836
    %v1838 = vpop.f32.mrf.mxu0
    %v1839 = vadd.f32 0.0, %v1838
    %v1840 = vpop.f32.mrf.mxu0
    %v1841 = vadd.f32 0.0, %v1840
    %1842 = vmatprep.mubr.bf16.mxu0 0
    %1843 = vmatmul.mubr.bf16.gmra.mxu0 %v1085
    %v1844 = vpop.f32.mrf.mxu0
    %v1845 = vadd.f32 0.0, %v1844
    %v1846 = vpop.f32.mrf.mxu0
    %v1847 = vadd.f32 0.0, %v1846
    %v1848 = vpop.f32.mrf.mxu0
    %v1849 = vadd.f32 0.0, %v1848
    %v1850 = vpop.f32.mrf.mxu0
    %v1851 = vadd.f32 0.0, %v1850
    %1852 = vmatprep.mubr.bf16.mxu0 0
    %1853 = vmatmul.mubr.bf16.gmra.mxu0 %v1086
    %v1854 = vpop.f32.mrf.mxu0
    %v1855 = vadd.f32 0.0, %v1854
    %v1856 = vpop.f32.mrf.mxu0
    %v1857 = vadd.f32 0.0, %v1856
    %v1858 = vpop.f32.mrf.mxu0
    %v1859 = vadd.f32 0.0, %v1858
    %v1860 = vpop.f32.mrf.mxu0
    %v1861 = vadd.f32 0.0, %v1860
    %1862 = vdwg.mxu0
    %v1879 = vunpack.c.l.b16 %v1171
    %v1880 = vunpack.c.h.b16 %v1171
    %v1881 = vunpack.c.l.b16 %v1172
    %v1882 = vunpack.c.h.b16 %v1172
    %v1883 = vunpack.c.l.b16 %v1173
    %v1884 = vunpack.c.h.b16 %v1173
    %v1885 = vunpack.c.l.b16 %v1174
    %v1886 = vunpack.c.h.b16 %v1174
    %v1887 = vunpack.c.l.b16 %v1175
    %v1888 = vunpack.c.h.b16 %v1175
    %v1889 = vunpack.c.l.b16 %v1176
    %v1890 = vunpack.c.h.b16 %v1176
    %v1891 = vunpack.c.l.b16 %v1177
    %v1892 = vunpack.c.h.b16 %v1177
    %v1893 = vunpack.c.l.b16 %v1178
    %v1894 = vunpack.c.h.b16 %v1178
    %v1895 = vunpack.c.l.b16 %v1179
    %v1896 = vunpack.c.h.b16 %v1179
    %v1897 = vunpack.c.l.b16 %v1180
    %v1898 = vunpack.c.h.b16 %v1180
    %v1899 = vunpack.c.l.b16 %v1181
    %v1900 = vunpack.c.h.b16 %v1181
    %v1901 = vunpack.c.l.b16 %v1182
    %v1902 = vunpack.c.h.b16 %v1182
    %v1903 = vunpack.c.l.b16 %v1183
    %v1904 = vunpack.c.h.b16 %v1183
    %v1905 = vunpack.c.l.b16 %v1184
    %v1906 = vunpack.c.h.b16 %v1184
    %v1907 = vunpack.c.l.b16 %v1185
    %v1908 = vunpack.c.h.b16 %v1185
    %v1909 = vunpack.c.l.b16 %v1186
    %v1910 = vunpack.c.h.b16 %v1186
    %v1911 = vpack.c.b16 %v1881, %v1879
    %v1912 = vpack.c.b16 %v1882, %v1880
    %v1913 = vpack.c.b16 %v1885, %v1883
    %v1914 = vpack.c.b16 %v1886, %v1884
    %v1915 = vpack.c.b16 %v1889, %v1887
    %v1916 = vpack.c.b16 %v1890, %v1888
    %v1917 = vpack.c.b16 %v1893, %v1891
    %v1918 = vpack.c.b16 %v1894, %v1892
    %v1919 = vpack.c.b16 %v1897, %v1895
    %v1920 = vpack.c.b16 %v1898, %v1896
    %v1921 = vpack.c.b16 %v1901, %v1899
    %v1922 = vpack.c.b16 %v1902, %v1900
    %v1923 = vpack.c.b16 %v1905, %v1903
    %v1924 = vpack.c.b16 %v1906, %v1904
    %v1925 = vpack.c.b16 %v1909, %v1907
    %v1926 = vpack.c.b16 %v1910, %v1908
    %1943 = vmatprep.subr.bf16.mxu0 %v1926
    %1944 = vmatpush1.bf16.msra.mxu0 %v1925
    %1945 = vmatprep.subr.bf16.mxu0 %v1924
    %1946 = vmatpush1.bf16.msra.mxu0 %v1923
    %1947 = vmatprep.subr.bf16.mxu0 %v1922
    %1948 = vmatpush1.bf16.msra.mxu0 %v1921
    %1949 = vmatprep.subr.bf16.mxu0 %v1920
    %1950 = vmatpush1.bf16.msra.mxu0 %v1919
    %1951 = vmatprep.subr.bf16.mxu0 %v1918
    %1952 = vmatpush1.bf16.msra.mxu0 %v1917
    %1953 = vmatprep.subr.bf16.mxu0 %v1916
    %1954 = vmatpush1.bf16.msra.mxu0 %v1915
    %1955 = vmatprep.subr.bf16.mxu0 %v1914
    %1956 = vmatpush1.bf16.msra.mxu0 %v1913
    %1957 = vmatprep.subr.bf16.mxu0 %v1912
    %1958 = vmatpush1.bf16.msra.mxu0 %v1911
    %1959 = vmatprep.subr.bf16.mxu0 0
    %1960 = vmatpush2.bf16.msra.mxu0 0
    %1961 = vmatprep.subr.bf16.mxu0 0
    %1962 = vmatpush2.bf16.msra.mxu0 0
    %1963 = vmatprep.subr.bf16.mxu0 0
    %1964 = vmatpush2.bf16.msra.mxu0 0
    %1965 = vmatprep.subr.bf16.mxu0 0
    %1966 = vmatpush2.bf16.msra.mxu0 0
    %1967 = vmatprep.subr.bf16.mxu0 0
    %1968 = vmatpush2.bf16.msra.mxu0 0
    %1969 = vmatprep.subr.bf16.mxu0 0
    %1970 = vmatpush2.bf16.msra.mxu0 0
    %1971 = vmatprep.subr.bf16.mxu0 0
    %1972 = vmatpush2.bf16.msra.mxu0 0
    %1973 = vmatprep.subr.bf16.mxu0 0
    %1974 = vmatpush2.bf16.msra.mxu0 0
    %1975 = vmatprep.mubr.bf16.mxu0 0
    %1976 = vmatmul.mubr.bf16.gmra.mxu0 %v1087
    %v1977 = vpop.f32.mrf.mxu0
    %v1978 = vadd.f32 0.0, %v1977
    %v1979 = vpop.f32.mrf.mxu0
    %v1980 = vadd.f32 0.0, %v1979
    %v1981 = vpop.f32.mrf.mxu0
    %v1982 = vadd.f32 0.0, %v1981
    %v1983 = vpop.f32.mrf.mxu0
    %v1984 = vadd.f32 0.0, %v1983
    %1985 = vmatprep.mubr.bf16.mxu0 0
    %1986 = vmatmul.mubr.bf16.gmra.mxu0 %v1088
    %v1987 = vpop.f32.mrf.mxu0
    %v1988 = vadd.f32 0.0, %v1987
    %v1989 = vpop.f32.mrf.mxu0
    %v1990 = vadd.f32 0.0, %v1989
    %v1991 = vpop.f32.mrf.mxu0
    %v1992 = vadd.f32 0.0, %v1991
    %v1993 = vpop.f32.mrf.mxu0
    %v1994 = vadd.f32 0.0, %v1993
    %1995 = vmatprep.mubr.bf16.mxu0 0
    %1996 = vmatmul.mubr.bf16.gmra.mxu0 %v1089
    %v1997 = vpop.f32.mrf.mxu0
    %v1998 = vadd.f32 0.0, %v1997
    %v1999 = vpop.f32.mrf.mxu0
    %v2000 = vadd.f32 0.0, %v1999
    %v2001 = vpop.f32.mrf.mxu0
    %v2002 = vadd.f32 0.0, %v2001
    %v2003 = vpop.f32.mrf.mxu0
    %v2004 = vadd.f32 0.0, %v2003
    %2005 = vmatprep.mubr.bf16.mxu0 0
    %2006 = vmatmul.mubr.bf16.gmra.mxu0 %v1090
    %v2007 = vpop.f32.mrf.mxu0
    %v2008 = vadd.f32 0.0, %v2007
    %v2009 = vpop.f32.mrf.mxu0
    %v2010 = vadd.f32 0.0, %v2009
    %v2011 = vpop.f32.mrf.mxu0
    %v2012 = vadd.f32 0.0, %v2011
    %v2013 = vpop.f32.mrf.mxu0
    %v2014 = vadd.f32 0.0, %v2013
    %2015 = vdwg.mxu0
    %v2032 = vunpack.c.l.b16 %v1187
    %v2033 = vunpack.c.h.b16 %v1187
    %v2034 = vunpack.c.l.b16 %v1188
    %v2035 = vunpack.c.h.b16 %v1188
    %v2036 = vunpack.c.l.b16 %v1189
    %v2037 = vunpack.c.h.b16 %v1189
    %v2038 = vunpack.c.l.b16 %v1190
    %v2039 = vunpack.c.h.b16 %v1190
    %v2040 = vunpack.c.l.b16 %v1191
    %v2041 = vunpack.c.h.b16 %v1191
    %v2042 = vunpack.c.l.b16 %v1192
    %v2043 = vunpack.c.h.b16 %v1192
    %v2044 = vunpack.c.l.b16 %v1193
    %v2045 = vunpack.c.h.b16 %v1193
    %v2046 = vunpack.c.l.b16 %v1194
    %v2047 = vunpack.c.h.b16 %v1194
    %v2048 = vunpack.c.l.b16 %v1195
    %v2049 = vunpack.c.h.b16 %v1195
    %v2050 = vunpack.c.l.b16 %v1196
    %v2051 = vunpack.c.h.b16 %v1196
    %v2052 = vunpack.c.l.b16 %v1197
    %v2053 = vunpack.c.h.b16 %v1197
    %v2054 = vunpack.c.l.b16 %v1198
    %v2055 = vunpack.c.h.b16 %v1198
    %v2056 = vunpack.c.l.b16 %v1199
    %v2057 = vunpack.c.h.b16 %v1199
    %v2058 = vunpack.c.l.b16 %v1200
    %v2059 = vunpack.c.h.b16 %v1200
    %v2060 = vunpack.c.l.b16 %v1201
    %v2061 = vunpack.c.h.b16 %v1201
    %v2062 = vunpack.c.l.b16 %v1202
    %v2063 = vunpack.c.h.b16 %v1202
    %v2064 = vpack.c.b16 %v2034, %v2032
    %v2065 = vpack.c.b16 %v2035, %v2033
    %v2066 = vpack.c.b16 %v2038, %v2036
    %v2067 = vpack.c.b16 %v2039, %v2037
    %v2068 = vpack.c.b16 %v2042, %v2040
    %v2069 = vpack.c.b16 %v2043, %v2041
    %v2070 = vpack.c.b16 %v2046, %v2044
    %v2071 = vpack.c.b16 %v2047, %v2045
    %v2072 = vpack.c.b16 %v2050, %v2048
    %v2073 = vpack.c.b16 %v2051, %v2049
    %v2074 = vpack.c.b16 %v2054, %v2052
    %v2075 = vpack.c.b16 %v2055, %v2053
    %v2076 = vpack.c.b16 %v2058, %v2056
    %v2077 = vpack.c.b16 %v2059, %v2057
    %v2078 = vpack.c.b16 %v2062, %v2060
    %v2079 = vpack.c.b16 %v2063, %v2061
    %2096 = vmatprep.subr.bf16.mxu0 %v2079
    %2097 = vmatpush1.bf16.msra.mxu0 %v2078
    %2098 = vmatprep.subr.bf16.mxu0 %v2077
    %2099 = vmatpush1.bf16.msra.mxu0 %v2076
    %2100 = vmatprep.subr.bf16.mxu0 %v2075
    %2101 = vmatpush1.bf16.msra.mxu0 %v2074
    %2102 = vmatprep.subr.bf16.mxu0 %v2073
    %2103 = vmatpush1.bf16.msra.mxu0 %v2072
    %2104 = vmatprep.subr.bf16.mxu0 %v2071
    %2105 = vmatpush1.bf16.msra.mxu0 %v2070
    %2106 = vmatprep.subr.bf16.mxu0 %v2069
    %2107 = vmatpush1.bf16.msra.mxu0 %v2068
    %2108 = vmatprep.subr.bf16.mxu0 %v2067
    %2109 = vmatpush1.bf16.msra.mxu0 %v2066
    %2110 = vmatprep.subr.bf16.mxu0 %v2065
    %2111 = vmatpush1.bf16.msra.mxu0 %v2064
    %2112 = vmatprep.subr.bf16.mxu0 0
    %2113 = vmatpush2.bf16.msra.mxu0 0
    %2114 = vmatprep.subr.bf16.mxu0 0
    %2115 = vmatpush2.bf16.msra.mxu0 0
    %2116 = vmatprep.subr.bf16.mxu0 0
    %2117 = vmatpush2.bf16.msra.mxu0 0
    %2118 = vmatprep.subr.bf16.mxu0 0
    %2119 = vmatpush2.bf16.msra.mxu0 0
    %2120 = vmatprep.subr.bf16.mxu0 0
    %2121 = vmatpush2.bf16.msra.mxu0 0
    %2122 = vmatprep.subr.bf16.mxu0 0
    %2123 = vmatpush2.bf16.msra.mxu0 0
    %2124 = vmatprep.subr.bf16.mxu0 0
    %2125 = vmatpush2.bf16.msra.mxu0 0
    %2126 = vmatprep.subr.bf16.mxu0 0
    %2127 = vmatpush2.bf16.msra.mxu0 0
    %2128 = vmatprep.mubr.bf16.mxu0 0
    %2129 = vmatmul.mubr.bf16.gmra.mxu0 %v1091
    %v2130 = vpop.f32.mrf.mxu0
    %v2131 = vadd.f32 0.0, %v2130
    %v2132 = vpop.f32.mrf.mxu0
    %v2133 = vadd.f32 0.0, %v2132
    %v2134 = vpop.f32.mrf.mxu0
    %v2135 = vadd.f32 0.0, %v2134
    %v2136 = vpop.f32.mrf.mxu0
    %v2137 = vadd.f32 0.0, %v2136
    %2138 = vmatprep.mubr.bf16.mxu0 0
    %2139 = vmatmul.mubr.bf16.gmra.mxu0 %v1092
    %v2140 = vpop.f32.mrf.mxu0
    %v2141 = vadd.f32 0.0, %v2140
    %v2142 = vpop.f32.mrf.mxu0
    %v2143 = vadd.f32 0.0, %v2142
    %v2144 = vpop.f32.mrf.mxu0
    %v2145 = vadd.f32 0.0, %v2144
    %v2146 = vpop.f32.mrf.mxu0
    %v2147 = vadd.f32 0.0, %v2146
    %2148 = vmatprep.mubr.bf16.mxu0 0
    %2149 = vmatmul.mubr.bf16.gmra.mxu0 %v1093
    %v2150 = vpop.f32.mrf.mxu0
    %v2151 = vadd.f32 0.0, %v2150
    %v2152 = vpop.f32.mrf.mxu0
    %v2153 = vadd.f32 0.0, %v2152
    %v2154 = vpop.f32.mrf.mxu0
    %v2155 = vadd.f32 0.0, %v2154
    %v2156 = vpop.f32.mrf.mxu0
    %v2157 = vadd.f32 0.0, %v2156
    %2158 = vmatprep.mubr.bf16.mxu0 0
    %2159 = vmatmul.mubr.bf16.gmra.mxu0 %v1094
    %v2160 = vpop.f32.mrf.mxu0
    %v2161 = vadd.f32 0.0, %v2160
    %v2162 = vpop.f32.mrf.mxu0
    %v2163 = vadd.f32 0.0, %v2162
    %v2164 = vpop.f32.mrf.mxu0
    %v2165 = vadd.f32 0.0, %v2164
    %v2166 = vpop.f32.mrf.mxu0
    %v2167 = vadd.f32 0.0, %v2166
    %2168 = vdwg.mxu0
    %v2185 = vunpack.c.l.b16 %v1203
    %v2186 = vunpack.c.h.b16 %v1203
    %v2187 = vunpack.c.l.b16 %v1204
    %v2188 = vunpack.c.h.b16 %v1204
    %v2189 = vunpack.c.l.b16 %v1205
    %v2190 = vunpack.c.h.b16 %v1205
    %v2191 = vunpack.c.l.b16 %v1206
    %v2192 = vunpack.c.h.b16 %v1206
    %v2193 = vunpack.c.l.b16 %v1207
    %v2194 = vunpack.c.h.b16 %v1207
    %v2195 = vunpack.c.l.b16 %v1208
    %v2196 = vunpack.c.h.b16 %v1208
    %v2197 = vunpack.c.l.b16 %v1209
    %v2198 = vunpack.c.h.b16 %v1209
    %v2199 = vunpack.c.l.b16 %v1210
    %v2200 = vunpack.c.h.b16 %v1210
    %v2201 = vunpack.c.l.b16 %v1211
    %v2202 = vunpack.c.h.b16 %v1211
    %v2203 = vunpack.c.l.b16 %v1212
    %v2204 = vunpack.c.h.b16 %v1212
    %v2205 = vunpack.c.l.b16 %v1213
    %v2206 = vunpack.c.h.b16 %v1213
    %v2207 = vunpack.c.l.b16 %v1214
    %v2208 = vunpack.c.h.b16 %v1214
    %v2209 = vunpack.c.l.b16 %v1215
    %v2210 = vunpack.c.h.b16 %v1215
    %v2211 = vunpack.c.l.b16 %v1216
    %v2212 = vunpack.c.h.b16 %v1216
    %v2213 = vunpack.c.l.b16 %v1217
    %v2214 = vunpack.c.h.b16 %v1217
    %v2215 = vunpack.c.l.b16 %v1218
    %v2216 = vunpack.c.h.b16 %v1218
    %v2217 = vpack.c.b16 %v2187, %v2185
    %v2218 = vpack.c.b16 %v2188, %v2186
    %v2219 = vpack.c.b16 %v2191, %v2189
    %v2220 = vpack.c.b16 %v2192, %v2190
    %v2221 = vpack.c.b16 %v2195, %v2193
    %v2222 = vpack.c.b16 %v2196, %v2194
    %v2223 = vpack.c.b16 %v2199, %v2197
    %v2224 = vpack.c.b16 %v2200, %v2198
    %v2225 = vpack.c.b16 %v2203, %v2201
    %v2226 = vpack.c.b16 %v2204, %v2202
    %v2227 = vpack.c.b16 %v2207, %v2205
    %v2228 = vpack.c.b16 %v2208, %v2206
    %v2229 = vpack.c.b16 %v2211, %v2209
    %v2230 = vpack.c.b16 %v2212, %v2210
    %v2231 = vpack.c.b16 %v2215, %v2213
    %v2232 = vpack.c.b16 %v2216, %v2214
    %2249 = vmatprep.subr.bf16.mxu0 %v2232
    %2250 = vmatpush1.bf16.msra.mxu0 %v2231
    %2251 = vmatprep.subr.bf16.mxu0 %v2230
    %2252 = vmatpush1.bf16.msra.mxu0 %v2229
    %2253 = vmatprep.subr.bf16.mxu0 %v2228
    %2254 = vmatpush1.bf16.msra.mxu0 %v2227
    %2255 = vmatprep.subr.bf16.mxu0 %v2226
    %2256 = vmatpush1.bf16.msra.mxu0 %v2225
    %2257 = vmatprep.subr.bf16.mxu0 %v2224
    %2258 = vmatpush1.bf16.msra.mxu0 %v2223
    %2259 = vmatprep.subr.bf16.mxu0 %v2222
    %2260 = vmatpush1.bf16.msra.mxu0 %v2221
    %2261 = vmatprep.subr.bf16.mxu0 %v2220
    %2262 = vmatpush1.bf16.msra.mxu0 %v2219
    %2263 = vmatprep.subr.bf16.mxu0 %v2218
    %2264 = vmatpush1.bf16.msra.mxu0 %v2217
    %2265 = vmatprep.subr.bf16.mxu0 0
    %2266 = vmatpush2.bf16.msra.mxu0 0
    %2267 = vmatprep.subr.bf16.mxu0 0
    %2268 = vmatpush2.bf16.msra.mxu0 0
    %2269 = vmatprep.subr.bf16.mxu0 0
    %2270 = vmatpush2.bf16.msra.mxu0 0
    %2271 = vmatprep.subr.bf16.mxu0 0
    %2272 = vmatpush2.bf16.msra.mxu0 0
    %2273 = vmatprep.subr.bf16.mxu0 0
    %2274 = vmatpush2.bf16.msra.mxu0 0
    %2275 = vmatprep.subr.bf16.mxu0 0
    %2276 = vmatpush2.bf16.msra.mxu0 0
    %2277 = vmatprep.subr.bf16.mxu0 0
    %2278 = vmatpush2.bf16.msra.mxu0 0
    %2279 = vmatprep.subr.bf16.mxu0 0
    %2280 = vmatpush2.bf16.msra.mxu0 0
    %2281 = vmatprep.mubr.bf16.mxu0 0
    %2282 = vmatmul.mubr.bf16.gmra.mxu0 %v1095
    %v2283 = vpop.f32.mrf.mxu0
    %v2284 = vadd.f32 0.0, %v2283
    %v2285 = vpop.f32.mrf.mxu0
    %v2286 = vadd.f32 0.0, %v2285
    %v2287 = vpop.f32.mrf.mxu0
    %v2288 = vadd.f32 0.0, %v2287
    %v2289 = vpop.f32.mrf.mxu0
    %v2290 = vadd.f32 0.0, %v2289
    %2291 = vmatprep.mubr.bf16.mxu0 0
    %2292 = vmatmul.mubr.bf16.gmra.mxu0 %v1096
    %v2293 = vpop.f32.mrf.mxu0
    %v2294 = vadd.f32 0.0, %v2293
    %v2295 = vpop.f32.mrf.mxu0
    %v2296 = vadd.f32 0.0, %v2295
    %v2297 = vpop.f32.mrf.mxu0
    %v2298 = vadd.f32 0.0, %v2297
    %v2299 = vpop.f32.mrf.mxu0
    %v2300 = vadd.f32 0.0, %v2299
    %2301 = vmatprep.mubr.bf16.mxu0 0
    %2302 = vmatmul.mubr.bf16.gmra.mxu0 %v1097
    %v2303 = vpop.f32.mrf.mxu0
    %v2304 = vadd.f32 0.0, %v2303
    %v2305 = vpop.f32.mrf.mxu0
    %v2306 = vadd.f32 0.0, %v2305
    %v2307 = vpop.f32.mrf.mxu0
    %v2308 = vadd.f32 0.0, %v2307
    %v2309 = vpop.f32.mrf.mxu0
    %v2310 = vadd.f32 0.0, %v2309
    %2311 = vmatprep.mubr.bf16.mxu0 0
    %2312 = vmatmul.mubr.bf16.gmra.mxu0 %v1098
    %v2313 = vpop.f32.mrf.mxu0
    %v2314 = vadd.f32 0.0, %v2313
    %v2315 = vpop.f32.mrf.mxu0
    %v2316 = vadd.f32 0.0, %v2315
    %v2317 = vpop.f32.mrf.mxu0
    %v2318 = vadd.f32 0.0, %v2317
    %v2319 = vpop.f32.mrf.mxu0
    %v2320 = vadd.f32 0.0, %v2319
    %2321 = vdwg.mxu0
    %v2338 = vunpack.c.l.b16 %v1219
    %v2339 = vunpack.c.h.b16 %v1219
    %v2340 = vunpack.c.l.b16 %v1220
    %v2341 = vunpack.c.h.b16 %v1220
    %v2342 = vunpack.c.l.b16 %v1221
    %v2343 = vunpack.c.h.b16 %v1221
    %v2344 = vunpack.c.l.b16 %v1222
    %v2345 = vunpack.c.h.b16 %v1222
    %v2346 = vunpack.c.l.b16 %v1223
    %v2347 = vunpack.c.h.b16 %v1223
    %v2348 = vunpack.c.l.b16 %v1224
    %v2349 = vunpack.c.h.b16 %v1224
    %v2350 = vunpack.c.l.b16 %v1225
    %v2351 = vunpack.c.h.b16 %v1225
    %v2352 = vunpack.c.l.b16 %v1226
    %v2353 = vunpack.c.h.b16 %v1226
    %v2354 = vunpack.c.l.b16 %v1227
    %v2355 = vunpack.c.h.b16 %v1227
    %v2356 = vunpack.c.l.b16 %v1228
    %v2357 = vunpack.c.h.b16 %v1228
    %v2358 = vunpack.c.l.b16 %v1229
    %v2359 = vunpack.c.h.b16 %v1229
    %v2360 = vunpack.c.l.b16 %v1230
    %v2361 = vunpack.c.h.b16 %v1230
    %v2362 = vunpack.c.l.b16 %v1231
    %v2363 = vunpack.c.h.b16 %v1231
    %v2364 = vunpack.c.l.b16 %v1232
    %v2365 = vunpack.c.h.b16 %v1232
    %v2366 = vunpack.c.l.b16 %v1233
    %v2367 = vunpack.c.h.b16 %v1233
    %v2368 = vunpack.c.l.b16 %v1234
    %v2369 = vunpack.c.h.b16 %v1234
    %v2370 = vpack.c.b16 %v2340, %v2338
    %v2371 = vpack.c.b16 %v2341, %v2339
    %v2372 = vpack.c.b16 %v2344, %v2342
    %v2373 = vpack.c.b16 %v2345, %v2343
    %v2374 = vpack.c.b16 %v2348, %v2346
    %v2375 = vpack.c.b16 %v2349, %v2347
    %v2376 = vpack.c.b16 %v2352, %v2350
    %v2377 = vpack.c.b16 %v2353, %v2351
    %v2378 = vpack.c.b16 %v2356, %v2354
    %v2379 = vpack.c.b16 %v2357, %v2355
    %v2380 = vpack.c.b16 %v2360, %v2358
    %v2381 = vpack.c.b16 %v2361, %v2359
    %v2382 = vpack.c.b16 %v2364, %v2362
    %v2383 = vpack.c.b16 %v2365, %v2363
    %v2384 = vpack.c.b16 %v2368, %v2366
    %v2385 = vpack.c.b16 %v2369, %v2367
    %2402 = vmatprep.subr.bf16.mxu0 %v2385
    %2403 = vmatpush1.bf16.msra.mxu0 %v2384
    %2404 = vmatprep.subr.bf16.mxu0 %v2383
    %2405 = vmatpush1.bf16.msra.mxu0 %v2382
    %2406 = vmatprep.subr.bf16.mxu0 %v2381
    %2407 = vmatpush1.bf16.msra.mxu0 %v2380
    %2408 = vmatprep.subr.bf16.mxu0 %v2379
    %2409 = vmatpush1.bf16.msra.mxu0 %v2378
    %2410 = vmatprep.subr.bf16.mxu0 %v2377
    %2411 = vmatpush1.bf16.msra.mxu0 %v2376
    %2412 = vmatprep.subr.bf16.mxu0 %v2375
    %2413 = vmatpush1.bf16.msra.mxu0 %v2374
    %2414 = vmatprep.subr.bf16.mxu0 %v2373
    %2415 = vmatpush1.bf16.msra.mxu0 %v2372
    %2416 = vmatprep.subr.bf16.mxu0 %v2371
    %2417 = vmatpush1.bf16.msra.mxu0 %v2370
    %2418 = vmatprep.subr.bf16.mxu0 0
    %2419 = vmatpush2.bf16.msra.mxu0 0
    %2420 = vmatprep.subr.bf16.mxu0 0
    %2421 = vmatpush2.bf16.msra.mxu0 0
    %2422 = vmatprep.subr.bf16.mxu0 0
    %2423 = vmatpush2.bf16.msra.mxu0 0
    %2424 = vmatprep.subr.bf16.mxu0 0
    %2425 = vmatpush2.bf16.msra.mxu0 0
    %2426 = vmatprep.subr.bf16.mxu0 0
    %2427 = vmatpush2.bf16.msra.mxu0 0
    %2428 = vmatprep.subr.bf16.mxu0 0
    %2429 = vmatpush2.bf16.msra.mxu0 0
    %2430 = vmatprep.subr.bf16.mxu0 0
    %2431 = vmatpush2.bf16.msra.mxu0 0
    %2432 = vmatprep.subr.bf16.mxu0 0
    %2433 = vmatpush2.bf16.msra.mxu0 0
    %2434 = vmatprep.mubr.bf16.mxu0 0
    %2435 = vmatmul.mubr.bf16.gmra.mxu0 %v1099
    %v2436 = vpop.f32.mrf.mxu0
    %v2437 = vadd.f32 0.0, %v2436
    %v2438 = vpop.f32.mrf.mxu0
    %v2439 = vadd.f32 0.0, %v2438
    %v2440 = vpop.f32.mrf.mxu0
    %v2441 = vadd.f32 0.0, %v2440
    %v2442 = vpop.f32.mrf.mxu0
    %v2443 = vadd.f32 0.0, %v2442
    %2444 = vmatprep.mubr.bf16.mxu0 0
    %2445 = vmatmul.mubr.bf16.gmra.mxu0 %v1100
    %v2446 = vpop.f32.mrf.mxu0
    %v2447 = vadd.f32 0.0, %v2446
    %v2448 = vpop.f32.mrf.mxu0
    %v2449 = vadd.f32 0.0, %v2448
    %v2450 = vpop.f32.mrf.mxu0
    %v2451 = vadd.f32 0.0, %v2450
    %v2452 = vpop.f32.mrf.mxu0
    %v2453 = vadd.f32 0.0, %v2452
    %2454 = vmatprep.mubr.bf16.mxu0 0
    %2455 = vmatmul.mubr.bf16.gmra.mxu0 %v1101
    %v2456 = vpop.f32.mrf.mxu0
    %v2457 = vadd.f32 0.0, %v2456
    %v2458 = vpop.f32.mrf.mxu0
    %v2459 = vadd.f32 0.0, %v2458
    %v2460 = vpop.f32.mrf.mxu0
    %v2461 = vadd.f32 0.0, %v2460
    %v2462 = vpop.f32.mrf.mxu0
    %v2463 = vadd.f32 0.0, %v2462
    %2464 = vmatprep.mubr.bf16.mxu0 0
    %2465 = vmatmul.mubr.bf16.gmra.mxu0 %v1102
    %v2466 = vpop.f32.mrf.mxu0
    %v2467 = vadd.f32 0.0, %v2466
    %v2468 = vpop.f32.mrf.mxu0
    %v2469 = vadd.f32 0.0, %v2468
    %v2470 = vpop.f32.mrf.mxu0
    %v2471 = vadd.f32 0.0, %v2470
    %v2472 = vpop.f32.mrf.mxu0
    %v2473 = vadd.f32 0.0, %v2472
    %2474 = vdwg.mxu0
    %v2491 = vunpack.c.l.b16 %v1235
    %v2492 = vunpack.c.h.b16 %v1235
    %v2493 = vunpack.c.l.b16 %v1236
    %v2494 = vunpack.c.h.b16 %v1236
    %v2495 = vunpack.c.l.b16 %v1237
    %v2496 = vunpack.c.h.b16 %v1237
    %v2497 = vunpack.c.l.b16 %v1238
    %v2498 = vunpack.c.h.b16 %v1238
    %v2499 = vunpack.c.l.b16 %v1239
    %v2500 = vunpack.c.h.b16 %v1239
    %v2501 = vunpack.c.l.b16 %v1240
    %v2502 = vunpack.c.h.b16 %v1240
    %v2503 = vunpack.c.l.b16 %v1241
    %v2504 = vunpack.c.h.b16 %v1241
    %v2505 = vunpack.c.l.b16 %v1242
    %v2506 = vunpack.c.h.b16 %v1242
    %v2507 = vunpack.c.l.b16 %v1243
    %v2508 = vunpack.c.h.b16 %v1243
    %v2509 = vunpack.c.l.b16 %v1244
    %v2510 = vunpack.c.h.b16 %v1244
    %v2511 = vunpack.c.l.b16 %v1245
    %v2512 = vunpack.c.h.b16 %v1245
    %v2513 = vunpack.c.l.b16 %v1246
    %v2514 = vunpack.c.h.b16 %v1246
    %v2515 = vunpack.c.l.b16 %v1247
    %v2516 = vunpack.c.h.b16 %v1247
    %v2517 = vunpack.c.l.b16 %v1248
    %v2518 = vunpack.c.h.b16 %v1248
    %v2519 = vunpack.c.l.b16 %v1249
    %v2520 = vunpack.c.h.b16 %v1249
    %v2521 = vunpack.c.l.b16 %v1250
    %v2522 = vunpack.c.h.b16 %v1250
    %v2523 = vpack.c.b16 %v2493, %v2491
    %v2524 = vpack.c.b16 %v2494, %v2492
    %v2525 = vpack.c.b16 %v2497, %v2495
    %v2526 = vpack.c.b16 %v2498, %v2496
    %v2527 = vpack.c.b16 %v2501, %v2499
    %v2528 = vpack.c.b16 %v2502, %v2500
    %v2529 = vpack.c.b16 %v2505, %v2503
    %v2530 = vpack.c.b16 %v2506, %v2504
    %v2531 = vpack.c.b16 %v2509, %v2507
    %v2532 = vpack.c.b16 %v2510, %v2508
    %v2533 = vpack.c.b16 %v2513, %v2511
    %v2534 = vpack.c.b16 %v2514, %v2512
    %v2535 = vpack.c.b16 %v2517, %v2515
    %v2536 = vpack.c.b16 %v2518, %v2516
    %v2537 = vpack.c.b16 %v2521, %v2519
    %v2538 = vpack.c.b16 %v2522, %v2520
    %2555 = vmatprep.subr.bf16.mxu0 %v2538
    %2556 = vmatpush1.bf16.msra.mxu0 %v2537
    %2557 = vmatprep.subr.bf16.mxu0 %v2536
    %2558 = vmatpush1.bf16.msra.mxu0 %v2535
    %2559 = vmatprep.subr.bf16.mxu0 %v2534
    %2560 = vmatpush1.bf16.msra.mxu0 %v2533
    %2561 = vmatprep.subr.bf16.mxu0 %v2532
    %2562 = vmatpush1.bf16.msra.mxu0 %v2531
    %2563 = vmatprep.subr.bf16.mxu0 %v2530
    %2564 = vmatpush1.bf16.msra.mxu0 %v2529
    %2565 = vmatprep.subr.bf16.mxu0 %v2528
    %2566 = vmatpush1.bf16.msra.mxu0 %v2527
    %2567 = vmatprep.subr.bf16.mxu0 %v2526
    %2568 = vmatpush1.bf16.msra.mxu0 %v2525
    %2569 = vmatprep.subr.bf16.mxu0 %v2524
    %2570 = vmatpush1.bf16.msra.mxu0 %v2523
    %2571 = vmatprep.subr.bf16.mxu0 0
    %2572 = vmatpush2.bf16.msra.mxu0 0
    %2573 = vmatprep.subr.bf16.mxu0 0
    %2574 = vmatpush2.bf16.msra.mxu0 0
    %2575 = vmatprep.subr.bf16.mxu0 0
    %2576 = vmatpush2.bf16.msra.mxu0 0
    %2577 = vmatprep.subr.bf16.mxu0 0
    %2578 = vmatpush2.bf16.msra.mxu0 0
    %2579 = vmatprep.subr.bf16.mxu0 0
    %2580 = vmatpush2.bf16.msra.mxu0 0
    %2581 = vmatprep.subr.bf16.mxu0 0
    %2582 = vmatpush2.bf16.msra.mxu0 0
    %2583 = vmatprep.subr.bf16.mxu0 0
    %2584 = vmatpush2.bf16.msra.mxu0 0
    %2585 = vmatprep.subr.bf16.mxu0 0
    %2586 = vmatpush2.bf16.msra.mxu0 0
    %2587 = vmatprep.mubr.bf16.mxu0 0
    %2588 = vmatmul.mubr.bf16.gmra.mxu0 %v1103
    %v2589 = vpop.f32.mrf.mxu0
    %v2590 = vadd.f32 0.0, %v2589
    %v2591 = vpop.f32.mrf.mxu0
    %v2592 = vadd.f32 0.0, %v2591
    %v2593 = vpop.f32.mrf.mxu0
    %v2594 = vadd.f32 0.0, %v2593
    %v2595 = vpop.f32.mrf.mxu0
    %v2596 = vadd.f32 0.0, %v2595
    %2597 = vmatprep.mubr.bf16.mxu0 0
    %2598 = vmatmul.mubr.bf16.gmra.mxu0 %v1104
    %v2599 = vpop.f32.mrf.mxu0
    %v2600 = vadd.f32 0.0, %v2599
    %v2601 = vpop.f32.mrf.mxu0
    %v2602 = vadd.f32 0.0, %v2601
    %v2603 = vpop.f32.mrf.mxu0
    %v2604 = vadd.f32 0.0, %v2603
    %v2605 = vpop.f32.mrf.mxu0
    %v2606 = vadd.f32 0.0, %v2605
    %2607 = vmatprep.mubr.bf16.mxu0 0
    %2608 = vmatmul.mubr.bf16.gmra.mxu0 %v1105
    %v2609 = vpop.f32.mrf.mxu0
    %v2610 = vadd.f32 0.0, %v2609
    %v2611 = vpop.f32.mrf.mxu0
    %v2612 = vadd.f32 0.0, %v2611
    %v2613 = vpop.f32.mrf.mxu0
    %v2614 = vadd.f32 0.0, %v2613
    %v2615 = vpop.f32.mrf.mxu0
    %v2616 = vadd.f32 0.0, %v2615
    %2617 = vmatprep.mubr.bf16.mxu0 0
    %2618 = vmatmul.mubr.bf16.gmra.mxu0 %v1106
    %v2619 = vpop.f32.mrf.mxu0
    %v2620 = vadd.f32 0.0, %v2619
    %v2621 = vpop.f32.mrf.mxu0
    %v2622 = vadd.f32 0.0, %v2621
    %v2623 = vpop.f32.mrf.mxu0
    %v2624 = vadd.f32 0.0, %v2623
    %v2625 = vpop.f32.mrf.mxu0
    %v2626 = vadd.f32 0.0, %v2625
    %2627 = vdwg.mxu0
    %v2628 = vadd.f32 %v1366, %v1519
    %v2629 = vadd.f32 %v2628, %v1672
    %v2630 = vadd.f32 %v2629, %v1825
    %v2631 = vadd.f32 %v2630, %v1978
    %v2632 = vadd.f32 %v2631, %v2131
    %v2633 = vadd.f32 %v2632, %v2284
    %v2634 = vadd.f32 %v2633, %v2437
    %v2635 = vadd.f32 %v2634, %v2590
    %v2636 = vadd.f32 %v1368, %v1521
    %v2637 = vadd.f32 %v2636, %v1674
    %v2638 = vadd.f32 %v2637, %v1827
    %v2639 = vadd.f32 %v2638, %v1980
    %v2640 = vadd.f32 %v2639, %v2133
    %v2641 = vadd.f32 %v2640, %v2286
    %v2642 = vadd.f32 %v2641, %v2439
    %v2643 = vadd.f32 %v2642, %v2592
    %v2644 = vadd.f32 %v1370, %v1523
    %v2645 = vadd.f32 %v2644, %v1676
    %v2646 = vadd.f32 %v2645, %v1829
    %v2647 = vadd.f32 %v2646, %v1982
    %v2648 = vadd.f32 %v2647, %v2135
    %v2649 = vadd.f32 %v2648, %v2288
    %v2650 = vadd.f32 %v2649, %v2441
    %v2651 = vadd.f32 %v2650, %v2594
    %v2652 = vadd.f32 %v1372, %v1525
    %v2653 = vadd.f32 %v2652, %v1678
    %v2654 = vadd.f32 %v2653, %v1831
    %v2655 = vadd.f32 %v2654, %v1984
    %v2656 = vadd.f32 %v2655, %v2137
    %v2657 = vadd.f32 %v2656, %v2290
    %v2658 = vadd.f32 %v2657, %v2443
    %v2659 = vadd.f32 %v2658, %v2596
    %v2660 = vadd.f32 %v1376, %v1529
    %v2661 = vadd.f32 %v2660, %v1682
    %v2662 = vadd.f32 %v2661, %v1835
    %v2663 = vadd.f32 %v2662, %v1988
    %v2664 = vadd.f32 %v2663, %v2141
    %v2665 = vadd.f32 %v2664, %v2294
    %v2666 = vadd.f32 %v2665, %v2447
    %v2667 = vadd.f32 %v2666, %v2600
    %v2668 = vadd.f32 %v1378, %v1531
    %v2669 = vadd.f32 %v2668, %v1684
    %v2670 = vadd.f32 %v2669, %v1837
    %v2671 = vadd.f32 %v2670, %v1990
    %v2672 = vadd.f32 %v2671, %v2143
    %v2673 = vadd.f32 %v2672, %v2296
    %v2674 = vadd.f32 %v2673, %v2449
    %v2675 = vadd.f32 %v2674, %v2602
    %v2676 = vadd.f32 %v1380, %v1533
    %v2677 = vadd.f32 %v2676, %v1686
    %v2678 = vadd.f32 %v2677, %v1839
    %v2679 = vadd.f32 %v2678, %v1992
    %v2680 = vadd.f32 %v2679, %v2145
    %v2681 = vadd.f32 %v2680, %v2298
    %v2682 = vadd.f32 %v2681, %v2451
    %v2683 = vadd.f32 %v2682, %v2604
    %v2684 = vadd.f32 %v1382, %v1535
    %v2685 = vadd.f32 %v2684, %v1688
    %v2686 = vadd.f32 %v2685, %v1841
    %v2687 = vadd.f32 %v2686, %v1994
    %v2688 = vadd.f32 %v2687, %v2147
    %v2689 = vadd.f32 %v2688, %v2300
    %v2690 = vadd.f32 %v2689, %v2453
    %v2691 = vadd.f32 %v2690, %v2606
    %v2692 = vadd.f32 %v1386, %v1539
    %v2693 = vadd.f32 %v2692, %v1692
    %v2694 = vadd.f32 %v2693, %v1845
    %v2695 = vadd.f32 %v2694, %v1998
    %v2696 = vadd.f32 %v2695, %v2151
    %v2697 = vadd.f32 %v2696, %v2304
    %v2698 = vadd.f32 %v2697, %v2457
    %v2699 = vadd.f32 %v2698, %v2610
    %v2700 = vadd.f32 %v1388, %v1541
    %v2701 = vadd.f32 %v2700, %v1694
    %v2702 = vadd.f32 %v2701, %v1847
    %v2703 = vadd.f32 %v2702, %v2000
    %v2704 = vadd.f32 %v2703, %v2153
    %v2705 = vadd.f32 %v2704, %v2306
    %v2706 = vadd.f32 %v2705, %v2459
    %v2707 = vadd.f32 %v2706, %v2612
    %v2708 = vadd.f32 %v1390, %v1543
    %v2709 = vadd.f32 %v2708, %v1696
    %v2710 = vadd.f32 %v2709, %v1849
    %v2711 = vadd.f32 %v2710, %v2002
    %v2712 = vadd.f32 %v2711, %v2155
    %v2713 = vadd.f32 %v2712, %v2308
    %v2714 = vadd.f32 %v2713, %v2461
    %v2715 = vadd.f32 %v2714, %v2614
    %v2716 = vadd.f32 %v1392, %v1545
    %v2717 = vadd.f32 %v2716, %v1698
    %v2718 = vadd.f32 %v2717, %v1851
    %v2719 = vadd.f32 %v2718, %v2004
    %v2720 = vadd.f32 %v2719, %v2157
    %v2721 = vadd.f32 %v2720, %v2310
    %v2722 = vadd.f32 %v2721, %v2463
    %v2723 = vadd.f32 %v2722, %v2616
    %v2724 = vadd.f32 %v1396, %v1549
    %v2725 = vadd.f32 %v2724, %v1702
    %v2726 = vadd.f32 %v2725, %v1855
    %v2727 = vadd.f32 %v2726, %v2008
    %v2728 = vadd.f32 %v2727, %v2161
    %v2729 = vadd.f32 %v2728, %v2314
    %v2730 = vadd.f32 %v2729, %v2467
    %v2731 = vadd.f32 %v2730, %v2620
    %v2732 = vadd.f32 %v1398, %v1551
    %v2733 = vadd.f32 %v2732, %v1704
    %v2734 = vadd.f32 %v2733, %v1857
    %v2735 = vadd.f32 %v2734, %v2010
    %v2736 = vadd.f32 %v2735, %v2163
    %v2737 = vadd.f32 %v2736, %v2316
    %v2738 = vadd.f32 %v2737, %v2469
    %v2739 = vadd.f32 %v2738, %v2622
    %v2740 = vadd.f32 %v1400, %v1553
    %v2741 = vadd.f32 %v2740, %v1706
    %v2742 = vadd.f32 %v2741, %v1859
    %v2743 = vadd.f32 %v2742, %v2012
    %v2744 = vadd.f32 %v2743, %v2165
    %v2745 = vadd.f32 %v2744, %v2318
    %v2746 = vadd.f32 %v2745, %v2471
    %v2747 = vadd.f32 %v2746, %v2624
    %v2748 = vadd.f32 %v1402, %v1555
    %v2749 = vadd.f32 %v2748, %v1708
    %v2750 = vadd.f32 %v2749, %v1861
    %v2751 = vadd.f32 %v2750, %v2014
    %v2752 = vadd.f32 %v2751, %v2167
    %v2753 = vadd.f32 %v2752, %v2320
    %v2754 = vadd.f32 %v2753, %v2473
    %v2755 = vadd.f32 %v2754, %v2626
    %v2756 = vld [vmem:[%s3] sm:$0x3]
    %v2758 = vlaneseq
    %v2759 = vshrl.u32 %v2758, 7
    %v2760 = vsub.s32 0, %v2759
    %v2761 = vrot.slane %v2756, %v2760
    %v2762 = vlaneseq
    %v2763 = vshrl.u32 %v2762, 7
    %v2764 = vsub.s32 1, %v2763
    %v2765 = vrot.slane %v2756, %v2764
    %v2768 = vadd.f32 %v2635, %v2761
    %v2769 = vadd.f32 %v2643, %v2765
    %v2770 = vadd.f32 %v2651, %v2761
    %v2771 = vadd.f32 %v2659, %v2765
    %v2772 = vadd.f32 %v2667, %v2761
    %v2773 = vadd.f32 %v2675, %v2765
    %v2774 = vadd.f32 %v2683, %v2761
    %v2775 = vadd.f32 %v2691, %v2765
    %v2776 = vadd.f32 %v2699, %v2761
    %v2777 = vadd.f32 %v2707, %v2765
    %v2778 = vadd.f32 %v2715, %v2761
    %v2779 = vadd.f32 %v2723, %v2765
    %v2780 = vadd.f32 %v2731, %v2761
    %v2781 = vadd.f32 %v2739, %v2765
    %v2782 = vadd.f32 %v2747, %v2761
    %v2783 = vadd.f32 %v2755, %v2765
    %v2784 = vmax.f32 %v2768, 0.0
    %v2785 = vmax.f32 %v2769, 0.0
    %v2786 = vmax.f32 %v2770, 0.0
    %v2787 = vmax.f32 %v2771, 0.0
    %v2788 = vmax.f32 %v2772, 0.0
    %v2789 = vmax.f32 %v2773, 0.0
    %v2790 = vmax.f32 %v2774, 0.0
    %v2791 = vmax.f32 %v2775, 0.0
    %v2792 = vmax.f32 %v2776, 0.0
    %v2793 = vmax.f32 %v2777, 0.0
    %v2794 = vmax.f32 %v2778, 0.0
    %v2795 = vmax.f32 %v2779, 0.0
    %v2796 = vmax.f32 %v2780, 0.0
    %v2797 = vmax.f32 %v2781, 0.0
    %v2798 = vmax.f32 %v2782, 0.0
    %v2799 = vmax.f32 %v2783, 0.0
    %v2800 = vpack.c.bf16 %v2786, %v2784
    %v2801 = vpack.c.bf16 %v2787, %v2785
    %v2802 = vpack.c.bf16 %v2790, %v2788
    %v2803 = vpack.c.bf16 %v2791, %v2789
    %v2804 = vpack.c.bf16 %v2794, %v2792
    %v2805 = vpack.c.bf16 %v2795, %v2793
    %v2806 = vpack.c.bf16 %v2798, %v2796
    %v2807 = vpack.c.bf16 %v2799, %v2797
    %v2808 = vld [vmem:[#allocation6] sm:$0xf]
    %v2809 = vld [vmem:[#allocation6 + $0x4] sm:$0xf]
    %v2810 = vld [vmem:[#allocation6 + $0x8] sm:$0xf]
    %v2811 = vld [vmem:[#allocation6 + $0xc] sm:$0xf]
    %v2812 = vld [vmem:[#allocation6 + $0x10] sm:$0xf]
    %v2813 = vld [vmem:[#allocation6 + $0x14] sm:$0xf]
    %v2814 = vld [vmem:[#allocation6 + $0x18] sm:$0xf]
    %v2815 = vld [vmem:[#allocation6 + $0x1c] sm:$0xf]
    %v2816 = vld [vmem:[#allocation6 + $0x20] sm:$0xf]
    %v2817 = vld [vmem:[#allocation6 + $0x24] sm:$0xf]
    %v2818 = vld [vmem:[#allocation6 + $0x28] sm:$0xf]
    %v2819 = vld [vmem:[#allocation6 + $0x2c] sm:$0xf]
    %v2820 = vld [vmem:[#allocation6 + $0x30] sm:$0xf]
    %v2821 = vld [vmem:[#allocation6 + $0x34] sm:$0xf]
    %v2822 = vld [vmem:[#allocation6 + $0x38] sm:$0xf]
    %v2823 = vld [vmem:[#allocation6 + $0x3c] sm:$0xf]
    %v2824 = vld [vmem:[#allocation6 + $0x40] sm:$0xf]
    %v2825 = vld [vmem:[#allocation6 + $0x44] sm:$0xf]
    %v2844 = vunpack.c.l.b16 %v2808
    %v2845 = vunpack.c.l.b16 %v2809
    %v2846 = vunpack.c.l.b16 %v2810
    %v2847 = vunpack.c.l.b16 %v2811
    %v2848 = vunpack.c.l.b16 %v2812
    %v2849 = vunpack.c.l.b16 %v2813
    %v2850 = vunpack.c.l.b16 %v2814
    %v2851 = vunpack.c.l.b16 %v2815
    %v2852 = vunpack.c.l.b16 %v2816
    %v2853 = vunpack.c.l.b16 %v2817
    %v2854 = vunpack.c.l.b16 %v2818
    %v2855 = vunpack.c.l.b16 %v2819
    %v2856 = vunpack.c.l.b16 %v2820
    %v2857 = vunpack.c.l.b16 %v2821
    %v2858 = vunpack.c.l.b16 %v2822
    %v2859 = vunpack.c.l.b16 %v2823
    %v2860 = vunpack.c.l.b16 %v2824
    %v2861 = vunpack.c.l.b16 %v2825
    %v2862 = vpack.c.b16 %v2845, %v2844
    %v2863 = vpack.c.b16 %v2847, %v2846
    %v2864 = vpack.c.b16 %v2849, %v2848
    %v2865 = vpack.c.b16 %v2851, %v2850
    %v2866 = vpack.c.b16 %v2853, %v2852
    %v2867 = vpack.c.b16 %v2855, %v2854
    %v2868 = vpack.c.b16 %v2857, %v2856
    %v2869 = vpack.c.b16 %v2859, %v2858
    %v2870 = vpack.c.b16 %v2861, %v2860
    %vm2871 = vcmask 523264
    %v2873 = vsel %vm2871, %v2862, 0
    %v2876 = vsel %vm2871, %v2863, 0
    %v2879 = vsel %vm2871, %v2864, 0
    %v2882 = vsel %vm2871, %v2865, 0
    %v2885 = vsel %vm2871, %v2866, 0
    %v2888 = vsel %vm2871, %v2867, 0
    %v2891 = vsel %vm2871, %v2868, 0
    %v2894 = vsel %vm2871, %v2869, 0
    %v2897 = vsel %vm2871, %v2870, 0
    %2899 = vmatprep.subr.bf16.mxu0 0
    %2900 = vmatpush1.bf16.msra.mxu0 0
    %2901 = vmatprep.subr.bf16.mxu0 0
    %2902 = vmatpush1.bf16.msra.mxu0 0
    %2903 = vmatprep.subr.bf16.mxu0 0
    %2904 = vmatpush1.bf16.msra.mxu0 0
    %2905 = vmatprep.subr.bf16.mxu0 0
    %2906 = vmatpush1.bf16.msra.mxu0 0
    %2907 = vmatprep.subr.bf16.mxu0 %v2807
    %2908 = vmatpush1.bf16.msra.mxu0 %v2806
    %2909 = vmatprep.subr.bf16.mxu0 %v2805
    %2910 = vmatpush1.bf16.msra.mxu0 %v2804
    %2911 = vmatprep.subr.bf16.mxu0 %v2803
    %2912 = vmatpush1.bf16.msra.mxu0 %v2802
    %2913 = vmatprep.subr.bf16.mxu0 %v2801
    %2914 = vmatpush1.bf16.msra.mxu0 %v2800
    %2915 = vmatprep.subr.bf16.mxu0 0
    %2916 = vmatpush2.bf16.msra.mxu0 0
    %2917 = vmatprep.subr.bf16.mxu0 0
    %2918 = vmatpush2.bf16.msra.mxu0 0
    %2919 = vmatprep.subr.bf16.mxu0 0
    %2920 = vmatpush2.bf16.msra.mxu0 0
    %2921 = vmatprep.subr.bf16.mxu0 0
    %2922 = vmatpush2.bf16.msra.mxu0 0
    %2923 = vmatprep.subr.bf16.mxu0 0
    %2924 = vmatpush2.bf16.msra.mxu0 0
    %2925 = vmatprep.subr.bf16.mxu0 0
    %2926 = vmatpush2.bf16.msra.mxu0 0
    %2927 = vmatprep.subr.bf16.mxu0 0
    %2928 = vmatpush2.bf16.msra.mxu0 0
    %2929 = vmatprep.subr.bf16.mxu0 0
    %2930 = vmatpush2.bf16.msra.mxu0 0
    %2931 = vmatprep.mubr.bf16.mxu0 0
    %2932 = vmatmul.mubr.bf16.gmra.mxu0 %v2873
    %v2933 = vpop.f32.mrf.mxu0
    %v2934 = vadd.f32 0.0, %v2933
    %v2935 = vpop.f32.mrf.mxu0
    %v2936 = vadd.f32 0.0, %v2935
    %v2937 = vpop.f32.mrf.mxu0
    %v2938 = vadd.f32 0.0, %v2937
    %v2939 = vpop.f32.mrf.mxu0
    %v2940 = vadd.f32 0.0, %v2939
    %2941 = vmatprep.mubr.bf16.mxu0 0
    %2942 = vmatmul.mubr.bf16.gmra.mxu0 %v2876
    %v2943 = vpop.f32.mrf.mxu0
    %v2944 = vadd.f32 0.0, %v2943
    %v2945 = vpop.f32.mrf.mxu0
    %v2946 = vadd.f32 0.0, %v2945
    %v2947 = vpop.f32.mrf.mxu0
    %v2948 = vadd.f32 0.0, %v2947
    %v2949 = vpop.f32.mrf.mxu0
    %v2950 = vadd.f32 0.0, %v2949
    %2951 = vmatprep.mubr.bf16.mxu0 0
    %2952 = vmatmul.mubr.bf16.gmra.mxu0 %v2879
    %v2953 = vpop.f32.mrf.mxu0
    %v2954 = vadd.f32 0.0, %v2953
    %v2955 = vpop.f32.mrf.mxu0
    %v2956 = vadd.f32 0.0, %v2955
    %v2957 = vpop.f32.mrf.mxu0
    %v2958 = vadd.f32 0.0, %v2957
    %v2959 = vpop.f32.mrf.mxu0
    %v2960 = vadd.f32 0.0, %v2959
    %2961 = vmatprep.mubr.bf16.mxu0 0
    %2962 = vmatmul.mubr.bf16.gmra.mxu0 %v2882
    %v2963 = vpop.f32.mrf.mxu0
    %v2964 = vadd.f32 0.0, %v2963
    %v2965 = vpop.f32.mrf.mxu0
    %v2966 = vadd.f32 0.0, %v2965
    %v2967 = vpop.f32.mrf.mxu0
    %v2968 = vadd.f32 0.0, %v2967
    %v2969 = vpop.f32.mrf.mxu0
    %v2970 = vadd.f32 0.0, %v2969
    %2971 = vmatprep.mubr.bf16.mxu0 0
    %2972 = vmatmul.mubr.bf16.gmra.mxu0 %v2885
    %v2973 = vpop.f32.mrf.mxu0
    %v2974 = vadd.f32 0.0, %v2973
    %v2975 = vpop.f32.mrf.mxu0
    %v2976 = vadd.f32 0.0, %v2975
    %v2977 = vpop.f32.mrf.mxu0
    %v2978 = vadd.f32 0.0, %v2977
    %v2979 = vpop.f32.mrf.mxu0
    %v2980 = vadd.f32 0.0, %v2979
    %2981 = vmatprep.mubr.bf16.mxu0 0
    %2982 = vmatmul.mubr.bf16.gmra.mxu0 %v2888
    %v2983 = vpop.f32.mrf.mxu0
    %v2984 = vadd.f32 0.0, %v2983
    %v2985 = vpop.f32.mrf.mxu0
    %v2986 = vadd.f32 0.0, %v2985
    %v2987 = vpop.f32.mrf.mxu0
    %v2988 = vadd.f32 0.0, %v2987
    %v2989 = vpop.f32.mrf.mxu0
    %v2990 = vadd.f32 0.0, %v2989
    %2991 = vmatprep.mubr.bf16.mxu0 0
    %2992 = vmatmul.mubr.bf16.gmra.mxu0 %v2891
    %v2993 = vpop.f32.mrf.mxu0
    %v2994 = vadd.f32 0.0, %v2993
    %v2995 = vpop.f32.mrf.mxu0
    %v2996 = vadd.f32 0.0, %v2995
    %v2997 = vpop.f32.mrf.mxu0
    %v2998 = vadd.f32 0.0, %v2997
    %v2999 = vpop.f32.mrf.mxu0
    %v3000 = vadd.f32 0.0, %v2999
    %3001 = vmatprep.mubr.bf16.mxu0 0
    %3002 = vmatmul.mubr.bf16.gmra.mxu0 %v2894
    %v3003 = vpop.f32.mrf.mxu0
    %v3004 = vadd.f32 0.0, %v3003
    %v3005 = vpop.f32.mrf.mxu0
    %v3006 = vadd.f32 0.0, %v3005
    %v3007 = vpop.f32.mrf.mxu0
    %v3008 = vadd.f32 0.0, %v3007
    %v3009 = vpop.f32.mrf.mxu0
    %v3010 = vadd.f32 0.0, %v3009
    %3011 = vmatprep.mubr.bf16.mxu0 0
    %3012 = vmatmul.mubr.bf16.gmra.mxu0 %v2897
    %v3013 = vpop.f32.mrf.mxu0
    %v3014 = vadd.f32 0.0, %v3013
    %v3015 = vpop.f32.mrf.mxu0
    %v3016 = vadd.f32 0.0, %v3015
    %v3017 = vpop.f32.mrf.mxu0
    %v3018 = vadd.f32 0.0, %v3017
    %v3019 = vpop.f32.mrf.mxu0
    %v3020 = vadd.f32 0.0, %v3019
    %3021 = vdwg.mxu0
    %v3022 = vpack.c.bf16 %v2938, %v2934
    %v3023 = vpack.c.bf16 %v2940, %v2936
    %v3024 = vpack.c.bf16 %v2948, %v2944
    %v3025 = vpack.c.bf16 %v2950, %v2946
    %v3026 = vpack.c.bf16 %v2958, %v2954
    %v3027 = vpack.c.bf16 %v2960, %v2956
    %v3028 = vpack.c.bf16 %v2968, %v2964
    %v3029 = vpack.c.bf16 %v2970, %v2966
    %v3030 = vpack.c.bf16 %v2978, %v2974
    %v3031 = vpack.c.bf16 %v2980, %v2976
    %v3032 = vpack.c.bf16 %v2988, %v2984
    %v3033 = vpack.c.bf16 %v2990, %v2986
    %v3034 = vpack.c.bf16 %v2998, %v2994
    %v3035 = vpack.c.bf16 %v3000, %v2996
    %v3036 = vpack.c.bf16 %v3008, %v3004
    %v3037 = vpack.c.bf16 %v3010, %v3006
    %v3038 = vpack.c.bf16 %v3018, %v3014
    %v3039 = vpack.c.bf16 %v3020, %v3016
    %v3040 = vld [vmem:[#allocation7] sm:$0xff]
    %v3041 = vld [vmem:[#allocation7 + $0x8] sm:$0xff]
    %v3042 = vld [vmem:[#allocation7 + $0x10] sm:$0xff]
    %v3043 = vld [vmem:[#allocation7 + $0x18] sm:$0xff]
    %v3044 = vld [vmem:[#allocation7 + $0x20] sm:$0xff]
    %v3045 = vld [vmem:[#allocation7 + $0x28] sm:$0xff]
    %v3046 = vld [vmem:[#allocation7 + $0x30] sm:$0xff]
    %v3047 = vld [vmem:[#allocation7 + $0x38] sm:$0xff]
    %v3048 = vld [vmem:[#allocation7 + $0x40] sm:$0xff]
    %v3049 = vld [vmem:[#allocation7 + $0x48] sm:$0xff]
    %v3050 = vld [vmem:[#allocation7 + $0x50] sm:$0xff]
    %v3051 = vld [vmem:[#allocation7 + $0x58] sm:$0xff]
    %v3052 = vld [vmem:[#allocation7 + $0x60] sm:$0xff]
    %v3053 = vld [vmem:[#allocation7 + $0x68] sm:$0xff]
    %v3054 = vld [vmem:[#allocation7 + $0x70] sm:$0xff]
    %v3055 = vld [vmem:[#allocation7 + $0x78] sm:$0xff]
    %v3056 = vld [vmem:[#allocation7 + $0x80] sm:$0xff]
    %v3057 = vld [vmem:[#allocation7 + $0x88] sm:$0xff]
    %v3058 = vld [vmem:[#allocation7 + $0x90] sm:$0xff]
    %v3059 = vld [vmem:[#allocation7 + $0x98] sm:$0xff]
    %v3060 = vld [vmem:[#allocation7 + $0xa0] sm:$0xff]
    %v3061 = vld [vmem:[#allocation7 + $0xa8] sm:$0xff]
    %v3062 = vld [vmem:[#allocation7 + $0xb0] sm:$0xff]
    %v3063 = vld [vmem:[#allocation7 + $0xb8] sm:$0xff]
    %v3064 = vld [vmem:[#allocation7 + $0xc0] sm:$0xff]
    %v3065 = vld [vmem:[#allocation7 + $0xc8] sm:$0xff]
    %v3066 = vld [vmem:[#allocation7 + $0xd0] sm:$0xff]
    %v3067 = vld [vmem:[#allocation7 + $0xd8] sm:$0xff]
    %v3068 = vld [vmem:[#allocation7 + $0xe0] sm:$0xff]
    %v3069 = vld [vmem:[#allocation7 + $0xe8] sm:$0xff]
    %v3070 = vld [vmem:[#allocation7 + $0xf0] sm:$0xff]
    %v3071 = vld [vmem:[#allocation7 + $0xf8] sm:$0xff]
    %v3072 = vld [vmem:[#allocation7 + $0x100] sm:$0xff]
    %v3073 = vld [vmem:[#allocation7 + $0x108] sm:$0xff]
    %v3074 = vld [vmem:[#allocation7 + $0x110] sm:$0xff]
    %v3075 = vld [vmem:[#allocation7 + $0x118] sm:$0xff]
    %v3076 = vld [vmem:[#allocation7 + $0x120] sm:$0xff]
    %v3077 = vld [vmem:[#allocation7 + $0x128] sm:$0xff]
    %v3078 = vld [vmem:[#allocation7 + $0x130] sm:$0xff]
    %v3079 = vld [vmem:[#allocation7 + $0x138] sm:$0xff]
    %v3080 = vld [vmem:[#allocation7 + $0x140] sm:$0xff]
    %v3081 = vld [vmem:[#allocation7 + $0x148] sm:$0xff]
    %v3082 = vld [vmem:[#allocation7 + $0x150] sm:$0xff]
    %v3083 = vld [vmem:[#allocation7 + $0x158] sm:$0xff]
    %v3084 = vld [vmem:[#allocation7 + $0x160] sm:$0xff]
    %v3085 = vld [vmem:[#allocation7 + $0x168] sm:$0xff]
    %v3086 = vld [vmem:[#allocation7 + $0x170] sm:$0xff]
    %v3087 = vld [vmem:[#allocation7 + $0x178] sm:$0xff]
    %v3088 = vld [vmem:[#allocation7 + $0x180] sm:$0xff]
    %v3089 = vld [vmem:[#allocation7 + $0x188] sm:$0xff]
    %v3090 = vld [vmem:[#allocation7 + $0x190] sm:$0xff]
    %v3091 = vld [vmem:[#allocation7 + $0x198] sm:$0xff]
    %v3092 = vld [vmem:[#allocation7 + $0x1a0] sm:$0xff]
    %v3093 = vld [vmem:[#allocation7 + $0x1a8] sm:$0xff]
    %v3094 = vld [vmem:[#allocation7 + $0x1b0] sm:$0xff]
    %v3095 = vld [vmem:[#allocation7 + $0x1b8] sm:$0xff]
    %v3096 = vld [vmem:[#allocation7 + $0x1c0] sm:$0xff]
    %v3097 = vld [vmem:[#allocation7 + $0x1c8] sm:$0xff]
    %v3098 = vld [vmem:[#allocation7 + $0x1d0] sm:$0xff]
    %v3099 = vld [vmem:[#allocation7 + $0x1d8] sm:$0xff]
    %v3100 = vld [vmem:[#allocation7 + $0x1e0] sm:$0xff]
    %v3101 = vld [vmem:[#allocation7 + $0x1e8] sm:$0xff]
    %v3102 = vld [vmem:[#allocation7 + $0x1f0] sm:$0xff]
    %v3103 = vld [vmem:[#allocation7 + $0x1f8] sm:$0xff]
    %v3104 = vld [vmem:[#allocation7 + $0x200] sm:$0xff]
    %v3105 = vld [vmem:[#allocation7 + $0x208] sm:$0xff]
    %v3106 = vld [vmem:[#allocation7 + $0x210] sm:$0xff]
    %v3107 = vld [vmem:[#allocation7 + $0x218] sm:$0xff]
    %v3108 = vld [vmem:[#allocation7 + $0x220] sm:$0xff]
    %v3109 = vld [vmem:[#allocation7 + $0x228] sm:$0xff]
    %v3110 = vld [vmem:[#allocation7 + $0x230] sm:$0xff]
    %v3111 = vld [vmem:[#allocation7 + $0x238] sm:$0xff]
    %v3112 = vld [vmem:[#allocation7 + $0x240] sm:$0xff]
    %v3113 = vld [vmem:[#allocation7 + $0x248] sm:$0xff]
    %v3114 = vld [vmem:[#allocation7 + $0x250] sm:$0xff]
    %v3115 = vld [vmem:[#allocation7 + $0x258] sm:$0xff]
    %v3116 = vld [vmem:[#allocation7 + $0x260] sm:$0xff]
    %v3117 = vld [vmem:[#allocation7 + $0x268] sm:$0xff]
    %v3118 = vld [vmem:[#allocation7 + $0x270] sm:$0xff]
    %v3119 = vld [vmem:[#allocation7 + $0x278] sm:$0xff]
    %v3120 = vld [vmem:[#allocation7 + $0x280] sm:$0xff]
    %v3121 = vld [vmem:[#allocation7 + $0x288] sm:$0xff]
    %v3122 = vld [vmem:[#allocation7 + $0x290] sm:$0xff]
    %v3123 = vld [vmem:[#allocation7 + $0x298] sm:$0xff]
    %v3124 = vld [vmem:[#allocation7 + $0x2a0] sm:$0xff]
    %v3125 = vld [vmem:[#allocation7 + $0x2a8] sm:$0xff]
    %v3126 = vld [vmem:[#allocation7 + $0x2b0] sm:$0xff]
    %v3127 = vld [vmem:[#allocation7 + $0x2b8] sm:$0xff]
    %v3128 = vld [vmem:[#allocation7 + $0x2c0] sm:$0xff]
    %v3129 = vld [vmem:[#allocation7 + $0x2c8] sm:$0xff]
    %v3130 = vld [vmem:[#allocation7 + $0x2d0] sm:$0xff]
    %v3131 = vld [vmem:[#allocation7 + $0x2d8] sm:$0xff]
    %v3132 = vld [vmem:[#allocation7 + $0x2e0] sm:$0xff]
    %v3133 = vld [vmem:[#allocation7 + $0x2e8] sm:$0xff]
    %v3134 = vld [vmem:[#allocation7 + $0x2f0] sm:$0xff]
    %v3135 = vld [vmem:[#allocation7 + $0x2f8] sm:$0xff]
    %v3136 = vld [vmem:[#allocation7 + $0x300] sm:$0xff]
    %v3137 = vld [vmem:[#allocation7 + $0x308] sm:$0xff]
    %v3138 = vld [vmem:[#allocation7 + $0x310] sm:$0xff]
    %v3139 = vld [vmem:[#allocation7 + $0x318] sm:$0xff]
    %v3140 = vld [vmem:[#allocation7 + $0x320] sm:$0xff]
    %v3141 = vld [vmem:[#allocation7 + $0x328] sm:$0xff]
    %v3142 = vld [vmem:[#allocation7 + $0x330] sm:$0xff]
    %v3143 = vld [vmem:[#allocation7 + $0x338] sm:$0xff]
    %v3144 = vld [vmem:[#allocation7 + $0x340] sm:$0xff]
    %v3145 = vld [vmem:[#allocation7 + $0x348] sm:$0xff]
    %v3146 = vld [vmem:[#allocation7 + $0x350] sm:$0xff]
    %v3147 = vld [vmem:[#allocation7 + $0x358] sm:$0xff]
    %v3148 = vld [vmem:[#allocation7 + $0x360] sm:$0xff]
    %v3149 = vld [vmem:[#allocation7 + $0x368] sm:$0xff]
    %v3150 = vld [vmem:[#allocation7 + $0x370] sm:$0xff]
    %v3151 = vld [vmem:[#allocation7 + $0x378] sm:$0xff]
    %v3152 = vld [vmem:[#allocation7 + $0x380] sm:$0xff]
    %v3153 = vld [vmem:[#allocation7 + $0x388] sm:$0xff]
    %v3154 = vld [vmem:[#allocation7 + $0x390] sm:$0xff]
    %v3155 = vld [vmem:[#allocation7 + $0x398] sm:$0xff]
    %v3156 = vld [vmem:[#allocation7 + $0x3a0] sm:$0xff]
    %v3157 = vld [vmem:[#allocation7 + $0x3a8] sm:$0xff]
    %v3158 = vld [vmem:[#allocation7 + $0x3b0] sm:$0xff]
    %v3159 = vld [vmem:[#allocation7 + $0x3b8] sm:$0xff]
    %v3160 = vld [vmem:[#allocation7 + $0x3c0] sm:$0xff]
    %v3161 = vld [vmem:[#allocation7 + $0x3c8] sm:$0xff]
    %v3162 = vld [vmem:[#allocation7 + $0x3d0] sm:$0xff]
    %v3163 = vld [vmem:[#allocation7 + $0x3d8] sm:$0xff]
    %v3164 = vld [vmem:[#allocation7 + $0x3e0] sm:$0xff]
    %v3165 = vld [vmem:[#allocation7 + $0x3e8] sm:$0xff]
    %v3166 = vld [vmem:[#allocation7 + $0x3f0] sm:$0xff]
    %v3167 = vld [vmem:[#allocation7 + $0x3f8] sm:$0xff]
    %v3168 = vld [vmem:[#allocation7 + $0x400] sm:$0xff]
    %v3169 = vld [vmem:[#allocation7 + $0x408] sm:$0xff]
    %v3170 = vld [vmem:[#allocation7 + $0x410] sm:$0xff]
    %v3171 = vld [vmem:[#allocation7 + $0x418] sm:$0xff]
    %v3172 = vld [vmem:[#allocation7 + $0x420] sm:$0xff]
    %v3173 = vld [vmem:[#allocation7 + $0x428] sm:$0xff]
    %v3174 = vld [vmem:[#allocation7 + $0x430] sm:$0xff]
    %v3175 = vld [vmem:[#allocation7 + $0x438] sm:$0xff]
    %v3176 = vld [vmem:[#allocation7 + $0x440] sm:$0xff]
    %v3177 = vld [vmem:[#allocation7 + $0x448] sm:$0xff]
    %v3178 = vld [vmem:[#allocation7 + $0x450] sm:$0xff]
    %v3179 = vld [vmem:[#allocation7 + $0x458] sm:$0xff]
    %v3180 = vld [vmem:[#allocation7 + $0x460] sm:$0xff]
    %v3181 = vld [vmem:[#allocation7 + $0x468] sm:$0xff]
    %v3182 = vld [vmem:[#allocation7 + $0x470] sm:$0xff]
    %v3183 = vld [vmem:[#allocation7 + $0x478] sm:$0xff]
    %v3184 = vld [vmem:[#allocation7 + $0x480] sm:$0xff]
    %v3185 = vld [vmem:[#allocation7 + $0x488] sm:$0xff]
    %v3186 = vld [vmem:[#allocation7 + $0x490] sm:$0xff]
    %v3187 = vld [vmem:[#allocation7 + $0x498] sm:$0xff]
    %v3188 = vld [vmem:[#allocation7 + $0x4a0] sm:$0xff]
    %v3189 = vld [vmem:[#allocation7 + $0x4a8] sm:$0xff]
    %v3190 = vld [vmem:[#allocation7 + $0x4b0] sm:$0xff]
    %v3191 = vld [vmem:[#allocation7 + $0x4b8] sm:$0xff]
    %v3192 = vld [vmem:[#allocation7 + $0x4c0] sm:$0xff]
    %v3193 = vld [vmem:[#allocation7 + $0x4c8] sm:$0xff]
    %v3194 = vld [vmem:[#allocation7 + $0x4d0] sm:$0xff]
    %v3195 = vld [vmem:[#allocation7 + $0x4d8] sm:$0xff]
    %v3196 = vld [vmem:[#allocation7 + $0x4e0] sm:$0xff]
    %v3197 = vld [vmem:[#allocation7 + $0x4e8] sm:$0xff]
    %v3198 = vld [vmem:[#allocation7 + $0x4f0] sm:$0xff]
    %v3199 = vld [vmem:[#allocation7 + $0x4f8] sm:$0xff]
    %v3200 = vld [vmem:[#allocation7 + $0x500] sm:$0xff]
    %v3201 = vld [vmem:[#allocation7 + $0x508] sm:$0xff]
    %v3202 = vld [vmem:[#allocation7 + $0x510] sm:$0xff]
    %v3203 = vld [vmem:[#allocation7 + $0x518] sm:$0xff]
    %v3204 = vld [vmem:[#allocation7 + $0x520] sm:$0xff]
    %v3205 = vld [vmem:[#allocation7 + $0x528] sm:$0xff]
    %v3206 = vld [vmem:[#allocation7 + $0x530] sm:$0xff]
    %v3207 = vld [vmem:[#allocation7 + $0x538] sm:$0xff]
    %v3208 = vld [vmem:[#allocation7 + $0x540] sm:$0xff]
    %v3209 = vld [vmem:[#allocation7 + $0x548] sm:$0xff]
    %v3210 = vld [vmem:[#allocation7 + $0x550] sm:$0xff]
    %v3211 = vld [vmem:[#allocation7 + $0x558] sm:$0xff]
    %v3212 = vld [vmem:[#allocation7 + $0x560] sm:$0xff]
    %v3213 = vld [vmem:[#allocation7 + $0x568] sm:$0xff]
    %v3214 = vld [vmem:[#allocation7 + $0x570] sm:$0xff]
    %v3215 = vld [vmem:[#allocation7 + $0x578] sm:$0xff]
    %v3216 = vld [vmem:[#allocation7 + $0x580] sm:$0xff]
    %v3217 = vld [vmem:[#allocation7 + $0x588] sm:$0xff]
    %v3218 = vld [vmem:[#allocation7 + $0x590] sm:$0xff]
    %v3219 = vld [vmem:[#allocation7 + $0x598] sm:$0xff]
    %v3220 = vld [vmem:[#allocation7 + $0x5a0] sm:$0xff]
    %v3221 = vld [vmem:[#allocation7 + $0x5a8] sm:$0xff]
    %v3222 = vld [vmem:[#allocation7 + $0x5b0] sm:$0xff]
    %v3223 = vld [vmem:[#allocation7 + $0x5b8] sm:$0xff]
    %v3224 = vld [vmem:[#allocation7 + $0x5c0] sm:$0xff]
    %v3225 = vld [vmem:[#allocation7 + $0x5c8] sm:$0xff]
    %v3226 = vld [vmem:[#allocation7 + $0x5d0] sm:$0xff]
    %v3227 = vld [vmem:[#allocation7 + $0x5d8] sm:$0xff]
    %v3228 = vld [vmem:[#allocation7 + $0x5e0] sm:$0xff]
    %v3229 = vld [vmem:[#allocation7 + $0x5e8] sm:$0xff]
    %v3230 = vld [vmem:[#allocation7 + $0x5f0] sm:$0xff]
    %v3231 = vld [vmem:[#allocation7 + $0x5f8] sm:$0xff]
    %v3232 = vld [vmem:[#allocation7 + $0x600] sm:$0xff]
    %v3233 = vld [vmem:[#allocation7 + $0x608] sm:$0xff]
    %v3234 = vld [vmem:[#allocation7 + $0x610] sm:$0xff]
    %v3235 = vld [vmem:[#allocation7 + $0x618] sm:$0xff]
    %v3236 = vld [vmem:[#allocation7 + $0x620] sm:$0xff]
    %v3237 = vld [vmem:[#allocation7 + $0x628] sm:$0xff]
    %v3238 = vld [vmem:[#allocation7 + $0x630] sm:$0xff]
    %v3239 = vld [vmem:[#allocation7 + $0x638] sm:$0xff]
    %v3240 = vld [vmem:[#allocation7 + $0x640] sm:$0xff]
    %v3241 = vld [vmem:[#allocation7 + $0x648] sm:$0xff]
    %v3242 = vld [vmem:[#allocation7 + $0x650] sm:$0xff]
    %v3243 = vld [vmem:[#allocation7 + $0x658] sm:$0xff]
    %v3244 = vld [vmem:[#allocation7 + $0x660] sm:$0xff]
    %v3245 = vld [vmem:[#allocation7 + $0x668] sm:$0xff]
    %v3246 = vld [vmem:[#allocation7 + $0x670] sm:$0xff]
    %v3247 = vld [vmem:[#allocation7 + $0x678] sm:$0xff]
    %v3248 = vld [vmem:[#allocation7 + $0x680] sm:$0xff]
    %v3249 = vld [vmem:[#allocation7 + $0x688] sm:$0xff]
    %v3250 = vld [vmem:[#allocation7 + $0x690] sm:$0xff]
    %v3251 = vld [vmem:[#allocation7 + $0x698] sm:$0xff]
    %v3252 = vld [vmem:[#allocation7 + $0x6a0] sm:$0xff]
    %v3253 = vld [vmem:[#allocation7 + $0x6a8] sm:$0xff]
    %v3254 = vld [vmem:[#allocation7 + $0x6b0] sm:$0xff]
    %v3255 = vld [vmem:[#allocation7 + $0x6b8] sm:$0xff]
    %v3256 = vld [vmem:[#allocation7 + $0x6c0] sm:$0xff]
    %v3257 = vld [vmem:[#allocation7 + $0x6c8] sm:$0xff]
    %v3258 = vld [vmem:[#allocation7 + $0x6d0] sm:$0xff]
    %v3259 = vld [vmem:[#allocation7 + $0x6d8] sm:$0xff]
    %v3260 = vld [vmem:[#allocation7 + $0x6e0] sm:$0xff]
    %v3261 = vld [vmem:[#allocation7 + $0x6e8] sm:$0xff]
    %v3262 = vld [vmem:[#allocation7 + $0x6f0] sm:$0xff]
    %v3263 = vld [vmem:[#allocation7 + $0x6f8] sm:$0xff]
    %v3264 = vld [vmem:[#allocation7 + $0x700] sm:$0xff]
    %v3265 = vld [vmem:[#allocation7 + $0x708] sm:$0xff]
    %v3266 = vld [vmem:[#allocation7 + $0x710] sm:$0xff]
    %v3267 = vld [vmem:[#allocation7 + $0x718] sm:$0xff]
    %v3268 = vld [vmem:[#allocation7 + $0x720] sm:$0xff]
    %v3269 = vld [vmem:[#allocation7 + $0x728] sm:$0xff]
    %v3270 = vld [vmem:[#allocation7 + $0x730] sm:$0xff]
    %v3271 = vld [vmem:[#allocation7 + $0x738] sm:$0xff]
    %v3272 = vld [vmem:[#allocation7 + $0x740] sm:$0xff]
    %v3273 = vld [vmem:[#allocation7 + $0x748] sm:$0xff]
    %v3274 = vld [vmem:[#allocation7 + $0x750] sm:$0xff]
    %v3275 = vld [vmem:[#allocation7 + $0x758] sm:$0xff]
    %v3276 = vld [vmem:[#allocation7 + $0x760] sm:$0xff]
    %v3277 = vld [vmem:[#allocation7 + $0x768] sm:$0xff]
    %v3278 = vld [vmem:[#allocation7 + $0x770] sm:$0xff]
    %v3279 = vld [vmem:[#allocation7 + $0x778] sm:$0xff]
    %v3280 = vld [vmem:[#allocation7 + $0x780] sm:$0xff]
    %v3281 = vld [vmem:[#allocation7 + $0x788] sm:$0xff]
    %v3282 = vld [vmem:[#allocation7 + $0x790] sm:$0xff]
    %v3283 = vld [vmem:[#allocation7 + $0x798] sm:$0xff]
    %v3284 = vld [vmem:[#allocation7 + $0x7a0] sm:$0xff]
    %v3285 = vld [vmem:[#allocation7 + $0x7a8] sm:$0xff]
    %v3286 = vld [vmem:[#allocation7 + $0x7b0] sm:$0xff]
    %v3287 = vld [vmem:[#allocation7 + $0x7b8] sm:$0xff]
    %v3288 = vld [vmem:[#allocation7 + $0x7c0] sm:$0xff]
    %v3289 = vld [vmem:[#allocation7 + $0x7c8] sm:$0xff]
    %v3290 = vld [vmem:[#allocation7 + $0x7d0] sm:$0xff]
    %v3291 = vld [vmem:[#allocation7 + $0x7d8] sm:$0xff]
    %v3292 = vld [vmem:[#allocation7 + $0x7e0] sm:$0xff]
    %v3293 = vld [vmem:[#allocation7 + $0x7e8] sm:$0xff]
    %v3294 = vld [vmem:[#allocation7 + $0x7f0] sm:$0xff]
    %v3295 = vld [vmem:[#allocation7 + $0x7f8] sm:$0xff]
    %v3296 = vld [vmem:[#allocation7 + $0x800] sm:$0xff]
    %v3297 = vld [vmem:[#allocation7 + $0x808] sm:$0xff]
    %v3298 = vld [vmem:[#allocation7 + $0x810] sm:$0xff]
    %v3299 = vld [vmem:[#allocation7 + $0x818] sm:$0xff]
    %v3300 = vld [vmem:[#allocation7 + $0x820] sm:$0xff]
    %v3301 = vld [vmem:[#allocation7 + $0x828] sm:$0xff]
    %v3302 = vld [vmem:[#allocation7 + $0x830] sm:$0xff]
    %v3303 = vld [vmem:[#allocation7 + $0x838] sm:$0xff]
    %v3304 = vld [vmem:[#allocation7 + $0x840] sm:$0xff]
    %v3305 = vld [vmem:[#allocation7 + $0x848] sm:$0xff]
    %v3306 = vld [vmem:[#allocation7 + $0x850] sm:$0xff]
    %v3307 = vld [vmem:[#allocation7 + $0x858] sm:$0xff]
    %v3308 = vld [vmem:[#allocation7 + $0x860] sm:$0xff]
    %v3309 = vld [vmem:[#allocation7 + $0x868] sm:$0xff]
    %v3310 = vld [vmem:[#allocation7 + $0x870] sm:$0xff]
    %v3311 = vld [vmem:[#allocation7 + $0x878] sm:$0xff]
    %v3312 = vld [vmem:[#allocation7 + $0x880] sm:$0xff]
    %v3313 = vld [vmem:[#allocation7 + $0x888] sm:$0xff]
    %v3314 = vld [vmem:[#allocation7 + $0x890] sm:$0xff]
    %v3315 = vld [vmem:[#allocation7 + $0x898] sm:$0xff]
    %v3316 = vld [vmem:[#allocation7 + $0x8a0] sm:$0xff]
    %v3317 = vld [vmem:[#allocation7 + $0x8a8] sm:$0xff]
    %v3318 = vld [vmem:[#allocation7 + $0x8b0] sm:$0xff]
    %v3319 = vld [vmem:[#allocation7 + $0x8b8] sm:$0xff]
    %v3320 = vld [vmem:[#allocation7 + $0x8c0] sm:$0xff]
    %v3321 = vld [vmem:[#allocation7 + $0x8c8] sm:$0xff]
    %v3322 = vld [vmem:[#allocation7 + $0x8d0] sm:$0xff]
    %v3323 = vld [vmem:[#allocation7 + $0x8d8] sm:$0xff]
    %v3324 = vld [vmem:[#allocation7 + $0x8e0] sm:$0xff]
    %v3325 = vld [vmem:[#allocation7 + $0x8e8] sm:$0xff]
    %v3326 = vld [vmem:[#allocation7 + $0x8f0] sm:$0xff]
    %v3327 = vld [vmem:[#allocation7 + $0x8f8] sm:$0xff]
    %v3360 = vunpack.c.l.b16 %v3040
    %v3361 = vunpack.c.h.b16 %v3040
    %v3362 = vunpack.c.l.b16 %v3041
    %v3363 = vunpack.c.h.b16 %v3041
    %v3364 = vunpack.c.l.b16 %v3042
    %v3365 = vunpack.c.h.b16 %v3042
    %v3366 = vunpack.c.l.b16 %v3043
    %v3367 = vunpack.c.h.b16 %v3043
    %v3368 = vunpack.c.l.b16 %v3044
    %v3369 = vunpack.c.h.b16 %v3044
    %v3370 = vunpack.c.l.b16 %v3045
    %v3371 = vunpack.c.h.b16 %v3045
    %v3372 = vunpack.c.l.b16 %v3046
    %v3373 = vunpack.c.h.b16 %v3046
    %v3374 = vunpack.c.l.b16 %v3047
    %v3375 = vunpack.c.h.b16 %v3047
    %v3376 = vunpack.c.l.b16 %v3048
    %v3377 = vunpack.c.h.b16 %v3048
    %v3378 = vunpack.c.l.b16 %v3049
    %v3379 = vunpack.c.h.b16 %v3049
    %v3380 = vunpack.c.l.b16 %v3050
    %v3381 = vunpack.c.h.b16 %v3050
    %v3382 = vunpack.c.l.b16 %v3051
    %v3383 = vunpack.c.h.b16 %v3051
    %v3384 = vunpack.c.l.b16 %v3052
    %v3385 = vunpack.c.h.b16 %v3052
    %v3386 = vunpack.c.l.b16 %v3053
    %v3387 = vunpack.c.h.b16 %v3053
    %v3388 = vunpack.c.l.b16 %v3054
    %v3389 = vunpack.c.h.b16 %v3054
    %v3390 = vunpack.c.l.b16 %v3055
    %v3391 = vunpack.c.h.b16 %v3055
    %v3392 = vunpack.c.l.b16 %v3056
    %v3393 = vunpack.c.h.b16 %v3056
    %v3394 = vunpack.c.l.b16 %v3057
    %v3395 = vunpack.c.h.b16 %v3057
    %v3396 = vunpack.c.l.b16 %v3058
    %v3397 = vunpack.c.h.b16 %v3058
    %v3398 = vunpack.c.l.b16 %v3059
    %v3399 = vunpack.c.h.b16 %v3059
    %v3400 = vunpack.c.l.b16 %v3060
    %v3401 = vunpack.c.h.b16 %v3060
    %v3402 = vunpack.c.l.b16 %v3061
    %v3403 = vunpack.c.h.b16 %v3061
    %v3404 = vunpack.c.l.b16 %v3062
    %v3405 = vunpack.c.h.b16 %v3062
    %v3406 = vunpack.c.l.b16 %v3063
    %v3407 = vunpack.c.h.b16 %v3063
    %v3408 = vunpack.c.l.b16 %v3064
    %v3409 = vunpack.c.h.b16 %v3064
    %v3410 = vunpack.c.l.b16 %v3065
    %v3411 = vunpack.c.h.b16 %v3065
    %v3412 = vunpack.c.l.b16 %v3066
    %v3413 = vunpack.c.h.b16 %v3066
    %v3414 = vunpack.c.l.b16 %v3067
    %v3415 = vunpack.c.h.b16 %v3067
    %v3416 = vunpack.c.l.b16 %v3068
    %v3417 = vunpack.c.h.b16 %v3068
    %v3418 = vunpack.c.l.b16 %v3069
    %v3419 = vunpack.c.h.b16 %v3069
    %v3420 = vunpack.c.l.b16 %v3070
    %v3421 = vunpack.c.h.b16 %v3070
    %v3422 = vunpack.c.l.b16 %v3071
    %v3423 = vunpack.c.h.b16 %v3071
    %v3424 = vpack.c.b16 %v3362, %v3360
    %v3425 = vpack.c.b16 %v3363, %v3361
    %v3426 = vpack.c.b16 %v3366, %v3364
    %v3427 = vpack.c.b16 %v3367, %v3365
    %v3428 = vpack.c.b16 %v3370, %v3368
    %v3429 = vpack.c.b16 %v3371, %v3369
    %v3430 = vpack.c.b16 %v3374, %v3372
    %v3431 = vpack.c.b16 %v3375, %v3373
    %v3432 = vpack.c.b16 %v3378, %v3376
    %v3433 = vpack.c.b16 %v3379, %v3377
    %v3434 = vpack.c.b16 %v3382, %v3380
    %v3435 = vpack.c.b16 %v3383, %v3381
    %v3436 = vpack.c.b16 %v3386, %v3384
    %v3437 = vpack.c.b16 %v3387, %v3385
    %v3438 = vpack.c.b16 %v3390, %v3388
    %v3439 = vpack.c.b16 %v3391, %v3389
    %v3440 = vpack.c.b16 %v3394, %v3392
    %v3441 = vpack.c.b16 %v3395, %v3393
    %v3442 = vpack.c.b16 %v3398, %v3396
    %v3443 = vpack.c.b16 %v3399, %v3397
    %v3444 = vpack.c.b16 %v3402, %v3400
    %v3445 = vpack.c.b16 %v3403, %v3401
    %v3446 = vpack.c.b16 %v3406, %v3404
    %v3447 = vpack.c.b16 %v3407, %v3405
    %v3448 = vpack.c.b16 %v3410, %v3408
    %v3449 = vpack.c.b16 %v3411, %v3409
    %v3450 = vpack.c.b16 %v3414, %v3412
    %v3451 = vpack.c.b16 %v3415, %v3413
    %v3452 = vpack.c.b16 %v3418, %v3416
    %v3453 = vpack.c.b16 %v3419, %v3417
    %v3454 = vpack.c.b16 %v3422, %v3420
    %v3455 = vpack.c.b16 %v3423, %v3421
    %3488 = vmatprep.subr.bf16.mxu0 %v3439
    %3489 = vmatpush1.bf16.msra.mxu0 %v3438
    %3490 = vmatprep.subr.bf16.mxu0 %v3437
    %3491 = vmatpush1.bf16.msra.mxu0 %v3436
    %3492 = vmatprep.subr.bf16.mxu0 %v3435
    %3493 = vmatpush1.bf16.msra.mxu0 %v3434
    %3494 = vmatprep.subr.bf16.mxu0 %v3433
    %3495 = vmatpush1.bf16.msra.mxu0 %v3432
    %3496 = vmatprep.subr.bf16.mxu0 %v3431
    %3497 = vmatpush1.bf16.msra.mxu0 %v3430
    %3498 = vmatprep.subr.bf16.mxu0 %v3429
    %3499 = vmatpush1.bf16.msra.mxu0 %v3428
    %3500 = vmatprep.subr.bf16.mxu0 %v3427
    %3501 = vmatpush1.bf16.msra.mxu0 %v3426
    %3502 = vmatprep.subr.bf16.mxu0 %v3425
    %3503 = vmatpush1.bf16.msra.mxu0 %v3424
    %3504 = vmatprep.subr.bf16.mxu0 %v3455
    %3505 = vmatpush2.bf16.msra.mxu0 %v3454
    %3506 = vmatprep.subr.bf16.mxu0 %v3453
    %3507 = vmatpush2.bf16.msra.mxu0 %v3452
    %3508 = vmatprep.subr.bf16.mxu0 %v3451
    %3509 = vmatpush2.bf16.msra.mxu0 %v3450
    %3510 = vmatprep.subr.bf16.mxu0 %v3449
    %3511 = vmatpush2.bf16.msra.mxu0 %v3448
    %3512 = vmatprep.subr.bf16.mxu0 %v3447
    %3513 = vmatpush2.bf16.msra.mxu0 %v3446
    %3514 = vmatprep.subr.bf16.mxu0 %v3445
    %3515 = vmatpush2.bf16.msra.mxu0 %v3444
    %3516 = vmatprep.subr.bf16.mxu0 %v3443
    %3517 = vmatpush2.bf16.msra.mxu0 %v3442
    %3518 = vmatprep.subr.bf16.mxu0 %v3441
    %3519 = vmatpush2.bf16.msra.mxu0 %v3440
    %3520 = vmatprep.mubr.bf16.mxu0 %v3023
    %3521 = vmatmul.mubr.bf16.gmra.mxu0 %v3022
    %v3522 = vpop.f32.mrf.mxu0
    %v3523 = vadd.f32 0.0, %v3522
    %v3524 = vpop.f32.mrf.mxu0
    %v3525 = vadd.f32 0.0, %v3524
    %v3526 = vpop.f32.mrf.mxu0
    %v3527 = vadd.f32 0.0, %v3526
    %v3528 = vpop.f32.mrf.mxu0
    %v3529 = vadd.f32 0.0, %v3528
    %3530 = vdwg.mxu0
    %v3563 = vunpack.c.l.b16 %v3072
    %v3564 = vunpack.c.h.b16 %v3072
    %v3565 = vunpack.c.l.b16 %v3073
    %v3566 = vunpack.c.h.b16 %v3073
    %v3567 = vunpack.c.l.b16 %v3074
    %v3568 = vunpack.c.h.b16 %v3074
    %v3569 = vunpack.c.l.b16 %v3075
    %v3570 = vunpack.c.h.b16 %v3075
    %v3571 = vunpack.c.l.b16 %v3076
    %v3572 = vunpack.c.h.b16 %v3076
    %v3573 = vunpack.c.l.b16 %v3077
    %v3574 = vunpack.c.h.b16 %v3077
    %v3575 = vunpack.c.l.b16 %v3078
    %v3576 = vunpack.c.h.b16 %v3078
    %v3577 = vunpack.c.l.b16 %v3079
    %v3578 = vunpack.c.h.b16 %v3079
    %v3579 = vunpack.c.l.b16 %v3080
    %v3580 = vunpack.c.h.b16 %v3080
    %v3581 = vunpack.c.l.b16 %v3081
    %v3582 = vunpack.c.h.b16 %v3081
    %v3583 = vunpack.c.l.b16 %v3082
    %v3584 = vunpack.c.h.b16 %v3082
    %v3585 = vunpack.c.l.b16 %v3083
    %v3586 = vunpack.c.h.b16 %v3083
    %v3587 = vunpack.c.l.b16 %v3084
    %v3588 = vunpack.c.h.b16 %v3084
    %v3589 = vunpack.c.l.b16 %v3085
    %v3590 = vunpack.c.h.b16 %v3085
    %v3591 = vunpack.c.l.b16 %v3086
    %v3592 = vunpack.c.h.b16 %v3086
    %v3593 = vunpack.c.l.b16 %v3087
    %v3594 = vunpack.c.h.b16 %v3087
    %v3595 = vunpack.c.l.b16 %v3088
    %v3596 = vunpack.c.h.b16 %v3088
    %v3597 = vunpack.c.l.b16 %v3089
    %v3598 = vunpack.c.h.b16 %v3089
    %v3599 = vunpack.c.l.b16 %v3090
    %v3600 = vunpack.c.h.b16 %v3090
    %v3601 = vunpack.c.l.b16 %v3091
    %v3602 = vunpack.c.h.b16 %v3091
    %v3603 = vunpack.c.l.b16 %v3092
    %v3604 = vunpack.c.h.b16 %v3092
    %v3605 = vunpack.c.l.b16 %v3093
    %v3606 = vunpack.c.h.b16 %v3093
    %v3607 = vunpack.c.l.b16 %v3094
    %v3608 = vunpack.c.h.b16 %v3094
    %v3609 = vunpack.c.l.b16 %v3095
    %v3610 = vunpack.c.h.b16 %v3095
    %v3611 = vunpack.c.l.b16 %v3096
    %v3612 = vunpack.c.h.b16 %v3096
    %v3613 = vunpack.c.l.b16 %v3097
    %v3614 = vunpack.c.h.b16 %v3097
    %v3615 = vunpack.c.l.b16 %v3098
    %v3616 = vunpack.c.h.b16 %v3098
    %v3617 = vunpack.c.l.b16 %v3099
    %v3618 = vunpack.c.h.b16 %v3099
    %v3619 = vunpack.c.l.b16 %v3100
    %v3620 = vunpack.c.h.b16 %v3100
    %v3621 = vunpack.c.l.b16 %v3101
    %v3622 = vunpack.c.h.b16 %v3101
    %v3623 = vunpack.c.l.b16 %v3102
    %v3624 = vunpack.c.h.b16 %v3102
    %v3625 = vunpack.c.l.b16 %v3103
    %v3626 = vunpack.c.h.b16 %v3103
    %v3627 = vpack.c.b16 %v3565, %v3563
    %v3628 = vpack.c.b16 %v3566, %v3564
    %v3629 = vpack.c.b16 %v3569, %v3567
    %v3630 = vpack.c.b16 %v3570, %v3568
    %v3631 = vpack.c.b16 %v3573, %v3571
    %v3632 = vpack.c.b16 %v3574, %v3572
    %v3633 = vpack.c.b16 %v3577, %v3575
    %v3634 = vpack.c.b16 %v3578, %v3576
    %v3635 = vpack.c.b16 %v3581, %v3579
    %v3636 = vpack.c.b16 %v3582, %v3580
    %v3637 = vpack.c.b16 %v3585, %v3583
    %v3638 = vpack.c.b16 %v3586, %v3584
    %v3639 = vpack.c.b16 %v3589, %v3587
    %v3640 = vpack.c.b16 %v3590, %v3588
    %v3641 = vpack.c.b16 %v3593, %v3591
    %v3642 = vpack.c.b16 %v3594, %v3592
    %v3643 = vpack.c.b16 %v3597, %v3595
    %v3644 = vpack.c.b16 %v3598, %v3596
    %v3645 = vpack.c.b16 %v3601, %v3599
    %v3646 = vpack.c.b16 %v3602, %v3600
    %v3647 = vpack.c.b16 %v3605, %v3603
    %v3648 = vpack.c.b16 %v3606, %v3604
    %v3649 = vpack.c.b16 %v3609, %v3607
    %v3650 = vpack.c.b16 %v3610, %v3608
    %v3651 = vpack.c.b16 %v3613, %v3611
    %v3652 = vpack.c.b16 %v3614, %v3612
    %v3653 = vpack.c.b16 %v3617, %v3615
    %v3654 = vpack.c.b16 %v3618, %v3616
    %v3655 = vpack.c.b16 %v3621, %v3619
    %v3656 = vpack.c.b16 %v3622, %v3620
    %v3657 = vpack.c.b16 %v3625, %v3623
    %v3658 = vpack.c.b16 %v3626, %v3624
    %3691 = vmatprep.subr.bf16.mxu0 %v3642
    %3692 = vmatpush1.bf16.msra.mxu0 %v3641
    %3693 = vmatprep.subr.bf16.mxu0 %v3640
    %3694 = vmatpush1.bf16.msra.mxu0 %v3639
    %3695 = vmatprep.subr.bf16.mxu0 %v3638
    %3696 = vmatpush1.bf16.msra.mxu0 %v3637
    %3697 = vmatprep.subr.bf16.mxu0 %v3636
    %3698 = vmatpush1.bf16.msra.mxu0 %v3635
    %3699 = vmatprep.subr.bf16.mxu0 %v3634
    %3700 = vmatpush1.bf16.msra.mxu0 %v3633
    %3701 = vmatprep.subr.bf16.mxu0 %v3632
    %3702 = vmatpush1.bf16.msra.mxu0 %v3631
    %3703 = vmatprep.subr.bf16.mxu0 %v3630
    %3704 = vmatpush1.bf16.msra.mxu0 %v3629
    %3705 = vmatprep.subr.bf16.mxu0 %v3628
    %3706 = vmatpush1.bf16.msra.mxu0 %v3627
    %3707 = vmatprep.subr.bf16.mxu0 %v3658
    %3708 = vmatpush2.bf16.msra.mxu0 %v3657
    %3709 = vmatprep.subr.bf16.mxu0 %v3656
    %3710 = vmatpush2.bf16.msra.mxu0 %v3655
    %3711 = vmatprep.subr.bf16.mxu0 %v3654
    %3712 = vmatpush2.bf16.msra.mxu0 %v3653
    %3713 = vmatprep.subr.bf16.mxu0 %v3652
    %3714 = vmatpush2.bf16.msra.mxu0 %v3651
    %3715 = vmatprep.subr.bf16.mxu0 %v3650
    %3716 = vmatpush2.bf16.msra.mxu0 %v3649
    %3717 = vmatprep.subr.bf16.mxu0 %v3648
    %3718 = vmatpush2.bf16.msra.mxu0 %v3647
    %3719 = vmatprep.subr.bf16.mxu0 %v3646
    %3720 = vmatpush2.bf16.msra.mxu0 %v3645
    %3721 = vmatprep.subr.bf16.mxu0 %v3644
    %3722 = vmatpush2.bf16.msra.mxu0 %v3643
    %3723 = vmatprep.mubr.bf16.mxu0 %v3025
    %3724 = vmatmul.mubr.bf16.gmra.mxu0 %v3024
    %v3725 = vpop.f32.mrf.mxu0
    %v3726 = vadd.f32 0.0, %v3725
    %v3727 = vpop.f32.mrf.mxu0
    %v3728 = vadd.f32 0.0, %v3727
    %v3729 = vpop.f32.mrf.mxu0
    %v3730 = vadd.f32 0.0, %v3729
    %v3731 = vpop.f32.mrf.mxu0
    %v3732 = vadd.f32 0.0, %v3731
    %3733 = vdwg.mxu0
    %v3766 = vunpack.c.l.b16 %v3104
    %v3767 = vunpack.c.h.b16 %v3104
    %v3768 = vunpack.c.l.b16 %v3105
    %v3769 = vunpack.c.h.b16 %v3105
    %v3770 = vunpack.c.l.b16 %v3106
    %v3771 = vunpack.c.h.b16 %v3106
    %v3772 = vunpack.c.l.b16 %v3107
    %v3773 = vunpack.c.h.b16 %v3107
    %v3774 = vunpack.c.l.b16 %v3108
    %v3775 = vunpack.c.h.b16 %v3108
    %v3776 = vunpack.c.l.b16 %v3109
    %v3777 = vunpack.c.h.b16 %v3109
    %v3778 = vunpack.c.l.b16 %v3110
    %v3779 = vunpack.c.h.b16 %v3110
    %v3780 = vunpack.c.l.b16 %v3111
    %v3781 = vunpack.c.h.b16 %v3111
    %v3782 = vunpack.c.l.b16 %v3112
    %v3783 = vunpack.c.h.b16 %v3112
    %v3784 = vunpack.c.l.b16 %v3113
    %v3785 = vunpack.c.h.b16 %v3113
    %v3786 = vunpack.c.l.b16 %v3114
    %v3787 = vunpack.c.h.b16 %v3114
    %v3788 = vunpack.c.l.b16 %v3115
    %v3789 = vunpack.c.h.b16 %v3115
    %v3790 = vunpack.c.l.b16 %v3116
    %v3791 = vunpack.c.h.b16 %v3116
    %v3792 = vunpack.c.l.b16 %v3117
    %v3793 = vunpack.c.h.b16 %v3117
    %v3794 = vunpack.c.l.b16 %v3118
    %v3795 = vunpack.c.h.b16 %v3118
    %v3796 = vunpack.c.l.b16 %v3119
    %v3797 = vunpack.c.h.b16 %v3119
    %v3798 = vunpack.c.l.b16 %v3120
    %v3799 = vunpack.c.h.b16 %v3120
    %v3800 = vunpack.c.l.b16 %v3121
    %v3801 = vunpack.c.h.b16 %v3121
    %v3802 = vunpack.c.l.b16 %v3122
    %v3803 = vunpack.c.h.b16 %v3122
    %v3804 = vunpack.c.l.b16 %v3123
    %v3805 = vunpack.c.h.b16 %v3123
    %v3806 = vunpack.c.l.b16 %v3124
    %v3807 = vunpack.c.h.b16 %v3124
    %v3808 = vunpack.c.l.b16 %v3125
    %v3809 = vunpack.c.h.b16 %v3125
    %v3810 = vunpack.c.l.b16 %v3126
    %v3811 = vunpack.c.h.b16 %v3126
    %v3812 = vunpack.c.l.b16 %v3127
    %v3813 = vunpack.c.h.b16 %v3127
    %v3814 = vunpack.c.l.b16 %v3128
    %v3815 = vunpack.c.h.b16 %v3128
    %v3816 = vunpack.c.l.b16 %v3129
    %v3817 = vunpack.c.h.b16 %v3129
    %v3818 = vunpack.c.l.b16 %v3130
    %v3819 = vunpack.c.h.b16 %v3130
    %v3820 = vunpack.c.l.b16 %v3131
    %v3821 = vunpack.c.h.b16 %v3131
    %v3822 = vunpack.c.l.b16 %v3132
    %v3823 = vunpack.c.h.b16 %v3132
    %v3824 = vunpack.c.l.b16 %v3133
    %v3825 = vunpack.c.h.b16 %v3133
    %v3826 = vunpack.c.l.b16 %v3134
    %v3827 = vunpack.c.h.b16 %v3134
    %v3828 = vunpack.c.l.b16 %v3135
    %v3829 = vunpack.c.h.b16 %v3135
    %v3830 = vpack.c.b16 %v3768, %v3766
    %v3831 = vpack.c.b16 %v3769, %v3767
    %v3832 = vpack.c.b16 %v3772, %v3770
    %v3833 = vpack.c.b16 %v3773, %v3771
    %v3834 = vpack.c.b16 %v3776, %v3774
    %v3835 = vpack.c.b16 %v3777, %v3775
    %v3836 = vpack.c.b16 %v3780, %v3778
    %v3837 = vpack.c.b16 %v3781, %v3779
    %v3838 = vpack.c.b16 %v3784, %v3782
    %v3839 = vpack.c.b16 %v3785, %v3783
    %v3840 = vpack.c.b16 %v3788, %v3786
    %v3841 = vpack.c.b16 %v3789, %v3787
    %v3842 = vpack.c.b16 %v3792, %v3790
    %v3843 = vpack.c.b16 %v3793, %v3791
    %v3844 = vpack.c.b16 %v3796, %v3794
    %v3845 = vpack.c.b16 %v3797, %v3795
    %v3846 = vpack.c.b16 %v3800, %v3798
    %v3847 = vpack.c.b16 %v3801, %v3799
    %v3848 = vpack.c.b16 %v3804, %v3802
    %v3849 = vpack.c.b16 %v3805, %v3803
    %v3850 = vpack.c.b16 %v3808, %v3806
    %v3851 = vpack.c.b16 %v3809, %v3807
    %v3852 = vpack.c.b16 %v3812, %v3810
    %v3853 = vpack.c.b16 %v3813, %v3811
    %v3854 = vpack.c.b16 %v3816, %v3814
    %v3855 = vpack.c.b16 %v3817, %v3815
    %v3856 = vpack.c.b16 %v3820, %v3818
    %v3857 = vpack.c.b16 %v3821, %v3819
    %v3858 = vpack.c.b16 %v3824, %v3822
    %v3859 = vpack.c.b16 %v3825, %v3823
    %v3860 = vpack.c.b16 %v3828, %v3826
    %v3861 = vpack.c.b16 %v3829, %v3827
    %3894 = vmatprep.subr.bf16.mxu0 %v3845
    %3895 = vmatpush1.bf16.msra.mxu0 %v3844
    %3896 = vmatprep.subr.bf16.mxu0 %v3843
    %3897 = vmatpush1.bf16.msra.mxu0 %v3842
    %3898 = vmatprep.subr.bf16.mxu0 %v3841
    %3899 = vmatpush1.bf16.msra.mxu0 %v3840
    %3900 = vmatprep.subr.bf16.mxu0 %v3839
    %3901 = vmatpush1.bf16.msra.mxu0 %v3838
    %3902 = vmatprep.subr.bf16.mxu0 %v3837
    %3903 = vmatpush1.bf16.msra.mxu0 %v3836
    %3904 = vmatprep.subr.bf16.mxu0 %v3835
    %3905 = vmatpush1.bf16.msra.mxu0 %v3834
    %3906 = vmatprep.subr.bf16.mxu0 %v3833
    %3907 = vmatpush1.bf16.msra.mxu0 %v3832
    %3908 = vmatprep.subr.bf16.mxu0 %v3831
    %3909 = vmatpush1.bf16.msra.mxu0 %v3830
    %3910 = vmatprep.subr.bf16.mxu0 %v3861
    %3911 = vmatpush2.bf16.msra.mxu0 %v3860
    %3912 = vmatprep.subr.bf16.mxu0 %v3859
    %3913 = vmatpush2.bf16.msra.mxu0 %v3858
    %3914 = vmatprep.subr.bf16.mxu0 %v3857
    %3915 = vmatpush2.bf16.msra.mxu0 %v3856
    %3916 = vmatprep.subr.bf16.mxu0 %v3855
    %3917 = vmatpush2.bf16.msra.mxu0 %v3854
    %3918 = vmatprep.subr.bf16.mxu0 %v3853
    %3919 = vmatpush2.bf16.msra.mxu0 %v3852
    %3920 = vmatprep.subr.bf16.mxu0 %v3851
    %3921 = vmatpush2.bf16.msra.mxu0 %v3850
    %3922 = vmatprep.subr.bf16.mxu0 %v3849
    %3923 = vmatpush2.bf16.msra.mxu0 %v3848
    %3924 = vmatprep.subr.bf16.mxu0 %v3847
    %3925 = vmatpush2.bf16.msra.mxu0 %v3846
    %3926 = vmatprep.mubr.bf16.mxu0 %v3027
    %3927 = vmatmul.mubr.bf16.gmra.mxu0 %v3026
    %v3928 = vpop.f32.mrf.mxu0
    %v3929 = vadd.f32 0.0, %v3928
    %v3930 = vpop.f32.mrf.mxu0
    %v3931 = vadd.f32 0.0, %v3930
    %v3932 = vpop.f32.mrf.mxu0
    %v3933 = vadd.f32 0.0, %v3932
    %v3934 = vpop.f32.mrf.mxu0
    %v3935 = vadd.f32 0.0, %v3934
    %3936 = vdwg.mxu0
    %v3969 = vunpack.c.l.b16 %v3136
    %v3970 = vunpack.c.h.b16 %v3136
    %v3971 = vunpack.c.l.b16 %v3137
    %v3972 = vunpack.c.h.b16 %v3137
    %v3973 = vunpack.c.l.b16 %v3138
    %v3974 = vunpack.c.h.b16 %v3138
    %v3975 = vunpack.c.l.b16 %v3139
    %v3976 = vunpack.c.h.b16 %v3139
    %v3977 = vunpack.c.l.b16 %v3140
    %v3978 = vunpack.c.h.b16 %v3140
    %v3979 = vunpack.c.l.b16 %v3141
    %v3980 = vunpack.c.h.b16 %v3141
    %v3981 = vunpack.c.l.b16 %v3142
    %v3982 = vunpack.c.h.b16 %v3142
    %v3983 = vunpack.c.l.b16 %v3143
    %v3984 = vunpack.c.h.b16 %v3143
    %v3985 = vunpack.c.l.b16 %v3144
    %v3986 = vunpack.c.h.b16 %v3144
    %v3987 = vunpack.c.l.b16 %v3145
    %v3988 = vunpack.c.h.b16 %v3145
    %v3989 = vunpack.c.l.b16 %v3146
    %v3990 = vunpack.c.h.b16 %v3146
    %v3991 = vunpack.c.l.b16 %v3147
    %v3992 = vunpack.c.h.b16 %v3147
    %v3993 = vunpack.c.l.b16 %v3148
    %v3994 = vunpack.c.h.b16 %v3148
    %v3995 = vunpack.c.l.b16 %v3149
    %v3996 = vunpack.c.h.b16 %v3149
    %v3997 = vunpack.c.l.b16 %v3150
    %v3998 = vunpack.c.h.b16 %v3150
    %v3999 = vunpack.c.l.b16 %v3151
    %v4000 = vunpack.c.h.b16 %v3151
    %v4001 = vunpack.c.l.b16 %v3152
    %v4002 = vunpack.c.h.b16 %v3152
    %v4003 = vunpack.c.l.b16 %v3153
    %v4004 = vunpack.c.h.b16 %v3153
    %v4005 = vunpack.c.l.b16 %v3154
    %v4006 = vunpack.c.h.b16 %v3154
    %v4007 = vunpack.c.l.b16 %v3155
    %v4008 = vunpack.c.h.b16 %v3155
    %v4009 = vunpack.c.l.b16 %v3156
    %v4010 = vunpack.c.h.b16 %v3156
    %v4011 = vunpack.c.l.b16 %v3157
    %v4012 = vunpack.c.h.b16 %v3157
    %v4013 = vunpack.c.l.b16 %v3158
    %v4014 = vunpack.c.h.b16 %v3158
    %v4015 = vunpack.c.l.b16 %v3159
    %v4016 = vunpack.c.h.b16 %v3159
    %v4017 = vunpack.c.l.b16 %v3160
    %v4018 = vunpack.c.h.b16 %v3160
    %v4019 = vunpack.c.l.b16 %v3161
    %v4020 = vunpack.c.h.b16 %v3161
    %v4021 = vunpack.c.l.b16 %v3162
    %v4022 = vunpack.c.h.b16 %v3162
    %v4023 = vunpack.c.l.b16 %v3163
    %v4024 = vunpack.c.h.b16 %v3163
    %v4025 = vunpack.c.l.b16 %v3164
    %v4026 = vunpack.c.h.b16 %v3164
    %v4027 = vunpack.c.l.b16 %v3165
    %v4028 = vunpack.c.h.b16 %v3165
    %v4029 = vunpack.c.l.b16 %v3166
    %v4030 = vunpack.c.h.b16 %v3166
    %v4031 = vunpack.c.l.b16 %v3167
    %v4032 = vunpack.c.h.b16 %v3167
    %v4033 = vpack.c.b16 %v3971, %v3969
    %v4034 = vpack.c.b16 %v3972, %v3970
    %v4035 = vpack.c.b16 %v3975, %v3973
    %v4036 = vpack.c.b16 %v3976, %v3974
    %v4037 = vpack.c.b16 %v3979, %v3977
    %v4038 = vpack.c.b16 %v3980, %v3978
    %v4039 = vpack.c.b16 %v3983, %v3981
    %v4040 = vpack.c.b16 %v3984, %v3982
    %v4041 = vpack.c.b16 %v3987, %v3985
    %v4042 = vpack.c.b16 %v3988, %v3986
    %v4043 = vpack.c.b16 %v3991, %v3989
    %v4044 = vpack.c.b16 %v3992, %v3990
    %v4045 = vpack.c.b16 %v3995, %v3993
    %v4046 = vpack.c.b16 %v3996, %v3994
    %v4047 = vpack.c.b16 %v3999, %v3997
    %v4048 = vpack.c.b16 %v4000, %v3998
    %v4049 = vpack.c.b16 %v4003, %v4001
    %v4050 = vpack.c.b16 %v4004, %v4002
    %v4051 = vpack.c.b16 %v4007, %v4005
    %v4052 = vpack.c.b16 %v4008, %v4006
    %v4053 = vpack.c.b16 %v4011, %v4009
    %v4054 = vpack.c.b16 %v4012, %v4010
    %v4055 = vpack.c.b16 %v4015, %v4013
    %v4056 = vpack.c.b16 %v4016, %v4014
    %v4057 = vpack.c.b16 %v4019, %v4017
    %v4058 = vpack.c.b16 %v4020, %v4018
    %v4059 = vpack.c.b16 %v4023, %v4021
    %v4060 = vpack.c.b16 %v4024, %v4022
    %v4061 = vpack.c.b16 %v4027, %v4025
    %v4062 = vpack.c.b16 %v4028, %v4026
    %v4063 = vpack.c.b16 %v4031, %v4029
    %v4064 = vpack.c.b16 %v4032, %v4030
    %4097 = vmatprep.subr.bf16.mxu0 %v4048
    %4098 = vmatpush1.bf16.msra.mxu0 %v4047
    %4099 = vmatprep.subr.bf16.mxu0 %v4046
    %4100 = vmatpush1.bf16.msra.mxu0 %v4045
    %4101 = vmatprep.subr.bf16.mxu0 %v4044
    %4102 = vmatpush1.bf16.msra.mxu0 %v4043
    %4103 = vmatprep.subr.bf16.mxu0 %v4042
    %4104 = vmatpush1.bf16.msra.mxu0 %v4041
    %4105 = vmatprep.subr.bf16.mxu0 %v4040
    %4106 = vmatpush1.bf16.msra.mxu0 %v4039
    %4107 = vmatprep.subr.bf16.mxu0 %v4038
    %4108 = vmatpush1.bf16.msra.mxu0 %v4037
    %4109 = vmatprep.subr.bf16.mxu0 %v4036
    %4110 = vmatpush1.bf16.msra.mxu0 %v4035
    %4111 = vmatprep.subr.bf16.mxu0 %v4034
    %4112 = vmatpush1.bf16.msra.mxu0 %v4033
    %4113 = vmatprep.subr.bf16.mxu0 %v4064
    %4114 = vmatpush2.bf16.msra.mxu0 %v4063
    %4115 = vmatprep.subr.bf16.mxu0 %v4062
    %4116 = vmatpush2.bf16.msra.mxu0 %v4061
    %4117 = vmatprep.subr.bf16.mxu0 %v4060
    %4118 = vmatpush2.bf16.msra.mxu0 %v4059
    %4119 = vmatprep.subr.bf16.mxu0 %v4058
    %4120 = vmatpush2.bf16.msra.mxu0 %v4057
    %4121 = vmatprep.subr.bf16.mxu0 %v4056
    %4122 = vmatpush2.bf16.msra.mxu0 %v4055
    %4123 = vmatprep.subr.bf16.mxu0 %v4054
    %4124 = vmatpush2.bf16.msra.mxu0 %v4053
    %4125 = vmatprep.subr.bf16.mxu0 %v4052
    %4126 = vmatpush2.bf16.msra.mxu0 %v4051
    %4127 = vmatprep.subr.bf16.mxu0 %v4050
    %4128 = vmatpush2.bf16.msra.mxu0 %v4049
    %4129 = vmatprep.mubr.bf16.mxu0 %v3029
    %4130 = vmatmul.mubr.bf16.gmra.mxu0 %v3028
    %v4131 = vpop.f32.mrf.mxu0
    %v4132 = vadd.f32 0.0, %v4131
    %v4133 = vpop.f32.mrf.mxu0
    %v4134 = vadd.f32 0.0, %v4133
    %v4135 = vpop.f32.mrf.mxu0
    %v4136 = vadd.f32 0.0, %v4135
    %v4137 = vpop.f32.mrf.mxu0
    %v4138 = vadd.f32 0.0, %v4137
    %4139 = vdwg.mxu0
    %v4172 = vunpack.c.l.b16 %v3168
    %v4173 = vunpack.c.h.b16 %v3168
    %v4174 = vunpack.c.l.b16 %v3169
    %v4175 = vunpack.c.h.b16 %v3169
    %v4176 = vunpack.c.l.b16 %v3170
    %v4177 = vunpack.c.h.b16 %v3170
    %v4178 = vunpack.c.l.b16 %v3171
    %v4179 = vunpack.c.h.b16 %v3171
    %v4180 = vunpack.c.l.b16 %v3172
    %v4181 = vunpack.c.h.b16 %v3172
    %v4182 = vunpack.c.l.b16 %v3173
    %v4183 = vunpack.c.h.b16 %v3173
    %v4184 = vunpack.c.l.b16 %v3174
    %v4185 = vunpack.c.h.b16 %v3174
    %v4186 = vunpack.c.l.b16 %v3175
    %v4187 = vunpack.c.h.b16 %v3175
    %v4188 = vunpack.c.l.b16 %v3176
    %v4189 = vunpack.c.h.b16 %v3176
    %v4190 = vunpack.c.l.b16 %v3177
    %v4191 = vunpack.c.h.b16 %v3177
    %v4192 = vunpack.c.l.b16 %v3178
    %v4193 = vunpack.c.h.b16 %v3178
    %v4194 = vunpack.c.l.b16 %v3179
    %v4195 = vunpack.c.h.b16 %v3179
    %v4196 = vunpack.c.l.b16 %v3180
    %v4197 = vunpack.c.h.b16 %v3180
    %v4198 = vunpack.c.l.b16 %v3181
    %v4199 = vunpack.c.h.b16 %v3181
    %v4200 = vunpack.c.l.b16 %v3182
    %v4201 = vunpack.c.h.b16 %v3182
    %v4202 = vunpack.c.l.b16 %v3183
    %v4203 = vunpack.c.h.b16 %v3183
    %v4204 = vunpack.c.l.b16 %v3184
    %v4205 = vunpack.c.h.b16 %v3184
    %v4206 = vunpack.c.l.b16 %v3185
    %v4207 = vunpack.c.h.b16 %v3185
    %v4208 = vunpack.c.l.b16 %v3186
    %v4209 = vunpack.c.h.b16 %v3186
    %v4210 = vunpack.c.l.b16 %v3187
    %v4211 = vunpack.c.h.b16 %v3187
    %v4212 = vunpack.c.l.b16 %v3188
    %v4213 = vunpack.c.h.b16 %v3188
    %v4214 = vunpack.c.l.b16 %v3189
    %v4215 = vunpack.c.h.b16 %v3189
    %v4216 = vunpack.c.l.b16 %v3190
    %v4217 = vunpack.c.h.b16 %v3190
    %v4218 = vunpack.c.l.b16 %v3191
    %v4219 = vunpack.c.h.b16 %v3191
    %v4220 = vunpack.c.l.b16 %v3192
    %v4221 = vunpack.c.h.b16 %v3192
    %v4222 = vunpack.c.l.b16 %v3193
    %v4223 = vunpack.c.h.b16 %v3193
    %v4224 = vunpack.c.l.b16 %v3194
    %v4225 = vunpack.c.h.b16 %v3194
    %v4226 = vunpack.c.l.b16 %v3195
    %v4227 = vunpack.c.h.b16 %v3195
    %v4228 = vunpack.c.l.b16 %v3196
    %v4229 = vunpack.c.h.b16 %v3196
    %v4230 = vunpack.c.l.b16 %v3197
    %v4231 = vunpack.c.h.b16 %v3197
    %v4232 = vunpack.c.l.b16 %v3198
    %v4233 = vunpack.c.h.b16 %v3198
    %v4234 = vunpack.c.l.b16 %v3199
    %v4235 = vunpack.c.h.b16 %v3199
    %v4236 = vpack.c.b16 %v4174, %v4172
    %v4237 = vpack.c.b16 %v4175, %v4173
    %v4238 = vpack.c.b16 %v4178, %v4176
    %v4239 = vpack.c.b16 %v4179, %v4177
    %v4240 = vpack.c.b16 %v4182, %v4180
    %v4241 = vpack.c.b16 %v4183, %v4181
    %v4242 = vpack.c.b16 %v4186, %v4184
    %v4243 = vpack.c.b16 %v4187, %v4185
    %v4244 = vpack.c.b16 %v4190, %v4188
    %v4245 = vpack.c.b16 %v4191, %v4189
    %v4246 = vpack.c.b16 %v4194, %v4192
    %v4247 = vpack.c.b16 %v4195, %v4193
    %v4248 = vpack.c.b16 %v4198, %v4196
    %v4249 = vpack.c.b16 %v4199, %v4197
    %v4250 = vpack.c.b16 %v4202, %v4200
    %v4251 = vpack.c.b16 %v4203, %v4201
    %v4252 = vpack.c.b16 %v4206, %v4204
    %v4253 = vpack.c.b16 %v4207, %v4205
    %v4254 = vpack.c.b16 %v4210, %v4208
    %v4255 = vpack.c.b16 %v4211, %v4209
    %v4256 = vpack.c.b16 %v4214, %v4212
    %v4257 = vpack.c.b16 %v4215, %v4213
    %v4258 = vpack.c.b16 %v4218, %v4216
    %v4259 = vpack.c.b16 %v4219, %v4217
    %v4260 = vpack.c.b16 %v4222, %v4220
    %v4261 = vpack.c.b16 %v4223, %v4221
    %v4262 = vpack.c.b16 %v4226, %v4224
    %v4263 = vpack.c.b16 %v4227, %v4225
    %v4264 = vpack.c.b16 %v4230, %v4228
    %v4265 = vpack.c.b16 %v4231, %v4229
    %v4266 = vpack.c.b16 %v4234, %v4232
    %v4267 = vpack.c.b16 %v4235, %v4233
    %4300 = vmatprep.subr.bf16.mxu0 %v4251
    %4301 = vmatpush1.bf16.msra.mxu0 %v4250
    %4302 = vmatprep.subr.bf16.mxu0 %v4249
    %4303 = vmatpush1.bf16.msra.mxu0 %v4248
    %4304 = vmatprep.subr.bf16.mxu0 %v4247
    %4305 = vmatpush1.bf16.msra.mxu0 %v4246
    %4306 = vmatprep.subr.bf16.mxu0 %v4245
    %4307 = vmatpush1.bf16.msra.mxu0 %v4244
    %4308 = vmatprep.subr.bf16.mxu0 %v4243
    %4309 = vmatpush1.bf16.msra.mxu0 %v4242
    %4310 = vmatprep.subr.bf16.mxu0 %v4241
    %4311 = vmatpush1.bf16.msra.mxu0 %v4240
    %4312 = vmatprep.subr.bf16.mxu0 %v4239
    %4313 = vmatpush1.bf16.msra.mxu0 %v4238
    %4314 = vmatprep.subr.bf16.mxu0 %v4237
    %4315 = vmatpush1.bf16.msra.mxu0 %v4236
    %4316 = vmatprep.subr.bf16.mxu0 %v4267
    %4317 = vmatpush2.bf16.msra.mxu0 %v4266
    %4318 = vmatprep.subr.bf16.mxu0 %v4265
    %4319 = vmatpush2.bf16.msra.mxu0 %v4264
    %4320 = vmatprep.subr.bf16.mxu0 %v4263
    %4321 = vmatpush2.bf16.msra.mxu0 %v4262
    %4322 = vmatprep.subr.bf16.mxu0 %v4261
    %4323 = vmatpush2.bf16.msra.mxu0 %v4260
    %4324 = vmatprep.subr.bf16.mxu0 %v4259
    %4325 = vmatpush2.bf16.msra.mxu0 %v4258
    %4326 = vmatprep.subr.bf16.mxu0 %v4257
    %4327 = vmatpush2.bf16.msra.mxu0 %v4256
    %4328 = vmatprep.subr.bf16.mxu0 %v4255
    %4329 = vmatpush2.bf16.msra.mxu0 %v4254
    %4330 = vmatprep.subr.bf16.mxu0 %v4253
    %4331 = vmatpush2.bf16.msra.mxu0 %v4252
    %4332 = vmatprep.mubr.bf16.mxu0 %v3031
    %4333 = vmatmul.mubr.bf16.gmra.mxu0 %v3030
    %v4334 = vpop.f32.mrf.mxu0
    %v4335 = vadd.f32 0.0, %v4334
    %v4336 = vpop.f32.mrf.mxu0
    %v4337 = vadd.f32 0.0, %v4336
    %v4338 = vpop.f32.mrf.mxu0
    %v4339 = vadd.f32 0.0, %v4338
    %v4340 = vpop.f32.mrf.mxu0
    %v4341 = vadd.f32 0.0, %v4340
    %4342 = vdwg.mxu0
    %v4375 = vunpack.c.l.b16 %v3200
    %v4376 = vunpack.c.h.b16 %v3200
    %v4377 = vunpack.c.l.b16 %v3201
    %v4378 = vunpack.c.h.b16 %v3201
    %v4379 = vunpack.c.l.b16 %v3202
    %v4380 = vunpack.c.h.b16 %v3202
    %v4381 = vunpack.c.l.b16 %v3203
    %v4382 = vunpack.c.h.b16 %v3203
    %v4383 = vunpack.c.l.b16 %v3204
    %v4384 = vunpack.c.h.b16 %v3204
    %v4385 = vunpack.c.l.b16 %v3205
    %v4386 = vunpack.c.h.b16 %v3205
    %v4387 = vunpack.c.l.b16 %v3206
    %v4388 = vunpack.c.h.b16 %v3206
    %v4389 = vunpack.c.l.b16 %v3207
    %v4390 = vunpack.c.h.b16 %v3207
    %v4391 = vunpack.c.l.b16 %v3208
    %v4392 = vunpack.c.h.b16 %v3208
    %v4393 = vunpack.c.l.b16 %v3209
    %v4394 = vunpack.c.h.b16 %v3209
    %v4395 = vunpack.c.l.b16 %v3210
    %v4396 = vunpack.c.h.b16 %v3210
    %v4397 = vunpack.c.l.b16 %v3211
    %v4398 = vunpack.c.h.b16 %v3211
    %v4399 = vunpack.c.l.b16 %v3212
    %v4400 = vunpack.c.h.b16 %v3212
    %v4401 = vunpack.c.l.b16 %v3213
    %v4402 = vunpack.c.h.b16 %v3213
    %v4403 = vunpack.c.l.b16 %v3214
    %v4404 = vunpack.c.h.b16 %v3214
    %v4405 = vunpack.c.l.b16 %v3215
    %v4406 = vunpack.c.h.b16 %v3215
    %v4407 = vunpack.c.l.b16 %v3216
    %v4408 = vunpack.c.h.b16 %v3216
    %v4409 = vunpack.c.l.b16 %v3217
    %v4410 = vunpack.c.h.b16 %v3217
    %v4411 = vunpack.c.l.b16 %v3218
    %v4412 = vunpack.c.h.b16 %v3218
    %v4413 = vunpack.c.l.b16 %v3219
    %v4414 = vunpack.c.h.b16 %v3219
    %v4415 = vunpack.c.l.b16 %v3220
    %v4416 = vunpack.c.h.b16 %v3220
    %v4417 = vunpack.c.l.b16 %v3221
    %v4418 = vunpack.c.h.b16 %v3221
    %v4419 = vunpack.c.l.b16 %v3222
    %v4420 = vunpack.c.h.b16 %v3222
    %v4421 = vunpack.c.l.b16 %v3223
    %v4422 = vunpack.c.h.b16 %v3223
    %v4423 = vunpack.c.l.b16 %v3224
    %v4424 = vunpack.c.h.b16 %v3224
    %v4425 = vunpack.c.l.b16 %v3225
    %v4426 = vunpack.c.h.b16 %v3225
    %v4427 = vunpack.c.l.b16 %v3226
    %v4428 = vunpack.c.h.b16 %v3226
    %v4429 = vunpack.c.l.b16 %v3227
    %v4430 = vunpack.c.h.b16 %v3227
    %v4431 = vunpack.c.l.b16 %v3228
    %v4432 = vunpack.c.h.b16 %v3228
    %v4433 = vunpack.c.l.b16 %v3229
    %v4434 = vunpack.c.h.b16 %v3229
    %v4435 = vunpack.c.l.b16 %v3230
    %v4436 = vunpack.c.h.b16 %v3230
    %v4437 = vunpack.c.l.b16 %v3231
    %v4438 = vunpack.c.h.b16 %v3231
    %v4439 = vpack.c.b16 %v4377, %v4375
    %v4440 = vpack.c.b16 %v4378, %v4376
    %v4441 = vpack.c.b16 %v4381, %v4379
    %v4442 = vpack.c.b16 %v4382, %v4380
    %v4443 = vpack.c.b16 %v4385, %v4383
    %v4444 = vpack.c.b16 %v4386, %v4384
    %v4445 = vpack.c.b16 %v4389, %v4387
    %v4446 = vpack.c.b16 %v4390, %v4388
    %v4447 = vpack.c.b16 %v4393, %v4391
    %v4448 = vpack.c.b16 %v4394, %v4392
    %v4449 = vpack.c.b16 %v4397, %v4395
    %v4450 = vpack.c.b16 %v4398, %v4396
    %v4451 = vpack.c.b16 %v4401, %v4399
    %v4452 = vpack.c.b16 %v4402, %v4400
    %v4453 = vpack.c.b16 %v4405, %v4403
    %v4454 = vpack.c.b16 %v4406, %v4404
    %v4455 = vpack.c.b16 %v4409, %v4407
    %v4456 = vpack.c.b16 %v4410, %v4408
    %v4457 = vpack.c.b16 %v4413, %v4411
    %v4458 = vpack.c.b16 %v4414, %v4412
    %v4459 = vpack.c.b16 %v4417, %v4415
    %v4460 = vpack.c.b16 %v4418, %v4416
    %v4461 = vpack.c.b16 %v4421, %v4419
    %v4462 = vpack.c.b16 %v4422, %v4420
    %v4463 = vpack.c.b16 %v4425, %v4423
    %v4464 = vpack.c.b16 %v4426, %v4424
    %v4465 = vpack.c.b16 %v4429, %v4427
    %v4466 = vpack.c.b16 %v4430, %v4428
    %v4467 = vpack.c.b16 %v4433, %v4431
    %v4468 = vpack.c.b16 %v4434, %v4432
    %v4469 = vpack.c.b16 %v4437, %v4435
    %v4470 = vpack.c.b16 %v4438, %v4436
    %4503 = vmatprep.subr.bf16.mxu0 %v4454
    %4504 = vmatpush1.bf16.msra.mxu0 %v4453
    %4505 = vmatprep.subr.bf16.mxu0 %v4452
    %4506 = vmatpush1.bf16.msra.mxu0 %v4451
    %4507 = vmatprep.subr.bf16.mxu0 %v4450
    %4508 = vmatpush1.bf16.msra.mxu0 %v4449
    %4509 = vmatprep.subr.bf16.mxu0 %v4448
    %4510 = vmatpush1.bf16.msra.mxu0 %v4447
    %4511 = vmatprep.subr.bf16.mxu0 %v4446
    %4512 = vmatpush1.bf16.msra.mxu0 %v4445
    %4513 = vmatprep.subr.bf16.mxu0 %v4444
    %4514 = vmatpush1.bf16.msra.mxu0 %v4443
    %4515 = vmatprep.subr.bf16.mxu0 %v4442
    %4516 = vmatpush1.bf16.msra.mxu0 %v4441
    %4517 = vmatprep.subr.bf16.mxu0 %v4440
    %4518 = vmatpush1.bf16.msra.mxu0 %v4439
    %4519 = vmatprep.subr.bf16.mxu0 %v4470
    %4520 = vmatpush2.bf16.msra.mxu0 %v4469
    %4521 = vmatprep.subr.bf16.mxu0 %v4468
    %4522 = vmatpush2.bf16.msra.mxu0 %v4467
    %4523 = vmatprep.subr.bf16.mxu0 %v4466
    %4524 = vmatpush2.bf16.msra.mxu0 %v4465
    %4525 = vmatprep.subr.bf16.mxu0 %v4464
    %4526 = vmatpush2.bf16.msra.mxu0 %v4463
    %4527 = vmatprep.subr.bf16.mxu0 %v4462
    %4528 = vmatpush2.bf16.msra.mxu0 %v4461
    %4529 = vmatprep.subr.bf16.mxu0 %v4460
    %4530 = vmatpush2.bf16.msra.mxu0 %v4459
    %4531 = vmatprep.subr.bf16.mxu0 %v4458
    %4532 = vmatpush2.bf16.msra.mxu0 %v4457
    %4533 = vmatprep.subr.bf16.mxu0 %v4456
    %4534 = vmatpush2.bf16.msra.mxu0 %v4455
    %4535 = vmatprep.mubr.bf16.mxu0 %v3033
    %4536 = vmatmul.mubr.bf16.gmra.mxu0 %v3032
    %v4537 = vpop.f32.mrf.mxu0
    %v4538 = vadd.f32 0.0, %v4537
    %v4539 = vpop.f32.mrf.mxu0
    %v4540 = vadd.f32 0.0, %v4539
    %v4541 = vpop.f32.mrf.mxu0
    %v4542 = vadd.f32 0.0, %v4541
    %v4543 = vpop.f32.mrf.mxu0
    %v4544 = vadd.f32 0.0, %v4543
    %4545 = vdwg.mxu0
    %v4578 = vunpack.c.l.b16 %v3232
    %v4579 = vunpack.c.h.b16 %v3232
    %v4580 = vunpack.c.l.b16 %v3233
    %v4581 = vunpack.c.h.b16 %v3233
    %v4582 = vunpack.c.l.b16 %v3234
    %v4583 = vunpack.c.h.b16 %v3234
    %v4584 = vunpack.c.l.b16 %v3235
    %v4585 = vunpack.c.h.b16 %v3235
    %v4586 = vunpack.c.l.b16 %v3236
    %v4587 = vunpack.c.h.b16 %v3236
    %v4588 = vunpack.c.l.b16 %v3237
    %v4589 = vunpack.c.h.b16 %v3237
    %v4590 = vunpack.c.l.b16 %v3238
    %v4591 = vunpack.c.h.b16 %v3238
    %v4592 = vunpack.c.l.b16 %v3239
    %v4593 = vunpack.c.h.b16 %v3239
    %v4594 = vunpack.c.l.b16 %v3240
    %v4595 = vunpack.c.h.b16 %v3240
    %v4596 = vunpack.c.l.b16 %v3241
    %v4597 = vunpack.c.h.b16 %v3241
    %v4598 = vunpack.c.l.b16 %v3242
    %v4599 = vunpack.c.h.b16 %v3242
    %v4600 = vunpack.c.l.b16 %v3243
    %v4601 = vunpack.c.h.b16 %v3243
    %v4602 = vunpack.c.l.b16 %v3244
    %v4603 = vunpack.c.h.b16 %v3244
    %v4604 = vunpack.c.l.b16 %v3245
    %v4605 = vunpack.c.h.b16 %v3245
    %v4606 = vunpack.c.l.b16 %v3246
    %v4607 = vunpack.c.h.b16 %v3246
    %v4608 = vunpack.c.l.b16 %v3247
    %v4609 = vunpack.c.h.b16 %v3247
    %v4610 = vunpack.c.l.b16 %v3248
    %v4611 = vunpack.c.h.b16 %v3248
    %v4612 = vunpack.c.l.b16 %v3249
    %v4613 = vunpack.c.h.b16 %v3249
    %v4614 = vunpack.c.l.b16 %v3250
    %v4615 = vunpack.c.h.b16 %v3250
    %v4616 = vunpack.c.l.b16 %v3251
    %v4617 = vunpack.c.h.b16 %v3251
    %v4618 = vunpack.c.l.b16 %v3252
    %v4619 = vunpack.c.h.b16 %v3252
    %v4620 = vunpack.c.l.b16 %v3253
    %v4621 = vunpack.c.h.b16 %v3253
    %v4622 = vunpack.c.l.b16 %v3254
    %v4623 = vunpack.c.h.b16 %v3254
    %v4624 = vunpack.c.l.b16 %v3255
    %v4625 = vunpack.c.h.b16 %v3255
    %v4626 = vunpack.c.l.b16 %v3256
    %v4627 = vunpack.c.h.b16 %v3256
    %v4628 = vunpack.c.l.b16 %v3257
    %v4629 = vunpack.c.h.b16 %v3257
    %v4630 = vunpack.c.l.b16 %v3258
    %v4631 = vunpack.c.h.b16 %v3258
    %v4632 = vunpack.c.l.b16 %v3259
    %v4633 = vunpack.c.h.b16 %v3259
    %v4634 = vunpack.c.l.b16 %v3260
    %v4635 = vunpack.c.h.b16 %v3260
    %v4636 = vunpack.c.l.b16 %v3261
    %v4637 = vunpack.c.h.b16 %v3261
    %v4638 = vunpack.c.l.b16 %v3262
    %v4639 = vunpack.c.h.b16 %v3262
    %v4640 = vunpack.c.l.b16 %v3263
    %v4641 = vunpack.c.h.b16 %v3263
    %v4642 = vpack.c.b16 %v4580, %v4578
    %v4643 = vpack.c.b16 %v4581, %v4579
    %v4644 = vpack.c.b16 %v4584, %v4582
    %v4645 = vpack.c.b16 %v4585, %v4583
    %v4646 = vpack.c.b16 %v4588, %v4586
    %v4647 = vpack.c.b16 %v4589, %v4587
    %v4648 = vpack.c.b16 %v4592, %v4590
    %v4649 = vpack.c.b16 %v4593, %v4591
    %v4650 = vpack.c.b16 %v4596, %v4594
    %v4651 = vpack.c.b16 %v4597, %v4595
    %v4652 = vpack.c.b16 %v4600, %v4598
    %v4653 = vpack.c.b16 %v4601, %v4599
    %v4654 = vpack.c.b16 %v4604, %v4602
    %v4655 = vpack.c.b16 %v4605, %v4603
    %v4656 = vpack.c.b16 %v4608, %v4606
    %v4657 = vpack.c.b16 %v4609, %v4607
    %v4658 = vpack.c.b16 %v4612, %v4610
    %v4659 = vpack.c.b16 %v4613, %v4611
    %v4660 = vpack.c.b16 %v4616, %v4614
    %v4661 = vpack.c.b16 %v4617, %v4615
    %v4662 = vpack.c.b16 %v4620, %v4618
    %v4663 = vpack.c.b16 %v4621, %v4619
    %v4664 = vpack.c.b16 %v4624, %v4622
    %v4665 = vpack.c.b16 %v4625, %v4623
    %v4666 = vpack.c.b16 %v4628, %v4626
    %v4667 = vpack.c.b16 %v4629, %v4627
    %v4668 = vpack.c.b16 %v4632, %v4630
    %v4669 = vpack.c.b16 %v4633, %v4631
    %v4670 = vpack.c.b16 %v4636, %v4634
    %v4671 = vpack.c.b16 %v4637, %v4635
    %v4672 = vpack.c.b16 %v4640, %v4638
    %v4673 = vpack.c.b16 %v4641, %v4639
    %4706 = vmatprep.subr.bf16.mxu0 %v4657
    %4707 = vmatpush1.bf16.msra.mxu0 %v4656
    %4708 = vmatprep.subr.bf16.mxu0 %v4655
    %4709 = vmatpush1.bf16.msra.mxu0 %v4654
    %4710 = vmatprep.subr.bf16.mxu0 %v4653
    %4711 = vmatpush1.bf16.msra.mxu0 %v4652
    %4712 = vmatprep.subr.bf16.mxu0 %v4651
    %4713 = vmatpush1.bf16.msra.mxu0 %v4650
    %4714 = vmatprep.subr.bf16.mxu0 %v4649
    %4715 = vmatpush1.bf16.msra.mxu0 %v4648
    %4716 = vmatprep.subr.bf16.mxu0 %v4647
    %4717 = vmatpush1.bf16.msra.mxu0 %v4646
    %4718 = vmatprep.subr.bf16.mxu0 %v4645
    %4719 = vmatpush1.bf16.msra.mxu0 %v4644
    %4720 = vmatprep.subr.bf16.mxu0 %v4643
    %4721 = vmatpush1.bf16.msra.mxu0 %v4642
    %4722 = vmatprep.subr.bf16.mxu0 %v4673
    %4723 = vmatpush2.bf16.msra.mxu0 %v4672
    %4724 = vmatprep.subr.bf16.mxu0 %v4671
    %4725 = vmatpush2.bf16.msra.mxu0 %v4670
    %4726 = vmatprep.subr.bf16.mxu0 %v4669
    %4727 = vmatpush2.bf16.msra.mxu0 %v4668
    %4728 = vmatprep.subr.bf16.mxu0 %v4667
    %4729 = vmatpush2.bf16.msra.mxu0 %v4666
    %4730 = vmatprep.subr.bf16.mxu0 %v4665
    %4731 = vmatpush2.bf16.msra.mxu0 %v4664
    %4732 = vmatprep.subr.bf16.mxu0 %v4663
    %4733 = vmatpush2.bf16.msra.mxu0 %v4662
    %4734 = vmatprep.subr.bf16.mxu0 %v4661
    %4735 = vmatpush2.bf16.msra.mxu0 %v4660
    %4736 = vmatprep.subr.bf16.mxu0 %v4659
    %4737 = vmatpush2.bf16.msra.mxu0 %v4658
    %4738 = vmatprep.mubr.bf16.mxu0 %v3035
    %4739 = vmatmul.mubr.bf16.gmra.mxu0 %v3034
    %v4740 = vpop.f32.mrf.mxu0
    %v4741 = vadd.f32 0.0, %v4740
    %v4742 = vpop.f32.mrf.mxu0
    %v4743 = vadd.f32 0.0, %v4742
    %v4744 = vpop.f32.mrf.mxu0
    %v4745 = vadd.f32 0.0, %v4744
    %v4746 = vpop.f32.mrf.mxu0
    %v4747 = vadd.f32 0.0, %v4746
    %4748 = vdwg.mxu0
    %v4781 = vunpack.c.l.b16 %v3264
    %v4782 = vunpack.c.h.b16 %v3264
    %v4783 = vunpack.c.l.b16 %v3265
    %v4784 = vunpack.c.h.b16 %v3265
    %v4785 = vunpack.c.l.b16 %v3266
    %v4786 = vunpack.c.h.b16 %v3266
    %v4787 = vunpack.c.l.b16 %v3267
    %v4788 = vunpack.c.h.b16 %v3267
    %v4789 = vunpack.c.l.b16 %v3268
    %v4790 = vunpack.c.h.b16 %v3268
    %v4791 = vunpack.c.l.b16 %v3269
    %v4792 = vunpack.c.h.b16 %v3269
    %v4793 = vunpack.c.l.b16 %v3270
    %v4794 = vunpack.c.h.b16 %v3270
    %v4795 = vunpack.c.l.b16 %v3271
    %v4796 = vunpack.c.h.b16 %v3271
    %v4797 = vunpack.c.l.b16 %v3272
    %v4798 = vunpack.c.h.b16 %v3272
    %v4799 = vunpack.c.l.b16 %v3273
    %v4800 = vunpack.c.h.b16 %v3273
    %v4801 = vunpack.c.l.b16 %v3274
    %v4802 = vunpack.c.h.b16 %v3274
    %v4803 = vunpack.c.l.b16 %v3275
    %v4804 = vunpack.c.h.b16 %v3275
    %v4805 = vunpack.c.l.b16 %v3276
    %v4806 = vunpack.c.h.b16 %v3276
    %v4807 = vunpack.c.l.b16 %v3277
    %v4808 = vunpack.c.h.b16 %v3277
    %v4809 = vunpack.c.l.b16 %v3278
    %v4810 = vunpack.c.h.b16 %v3278
    %v4811 = vunpack.c.l.b16 %v3279
    %v4812 = vunpack.c.h.b16 %v3279
    %v4813 = vunpack.c.l.b16 %v3280
    %v4814 = vunpack.c.h.b16 %v3280
    %v4815 = vunpack.c.l.b16 %v3281
    %v4816 = vunpack.c.h.b16 %v3281
    %v4817 = vunpack.c.l.b16 %v3282
    %v4818 = vunpack.c.h.b16 %v3282
    %v4819 = vunpack.c.l.b16 %v3283
    %v4820 = vunpack.c.h.b16 %v3283
    %v4821 = vunpack.c.l.b16 %v3284
    %v4822 = vunpack.c.h.b16 %v3284
    %v4823 = vunpack.c.l.b16 %v3285
    %v4824 = vunpack.c.h.b16 %v3285
    %v4825 = vunpack.c.l.b16 %v3286
    %v4826 = vunpack.c.h.b16 %v3286
    %v4827 = vunpack.c.l.b16 %v3287
    %v4828 = vunpack.c.h.b16 %v3287
    %v4829 = vunpack.c.l.b16 %v3288
    %v4830 = vunpack.c.h.b16 %v3288
    %v4831 = vunpack.c.l.b16 %v3289
    %v4832 = vunpack.c.h.b16 %v3289
    %v4833 = vunpack.c.l.b16 %v3290
    %v4834 = vunpack.c.h.b16 %v3290
    %v4835 = vunpack.c.l.b16 %v3291
    %v4836 = vunpack.c.h.b16 %v3291
    %v4837 = vunpack.c.l.b16 %v3292
    %v4838 = vunpack.c.h.b16 %v3292
    %v4839 = vunpack.c.l.b16 %v3293
    %v4840 = vunpack.c.h.b16 %v3293
    %v4841 = vunpack.c.l.b16 %v3294
    %v4842 = vunpack.c.h.b16 %v3294
    %v4843 = vunpack.c.l.b16 %v3295
    %v4844 = vunpack.c.h.b16 %v3295
    %v4845 = vpack.c.b16 %v4783, %v4781
    %v4846 = vpack.c.b16 %v4784, %v4782
    %v4847 = vpack.c.b16 %v4787, %v4785
    %v4848 = vpack.c.b16 %v4788, %v4786
    %v4849 = vpack.c.b16 %v4791, %v4789
    %v4850 = vpack.c.b16 %v4792, %v4790
    %v4851 = vpack.c.b16 %v4795, %v4793
    %v4852 = vpack.c.b16 %v4796, %v4794
    %v4853 = vpack.c.b16 %v4799, %v4797
    %v4854 = vpack.c.b16 %v4800, %v4798
    %v4855 = vpack.c.b16 %v4803, %v4801
    %v4856 = vpack.c.b16 %v4804, %v4802
    %v4857 = vpack.c.b16 %v4807, %v4805
    %v4858 = vpack.c.b16 %v4808, %v4806
    %v4859 = vpack.c.b16 %v4811, %v4809
    %v4860 = vpack.c.b16 %v4812, %v4810
    %v4861 = vpack.c.b16 %v4815, %v4813
    %v4862 = vpack.c.b16 %v4816, %v4814
    %v4863 = vpack.c.b16 %v4819, %v4817
    %v4864 = vpack.c.b16 %v4820, %v4818
    %v4865 = vpack.c.b16 %v4823, %v4821
    %v4866 = vpack.c.b16 %v4824, %v4822
    %v4867 = vpack.c.b16 %v4827, %v4825
    %v4868 = vpack.c.b16 %v4828, %v4826
    %v4869 = vpack.c.b16 %v4831, %v4829
    %v4870 = vpack.c.b16 %v4832, %v4830
    %v4871 = vpack.c.b16 %v4835, %v4833
    %v4872 = vpack.c.b16 %v4836, %v4834
    %v4873 = vpack.c.b16 %v4839, %v4837
    %v4874 = vpack.c.b16 %v4840, %v4838
    %v4875 = vpack.c.b16 %v4843, %v4841
    %v4876 = vpack.c.b16 %v4844, %v4842
    %4909 = vmatprep.subr.bf16.mxu0 %v4860
    %4910 = vmatpush1.bf16.msra.mxu0 %v4859
    %4911 = vmatprep.subr.bf16.mxu0 %v4858
    %4912 = vmatpush1.bf16.msra.mxu0 %v4857
    %4913 = vmatprep.subr.bf16.mxu0 %v4856
    %4914 = vmatpush1.bf16.msra.mxu0 %v4855
    %4915 = vmatprep.subr.bf16.mxu0 %v4854
    %4916 = vmatpush1.bf16.msra.mxu0 %v4853
    %4917 = vmatprep.subr.bf16.mxu0 %v4852
    %4918 = vmatpush1.bf16.msra.mxu0 %v4851
    %4919 = vmatprep.subr.bf16.mxu0 %v4850
    %4920 = vmatpush1.bf16.msra.mxu0 %v4849
    %4921 = vmatprep.subr.bf16.mxu0 %v4848
    %4922 = vmatpush1.bf16.msra.mxu0 %v4847
    %4923 = vmatprep.subr.bf16.mxu0 %v4846
    %4924 = vmatpush1.bf16.msra.mxu0 %v4845
    %4925 = vmatprep.subr.bf16.mxu0 %v4876
    %4926 = vmatpush2.bf16.msra.mxu0 %v4875
    %4927 = vmatprep.subr.bf16.mxu0 %v4874
    %4928 = vmatpush2.bf16.msra.mxu0 %v4873
    %4929 = vmatprep.subr.bf16.mxu0 %v4872
    %4930 = vmatpush2.bf16.msra.mxu0 %v4871
    %4931 = vmatprep.subr.bf16.mxu0 %v4870
    %4932 = vmatpush2.bf16.msra.mxu0 %v4869
    %4933 = vmatprep.subr.bf16.mxu0 %v4868
    %4934 = vmatpush2.bf16.msra.mxu0 %v4867
    %4935 = vmatprep.subr.bf16.mxu0 %v4866
    %4936 = vmatpush2.bf16.msra.mxu0 %v4865
    %4937 = vmatprep.subr.bf16.mxu0 %v4864
    %4938 = vmatpush2.bf16.msra.mxu0 %v4863
    %4939 = vmatprep.subr.bf16.mxu0 %v4862
    %4940 = vmatpush2.bf16.msra.mxu0 %v4861
    %4941 = vmatprep.mubr.bf16.mxu0 %v3037
    %4942 = vmatmul.mubr.bf16.gmra.mxu0 %v3036
    %v4943 = vpop.f32.mrf.mxu0
    %v4944 = vadd.f32 0.0, %v4943
    %v4945 = vpop.f32.mrf.mxu0
    %v4946 = vadd.f32 0.0, %v4945
    %v4947 = vpop.f32.mrf.mxu0
    %v4948 = vadd.f32 0.0, %v4947
    %v4949 = vpop.f32.mrf.mxu0
    %v4950 = vadd.f32 0.0, %v4949
    %4951 = vdwg.mxu0
    %v4984 = vunpack.c.l.b16 %v3296
    %v4985 = vunpack.c.h.b16 %v3296
    %v4986 = vunpack.c.l.b16 %v3297
    %v4987 = vunpack.c.h.b16 %v3297
    %v4988 = vunpack.c.l.b16 %v3298
    %v4989 = vunpack.c.h.b16 %v3298
    %v4990 = vunpack.c.l.b16 %v3299
    %v4991 = vunpack.c.h.b16 %v3299
    %v4992 = vunpack.c.l.b16 %v3300
    %v4993 = vunpack.c.h.b16 %v3300
    %v4994 = vunpack.c.l.b16 %v3301
    %v4995 = vunpack.c.h.b16 %v3301
    %v4996 = vunpack.c.l.b16 %v3302
    %v4997 = vunpack.c.h.b16 %v3302
    %v4998 = vunpack.c.l.b16 %v3303
    %v4999 = vunpack.c.h.b16 %v3303
    %v5000 = vunpack.c.l.b16 %v3304
    %v5001 = vunpack.c.h.b16 %v3304
    %v5002 = vunpack.c.l.b16 %v3305
    %v5003 = vunpack.c.h.b16 %v3305
    %v5004 = vunpack.c.l.b16 %v3306
    %v5005 = vunpack.c.h.b16 %v3306
    %v5006 = vunpack.c.l.b16 %v3307
    %v5007 = vunpack.c.h.b16 %v3307
    %v5008 = vunpack.c.l.b16 %v3308
    %v5009 = vunpack.c.h.b16 %v3308
    %v5010 = vunpack.c.l.b16 %v3309
    %v5011 = vunpack.c.h.b16 %v3309
    %v5012 = vunpack.c.l.b16 %v3310
    %v5013 = vunpack.c.h.b16 %v3310
    %v5014 = vunpack.c.l.b16 %v3311
    %v5015 = vunpack.c.h.b16 %v3311
    %v5016 = vunpack.c.l.b16 %v3312
    %v5017 = vunpack.c.h.b16 %v3312
    %v5018 = vunpack.c.l.b16 %v3313
    %v5019 = vunpack.c.h.b16 %v3313
    %v5020 = vunpack.c.l.b16 %v3314
    %v5021 = vunpack.c.h.b16 %v3314
    %v5022 = vunpack.c.l.b16 %v3315
    %v5023 = vunpack.c.h.b16 %v3315
    %v5024 = vunpack.c.l.b16 %v3316
    %v5025 = vunpack.c.h.b16 %v3316
    %v5026 = vunpack.c.l.b16 %v3317
    %v5027 = vunpack.c.h.b16 %v3317
    %v5028 = vunpack.c.l.b16 %v3318
    %v5029 = vunpack.c.h.b16 %v3318
    %v5030 = vunpack.c.l.b16 %v3319
    %v5031 = vunpack.c.h.b16 %v3319
    %v5032 = vunpack.c.l.b16 %v3320
    %v5033 = vunpack.c.h.b16 %v3320
    %v5034 = vunpack.c.l.b16 %v3321
    %v5035 = vunpack.c.h.b16 %v3321
    %v5036 = vunpack.c.l.b16 %v3322
    %v5037 = vunpack.c.h.b16 %v3322
    %v5038 = vunpack.c.l.b16 %v3323
    %v5039 = vunpack.c.h.b16 %v3323
    %v5040 = vunpack.c.l.b16 %v3324
    %v5041 = vunpack.c.h.b16 %v3324
    %v5042 = vunpack.c.l.b16 %v3325
    %v5043 = vunpack.c.h.b16 %v3325
    %v5044 = vunpack.c.l.b16 %v3326
    %v5045 = vunpack.c.h.b16 %v3326
    %v5046 = vunpack.c.l.b16 %v3327
    %v5047 = vunpack.c.h.b16 %v3327
    %v5048 = vpack.c.b16 %v4986, %v4984
    %v5049 = vpack.c.b16 %v4987, %v4985
    %v5050 = vpack.c.b16 %v4990, %v4988
    %v5051 = vpack.c.b16 %v4991, %v4989
    %v5052 = vpack.c.b16 %v4994, %v4992
    %v5053 = vpack.c.b16 %v4995, %v4993
    %v5054 = vpack.c.b16 %v4998, %v4996
    %v5055 = vpack.c.b16 %v4999, %v4997
    %v5056 = vpack.c.b16 %v5002, %v5000
    %v5057 = vpack.c.b16 %v5003, %v5001
    %v5058 = vpack.c.b16 %v5006, %v5004
    %v5059 = vpack.c.b16 %v5007, %v5005
    %v5060 = vpack.c.b16 %v5010, %v5008
    %v5061 = vpack.c.b16 %v5011, %v5009
    %v5062 = vpack.c.b16 %v5014, %v5012
    %v5063 = vpack.c.b16 %v5015, %v5013
    %v5064 = vpack.c.b16 %v5018, %v5016
    %v5065 = vpack.c.b16 %v5019, %v5017
    %v5066 = vpack.c.b16 %v5022, %v5020
    %v5067 = vpack.c.b16 %v5023, %v5021
    %v5068 = vpack.c.b16 %v5026, %v5024
    %v5069 = vpack.c.b16 %v5027, %v5025
    %v5070 = vpack.c.b16 %v5030, %v5028
    %v5071 = vpack.c.b16 %v5031, %v5029
    %v5072 = vpack.c.b16 %v5034, %v5032
    %v5073 = vpack.c.b16 %v5035, %v5033
    %v5074 = vpack.c.b16 %v5038, %v5036
    %v5075 = vpack.c.b16 %v5039, %v5037
    %v5076 = vpack.c.b16 %v5042, %v5040
    %v5077 = vpack.c.b16 %v5043, %v5041
    %v5078 = vpack.c.b16 %v5046, %v5044
    %v5079 = vpack.c.b16 %v5047, %v5045
    %5112 = vmatprep.subr.bf16.mxu0 %v5063
    %5113 = vmatpush1.bf16.msra.mxu0 %v5062
    %5114 = vmatprep.subr.bf16.mxu0 %v5061
    %5115 = vmatpush1.bf16.msra.mxu0 %v5060
    %5116 = vmatprep.subr.bf16.mxu0 %v5059
    %5117 = vmatpush1.bf16.msra.mxu0 %v5058
    %5118 = vmatprep.subr.bf16.mxu0 %v5057
    %5119 = vmatpush1.bf16.msra.mxu0 %v5056
    %5120 = vmatprep.subr.bf16.mxu0 %v5055
    %5121 = vmatpush1.bf16.msra.mxu0 %v5054
    %5122 = vmatprep.subr.bf16.mxu0 %v5053
    %5123 = vmatpush1.bf16.msra.mxu0 %v5052
    %5124 = vmatprep.subr.bf16.mxu0 %v5051
    %5125 = vmatpush1.bf16.msra.mxu0 %v5050
    %5126 = vmatprep.subr.bf16.mxu0 %v5049
    %5127 = vmatpush1.bf16.msra.mxu0 %v5048
    %5128 = vmatprep.subr.bf16.mxu0 %v5079
    %5129 = vmatpush2.bf16.msra.mxu0 %v5078
    %5130 = vmatprep.subr.bf16.mxu0 %v5077
    %5131 = vmatpush2.bf16.msra.mxu0 %v5076
    %5132 = vmatprep.subr.bf16.mxu0 %v5075
    %5133 = vmatpush2.bf16.msra.mxu0 %v5074
    %5134 = vmatprep.subr.bf16.mxu0 %v5073
    %5135 = vmatpush2.bf16.msra.mxu0 %v5072
    %5136 = vmatprep.subr.bf16.mxu0 %v5071
    %5137 = vmatpush2.bf16.msra.mxu0 %v5070
    %5138 = vmatprep.subr.bf16.mxu0 %v5069
    %5139 = vmatpush2.bf16.msra.mxu0 %v5068
    %5140 = vmatprep.subr.bf16.mxu0 %v5067
    %5141 = vmatpush2.bf16.msra.mxu0 %v5066
    %5142 = vmatprep.subr.bf16.mxu0 %v5065
    %5143 = vmatpush2.bf16.msra.mxu0 %v5064
    %5144 = vmatprep.mubr.bf16.mxu0 %v3039
    %5145 = vmatmul.mubr.bf16.gmra.mxu0 %v3038
    %v5146 = vpop.f32.mrf.mxu0
    %v5147 = vadd.f32 0.0, %v5146
    %v5148 = vpop.f32.mrf.mxu0
    %v5149 = vadd.f32 0.0, %v5148
    %v5150 = vpop.f32.mrf.mxu0
    %v5151 = vadd.f32 0.0, %v5150
    %v5152 = vpop.f32.mrf.mxu0
    %v5153 = vadd.f32 0.0, %v5152
    %5154 = vdwg.mxu0
    %v5155 = vadd.f32 %v3523, %v3726
    %v5156 = vadd.f32 %v5155, %v3929
    %v5157 = vadd.f32 %v5156, %v4132
    %v5158 = vadd.f32 %v5157, %v4335
    %v5159 = vadd.f32 %v5158, %v4538
    %v5160 = vadd.f32 %v5159, %v4741
    %v5161 = vadd.f32 %v5160, %v4944
    %v5162 = vadd.f32 %v5161, %v5147
    %v5163 = vadd.f32 %v3525, %v3728
    %v5164 = vadd.f32 %v5163, %v3931
    %v5165 = vadd.f32 %v5164, %v4134
    %v5166 = vadd.f32 %v5165, %v4337
    %v5167 = vadd.f32 %v5166, %v4540
    %v5168 = vadd.f32 %v5167, %v4743
    %v5169 = vadd.f32 %v5168, %v4946
    %v5170 = vadd.f32 %v5169, %v5149
    %v5171 = vadd.f32 %v3527, %v3730
    %v5172 = vadd.f32 %v5171, %v3933
    %v5173 = vadd.f32 %v5172, %v4136
    %v5174 = vadd.f32 %v5173, %v4339
    %v5175 = vadd.f32 %v5174, %v4542
    %v5176 = vadd.f32 %v5175, %v4745
    %v5177 = vadd.f32 %v5176, %v4948
    %v5178 = vadd.f32 %v5177, %v5151
    %v5179 = vadd.f32 %v3529, %v3732
    %v5180 = vadd.f32 %v5179, %v3935
    %v5181 = vadd.f32 %v5180, %v4138
    %v5182 = vadd.f32 %v5181, %v4341
    %v5183 = vadd.f32 %v5182, %v4544
    %v5184 = vadd.f32 %v5183, %v4747
    %v5185 = vadd.f32 %v5184, %v4950
    %v5186 = vadd.f32 %v5185, %v5153
    %v5187 = vld [vmem:[%s6] sm:$0x3]
    %v5189 = vlaneseq
    %v5190 = vshrl.u32 %v5189, 7
    %v5191 = vsub.s32 0, %v5190
    %v5192 = vrot.slane %v5187, %v5191
    %v5193 = vlaneseq
    %v5194 = vshrl.u32 %v5193, 7
    %v5195 = vsub.s32 1, %v5194
    %v5196 = vrot.slane %v5187, %v5195
    %v5199 = vadd.f32 %v5162, %v5192
    %v5200 = vadd.f32 %v5170, %v5196
    %v5201 = vadd.f32 %v5178, %v5192
    %v5202 = vadd.f32 %v5186, %v5196
    %v5203 = vmax.f32 %v5199, 0.0
    %v5204 = vmax.f32 %v5200, 0.0
    %v5205 = vmax.f32 %v5201, 0.0
    %v5206 = vmax.f32 %v5202, 0.0
    %v5207 = vpack.c.bf16 %v5205, %v5203
    %v5208 = vpack.c.bf16 %v5206, %v5204
    %v5209 = vld [vmem:[#allocation9] sm:$0xf]
    %v5210 = vld [vmem:[#allocation9 + $0x4] sm:$0xf]
    %v5211 = vld [vmem:[#allocation9 + $0x8] sm:$0xf]
    %v5212 = vld [vmem:[#allocation9 + $0xc] sm:$0xf]
    %v5213 = vld [vmem:[#allocation9 + $0x10] sm:$0xf]
    %v5214 = vld [vmem:[#allocation9 + $0x14] sm:$0xf]
    %v5215 = vld [vmem:[#allocation9 + $0x18] sm:$0xf]
    %v5216 = vld [vmem:[#allocation9 + $0x1c] sm:$0xf]
    %v5217 = vld [vmem:[#allocation9 + $0x20] sm:$0xf]
    %v5227 = vunpack.c.l.b16 %v5209
    %v5228 = vunpack.c.l.b16 %v5210
    %v5229 = vunpack.c.l.b16 %v5211
    %v5230 = vunpack.c.l.b16 %v5212
    %v5231 = vunpack.c.l.b16 %v5213
    %v5232 = vunpack.c.l.b16 %v5214
    %v5233 = vunpack.c.l.b16 %v5215
    %v5234 = vunpack.c.l.b16 %v5216
    %v5235 = vunpack.c.l.b16 %v5217
    %v5236 = vpack.c.b16 %v5228, %v5227
    %v5237 = vpack.c.b16 %v5230, %v5229
    %v5238 = vpack.c.b16 %v5232, %v5231
    %v5239 = vpack.c.b16 %v5234, %v5233
    %v5240 = vpack.c.b16 %v5235, %v5235
    %vm5241 = vcmask 130048
    %v5243 = vsel %vm5241, %v5236, 0
    %v5246 = vsel %vm5241, %v5237, 0
    %v5249 = vsel %vm5241, %v5238, 0
    %v5252 = vsel %vm5241, %v5239, 0
    %v5255 = vsel %vm5241, %v5240, 0
    %5257 = vmatprep.subr.bf16.mxu0 0
    %5258 = vmatpush1.bf16.msra.mxu0 0
    %5259 = vmatprep.subr.bf16.mxu0 0
    %5260 = vmatpush1.bf16.msra.mxu0 0
    %5261 = vmatprep.subr.bf16.mxu0 0
    %5262 = vmatpush1.bf16.msra.mxu0 0
    %5263 = vmatprep.subr.bf16.mxu0 0
    %5264 = vmatpush1.bf16.msra.mxu0 0
    %5265 = vmatprep.subr.bf16.mxu0 0
    %5266 = vmatpush1.bf16.msra.mxu0 0
    %5267 = vmatprep.subr.bf16.mxu0 0
    %5268 = vmatpush1.bf16.msra.mxu0 0
    %5269 = vmatprep.subr.bf16.mxu0 0
    %5270 = vmatpush1.bf16.msra.mxu0 0
    %5271 = vmatprep.subr.bf16.mxu0 %v5208
    %5272 = vmatpush1.bf16.msra.mxu0 %v5207
    %5273 = vmatprep.subr.bf16.mxu0 0
    %5274 = vmatpush2.bf16.msra.mxu0 0
    %5275 = vmatprep.subr.bf16.mxu0 0
    %5276 = vmatpush2.bf16.msra.mxu0 0
    %5277 = vmatprep.subr.bf16.mxu0 0
    %5278 = vmatpush2.bf16.msra.mxu0 0
    %5279 = vmatprep.subr.bf16.mxu0 0
    %5280 = vmatpush2.bf16.msra.mxu0 0
    %5281 = vmatprep.subr.bf16.mxu0 0
    %5282 = vmatpush2.bf16.msra.mxu0 0
    %5283 = vmatprep.subr.bf16.mxu0 0
    %5284 = vmatpush2.bf16.msra.mxu0 0
    %5285 = vmatprep.subr.bf16.mxu0 0
    %5286 = vmatpush2.bf16.msra.mxu0 0
    %5287 = vmatprep.subr.bf16.mxu0 0
    %5288 = vmatpush2.bf16.msra.mxu0 0
    %5289 = vmatprep.mubr.bf16.mxu0 0
    %5290 = vmatmul.mubr.bf16.gmra.mxu0 %v5243
    %v5291 = vpop.f32.mrf.mxu0
    %v5292 = vadd.f32 0.0, %v5291
    %v5293 = vpop.f32.mrf.mxu0
    %v5294 = vadd.f32 0.0, %v5293
    %v5295 = vpop.f32.mrf.mxu0
    %v5296 = vadd.f32 0.0, %v5295
    %v5297 = vpop.f32.mrf.mxu0
    %v5298 = vadd.f32 0.0, %v5297
    %5299 = vmatprep.mubr.bf16.mxu0 0
    %5300 = vmatmul.mubr.bf16.gmra.mxu0 %v5246
    %v5301 = vpop.f32.mrf.mxu0
    %v5302 = vadd.f32 0.0, %v5301
    %v5303 = vpop.f32.mrf.mxu0
    %v5304 = vadd.f32 0.0, %v5303
    %v5305 = vpop.f32.mrf.mxu0
    %v5306 = vadd.f32 0.0, %v5305
    %v5307 = vpop.f32.mrf.mxu0
    %v5308 = vadd.f32 0.0, %v5307
    %5309 = vmatprep.mubr.bf16.mxu0 0
    %5310 = vmatmul.mubr.bf16.gmra.mxu0 %v5249
    %v5311 = vpop.f32.mrf.mxu0
    %v5312 = vadd.f32 0.0, %v5311
    %v5313 = vpop.f32.mrf.mxu0
    %v5314 = vadd.f32 0.0, %v5313
    %v5315 = vpop.f32.mrf.mxu0
    %v5316 = vadd.f32 0.0, %v5315
    %v5317 = vpop.f32.mrf.mxu0
    %v5318 = vadd.f32 0.0, %v5317
    %5319 = vmatprep.mubr.bf16.mxu0 0
    %5320 = vmatmul.mubr.bf16.gmra.mxu0 %v5252
    %v5321 = vpop.f32.mrf.mxu0
    %v5322 = vadd.f32 0.0, %v5321
    %v5323 = vpop.f32.mrf.mxu0
    %v5324 = vadd.f32 0.0, %v5323
    %v5325 = vpop.f32.mrf.mxu0
    %v5326 = vadd.f32 0.0, %v5325
    %v5327 = vpop.f32.mrf.mxu0
    %v5328 = vadd.f32 0.0, %v5327
    %5329 = vmatprep.mubr.bf16.mxu0 0
    %5330 = vmatmul.mubr.bf16.gmra.mxu0 %v5255
    %v5331 = vpop.f32.mrf.mxu0
    %v5332 = vadd.f32 0.0, %v5331
    %v5333 = vpop.f32.mrf.mxu0
    %v5334 = vadd.f32 0.0, %v5333
    %v5335 = vpop.f32.mrf.mxu0
    %v5336 = vpop.f32.mrf.mxu0
    %5337 = vdwg.mxu0
    %v5338 = vpack.c.bf16 %v5296, %v5292
    %v5339 = vpack.c.bf16 %v5298, %v5294
    %v5340 = vpack.c.bf16 %v5306, %v5302
    %v5341 = vpack.c.bf16 %v5308, %v5304
    %v5342 = vpack.c.bf16 %v5316, %v5312
    %v5343 = vpack.c.bf16 %v5318, %v5314
    %v5344 = vpack.c.bf16 %v5326, %v5322
    %v5345 = vpack.c.bf16 %v5328, %v5324
    %v5346 = vpack.c.bf16 %v5332, %v5332
    %v5347 = vpack.c.bf16 %v5334, %v5334
    %v5358 = vunpack.c.l.b16 %v5338
    %v5359 = vunpack.c.l.b16 %v5339
    %v5360 = vunpack.c.h.b16 %v5338
    %v5361 = vunpack.c.h.b16 %v5339
    %v5362 = vunpack.c.l.b16 %v5340
    %v5363 = vunpack.c.l.b16 %v5341
    %v5364 = vunpack.c.h.b16 %v5340
    %v5365 = vunpack.c.h.b16 %v5341
    %v5366 = vunpack.c.l.b16 %v5342
    %v5367 = vunpack.c.l.b16 %v5343
    %v5368 = vunpack.c.h.b16 %v5342
    %v5369 = vunpack.c.h.b16 %v5343
    %v5370 = vunpack.c.l.b16 %v5344
    %v5371 = vunpack.c.l.b16 %v5345
    %v5372 = vunpack.c.h.b16 %v5344
    %v5373 = vunpack.c.h.b16 %v5345
    %v5374 = vunpack.c.l.b16 %v5346
    %v5375 = vunpack.c.l.b16 %v5347
    %v5376 = vld [vmem:[#allocation10] sm:$0xff]
    %v5377 = vld [vmem:[#allocation10 + $0x8] sm:$0xff]
    %v5378 = vld [vmem:[#allocation10 + $0x10] sm:$0xff]
    %v5379 = vld [vmem:[#allocation10 + $0x18] sm:$0xff]
    %v5380 = vld [vmem:[#allocation10 + $0x20] sm:$0xff]
    %v5381 = vld [vmem:[#allocation10 + $0x28] sm:$0xff]
    %v5382 = vld [vmem:[#allocation10 + $0x30] sm:$0xff]
    %v5383 = vld [vmem:[#allocation10 + $0x38] sm:$0xff]
    %v5384 = vld [vmem:[#allocation10 + $0x40] sm:$0xff]
    %v5385 = vld [vmem:[#allocation10 + $0x48] sm:$0xff]
    %v5386 = vld [vmem:[#allocation10 + $0x50] sm:$0xff]
    %v5387 = vld [vmem:[#allocation10 + $0x58] sm:$0xff]
    %v5388 = vld [vmem:[#allocation10 + $0x60] sm:$0xff]
    %v5389 = vld [vmem:[#allocation10 + $0x68] sm:$0xff]
    %v5390 = vld [vmem:[#allocation10 + $0x70] sm:$0xff]
    %v5391 = vld [vmem:[#allocation10 + $0x78] sm:$0xff]
    %v5392 = vld [vmem:[#allocation10 + $0x80] sm:$0xff]
    %v5393 = vld [vmem:[#allocation10 + $0x88] sm:$0xff]
    %v5394 = vld [vmem:[#allocation10 + $0x90] sm:$0xff]
    %v5395 = vld [vmem:[#allocation10 + $0x98] sm:$0xff]
    %v5396 = vld [vmem:[#allocation10 + $0xa0] sm:$0xff]
    %v5397 = vld [vmem:[#allocation10 + $0xa8] sm:$0xff]
    %v5398 = vld [vmem:[#allocation10 + $0xb0] sm:$0xff]
    %v5399 = vld [vmem:[#allocation10 + $0xb8] sm:$0xff]
    %v5400 = vld [vmem:[#allocation10 + $0xc0] sm:$0xff]
    %v5401 = vld [vmem:[#allocation10 + $0xc8] sm:$0xff]
    %v5402 = vld [vmem:[#allocation10 + $0xd0] sm:$0xff]
    %v5403 = vld [vmem:[#allocation10 + $0xd8] sm:$0xff]
    %v5404 = vld [vmem:[#allocation10 + $0xe0] sm:$0xff]
    %v5405 = vld [vmem:[#allocation10 + $0xe8] sm:$0xff]
    %v5406 = vld [vmem:[#allocation10 + $0xf0] sm:$0xff]
    %v5407 = vld [vmem:[#allocation10 + $0xf8] sm:$0xff]
    %v5408 = vld [vmem:[#allocation10 + $0x100] sm:$0xff]
    %v5409 = vld [vmem:[#allocation10 + $0x108] sm:$0xff]
    %v5410 = vld [vmem:[#allocation10 + $0x110] sm:$0xff]
    %v5411 = vld [vmem:[#allocation10 + $0x118] sm:$0xff]
    %v5412 = vld [vmem:[#allocation10 + $0x120] sm:$0xff]
    %v5413 = vld [vmem:[#allocation10 + $0x128] sm:$0xff]
    %v5414 = vld [vmem:[#allocation10 + $0x130] sm:$0xff]
    %v5415 = vld [vmem:[#allocation10 + $0x138] sm:$0xff]
    %v5416 = vld [vmem:[#allocation10 + $0x140] sm:$0xff]
    %v5417 = vld [vmem:[#allocation10 + $0x148] sm:$0xff]
    %v5418 = vld [vmem:[#allocation10 + $0x150] sm:$0xff]
    %v5419 = vld [vmem:[#allocation10 + $0x158] sm:$0xff]
    %v5420 = vld [vmem:[#allocation10 + $0x160] sm:$0xff]
    %v5421 = vld [vmem:[#allocation10 + $0x168] sm:$0xff]
    %v5422 = vld [vmem:[#allocation10 + $0x170] sm:$0xff]
    %v5423 = vld [vmem:[#allocation10 + $0x178] sm:$0xff]
    %v5424 = vld [vmem:[#allocation10 + $0x180] sm:$0xff]
    %v5425 = vld [vmem:[#allocation10 + $0x188] sm:$0xff]
    %v5426 = vld [vmem:[#allocation10 + $0x190] sm:$0xff]
    %v5427 = vld [vmem:[#allocation10 + $0x198] sm:$0xff]
    %v5428 = vld [vmem:[#allocation10 + $0x1a0] sm:$0xff]
    %v5429 = vld [vmem:[#allocation10 + $0x1a8] sm:$0xff]
    %v5430 = vld [vmem:[#allocation10 + $0x1b0] sm:$0xff]
    %v5431 = vld [vmem:[#allocation10 + $0x1b8] sm:$0xff]
    %v5432 = vld [vmem:[#allocation10 + $0x1c0] sm:$0xff]
    %v5433 = vld [vmem:[#allocation10 + $0x1c8] sm:$0xff]
    %v5434 = vld [vmem:[#allocation10 + $0x1d0] sm:$0xff]
    %v5435 = vld [vmem:[#allocation10 + $0x1d8] sm:$0xff]
    %v5436 = vld [vmem:[#allocation10 + $0x1e0] sm:$0xff]
    %v5437 = vld [vmem:[#allocation10 + $0x1e8] sm:$0xff]
    %v5438 = vld [vmem:[#allocation10 + $0x1f0] sm:$0xff]
    %v5439 = vld [vmem:[#allocation10 + $0x1f8] sm:$0xff]
    %v5440 = vld [vmem:[#allocation10 + $0x200] sm:$0xff]
    %v5441 = vld [vmem:[#allocation10 + $0x208] sm:$0xff]
    %v5442 = vld [vmem:[#allocation10 + $0x210] sm:$0xff]
    %v5443 = vld [vmem:[#allocation10 + $0x218] sm:$0xff]
    %v5444 = vld [vmem:[#allocation10 + $0x220] sm:$0xff]
    %v5445 = vld [vmem:[#allocation10 + $0x228] sm:$0xff]
    %v5446 = vld [vmem:[#allocation10 + $0x230] sm:$0xff]
    %v5447 = vld [vmem:[#allocation10 + $0x238] sm:$0xff]
    %v5448 = vld [vmem:[#allocation10 + $0x240] sm:$0xff]
    %v5449 = vld [vmem:[#allocation10 + $0x248] sm:$0xff]
    %v5450 = vld [vmem:[#allocation10 + $0x250] sm:$0xff]
    %v5451 = vld [vmem:[#allocation10 + $0x258] sm:$0xff]
    %v5452 = vld [vmem:[#allocation10 + $0x260] sm:$0xff]
    %v5453 = vld [vmem:[#allocation10 + $0x268] sm:$0xff]
    %v5454 = vld [vmem:[#allocation10 + $0x270] sm:$0xff]
    %v5455 = vld [vmem:[#allocation10 + $0x278] sm:$0xff]
    %v5456 = vld [vmem:[#allocation10 + $0x280] sm:$0xff]
    %v5457 = vld [vmem:[#allocation10 + $0x288] sm:$0xff]
    %v5458 = vld [vmem:[#allocation10 + $0x290] sm:$0xff]
    %v5459 = vld [vmem:[#allocation10 + $0x298] sm:$0xff]
    %v5460 = vld [vmem:[#allocation10 + $0x2a0] sm:$0xff]
    %v5461 = vld [vmem:[#allocation10 + $0x2a8] sm:$0xff]
    %v5462 = vld [vmem:[#allocation10 + $0x2b0] sm:$0xff]
    %v5463 = vld [vmem:[#allocation10 + $0x2b8] sm:$0xff]
    %v5464 = vld [vmem:[#allocation10 + $0x2c0] sm:$0xff]
    %v5465 = vld [vmem:[#allocation10 + $0x2c8] sm:$0xff]
    %v5466 = vld [vmem:[#allocation10 + $0x2d0] sm:$0xff]
    %v5467 = vld [vmem:[#allocation10 + $0x2d8] sm:$0xff]
    %v5468 = vld [vmem:[#allocation10 + $0x2e0] sm:$0xff]
    %v5469 = vld [vmem:[#allocation10 + $0x2e8] sm:$0xff]
    %v5470 = vld [vmem:[#allocation10 + $0x2f0] sm:$0xff]
    %v5471 = vld [vmem:[#allocation10 + $0x2f8] sm:$0xff]
    %v5472 = vld [vmem:[#allocation10 + $0x300] sm:$0xff]
    %v5473 = vld [vmem:[#allocation10 + $0x308] sm:$0xff]
    %v5474 = vld [vmem:[#allocation10 + $0x310] sm:$0xff]
    %v5475 = vld [vmem:[#allocation10 + $0x318] sm:$0xff]
    %v5476 = vld [vmem:[#allocation10 + $0x320] sm:$0xff]
    %v5477 = vld [vmem:[#allocation10 + $0x328] sm:$0xff]
    %v5478 = vld [vmem:[#allocation10 + $0x330] sm:$0xff]
    %v5479 = vld [vmem:[#allocation10 + $0x338] sm:$0xff]
    %v5480 = vld [vmem:[#allocation10 + $0x340] sm:$0xff]
    %v5481 = vld [vmem:[#allocation10 + $0x348] sm:$0xff]
    %v5482 = vld [vmem:[#allocation10 + $0x350] sm:$0xff]
    %v5483 = vld [vmem:[#allocation10 + $0x358] sm:$0xff]
    %v5484 = vld [vmem:[#allocation10 + $0x360] sm:$0xff]
    %v5485 = vld [vmem:[#allocation10 + $0x368] sm:$0xff]
    %v5486 = vld [vmem:[#allocation10 + $0x370] sm:$0xff]
    %v5487 = vld [vmem:[#allocation10 + $0x378] sm:$0xff]
    %v5488 = vld [vmem:[#allocation10 + $0x380] sm:$0xff]
    %v5489 = vld [vmem:[#allocation10 + $0x388] sm:$0xff]
    %v5490 = vld [vmem:[#allocation10 + $0x390] sm:$0xff]
    %v5491 = vld [vmem:[#allocation10 + $0x398] sm:$0xff]
    %v5492 = vld [vmem:[#allocation10 + $0x3a0] sm:$0xff]
    %v5493 = vld [vmem:[#allocation10 + $0x3a8] sm:$0xff]
    %v5494 = vld [vmem:[#allocation10 + $0x3b0] sm:$0xff]
    %v5495 = vld [vmem:[#allocation10 + $0x3b8] sm:$0xff]
    %v5496 = vld [vmem:[#allocation10 + $0x3c0] sm:$0xff]
    %v5497 = vld [vmem:[#allocation10 + $0x3c8] sm:$0xff]
    %v5498 = vld [vmem:[#allocation10 + $0x3d0] sm:$0xff]
    %v5499 = vld [vmem:[#allocation10 + $0x3d8] sm:$0xff]
    %v5500 = vld [vmem:[#allocation10 + $0x3e0] sm:$0xff]
    %v5501 = vld [vmem:[#allocation10 + $0x3e8] sm:$0xff]
    %v5502 = vld [vmem:[#allocation10 + $0x3f0] sm:$0xff]
    %v5503 = vld [vmem:[#allocation10 + $0x3f8] sm:$0xff]
    %v5504 = vld [vmem:[#allocation10 + $0x400] sm:$0xff]
    %v5505 = vld [vmem:[#allocation10 + $0x408] sm:$0xff]
    %v5506 = vld [vmem:[#allocation10 + $0x410] sm:$0xff]
    %v5507 = vld [vmem:[#allocation10 + $0x418] sm:$0xff]
    %v5508 = vld [vmem:[#allocation10 + $0x420] sm:$0xff]
    %v5509 = vld [vmem:[#allocation10 + $0x428] sm:$0xff]
    %v5510 = vld [vmem:[#allocation10 + $0x430] sm:$0xff]
    %v5511 = vld [vmem:[#allocation10 + $0x438] sm:$0xff]
    %v5512 = vld [vmem:[#allocation10 + $0x440] sm:$0xff]
    %v5513 = vld [vmem:[#allocation10 + $0x448] sm:$0xff]
    %v5514 = vld [vmem:[#allocation10 + $0x450] sm:$0xff]
    %v5515 = vld [vmem:[#allocation10 + $0x458] sm:$0xff]
    %v5516 = vld [vmem:[#allocation10 + $0x460] sm:$0xff]
    %v5517 = vld [vmem:[#allocation10 + $0x468] sm:$0xff]
    %v5518 = vld [vmem:[#allocation10 + $0x470] sm:$0xff]
    %v5519 = vld [vmem:[#allocation10 + $0x478] sm:$0xff]
    %v5520 = vld [vmem:[#allocation10 + $0x480] sm:$0xff]
    %v5521 = vld [vmem:[#allocation10 + $0x488] sm:$0xff]
    %v5522 = vld [vmem:[#allocation10 + $0x490] sm:$0xff]
    %v5523 = vld [vmem:[#allocation10 + $0x498] sm:$0xff]
    %v5524 = vld [vmem:[#allocation10 + $0x4a0] sm:$0xff]
    %v5525 = vld [vmem:[#allocation10 + $0x4a8] sm:$0xff]
    %v5526 = vld [vmem:[#allocation10 + $0x4b0] sm:$0xff]
    %v5527 = vld [vmem:[#allocation10 + $0x4b8] sm:$0xff]
    %v5528 = vld [vmem:[#allocation10 + $0x4c0] sm:$0xff]
    %v5529 = vld [vmem:[#allocation10 + $0x4c8] sm:$0xff]
    %v5530 = vld [vmem:[#allocation10 + $0x4d0] sm:$0xff]
    %v5531 = vld [vmem:[#allocation10 + $0x4d8] sm:$0xff]
    %v5532 = vld [vmem:[#allocation10 + $0x4e0] sm:$0xff]
    %v5533 = vld [vmem:[#allocation10 + $0x4e8] sm:$0xff]
    %v5534 = vld [vmem:[#allocation10 + $0x4f0] sm:$0xff]
    %v5535 = vld [vmem:[#allocation10 + $0x4f8] sm:$0xff]
    %v5536 = vld [vmem:[#allocation10 + $0x500] sm:$0xff]
    %v5537 = vld [vmem:[#allocation10 + $0x508] sm:$0xff]
    %v5538 = vld [vmem:[#allocation10 + $0x510] sm:$0xff]
    %v5539 = vld [vmem:[#allocation10 + $0x518] sm:$0xff]
    %v5540 = vld [vmem:[#allocation10 + $0x520] sm:$0xff]
    %v5541 = vld [vmem:[#allocation10 + $0x528] sm:$0xff]
    %v5542 = vld [vmem:[#allocation10 + $0x530] sm:$0xff]
    %v5543 = vld [vmem:[#allocation10 + $0x538] sm:$0xff]
    %v5544 = vld [vmem:[#allocation10 + $0x540] sm:$0xff]
    %v5545 = vld [vmem:[#allocation10 + $0x548] sm:$0xff]
    %v5546 = vld [vmem:[#allocation10 + $0x550] sm:$0xff]
    %v5547 = vld [vmem:[#allocation10 + $0x558] sm:$0xff]
    %v5548 = vld [vmem:[#allocation10 + $0x560] sm:$0xff]
    %v5549 = vld [vmem:[#allocation10 + $0x568] sm:$0xff]
    %v5550 = vld [vmem:[#allocation10 + $0x570] sm:$0xff]
    %v5551 = vld [vmem:[#allocation10 + $0x578] sm:$0xff]
    %v5552 = vld [vmem:[#allocation10 + $0x580] sm:$0xff]
    %v5553 = vld [vmem:[#allocation10 + $0x588] sm:$0xff]
    %v5554 = vld [vmem:[#allocation10 + $0x590] sm:$0xff]
    %v5555 = vld [vmem:[#allocation10 + $0x598] sm:$0xff]
    %v5556 = vld [vmem:[#allocation10 + $0x5a0] sm:$0xff]
    %v5557 = vld [vmem:[#allocation10 + $0x5a8] sm:$0xff]
    %v5558 = vld [vmem:[#allocation10 + $0x5b0] sm:$0xff]
    %v5559 = vld [vmem:[#allocation10 + $0x5b8] sm:$0xff]
    %v5560 = vld [vmem:[#allocation10 + $0x5c0] sm:$0xff]
    %v5561 = vld [vmem:[#allocation10 + $0x5c8] sm:$0xff]
    %v5562 = vld [vmem:[#allocation10 + $0x5d0] sm:$0xff]
    %v5563 = vld [vmem:[#allocation10 + $0x5d8] sm:$0xff]
    %v5564 = vld [vmem:[#allocation10 + $0x5e0] sm:$0xff]
    %v5565 = vld [vmem:[#allocation10 + $0x5e8] sm:$0xff]
    %v5566 = vld [vmem:[#allocation10 + $0x5f0] sm:$0xff]
    %v5567 = vld [vmem:[#allocation10 + $0x5f8] sm:$0xff]
    %v5568 = vld [vmem:[#allocation10 + $0x600] sm:$0xff]
    %v5569 = vld [vmem:[#allocation10 + $0x608] sm:$0xff]
    %v5570 = vld [vmem:[#allocation10 + $0x610] sm:$0xff]
    %v5571 = vld [vmem:[#allocation10 + $0x618] sm:$0xff]
    %v5572 = vld [vmem:[#allocation10 + $0x620] sm:$0xff]
    %v5573 = vld [vmem:[#allocation10 + $0x628] sm:$0xff]
    %v5574 = vld [vmem:[#allocation10 + $0x630] sm:$0xff]
    %v5575 = vld [vmem:[#allocation10 + $0x638] sm:$0xff]
    %v5576 = vld [vmem:[#allocation10 + $0x640] sm:$0xff]
    %v5577 = vld [vmem:[#allocation10 + $0x648] sm:$0xff]
    %v5578 = vld [vmem:[#allocation10 + $0x650] sm:$0xff]
    %v5579 = vld [vmem:[#allocation10 + $0x658] sm:$0xff]
    %v5580 = vld [vmem:[#allocation10 + $0x660] sm:$0xff]
    %v5581 = vld [vmem:[#allocation10 + $0x668] sm:$0xff]
    %v5582 = vld [vmem:[#allocation10 + $0x670] sm:$0xff]
    %v5583 = vld [vmem:[#allocation10 + $0x678] sm:$0xff]
    %v5584 = vld [vmem:[#allocation10 + $0x680] sm:$0xff]
    %v5585 = vld [vmem:[#allocation10 + $0x688] sm:$0xff]
    %v5586 = vld [vmem:[#allocation10 + $0x690] sm:$0xff]
    %v5587 = vld [vmem:[#allocation10 + $0x698] sm:$0xff]
    %v5588 = vld [vmem:[#allocation10 + $0x6a0] sm:$0xff]
    %v5589 = vld [vmem:[#allocation10 + $0x6a8] sm:$0xff]
    %v5590 = vld [vmem:[#allocation10 + $0x6b0] sm:$0xff]
    %v5591 = vld [vmem:[#allocation10 + $0x6b8] sm:$0xff]
    %v5592 = vld [vmem:[#allocation10 + $0x6c0] sm:$0xff]
    %v5593 = vld [vmem:[#allocation10 + $0x6c8] sm:$0xff]
    %v5594 = vld [vmem:[#allocation10 + $0x6d0] sm:$0xff]
    %v5595 = vld [vmem:[#allocation10 + $0x6d8] sm:$0xff]
    %v5596 = vld [vmem:[#allocation10 + $0x6e0] sm:$0xff]
    %v5597 = vld [vmem:[#allocation10 + $0x6e8] sm:$0xff]
    %v5598 = vld [vmem:[#allocation10 + $0x6f0] sm:$0xff]
    %v5599 = vld [vmem:[#allocation10 + $0x6f8] sm:$0xff]
    %v5600 = vld [vmem:[#allocation10 + $0x700] sm:$0xff]
    %v5601 = vld [vmem:[#allocation10 + $0x708] sm:$0xff]
    %v5602 = vld [vmem:[#allocation10 + $0x710] sm:$0xff]
    %v5603 = vld [vmem:[#allocation10 + $0x718] sm:$0xff]
    %v5604 = vld [vmem:[#allocation10 + $0x720] sm:$0xff]
    %v5605 = vld [vmem:[#allocation10 + $0x728] sm:$0xff]
    %v5606 = vld [vmem:[#allocation10 + $0x730] sm:$0xff]
    %v5607 = vld [vmem:[#allocation10 + $0x738] sm:$0xff]
    %v5608 = vld [vmem:[#allocation10 + $0x740] sm:$0xff]
    %v5609 = vld [vmem:[#allocation10 + $0x748] sm:$0xff]
    %v5610 = vld [vmem:[#allocation10 + $0x750] sm:$0xff]
    %v5611 = vld [vmem:[#allocation10 + $0x758] sm:$0xff]
    %v5612 = vld [vmem:[#allocation10 + $0x760] sm:$0xff]
    %v5613 = vld [vmem:[#allocation10 + $0x768] sm:$0xff]
    %v5614 = vld [vmem:[#allocation10 + $0x770] sm:$0xff]
    %v5615 = vld [vmem:[#allocation10 + $0x778] sm:$0xff]
    %v5616 = vld [vmem:[#allocation10 + $0x780] sm:$0xff]
    %v5617 = vld [vmem:[#allocation10 + $0x788] sm:$0xff]
    %v5618 = vld [vmem:[#allocation10 + $0x790] sm:$0xff]
    %v5619 = vld [vmem:[#allocation10 + $0x798] sm:$0xff]
    %v5620 = vld [vmem:[#allocation10 + $0x7a0] sm:$0xff]
    %v5621 = vld [vmem:[#allocation10 + $0x7a8] sm:$0xff]
    %v5622 = vld [vmem:[#allocation10 + $0x7b0] sm:$0xff]
    %v5623 = vld [vmem:[#allocation10 + $0x7b8] sm:$0xff]
    %v5624 = vld [vmem:[#allocation10 + $0x7c0] sm:$0xff]
    %v5625 = vld [vmem:[#allocation10 + $0x7c8] sm:$0xff]
    %v5626 = vld [vmem:[#allocation10 + $0x7d0] sm:$0xff]
    %v5627 = vld [vmem:[#allocation10 + $0x7d8] sm:$0xff]
    %v5628 = vld [vmem:[#allocation10 + $0x7e0] sm:$0xff]
    %v5629 = vld [vmem:[#allocation10 + $0x7e8] sm:$0xff]
    %v5630 = vld [vmem:[#allocation10 + $0x7f0] sm:$0xff]
    %v5631 = vld [vmem:[#allocation10 + $0x7f8] sm:$0xff]
    %v5632 = vld [vmem:[#allocation10 + $0x800] sm:$0xff]
    %v5633 = vld [vmem:[#allocation10 + $0x808] sm:$0xff]
    %v5634 = vld [vmem:[#allocation10 + $0x810] sm:$0xff]
    %v5635 = vld [vmem:[#allocation10 + $0x818] sm:$0xff]
    %v5636 = vld [vmem:[#allocation10 + $0x820] sm:$0xff]
    %v5637 = vld [vmem:[#allocation10 + $0x828] sm:$0xff]
    %v5638 = vld [vmem:[#allocation10 + $0x830] sm:$0xff]
    %v5639 = vld [vmem:[#allocation10 + $0x838] sm:$0xff]
    %v5640 = vld [vmem:[#allocation10 + $0x840] sm:$0xff]
    %v5641 = vld [vmem:[#allocation10 + $0x848] sm:$0xff]
    %v5642 = vld [vmem:[#allocation10 + $0x850] sm:$0xff]
    %v5643 = vld [vmem:[#allocation10 + $0x858] sm:$0xff]
    %v5644 = vld [vmem:[#allocation10 + $0x860] sm:$0xff]
    %v5645 = vld [vmem:[#allocation10 + $0x868] sm:$0xff]
    %v5646 = vld [vmem:[#allocation10 + $0x870] sm:$0xff]
    %v5647 = vld [vmem:[#allocation10 + $0x878] sm:$0xff]
    %v5648 = vld [vmem:[#allocation10 + $0x880] sm:$0xff]
    %v5649 = vld [vmem:[#allocation10 + $0x888] sm:$0xff]
    %v5650 = vld [vmem:[#allocation10 + $0x890] sm:$0xff]
    %v5651 = vld [vmem:[#allocation10 + $0x898] sm:$0xff]
    %v5652 = vld [vmem:[#allocation10 + $0x8a0] sm:$0xff]
    %v5653 = vld [vmem:[#allocation10 + $0x8a8] sm:$0xff]
    %v5654 = vld [vmem:[#allocation10 + $0x8b0] sm:$0xff]
    %v5655 = vld [vmem:[#allocation10 + $0x8b8] sm:$0xff]
    %v5656 = vld [vmem:[#allocation10 + $0x8c0] sm:$0xff]
    %v5657 = vld [vmem:[#allocation10 + $0x8c8] sm:$0xff]
    %v5658 = vld [vmem:[#allocation10 + $0x8d0] sm:$0xff]
    %v5659 = vld [vmem:[#allocation10 + $0x8d8] sm:$0xff]
    %v5660 = vld [vmem:[#allocation10 + $0x8e0] sm:$0xff]
    %v5661 = vld [vmem:[#allocation10 + $0x8e8] sm:$0xff]
    %v5662 = vld [vmem:[#allocation10 + $0x8f0] sm:$0xff]
    %v5663 = vld [vmem:[#allocation10 + $0x8f8] sm:$0xff]
    %v5664 = vpack.c.b16 %v5358, %v5358
    %v5665 = vpack.c.b16 %v5359, %v5359
    %v5700 = vunpack.c.l.b16 %v5376
    %v5701 = vunpack.c.h.b16 %v5376
    %v5702 = vunpack.c.l.b16 %v5377
    %v5703 = vunpack.c.h.b16 %v5377
    %v5704 = vunpack.c.l.b16 %v5378
    %v5705 = vunpack.c.h.b16 %v5378
    %v5706 = vunpack.c.l.b16 %v5379
    %v5707 = vunpack.c.h.b16 %v5379
    %v5708 = vunpack.c.l.b16 %v5380
    %v5709 = vunpack.c.h.b16 %v5380
    %v5710 = vunpack.c.l.b16 %v5381
    %v5711 = vunpack.c.h.b16 %v5381
    %v5712 = vunpack.c.l.b16 %v5382
    %v5713 = vunpack.c.h.b16 %v5382
    %v5714 = vunpack.c.l.b16 %v5383
    %v5715 = vunpack.c.h.b16 %v5383
    %v5716 = vunpack.c.l.b16 %v5384
    %v5717 = vunpack.c.h.b16 %v5384
    %v5718 = vunpack.c.l.b16 %v5385
    %v5719 = vunpack.c.h.b16 %v5385
    %v5720 = vunpack.c.l.b16 %v5386
    %v5721 = vunpack.c.h.b16 %v5386
    %v5722 = vunpack.c.l.b16 %v5387
    %v5723 = vunpack.c.h.b16 %v5387
    %v5724 = vunpack.c.l.b16 %v5388
    %v5725 = vunpack.c.h.b16 %v5388
    %v5726 = vunpack.c.l.b16 %v5389
    %v5727 = vunpack.c.h.b16 %v5389
    %v5728 = vunpack.c.l.b16 %v5390
    %v5729 = vunpack.c.h.b16 %v5390
    %v5730 = vunpack.c.l.b16 %v5391
    %v5731 = vunpack.c.h.b16 %v5391
    %v5732 = vunpack.c.l.b16 %v5392
    %v5733 = vunpack.c.h.b16 %v5392
    %v5734 = vunpack.c.l.b16 %v5393
    %v5735 = vunpack.c.h.b16 %v5393
    %v5736 = vunpack.c.l.b16 %v5394
    %v5737 = vunpack.c.h.b16 %v5394
    %v5738 = vunpack.c.l.b16 %v5395
    %v5739 = vunpack.c.h.b16 %v5395
    %v5740 = vunpack.c.l.b16 %v5396
    %v5741 = vunpack.c.h.b16 %v5396
    %v5742 = vunpack.c.l.b16 %v5397
    %v5743 = vunpack.c.h.b16 %v5397
    %v5744 = vunpack.c.l.b16 %v5398
    %v5745 = vunpack.c.h.b16 %v5398
    %v5746 = vunpack.c.l.b16 %v5399
    %v5747 = vunpack.c.h.b16 %v5399
    %v5748 = vunpack.c.l.b16 %v5400
    %v5749 = vunpack.c.h.b16 %v5400
    %v5750 = vunpack.c.l.b16 %v5401
    %v5751 = vunpack.c.h.b16 %v5401
    %v5752 = vunpack.c.l.b16 %v5402
    %v5753 = vunpack.c.h.b16 %v5402
    %v5754 = vunpack.c.l.b16 %v5403
    %v5755 = vunpack.c.h.b16 %v5403
    %v5756 = vunpack.c.l.b16 %v5404
    %v5757 = vunpack.c.h.b16 %v5404
    %v5758 = vunpack.c.l.b16 %v5405
    %v5759 = vunpack.c.h.b16 %v5405
    %v5760 = vunpack.c.l.b16 %v5406
    %v5761 = vunpack.c.h.b16 %v5406
    %v5762 = vunpack.c.l.b16 %v5407
    %v5763 = vunpack.c.h.b16 %v5407
    %v5764 = vpack.c.b16 %v5702, %v5700
    %v5765 = vpack.c.b16 %v5703, %v5701
    %v5766 = vpack.c.b16 %v5706, %v5704
    %v5767 = vpack.c.b16 %v5707, %v5705
    %v5768 = vpack.c.b16 %v5710, %v5708
    %v5769 = vpack.c.b16 %v5711, %v5709
    %v5770 = vpack.c.b16 %v5714, %v5712
    %v5771 = vpack.c.b16 %v5715, %v5713
    %v5772 = vpack.c.b16 %v5718, %v5716
    %v5773 = vpack.c.b16 %v5719, %v5717
    %v5774 = vpack.c.b16 %v5722, %v5720
    %v5775 = vpack.c.b16 %v5723, %v5721
    %v5776 = vpack.c.b16 %v5726, %v5724
    %v5777 = vpack.c.b16 %v5727, %v5725
    %v5778 = vpack.c.b16 %v5730, %v5728
    %v5779 = vpack.c.b16 %v5731, %v5729
    %v5780 = vpack.c.b16 %v5734, %v5732
    %v5781 = vpack.c.b16 %v5735, %v5733
    %v5782 = vpack.c.b16 %v5738, %v5736
    %v5783 = vpack.c.b16 %v5739, %v5737
    %v5784 = vpack.c.b16 %v5742, %v5740
    %v5785 = vpack.c.b16 %v5743, %v5741
    %v5786 = vpack.c.b16 %v5746, %v5744
    %v5787 = vpack.c.b16 %v5747, %v5745
    %v5788 = vpack.c.b16 %v5750, %v5748
    %v5789 = vpack.c.b16 %v5751, %v5749
    %v5790 = vpack.c.b16 %v5754, %v5752
    %v5791 = vpack.c.b16 %v5755, %v5753
    %v5792 = vpack.c.b16 %v5758, %v5756
    %v5793 = vpack.c.b16 %v5759, %v5757
    %v5794 = vpack.c.b16 %v5762, %v5760
    %v5795 = vpack.c.b16 %v5763, %v5761
    %5828 = vmatprep.subr.bf16.mxu0 %v5779
    %5829 = vmatpush1.bf16.msra.mxu0 %v5778
    %5830 = vmatprep.subr.bf16.mxu0 %v5777
    %5831 = vmatpush1.bf16.msra.mxu0 %v5776
    %5832 = vmatprep.subr.bf16.mxu0 %v5775
    %5833 = vmatpush1.bf16.msra.mxu0 %v5774
    %5834 = vmatprep.subr.bf16.mxu0 %v5773
    %5835 = vmatpush1.bf16.msra.mxu0 %v5772
    %5836 = vmatprep.subr.bf16.mxu0 %v5771
    %5837 = vmatpush1.bf16.msra.mxu0 %v5770
    %5838 = vmatprep.subr.bf16.mxu0 %v5769
    %5839 = vmatpush1.bf16.msra.mxu0 %v5768
    %5840 = vmatprep.subr.bf16.mxu0 %v5767
    %5841 = vmatpush1.bf16.msra.mxu0 %v5766
    %5842 = vmatprep.subr.bf16.mxu0 %v5765
    %5843 = vmatpush1.bf16.msra.mxu0 %v5764
    %5844 = vmatprep.subr.bf16.mxu0 %v5795
    %5845 = vmatpush2.bf16.msra.mxu0 %v5794
    %5846 = vmatprep.subr.bf16.mxu0 %v5793
    %5847 = vmatpush2.bf16.msra.mxu0 %v5792
    %5848 = vmatprep.subr.bf16.mxu0 %v5791
    %5849 = vmatpush2.bf16.msra.mxu0 %v5790
    %5850 = vmatprep.subr.bf16.mxu0 %v5789
    %5851 = vmatpush2.bf16.msra.mxu0 %v5788
    %5852 = vmatprep.subr.bf16.mxu0 %v5787
    %5853 = vmatpush2.bf16.msra.mxu0 %v5786
    %5854 = vmatprep.subr.bf16.mxu0 %v5785
    %5855 = vmatpush2.bf16.msra.mxu0 %v5784
    %5856 = vmatprep.subr.bf16.mxu0 %v5783
    %5857 = vmatpush2.bf16.msra.mxu0 %v5782
    %5858 = vmatprep.subr.bf16.mxu0 %v5781
    %5859 = vmatpush2.bf16.msra.mxu0 %v5780
    %5860 = vmatprep.mubr.bf16.mxu0 %v5665
    %5861 = vmatmul.mubr.bf16.gmra.mxu0 %v5664
    %v5862 = vpop.f32.mrf.mxu0
    %v5863 = vadd.f32 0.0, %v5862
    %v5864 = vpop.f32.mrf.mxu0
    %v5865 = vadd.f32 0.0, %v5864
    %v5866 = vpop.f32.mrf.mxu0
    %v5867 = vpop.f32.mrf.mxu0
    %5868 = vdwg.mxu0
    %v5869 = vpack.c.b16 %v5360, %v5360
    %v5870 = vpack.c.b16 %v5361, %v5361
    %v5905 = vunpack.c.l.b16 %v5408
    %v5906 = vunpack.c.h.b16 %v5408
    %v5907 = vunpack.c.l.b16 %v5409
    %v5908 = vunpack.c.h.b16 %v5409
    %v5909 = vunpack.c.l.b16 %v5410
    %v5910 = vunpack.c.h.b16 %v5410
    %v5911 = vunpack.c.l.b16 %v5411
    %v5912 = vunpack.c.h.b16 %v5411
    %v5913 = vunpack.c.l.b16 %v5412
    %v5914 = vunpack.c.h.b16 %v5412
    %v5915 = vunpack.c.l.b16 %v5413
    %v5916 = vunpack.c.h.b16 %v5413
    %v5917 = vunpack.c.l.b16 %v5414
    %v5918 = vunpack.c.h.b16 %v5414
    %v5919 = vunpack.c.l.b16 %v5415
    %v5920 = vunpack.c.h.b16 %v5415
    %v5921 = vunpack.c.l.b16 %v5416
    %v5922 = vunpack.c.h.b16 %v5416
    %v5923 = vunpack.c.l.b16 %v5417
    %v5924 = vunpack.c.h.b16 %v5417
    %v5925 = vunpack.c.l.b16 %v5418
    %v5926 = vunpack.c.h.b16 %v5418
    %v5927 = vunpack.c.l.b16 %v5419
    %v5928 = vunpack.c.h.b16 %v5419
    %v5929 = vunpack.c.l.b16 %v5420
    %v5930 = vunpack.c.h.b16 %v5420
    %v5931 = vunpack.c.l.b16 %v5421
    %v5932 = vunpack.c.h.b16 %v5421
    %v5933 = vunpack.c.l.b16 %v5422
    %v5934 = vunpack.c.h.b16 %v5422
    %v5935 = vunpack.c.l.b16 %v5423
    %v5936 = vunpack.c.h.b16 %v5423
    %v5937 = vunpack.c.l.b16 %v5424
    %v5938 = vunpack.c.h.b16 %v5424
    %v5939 = vunpack.c.l.b16 %v5425
    %v5940 = vunpack.c.h.b16 %v5425
    %v5941 = vunpack.c.l.b16 %v5426
    %v5942 = vunpack.c.h.b16 %v5426
    %v5943 = vunpack.c.l.b16 %v5427
    %v5944 = vunpack.c.h.b16 %v5427
    %v5945 = vunpack.c.l.b16 %v5428
    %v5946 = vunpack.c.h.b16 %v5428
    %v5947 = vunpack.c.l.b16 %v5429
    %v5948 = vunpack.c.h.b16 %v5429
    %v5949 = vunpack.c.l.b16 %v5430
    %v5950 = vunpack.c.h.b16 %v5430
    %v5951 = vunpack.c.l.b16 %v5431
    %v5952 = vunpack.c.h.b16 %v5431
    %v5953 = vunpack.c.l.b16 %v5432
    %v5954 = vunpack.c.h.b16 %v5432
    %v5955 = vunpack.c.l.b16 %v5433
    %v5956 = vunpack.c.h.b16 %v5433
    %v5957 = vunpack.c.l.b16 %v5434
    %v5958 = vunpack.c.h.b16 %v5434
    %v5959 = vunpack.c.l.b16 %v5435
    %v5960 = vunpack.c.h.b16 %v5435
    %v5961 = vunpack.c.l.b16 %v5436
    %v5962 = vunpack.c.h.b16 %v5436
    %v5963 = vunpack.c.l.b16 %v5437
    %v5964 = vunpack.c.h.b16 %v5437
    %v5965 = vunpack.c.l.b16 %v5438
    %v5966 = vunpack.c.h.b16 %v5438
    %v5967 = vunpack.c.l.b16 %v5439
    %v5968 = vunpack.c.h.b16 %v5439
    %v5969 = vpack.c.b16 %v5907, %v5905
    %v5970 = vpack.c.b16 %v5908, %v5906
    %v5971 = vpack.c.b16 %v5911, %v5909
    %v5972 = vpack.c.b16 %v5912, %v5910
    %v5973 = vpack.c.b16 %v5915, %v5913
    %v5974 = vpack.c.b16 %v5916, %v5914
    %v5975 = vpack.c.b16 %v5919, %v5917
    %v5976 = vpack.c.b16 %v5920, %v5918
    %v5977 = vpack.c.b16 %v5923, %v5921
    %v5978 = vpack.c.b16 %v5924, %v5922
    %v5979 = vpack.c.b16 %v5927, %v5925
    %v5980 = vpack.c.b16 %v5928, %v5926
    %v5981 = vpack.c.b16 %v5931, %v5929
    %v5982 = vpack.c.b16 %v5932, %v5930
    %v5983 = vpack.c.b16 %v5935, %v5933
    %v5984 = vpack.c.b16 %v5936, %v5934
    %v5985 = vpack.c.b16 %v5939, %v5937
    %v5986 = vpack.c.b16 %v5940, %v5938
    %v5987 = vpack.c.b16 %v5943, %v5941
    %v5988 = vpack.c.b16 %v5944, %v5942
    %v5989 = vpack.c.b16 %v5947, %v5945
    %v5990 = vpack.c.b16 %v5948, %v5946
    %v5991 = vpack.c.b16 %v5951, %v5949
    %v5992 = vpack.c.b16 %v5952, %v5950
    %v5993 = vpack.c.b16 %v5955, %v5953
    %v5994 = vpack.c.b16 %v5956, %v5954
    %v5995 = vpack.c.b16 %v5959, %v5957
    %v5996 = vpack.c.b16 %v5960, %v5958
    %v5997 = vpack.c.b16 %v5963, %v5961
    %v5998 = vpack.c.b16 %v5964, %v5962
    %v5999 = vpack.c.b16 %v5967, %v5965
    %v6000 = vpack.c.b16 %v5968, %v5966
    %6033 = vmatprep.subr.bf16.mxu0 %v5984
    %6034 = vmatpush1.bf16.msra.mxu0 %v5983
    %6035 = vmatprep.subr.bf16.mxu0 %v5982
    %6036 = vmatpush1.bf16.msra.mxu0 %v5981
    %6037 = vmatprep.subr.bf16.mxu0 %v5980
    %6038 = vmatpush1.bf16.msra.mxu0 %v5979
    %6039 = vmatprep.subr.bf16.mxu0 %v5978
    %6040 = vmatpush1.bf16.msra.mxu0 %v5977
    %6041 = vmatprep.subr.bf16.mxu0 %v5976
    %6042 = vmatpush1.bf16.msra.mxu0 %v5975
    %6043 = vmatprep.subr.bf16.mxu0 %v5974
    %6044 = vmatpush1.bf16.msra.mxu0 %v5973
    %6045 = vmatprep.subr.bf16.mxu0 %v5972
    %6046 = vmatpush1.bf16.msra.mxu0 %v5971
    %6047 = vmatprep.subr.bf16.mxu0 %v5970
    %6048 = vmatpush1.bf16.msra.mxu0 %v5969
    %6049 = vmatprep.subr.bf16.mxu0 %v6000
    %6050 = vmatpush2.bf16.msra.mxu0 %v5999
    %6051 = vmatprep.subr.bf16.mxu0 %v5998
    %6052 = vmatpush2.bf16.msra.mxu0 %v5997
    %6053 = vmatprep.subr.bf16.mxu0 %v5996
    %6054 = vmatpush2.bf16.msra.mxu0 %v5995
    %6055 = vmatprep.subr.bf16.mxu0 %v5994
    %6056 = vmatpush2.bf16.msra.mxu0 %v5993
    %6057 = vmatprep.subr.bf16.mxu0 %v5992
    %6058 = vmatpush2.bf16.msra.mxu0 %v5991
    %6059 = vmatprep.subr.bf16.mxu0 %v5990
    %6060 = vmatpush2.bf16.msra.mxu0 %v5989
    %6061 = vmatprep.subr.bf16.mxu0 %v5988
    %6062 = vmatpush2.bf16.msra.mxu0 %v5987
    %6063 = vmatprep.subr.bf16.mxu0 %v5986
    %6064 = vmatpush2.bf16.msra.mxu0 %v5985
    %6065 = vmatprep.mubr.bf16.mxu0 %v5870
    %6066 = vmatmul.mubr.bf16.gmra.mxu0 %v5869
    %v6067 = vpop.f32.mrf.mxu0
    %v6068 = vadd.f32 0.0, %v6067
    %v6069 = vpop.f32.mrf.mxu0
    %v6070 = vadd.f32 0.0, %v6069
    %v6071 = vpop.f32.mrf.mxu0
    %v6072 = vpop.f32.mrf.mxu0
    %6073 = vdwg.mxu0
    %v6074 = vpack.c.b16 %v5362, %v5362
    %v6075 = vpack.c.b16 %v5363, %v5363
    %v6110 = vunpack.c.l.b16 %v5440
    %v6111 = vunpack.c.h.b16 %v5440
    %v6112 = vunpack.c.l.b16 %v5441
    %v6113 = vunpack.c.h.b16 %v5441
    %v6114 = vunpack.c.l.b16 %v5442
    %v6115 = vunpack.c.h.b16 %v5442
    %v6116 = vunpack.c.l.b16 %v5443
    %v6117 = vunpack.c.h.b16 %v5443
    %v6118 = vunpack.c.l.b16 %v5444
    %v6119 = vunpack.c.h.b16 %v5444
    %v6120 = vunpack.c.l.b16 %v5445
    %v6121 = vunpack.c.h.b16 %v5445
    %v6122 = vunpack.c.l.b16 %v5446
    %v6123 = vunpack.c.h.b16 %v5446
    %v6124 = vunpack.c.l.b16 %v5447
    %v6125 = vunpack.c.h.b16 %v5447
    %v6126 = vunpack.c.l.b16 %v5448
    %v6127 = vunpack.c.h.b16 %v5448
    %v6128 = vunpack.c.l.b16 %v5449
    %v6129 = vunpack.c.h.b16 %v5449
    %v6130 = vunpack.c.l.b16 %v5450
    %v6131 = vunpack.c.h.b16 %v5450
    %v6132 = vunpack.c.l.b16 %v5451
    %v6133 = vunpack.c.h.b16 %v5451
    %v6134 = vunpack.c.l.b16 %v5452
    %v6135 = vunpack.c.h.b16 %v5452
    %v6136 = vunpack.c.l.b16 %v5453
    %v6137 = vunpack.c.h.b16 %v5453
    %v6138 = vunpack.c.l.b16 %v5454
    %v6139 = vunpack.c.h.b16 %v5454
    %v6140 = vunpack.c.l.b16 %v5455
    %v6141 = vunpack.c.h.b16 %v5455
    %v6142 = vunpack.c.l.b16 %v5456
    %v6143 = vunpack.c.h.b16 %v5456
    %v6144 = vunpack.c.l.b16 %v5457
    %v6145 = vunpack.c.h.b16 %v5457
    %v6146 = vunpack.c.l.b16 %v5458
    %v6147 = vunpack.c.h.b16 %v5458
    %v6148 = vunpack.c.l.b16 %v5459
    %v6149 = vunpack.c.h.b16 %v5459
    %v6150 = vunpack.c.l.b16 %v5460
    %v6151 = vunpack.c.h.b16 %v5460
    %v6152 = vunpack.c.l.b16 %v5461
    %v6153 = vunpack.c.h.b16 %v5461
    %v6154 = vunpack.c.l.b16 %v5462
    %v6155 = vunpack.c.h.b16 %v5462
    %v6156 = vunpack.c.l.b16 %v5463
    %v6157 = vunpack.c.h.b16 %v5463
    %v6158 = vunpack.c.l.b16 %v5464
    %v6159 = vunpack.c.h.b16 %v5464
    %v6160 = vunpack.c.l.b16 %v5465
    %v6161 = vunpack.c.h.b16 %v5465
    %v6162 = vunpack.c.l.b16 %v5466
    %v6163 = vunpack.c.h.b16 %v5466
    %v6164 = vunpack.c.l.b16 %v5467
    %v6165 = vunpack.c.h.b16 %v5467
    %v6166 = vunpack.c.l.b16 %v5468
    %v6167 = vunpack.c.h.b16 %v5468
    %v6168 = vunpack.c.l.b16 %v5469
    %v6169 = vunpack.c.h.b16 %v5469
    %v6170 = vunpack.c.l.b16 %v5470
    %v6171 = vunpack.c.h.b16 %v5470
    %v6172 = vunpack.c.l.b16 %v5471
    %v6173 = vunpack.c.h.b16 %v5471
    %v6174 = vpack.c.b16 %v6112, %v6110
    %v6175 = vpack.c.b16 %v6113, %v6111
    %v6176 = vpack.c.b16 %v6116, %v6114
    %v6177 = vpack.c.b16 %v6117, %v6115
    %v6178 = vpack.c.b16 %v6120, %v6118
    %v6179 = vpack.c.b16 %v6121, %v6119
    %v6180 = vpack.c.b16 %v6124, %v6122
    %v6181 = vpack.c.b16 %v6125, %v6123
    %v6182 = vpack.c.b16 %v6128, %v6126
    %v6183 = vpack.c.b16 %v6129, %v6127
    %v6184 = vpack.c.b16 %v6132, %v6130
    %v6185 = vpack.c.b16 %v6133, %v6131
    %v6186 = vpack.c.b16 %v6136, %v6134
    %v6187 = vpack.c.b16 %v6137, %v6135
    %v6188 = vpack.c.b16 %v6140, %v6138
    %v6189 = vpack.c.b16 %v6141, %v6139
    %v6190 = vpack.c.b16 %v6144, %v6142
    %v6191 = vpack.c.b16 %v6145, %v6143
    %v6192 = vpack.c.b16 %v6148, %v6146
    %v6193 = vpack.c.b16 %v6149, %v6147
    %v6194 = vpack.c.b16 %v6152, %v6150
    %v6195 = vpack.c.b16 %v6153, %v6151
    %v6196 = vpack.c.b16 %v6156, %v6154
    %v6197 = vpack.c.b16 %v6157, %v6155
    %v6198 = vpack.c.b16 %v6160, %v6158
    %v6199 = vpack.c.b16 %v6161, %v6159
    %v6200 = vpack.c.b16 %v6164, %v6162
    %v6201 = vpack.c.b16 %v6165, %v6163
    %v6202 = vpack.c.b16 %v6168, %v6166
    %v6203 = vpack.c.b16 %v6169, %v6167
    %v6204 = vpack.c.b16 %v6172, %v6170
    %v6205 = vpack.c.b16 %v6173, %v6171
    %6238 = vmatprep.subr.bf16.mxu0 %v6189
    %6239 = vmatpush1.bf16.msra.mxu0 %v6188
    %6240 = vmatprep.subr.bf16.mxu0 %v6187
    %6241 = vmatpush1.bf16.msra.mxu0 %v6186
    %6242 = vmatprep.subr.bf16.mxu0 %v6185
    %6243 = vmatpush1.bf16.msra.mxu0 %v6184
    %6244 = vmatprep.subr.bf16.mxu0 %v6183
    %6245 = vmatpush1.bf16.msra.mxu0 %v6182
    %6246 = vmatprep.subr.bf16.mxu0 %v6181
    %6247 = vmatpush1.bf16.msra.mxu0 %v6180
    %6248 = vmatprep.subr.bf16.mxu0 %v6179
    %6249 = vmatpush1.bf16.msra.mxu0 %v6178
    %6250 = vmatprep.subr.bf16.mxu0 %v6177
    %6251 = vmatpush1.bf16.msra.mxu0 %v6176
    %6252 = vmatprep.subr.bf16.mxu0 %v6175
    %6253 = vmatpush1.bf16.msra.mxu0 %v6174
    %6254 = vmatprep.subr.bf16.mxu0 %v6205
    %6255 = vmatpush2.bf16.msra.mxu0 %v6204
    %6256 = vmatprep.subr.bf16.mxu0 %v6203
    %6257 = vmatpush2.bf16.msra.mxu0 %v6202
    %6258 = vmatprep.subr.bf16.mxu0 %v6201
    %6259 = vmatpush2.bf16.msra.mxu0 %v6200
    %6260 = vmatprep.subr.bf16.mxu0 %v6199
    %6261 = vmatpush2.bf16.msra.mxu0 %v6198
    %6262 = vmatprep.subr.bf16.mxu0 %v6197
    %6263 = vmatpush2.bf16.msra.mxu0 %v6196
    %6264 = vmatprep.subr.bf16.mxu0 %v6195
    %6265 = vmatpush2.bf16.msra.mxu0 %v6194
    %6266 = vmatprep.subr.bf16.mxu0 %v6193
    %6267 = vmatpush2.bf16.msra.mxu0 %v6192
    %6268 = vmatprep.subr.bf16.mxu0 %v6191
    %6269 = vmatpush2.bf16.msra.mxu0 %v6190
    %6270 = vmatprep.mubr.bf16.mxu0 %v6075
    %6271 = vmatmul.mubr.bf16.gmra.mxu0 %v6074
    %v6272 = vpop.f32.mrf.mxu0
    %v6273 = vadd.f32 0.0, %v6272
    %v6274 = vpop.f32.mrf.mxu0
    %v6275 = vadd.f32 0.0, %v6274
    %v6276 = vpop.f32.mrf.mxu0
    %v6277 = vpop.f32.mrf.mxu0
    %6278 = vdwg.mxu0
    %v6279 = vpack.c.b16 %v5364, %v5364
    %v6280 = vpack.c.b16 %v5365, %v5365
    %v6315 = vunpack.c.l.b16 %v5472
    %v6316 = vunpack.c.h.b16 %v5472
    %v6317 = vunpack.c.l.b16 %v5473
    %v6318 = vunpack.c.h.b16 %v5473
    %v6319 = vunpack.c.l.b16 %v5474
    %v6320 = vunpack.c.h.b16 %v5474
    %v6321 = vunpack.c.l.b16 %v5475
    %v6322 = vunpack.c.h.b16 %v5475
    %v6323 = vunpack.c.l.b16 %v5476
    %v6324 = vunpack.c.h.b16 %v5476
    %v6325 = vunpack.c.l.b16 %v5477
    %v6326 = vunpack.c.h.b16 %v5477
    %v6327 = vunpack.c.l.b16 %v5478
    %v6328 = vunpack.c.h.b16 %v5478
    %v6329 = vunpack.c.l.b16 %v5479
    %v6330 = vunpack.c.h.b16 %v5479
    %v6331 = vunpack.c.l.b16 %v5480
    %v6332 = vunpack.c.h.b16 %v5480
    %v6333 = vunpack.c.l.b16 %v5481
    %v6334 = vunpack.c.h.b16 %v5481
    %v6335 = vunpack.c.l.b16 %v5482
    %v6336 = vunpack.c.h.b16 %v5482
    %v6337 = vunpack.c.l.b16 %v5483
    %v6338 = vunpack.c.h.b16 %v5483
    %v6339 = vunpack.c.l.b16 %v5484
    %v6340 = vunpack.c.h.b16 %v5484
    %v6341 = vunpack.c.l.b16 %v5485
    %v6342 = vunpack.c.h.b16 %v5485
    %v6343 = vunpack.c.l.b16 %v5486
    %v6344 = vunpack.c.h.b16 %v5486
    %v6345 = vunpack.c.l.b16 %v5487
    %v6346 = vunpack.c.h.b16 %v5487
    %v6347 = vunpack.c.l.b16 %v5488
    %v6348 = vunpack.c.h.b16 %v5488
    %v6349 = vunpack.c.l.b16 %v5489
    %v6350 = vunpack.c.h.b16 %v5489
    %v6351 = vunpack.c.l.b16 %v5490
    %v6352 = vunpack.c.h.b16 %v5490
    %v6353 = vunpack.c.l.b16 %v5491
    %v6354 = vunpack.c.h.b16 %v5491
    %v6355 = vunpack.c.l.b16 %v5492
    %v6356 = vunpack.c.h.b16 %v5492
    %v6357 = vunpack.c.l.b16 %v5493
    %v6358 = vunpack.c.h.b16 %v5493
    %v6359 = vunpack.c.l.b16 %v5494
    %v6360 = vunpack.c.h.b16 %v5494
    %v6361 = vunpack.c.l.b16 %v5495
    %v6362 = vunpack.c.h.b16 %v5495
    %v6363 = vunpack.c.l.b16 %v5496
    %v6364 = vunpack.c.h.b16 %v5496
    %v6365 = vunpack.c.l.b16 %v5497
    %v6366 = vunpack.c.h.b16 %v5497
    %v6367 = vunpack.c.l.b16 %v5498
    %v6368 = vunpack.c.h.b16 %v5498
    %v6369 = vunpack.c.l.b16 %v5499
    %v6370 = vunpack.c.h.b16 %v5499
    %v6371 = vunpack.c.l.b16 %v5500
    %v6372 = vunpack.c.h.b16 %v5500
    %v6373 = vunpack.c.l.b16 %v5501
    %v6374 = vunpack.c.h.b16 %v5501
    %v6375 = vunpack.c.l.b16 %v5502
    %v6376 = vunpack.c.h.b16 %v5502
    %v6377 = vunpack.c.l.b16 %v5503
    %v6378 = vunpack.c.h.b16 %v5503
    %v6379 = vpack.c.b16 %v6317, %v6315
    %v6380 = vpack.c.b16 %v6318, %v6316
    %v6381 = vpack.c.b16 %v6321, %v6319
    %v6382 = vpack.c.b16 %v6322, %v6320
    %v6383 = vpack.c.b16 %v6325, %v6323
    %v6384 = vpack.c.b16 %v6326, %v6324
    %v6385 = vpack.c.b16 %v6329, %v6327
    %v6386 = vpack.c.b16 %v6330, %v6328
    %v6387 = vpack.c.b16 %v6333, %v6331
    %v6388 = vpack.c.b16 %v6334, %v6332
    %v6389 = vpack.c.b16 %v6337, %v6335
    %v6390 = vpack.c.b16 %v6338, %v6336
    %v6391 = vpack.c.b16 %v6341, %v6339
    %v6392 = vpack.c.b16 %v6342, %v6340
    %v6393 = vpack.c.b16 %v6345, %v6343
    %v6394 = vpack.c.b16 %v6346, %v6344
    %v6395 = vpack.c.b16 %v6349, %v6347
    %v6396 = vpack.c.b16 %v6350, %v6348
    %v6397 = vpack.c.b16 %v6353, %v6351
    %v6398 = vpack.c.b16 %v6354, %v6352
    %v6399 = vpack.c.b16 %v6357, %v6355
    %v6400 = vpack.c.b16 %v6358, %v6356
    %v6401 = vpack.c.b16 %v6361, %v6359
    %v6402 = vpack.c.b16 %v6362, %v6360
    %v6403 = vpack.c.b16 %v6365, %v6363
    %v6404 = vpack.c.b16 %v6366, %v6364
    %v6405 = vpack.c.b16 %v6369, %v6367
    %v6406 = vpack.c.b16 %v6370, %v6368
    %v6407 = vpack.c.b16 %v6373, %v6371
    %v6408 = vpack.c.b16 %v6374, %v6372
    %v6409 = vpack.c.b16 %v6377, %v6375
    %v6410 = vpack.c.b16 %v6378, %v6376
    %6443 = vmatprep.subr.bf16.mxu0 %v6394
    %6444 = vmatpush1.bf16.msra.mxu0 %v6393
    %6445 = vmatprep.subr.bf16.mxu0 %v6392
    %6446 = vmatpush1.bf16.msra.mxu0 %v6391
    %6447 = vmatprep.subr.bf16.mxu0 %v6390
    %6448 = vmatpush1.bf16.msra.mxu0 %v6389
    %6449 = vmatprep.subr.bf16.mxu0 %v6388
    %6450 = vmatpush1.bf16.msra.mxu0 %v6387
    %6451 = vmatprep.subr.bf16.mxu0 %v6386
    %6452 = vmatpush1.bf16.msra.mxu0 %v6385
    %6453 = vmatprep.subr.bf16.mxu0 %v6384
    %6454 = vmatpush1.bf16.msra.mxu0 %v6383
    %6455 = vmatprep.subr.bf16.mxu0 %v6382
    %6456 = vmatpush1.bf16.msra.mxu0 %v6381
    %6457 = vmatprep.subr.bf16.mxu0 %v6380
    %6458 = vmatpush1.bf16.msra.mxu0 %v6379
    %6459 = vmatprep.subr.bf16.mxu0 %v6410
    %6460 = vmatpush2.bf16.msra.mxu0 %v6409
    %6461 = vmatprep.subr.bf16.mxu0 %v6408
    %6462 = vmatpush2.bf16.msra.mxu0 %v6407
    %6463 = vmatprep.subr.bf16.mxu0 %v6406
    %6464 = vmatpush2.bf16.msra.mxu0 %v6405
    %6465 = vmatprep.subr.bf16.mxu0 %v6404
    %6466 = vmatpush2.bf16.msra.mxu0 %v6403
    %6467 = vmatprep.subr.bf16.mxu0 %v6402
    %6468 = vmatpush2.bf16.msra.mxu0 %v6401
    %6469 = vmatprep.subr.bf16.mxu0 %v6400
    %6470 = vmatpush2.bf16.msra.mxu0 %v6399
    %6471 = vmatprep.subr.bf16.mxu0 %v6398
    %6472 = vmatpush2.bf16.msra.mxu0 %v6397
    %6473 = vmatprep.subr.bf16.mxu0 %v6396
    %6474 = vmatpush2.bf16.msra.mxu0 %v6395
    %6475 = vmatprep.mubr.bf16.mxu0 %v6280
    %6476 = vmatmul.mubr.bf16.gmra.mxu0 %v6279
    %v6477 = vpop.f32.mrf.mxu0
    %v6478 = vadd.f32 0.0, %v6477
    %v6479 = vpop.f32.mrf.mxu0
    %v6480 = vadd.f32 0.0, %v6479
    %v6481 = vpop.f32.mrf.mxu0
    %v6482 = vpop.f32.mrf.mxu0
    %6483 = vdwg.mxu0
    %v6484 = vpack.c.b16 %v5366, %v5366
    %v6485 = vpack.c.b16 %v5367, %v5367
    %v6520 = vunpack.c.l.b16 %v5504
    %v6521 = vunpack.c.h.b16 %v5504
    %v6522 = vunpack.c.l.b16 %v5505
    %v6523 = vunpack.c.h.b16 %v5505
    %v6524 = vunpack.c.l.b16 %v5506
    %v6525 = vunpack.c.h.b16 %v5506
    %v6526 = vunpack.c.l.b16 %v5507
    %v6527 = vunpack.c.h.b16 %v5507
    %v6528 = vunpack.c.l.b16 %v5508
    %v6529 = vunpack.c.h.b16 %v5508
    %v6530 = vunpack.c.l.b16 %v5509
    %v6531 = vunpack.c.h.b16 %v5509
    %v6532 = vunpack.c.l.b16 %v5510
    %v6533 = vunpack.c.h.b16 %v5510
    %v6534 = vunpack.c.l.b16 %v5511
    %v6535 = vunpack.c.h.b16 %v5511
    %v6536 = vunpack.c.l.b16 %v5512
    %v6537 = vunpack.c.h.b16 %v5512
    %v6538 = vunpack.c.l.b16 %v5513
    %v6539 = vunpack.c.h.b16 %v5513
    %v6540 = vunpack.c.l.b16 %v5514
    %v6541 = vunpack.c.h.b16 %v5514
    %v6542 = vunpack.c.l.b16 %v5515
    %v6543 = vunpack.c.h.b16 %v5515
    %v6544 = vunpack.c.l.b16 %v5516
    %v6545 = vunpack.c.h.b16 %v5516
    %v6546 = vunpack.c.l.b16 %v5517
    %v6547 = vunpack.c.h.b16 %v5517
    %v6548 = vunpack.c.l.b16 %v5518
    %v6549 = vunpack.c.h.b16 %v5518
    %v6550 = vunpack.c.l.b16 %v5519
    %v6551 = vunpack.c.h.b16 %v5519
    %v6552 = vunpack.c.l.b16 %v5520
    %v6553 = vunpack.c.h.b16 %v5520
    %v6554 = vunpack.c.l.b16 %v5521
    %v6555 = vunpack.c.h.b16 %v5521
    %v6556 = vunpack.c.l.b16 %v5522
    %v6557 = vunpack.c.h.b16 %v5522
    %v6558 = vunpack.c.l.b16 %v5523
    %v6559 = vunpack.c.h.b16 %v5523
    %v6560 = vunpack.c.l.b16 %v5524
    %v6561 = vunpack.c.h.b16 %v5524
    %v6562 = vunpack.c.l.b16 %v5525
    %v6563 = vunpack.c.h.b16 %v5525
    %v6564 = vunpack.c.l.b16 %v5526
    %v6565 = vunpack.c.h.b16 %v5526
    %v6566 = vunpack.c.l.b16 %v5527
    %v6567 = vunpack.c.h.b16 %v5527
    %v6568 = vunpack.c.l.b16 %v5528
    %v6569 = vunpack.c.h.b16 %v5528
    %v6570 = vunpack.c.l.b16 %v5529
    %v6571 = vunpack.c.h.b16 %v5529
    %v6572 = vunpack.c.l.b16 %v5530
    %v6573 = vunpack.c.h.b16 %v5530
    %v6574 = vunpack.c.l.b16 %v5531
    %v6575 = vunpack.c.h.b16 %v5531
    %v6576 = vunpack.c.l.b16 %v5532
    %v6577 = vunpack.c.h.b16 %v5532
    %v6578 = vunpack.c.l.b16 %v5533
    %v6579 = vunpack.c.h.b16 %v5533
    %v6580 = vunpack.c.l.b16 %v5534
    %v6581 = vunpack.c.h.b16 %v5534
    %v6582 = vunpack.c.l.b16 %v5535
    %v6583 = vunpack.c.h.b16 %v5535
    %v6584 = vpack.c.b16 %v6522, %v6520
    %v6585 = vpack.c.b16 %v6523, %v6521
    %v6586 = vpack.c.b16 %v6526, %v6524
    %v6587 = vpack.c.b16 %v6527, %v6525
    %v6588 = vpack.c.b16 %v6530, %v6528
    %v6589 = vpack.c.b16 %v6531, %v6529
    %v6590 = vpack.c.b16 %v6534, %v6532
    %v6591 = vpack.c.b16 %v6535, %v6533
    %v6592 = vpack.c.b16 %v6538, %v6536
    %v6593 = vpack.c.b16 %v6539, %v6537
    %v6594 = vpack.c.b16 %v6542, %v6540
    %v6595 = vpack.c.b16 %v6543, %v6541
    %v6596 = vpack.c.b16 %v6546, %v6544
    %v6597 = vpack.c.b16 %v6547, %v6545
    %v6598 = vpack.c.b16 %v6550, %v6548
    %v6599 = vpack.c.b16 %v6551, %v6549
    %v6600 = vpack.c.b16 %v6554, %v6552
    %v6601 = vpack.c.b16 %v6555, %v6553
    %v6602 = vpack.c.b16 %v6558, %v6556
    %v6603 = vpack.c.b16 %v6559, %v6557
    %v6604 = vpack.c.b16 %v6562, %v6560
    %v6605 = vpack.c.b16 %v6563, %v6561
    %v6606 = vpack.c.b16 %v6566, %v6564
    %v6607 = vpack.c.b16 %v6567, %v6565
    %v6608 = vpack.c.b16 %v6570, %v6568
    %v6609 = vpack.c.b16 %v6571, %v6569
    %v6610 = vpack.c.b16 %v6574, %v6572
    %v6611 = vpack.c.b16 %v6575, %v6573
    %v6612 = vpack.c.b16 %v6578, %v6576
    %v6613 = vpack.c.b16 %v6579, %v6577
    %v6614 = vpack.c.b16 %v6582, %v6580
    %v6615 = vpack.c.b16 %v6583, %v6581
    %6648 = vmatprep.subr.bf16.mxu0 %v6599
    %6649 = vmatpush1.bf16.msra.mxu0 %v6598
    %6650 = vmatprep.subr.bf16.mxu0 %v6597
    %6651 = vmatpush1.bf16.msra.mxu0 %v6596
    %6652 = vmatprep.subr.bf16.mxu0 %v6595
    %6653 = vmatpush1.bf16.msra.mxu0 %v6594
    %6654 = vmatprep.subr.bf16.mxu0 %v6593
    %6655 = vmatpush1.bf16.msra.mxu0 %v6592
    %6656 = vmatprep.subr.bf16.mxu0 %v6591
    %6657 = vmatpush1.bf16.msra.mxu0 %v6590
    %6658 = vmatprep.subr.bf16.mxu0 %v6589
    %6659 = vmatpush1.bf16.msra.mxu0 %v6588
    %6660 = vmatprep.subr.bf16.mxu0 %v6587
    %6661 = vmatpush1.bf16.msra.mxu0 %v6586
    %6662 = vmatprep.subr.bf16.mxu0 %v6585
    %6663 = vmatpush1.bf16.msra.mxu0 %v6584
    %6664 = vmatprep.subr.bf16.mxu0 %v6615
    %6665 = vmatpush2.bf16.msra.mxu0 %v6614
    %6666 = vmatprep.subr.bf16.mxu0 %v6613
    %6667 = vmatpush2.bf16.msra.mxu0 %v6612
    %6668 = vmatprep.subr.bf16.mxu0 %v6611
    %6669 = vmatpush2.bf16.msra.mxu0 %v6610
    %6670 = vmatprep.subr.bf16.mxu0 %v6609
    %6671 = vmatpush2.bf16.msra.mxu0 %v6608
    %6672 = vmatprep.subr.bf16.mxu0 %v6607
    %6673 = vmatpush2.bf16.msra.mxu0 %v6606
    %6674 = vmatprep.subr.bf16.mxu0 %v6605
    %6675 = vmatpush2.bf16.msra.mxu0 %v6604
    %6676 = vmatprep.subr.bf16.mxu0 %v6603
    %6677 = vmatpush2.bf16.msra.mxu0 %v6602
    %6678 = vmatprep.subr.bf16.mxu0 %v6601
    %6679 = vmatpush2.bf16.msra.mxu0 %v6600
    %6680 = vmatprep.mubr.bf16.mxu0 %v6485
    %6681 = vmatmul.mubr.bf16.gmra.mxu0 %v6484
    %v6682 = vpop.f32.mrf.mxu0
    %v6683 = vadd.f32 0.0, %v6682
    %v6684 = vpop.f32.mrf.mxu0
    %v6685 = vadd.f32 0.0, %v6684
    %v6686 = vpop.f32.mrf.mxu0
    %v6687 = vpop.f32.mrf.mxu0
    %6688 = vdwg.mxu0
    %v6689 = vpack.c.b16 %v5368, %v5368
    %v6690 = vpack.c.b16 %v5369, %v5369
    %v6725 = vunpack.c.l.b16 %v5536
    %v6726 = vunpack.c.h.b16 %v5536
    %v6727 = vunpack.c.l.b16 %v5537
    %v6728 = vunpack.c.h.b16 %v5537
    %v6729 = vunpack.c.l.b16 %v5538
    %v6730 = vunpack.c.h.b16 %v5538
    %v6731 = vunpack.c.l.b16 %v5539
    %v6732 = vunpack.c.h.b16 %v5539
    %v6733 = vunpack.c.l.b16 %v5540
    %v6734 = vunpack.c.h.b16 %v5540
    %v6735 = vunpack.c.l.b16 %v5541
    %v6736 = vunpack.c.h.b16 %v5541
    %v6737 = vunpack.c.l.b16 %v5542
    %v6738 = vunpack.c.h.b16 %v5542
    %v6739 = vunpack.c.l.b16 %v5543
    %v6740 = vunpack.c.h.b16 %v5543
    %v6741 = vunpack.c.l.b16 %v5544
    %v6742 = vunpack.c.h.b16 %v5544
    %v6743 = vunpack.c.l.b16 %v5545
    %v6744 = vunpack.c.h.b16 %v5545
    %v6745 = vunpack.c.l.b16 %v5546
    %v6746 = vunpack.c.h.b16 %v5546
    %v6747 = vunpack.c.l.b16 %v5547
    %v6748 = vunpack.c.h.b16 %v5547
    %v6749 = vunpack.c.l.b16 %v5548
    %v6750 = vunpack.c.h.b16 %v5548
    %v6751 = vunpack.c.l.b16 %v5549
    %v6752 = vunpack.c.h.b16 %v5549
    %v6753 = vunpack.c.l.b16 %v5550
    %v6754 = vunpack.c.h.b16 %v5550
    %v6755 = vunpack.c.l.b16 %v5551
    %v6756 = vunpack.c.h.b16 %v5551
    %v6757 = vunpack.c.l.b16 %v5552
    %v6758 = vunpack.c.h.b16 %v5552
    %v6759 = vunpack.c.l.b16 %v5553
    %v6760 = vunpack.c.h.b16 %v5553
    %v6761 = vunpack.c.l.b16 %v5554
    %v6762 = vunpack.c.h.b16 %v5554
    %v6763 = vunpack.c.l.b16 %v5555
    %v6764 = vunpack.c.h.b16 %v5555
    %v6765 = vunpack.c.l.b16 %v5556
    %v6766 = vunpack.c.h.b16 %v5556
    %v6767 = vunpack.c.l.b16 %v5557
    %v6768 = vunpack.c.h.b16 %v5557
    %v6769 = vunpack.c.l.b16 %v5558
    %v6770 = vunpack.c.h.b16 %v5558
    %v6771 = vunpack.c.l.b16 %v5559
    %v6772 = vunpack.c.h.b16 %v5559
    %v6773 = vunpack.c.l.b16 %v5560
    %v6774 = vunpack.c.h.b16 %v5560
    %v6775 = vunpack.c.l.b16 %v5561
    %v6776 = vunpack.c.h.b16 %v5561
    %v6777 = vunpack.c.l.b16 %v5562
    %v6778 = vunpack.c.h.b16 %v5562
    %v6779 = vunpack.c.l.b16 %v5563
    %v6780 = vunpack.c.h.b16 %v5563
    %v6781 = vunpack.c.l.b16 %v5564
    %v6782 = vunpack.c.h.b16 %v5564
    %v6783 = vunpack.c.l.b16 %v5565
    %v6784 = vunpack.c.h.b16 %v5565
    %v6785 = vunpack.c.l.b16 %v5566
    %v6786 = vunpack.c.h.b16 %v5566
    %v6787 = vunpack.c.l.b16 %v5567
    %v6788 = vunpack.c.h.b16 %v5567
    %v6789 = vpack.c.b16 %v6727, %v6725
    %v6790 = vpack.c.b16 %v6728, %v6726
    %v6791 = vpack.c.b16 %v6731, %v6729
    %v6792 = vpack.c.b16 %v6732, %v6730
    %v6793 = vpack.c.b16 %v6735, %v6733
    %v6794 = vpack.c.b16 %v6736, %v6734
    %v6795 = vpack.c.b16 %v6739, %v6737
    %v6796 = vpack.c.b16 %v6740, %v6738
    %v6797 = vpack.c.b16 %v6743, %v6741
    %v6798 = vpack.c.b16 %v6744, %v6742
    %v6799 = vpack.c.b16 %v6747, %v6745
    %v6800 = vpack.c.b16 %v6748, %v6746
    %v6801 = vpack.c.b16 %v6751, %v6749
    %v6802 = vpack.c.b16 %v6752, %v6750
    %v6803 = vpack.c.b16 %v6755, %v6753
    %v6804 = vpack.c.b16 %v6756, %v6754
    %v6805 = vpack.c.b16 %v6759, %v6757
    %v6806 = vpack.c.b16 %v6760, %v6758
    %v6807 = vpack.c.b16 %v6763, %v6761
    %v6808 = vpack.c.b16 %v6764, %v6762
    %v6809 = vpack.c.b16 %v6767, %v6765
    %v6810 = vpack.c.b16 %v6768, %v6766
    %v6811 = vpack.c.b16 %v6771, %v6769
    %v6812 = vpack.c.b16 %v6772, %v6770
    %v6813 = vpack.c.b16 %v6775, %v6773
    %v6814 = vpack.c.b16 %v6776, %v6774
    %v6815 = vpack.c.b16 %v6779, %v6777
    %v6816 = vpack.c.b16 %v6780, %v6778
    %v6817 = vpack.c.b16 %v6783, %v6781
    %v6818 = vpack.c.b16 %v6784, %v6782
    %v6819 = vpack.c.b16 %v6787, %v6785
    %v6820 = vpack.c.b16 %v6788, %v6786
    %6853 = vmatprep.subr.bf16.mxu0 %v6804
    %6854 = vmatpush1.bf16.msra.mxu0 %v6803
    %6855 = vmatprep.subr.bf16.mxu0 %v6802
    %6856 = vmatpush1.bf16.msra.mxu0 %v6801
    %6857 = vmatprep.subr.bf16.mxu0 %v6800
    %6858 = vmatpush1.bf16.msra.mxu0 %v6799
    %6859 = vmatprep.subr.bf16.mxu0 %v6798
    %6860 = vmatpush1.bf16.msra.mxu0 %v6797
    %6861 = vmatprep.subr.bf16.mxu0 %v6796
    %6862 = vmatpush1.bf16.msra.mxu0 %v6795
    %6863 = vmatprep.subr.bf16.mxu0 %v6794
    %6864 = vmatpush1.bf16.msra.mxu0 %v6793
    %6865 = vmatprep.subr.bf16.mxu0 %v6792
    %6866 = vmatpush1.bf16.msra.mxu0 %v6791
    %6867 = vmatprep.subr.bf16.mxu0 %v6790
    %6868 = vmatpush1.bf16.msra.mxu0 %v6789
    %6869 = vmatprep.subr.bf16.mxu0 %v6820
    %6870 = vmatpush2.bf16.msra.mxu0 %v6819
    %6871 = vmatprep.subr.bf16.mxu0 %v6818
    %6872 = vmatpush2.bf16.msra.mxu0 %v6817
    %6873 = vmatprep.subr.bf16.mxu0 %v6816
    %6874 = vmatpush2.bf16.msra.mxu0 %v6815
    %6875 = vmatprep.subr.bf16.mxu0 %v6814
    %6876 = vmatpush2.bf16.msra.mxu0 %v6813
    %6877 = vmatprep.subr.bf16.mxu0 %v6812
    %6878 = vmatpush2.bf16.msra.mxu0 %v6811
    %6879 = vmatprep.subr.bf16.mxu0 %v6810
    %6880 = vmatpush2.bf16.msra.mxu0 %v6809
    %6881 = vmatprep.subr.bf16.mxu0 %v6808
    %6882 = vmatpush2.bf16.msra.mxu0 %v6807
    %6883 = vmatprep.subr.bf16.mxu0 %v6806
    %6884 = vmatpush2.bf16.msra.mxu0 %v6805
    %6885 = vmatprep.mubr.bf16.mxu0 %v6690
    %6886 = vmatmul.mubr.bf16.gmra.mxu0 %v6689
    %v6887 = vpop.f32.mrf.mxu0
    %v6888 = vadd.f32 0.0, %v6887
    %v6889 = vpop.f32.mrf.mxu0
    %v6890 = vadd.f32 0.0, %v6889
    %v6891 = vpop.f32.mrf.mxu0
    %v6892 = vpop.f32.mrf.mxu0
    %6893 = vdwg.mxu0
    %v6894 = vpack.c.b16 %v5370, %v5370
    %v6895 = vpack.c.b16 %v5371, %v5371
    %v6930 = vunpack.c.l.b16 %v5568
    %v6931 = vunpack.c.h.b16 %v5568
    %v6932 = vunpack.c.l.b16 %v5569
    %v6933 = vunpack.c.h.b16 %v5569
    %v6934 = vunpack.c.l.b16 %v5570
    %v6935 = vunpack.c.h.b16 %v5570
    %v6936 = vunpack.c.l.b16 %v5571
    %v6937 = vunpack.c.h.b16 %v5571
    %v6938 = vunpack.c.l.b16 %v5572
    %v6939 = vunpack.c.h.b16 %v5572
    %v6940 = vunpack.c.l.b16 %v5573
    %v6941 = vunpack.c.h.b16 %v5573
    %v6942 = vunpack.c.l.b16 %v5574
    %v6943 = vunpack.c.h.b16 %v5574
    %v6944 = vunpack.c.l.b16 %v5575
    %v6945 = vunpack.c.h.b16 %v5575
    %v6946 = vunpack.c.l.b16 %v5576
    %v6947 = vunpack.c.h.b16 %v5576
    %v6948 = vunpack.c.l.b16 %v5577
    %v6949 = vunpack.c.h.b16 %v5577
    %v6950 = vunpack.c.l.b16 %v5578
    %v6951 = vunpack.c.h.b16 %v5578
    %v6952 = vunpack.c.l.b16 %v5579
    %v6953 = vunpack.c.h.b16 %v5579
    %v6954 = vunpack.c.l.b16 %v5580
    %v6955 = vunpack.c.h.b16 %v5580
    %v6956 = vunpack.c.l.b16 %v5581
    %v6957 = vunpack.c.h.b16 %v5581
    %v6958 = vunpack.c.l.b16 %v5582
    %v6959 = vunpack.c.h.b16 %v5582
    %v6960 = vunpack.c.l.b16 %v5583
    %v6961 = vunpack.c.h.b16 %v5583
    %v6962 = vunpack.c.l.b16 %v5584
    %v6963 = vunpack.c.h.b16 %v5584
    %v6964 = vunpack.c.l.b16 %v5585
    %v6965 = vunpack.c.h.b16 %v5585
    %v6966 = vunpack.c.l.b16 %v5586
    %v6967 = vunpack.c.h.b16 %v5586
    %v6968 = vunpack.c.l.b16 %v5587
    %v6969 = vunpack.c.h.b16 %v5587
    %v6970 = vunpack.c.l.b16 %v5588
    %v6971 = vunpack.c.h.b16 %v5588
    %v6972 = vunpack.c.l.b16 %v5589
    %v6973 = vunpack.c.h.b16 %v5589
    %v6974 = vunpack.c.l.b16 %v5590
    %v6975 = vunpack.c.h.b16 %v5590
    %v6976 = vunpack.c.l.b16 %v5591
    %v6977 = vunpack.c.h.b16 %v5591
    %v6978 = vunpack.c.l.b16 %v5592
    %v6979 = vunpack.c.h.b16 %v5592
    %v6980 = vunpack.c.l.b16 %v5593
    %v6981 = vunpack.c.h.b16 %v5593
    %v6982 = vunpack.c.l.b16 %v5594
    %v6983 = vunpack.c.h.b16 %v5594
    %v6984 = vunpack.c.l.b16 %v5595
    %v6985 = vunpack.c.h.b16 %v5595
    %v6986 = vunpack.c.l.b16 %v5596
    %v6987 = vunpack.c.h.b16 %v5596
    %v6988 = vunpack.c.l.b16 %v5597
    %v6989 = vunpack.c.h.b16 %v5597
    %v6990 = vunpack.c.l.b16 %v5598
    %v6991 = vunpack.c.h.b16 %v5598
    %v6992 = vunpack.c.l.b16 %v5599
    %v6993 = vunpack.c.h.b16 %v5599
    %v6994 = vpack.c.b16 %v6932, %v6930
    %v6995 = vpack.c.b16 %v6933, %v6931
    %v6996 = vpack.c.b16 %v6936, %v6934
    %v6997 = vpack.c.b16 %v6937, %v6935
    %v6998 = vpack.c.b16 %v6940, %v6938
    %v6999 = vpack.c.b16 %v6941, %v6939
    %v7000 = vpack.c.b16 %v6944, %v6942
    %v7001 = vpack.c.b16 %v6945, %v6943
    %v7002 = vpack.c.b16 %v6948, %v6946
    %v7003 = vpack.c.b16 %v6949, %v6947
    %v7004 = vpack.c.b16 %v6952, %v6950
    %v7005 = vpack.c.b16 %v6953, %v6951
    %v7006 = vpack.c.b16 %v6956, %v6954
    %v7007 = vpack.c.b16 %v6957, %v6955
    %v7008 = vpack.c.b16 %v6960, %v6958
    %v7009 = vpack.c.b16 %v6961, %v6959
    %v7010 = vpack.c.b16 %v6964, %v6962
    %v7011 = vpack.c.b16 %v6965, %v6963
    %v7012 = vpack.c.b16 %v6968, %v6966
    %v7013 = vpack.c.b16 %v6969, %v6967
    %v7014 = vpack.c.b16 %v6972, %v6970
    %v7015 = vpack.c.b16 %v6973, %v6971
    %v7016 = vpack.c.b16 %v6976, %v6974
    %v7017 = vpack.c.b16 %v6977, %v6975
    %v7018 = vpack.c.b16 %v6980, %v6978
    %v7019 = vpack.c.b16 %v6981, %v6979
    %v7020 = vpack.c.b16 %v6984, %v6982
    %v7021 = vpack.c.b16 %v6985, %v6983
    %v7022 = vpack.c.b16 %v6988, %v6986
    %v7023 = vpack.c.b16 %v6989, %v6987
    %v7024 = vpack.c.b16 %v6992, %v6990
    %v7025 = vpack.c.b16 %v6993, %v6991
    %7058 = vmatprep.subr.bf16.mxu0 %v7009
    %7059 = vmatpush1.bf16.msra.mxu0 %v7008
    %7060 = vmatprep.subr.bf16.mxu0 %v7007
    %7061 = vmatpush1.bf16.msra.mxu0 %v7006
    %7062 = vmatprep.subr.bf16.mxu0 %v7005
    %7063 = vmatpush1.bf16.msra.mxu0 %v7004
    %7064 = vmatprep.subr.bf16.mxu0 %v7003
    %7065 = vmatpush1.bf16.msra.mxu0 %v7002
    %7066 = vmatprep.subr.bf16.mxu0 %v7001
    %7067 = vmatpush1.bf16.msra.mxu0 %v7000
    %7068 = vmatprep.subr.bf16.mxu0 %v6999
    %7069 = vmatpush1.bf16.msra.mxu0 %v6998
    %7070 = vmatprep.subr.bf16.mxu0 %v6997
    %7071 = vmatpush1.bf16.msra.mxu0 %v6996
    %7072 = vmatprep.subr.bf16.mxu0 %v6995
    %7073 = vmatpush1.bf16.msra.mxu0 %v6994
    %7074 = vmatprep.subr.bf16.mxu0 %v7025
    %7075 = vmatpush2.bf16.msra.mxu0 %v7024
    %7076 = vmatprep.subr.bf16.mxu0 %v7023
    %7077 = vmatpush2.bf16.msra.mxu0 %v7022
    %7078 = vmatprep.subr.bf16.mxu0 %v7021
    %7079 = vmatpush2.bf16.msra.mxu0 %v7020
    %7080 = vmatprep.subr.bf16.mxu0 %v7019
    %7081 = vmatpush2.bf16.msra.mxu0 %v7018
    %7082 = vmatprep.subr.bf16.mxu0 %v7017
    %7083 = vmatpush2.bf16.msra.mxu0 %v7016
    %7084 = vmatprep.subr.bf16.mxu0 %v7015
    %7085 = vmatpush2.bf16.msra.mxu0 %v7014
    %7086 = vmatprep.subr.bf16.mxu0 %v7013
    %7087 = vmatpush2.bf16.msra.mxu0 %v7012
    %7088 = vmatprep.subr.bf16.mxu0 %v7011
    %7089 = vmatpush2.bf16.msra.mxu0 %v7010
    %7090 = vmatprep.mubr.bf16.mxu0 %v6895
    %7091 = vmatmul.mubr.bf16.gmra.mxu0 %v6894
    %v7092 = vpop.f32.mrf.mxu0
    %v7093 = vadd.f32 0.0, %v7092
    %v7094 = vpop.f32.mrf.mxu0
    %v7095 = vadd.f32 0.0, %v7094
    %v7096 = vpop.f32.mrf.mxu0
    %v7097 = vpop.f32.mrf.mxu0
    %7098 = vdwg.mxu0
    %v7099 = vpack.c.b16 %v5372, %v5372
    %v7100 = vpack.c.b16 %v5373, %v5373
    %v7135 = vunpack.c.l.b16 %v5600
    %v7136 = vunpack.c.h.b16 %v5600
    %v7137 = vunpack.c.l.b16 %v5601
    %v7138 = vunpack.c.h.b16 %v5601
    %v7139 = vunpack.c.l.b16 %v5602
    %v7140 = vunpack.c.h.b16 %v5602
    %v7141 = vunpack.c.l.b16 %v5603
    %v7142 = vunpack.c.h.b16 %v5603
    %v7143 = vunpack.c.l.b16 %v5604
    %v7144 = vunpack.c.h.b16 %v5604
    %v7145 = vunpack.c.l.b16 %v5605
    %v7146 = vunpack.c.h.b16 %v5605
    %v7147 = vunpack.c.l.b16 %v5606
    %v7148 = vunpack.c.h.b16 %v5606
    %v7149 = vunpack.c.l.b16 %v5607
    %v7150 = vunpack.c.h.b16 %v5607
    %v7151 = vunpack.c.l.b16 %v5608
    %v7152 = vunpack.c.h.b16 %v5608
    %v7153 = vunpack.c.l.b16 %v5609
    %v7154 = vunpack.c.h.b16 %v5609
    %v7155 = vunpack.c.l.b16 %v5610
    %v7156 = vunpack.c.h.b16 %v5610
    %v7157 = vunpack.c.l.b16 %v5611
    %v7158 = vunpack.c.h.b16 %v5611
    %v7159 = vunpack.c.l.b16 %v5612
    %v7160 = vunpack.c.h.b16 %v5612
    %v7161 = vunpack.c.l.b16 %v5613
    %v7162 = vunpack.c.h.b16 %v5613
    %v7163 = vunpack.c.l.b16 %v5614
    %v7164 = vunpack.c.h.b16 %v5614
    %v7165 = vunpack.c.l.b16 %v5615
    %v7166 = vunpack.c.h.b16 %v5615
    %v7167 = vunpack.c.l.b16 %v5616
    %v7168 = vunpack.c.h.b16 %v5616
    %v7169 = vunpack.c.l.b16 %v5617
    %v7170 = vunpack.c.h.b16 %v5617
    %v7171 = vunpack.c.l.b16 %v5618
    %v7172 = vunpack.c.h.b16 %v5618
    %v7173 = vunpack.c.l.b16 %v5619
    %v7174 = vunpack.c.h.b16 %v5619
    %v7175 = vunpack.c.l.b16 %v5620
    %v7176 = vunpack.c.h.b16 %v5620
    %v7177 = vunpack.c.l.b16 %v5621
    %v7178 = vunpack.c.h.b16 %v5621
    %v7179 = vunpack.c.l.b16 %v5622
    %v7180 = vunpack.c.h.b16 %v5622
    %v7181 = vunpack.c.l.b16 %v5623
    %v7182 = vunpack.c.h.b16 %v5623
    %v7183 = vunpack.c.l.b16 %v5624
    %v7184 = vunpack.c.h.b16 %v5624
    %v7185 = vunpack.c.l.b16 %v5625
    %v7186 = vunpack.c.h.b16 %v5625
    %v7187 = vunpack.c.l.b16 %v5626
    %v7188 = vunpack.c.h.b16 %v5626
    %v7189 = vunpack.c.l.b16 %v5627
    %v7190 = vunpack.c.h.b16 %v5627
    %v7191 = vunpack.c.l.b16 %v5628
    %v7192 = vunpack.c.h.b16 %v5628
    %v7193 = vunpack.c.l.b16 %v5629
    %v7194 = vunpack.c.h.b16 %v5629
    %v7195 = vunpack.c.l.b16 %v5630
    %v7196 = vunpack.c.h.b16 %v5630
    %v7197 = vunpack.c.l.b16 %v5631
    %v7198 = vunpack.c.h.b16 %v5631
    %v7199 = vpack.c.b16 %v7137, %v7135
    %v7200 = vpack.c.b16 %v7138, %v7136
    %v7201 = vpack.c.b16 %v7141, %v7139
    %v7202 = vpack.c.b16 %v7142, %v7140
    %v7203 = vpack.c.b16 %v7145, %v7143
    %v7204 = vpack.c.b16 %v7146, %v7144
    %v7205 = vpack.c.b16 %v7149, %v7147
    %v7206 = vpack.c.b16 %v7150, %v7148
    %v7207 = vpack.c.b16 %v7153, %v7151
    %v7208 = vpack.c.b16 %v7154, %v7152
    %v7209 = vpack.c.b16 %v7157, %v7155
    %v7210 = vpack.c.b16 %v7158, %v7156
    %v7211 = vpack.c.b16 %v7161, %v7159
    %v7212 = vpack.c.b16 %v7162, %v7160
    %v7213 = vpack.c.b16 %v7165, %v7163
    %v7214 = vpack.c.b16 %v7166, %v7164
    %v7215 = vpack.c.b16 %v7169, %v7167
    %v7216 = vpack.c.b16 %v7170, %v7168
    %v7217 = vpack.c.b16 %v7173, %v7171
    %v7218 = vpack.c.b16 %v7174, %v7172
    %v7219 = vpack.c.b16 %v7177, %v7175
    %v7220 = vpack.c.b16 %v7178, %v7176
    %v7221 = vpack.c.b16 %v7181, %v7179
    %v7222 = vpack.c.b16 %v7182, %v7180
    %v7223 = vpack.c.b16 %v7185, %v7183
    %v7224 = vpack.c.b16 %v7186, %v7184
    %v7225 = vpack.c.b16 %v7189, %v7187
    %v7226 = vpack.c.b16 %v7190, %v7188
    %v7227 = vpack.c.b16 %v7193, %v7191
    %v7228 = vpack.c.b16 %v7194, %v7192
    %v7229 = vpack.c.b16 %v7197, %v7195
    %v7230 = vpack.c.b16 %v7198, %v7196
    %7263 = vmatprep.subr.bf16.mxu0 %v7214
    %7264 = vmatpush1.bf16.msra.mxu0 %v7213
    %7265 = vmatprep.subr.bf16.mxu0 %v7212
    %7266 = vmatpush1.bf16.msra.mxu0 %v7211
    %7267 = vmatprep.subr.bf16.mxu0 %v7210
    %7268 = vmatpush1.bf16.msra.mxu0 %v7209
    %7269 = vmatprep.subr.bf16.mxu0 %v7208
    %7270 = vmatpush1.bf16.msra.mxu0 %v7207
    %7271 = vmatprep.subr.bf16.mxu0 %v7206
    %7272 = vmatpush1.bf16.msra.mxu0 %v7205
    %7273 = vmatprep.subr.bf16.mxu0 %v7204
    %7274 = vmatpush1.bf16.msra.mxu0 %v7203
    %7275 = vmatprep.subr.bf16.mxu0 %v7202
    %7276 = vmatpush1.bf16.msra.mxu0 %v7201
    %7277 = vmatprep.subr.bf16.mxu0 %v7200
    %7278 = vmatpush1.bf16.msra.mxu0 %v7199
    %7279 = vmatprep.subr.bf16.mxu0 %v7230
    %7280 = vmatpush2.bf16.msra.mxu0 %v7229
    %7281 = vmatprep.subr.bf16.mxu0 %v7228
    %7282 = vmatpush2.bf16.msra.mxu0 %v7227
    %7283 = vmatprep.subr.bf16.mxu0 %v7226
    %7284 = vmatpush2.bf16.msra.mxu0 %v7225
    %7285 = vmatprep.subr.bf16.mxu0 %v7224
    %7286 = vmatpush2.bf16.msra.mxu0 %v7223
    %7287 = vmatprep.subr.bf16.mxu0 %v7222
    %7288 = vmatpush2.bf16.msra.mxu0 %v7221
    %7289 = vmatprep.subr.bf16.mxu0 %v7220
    %7290 = vmatpush2.bf16.msra.mxu0 %v7219
    %7291 = vmatprep.subr.bf16.mxu0 %v7218
    %7292 = vmatpush2.bf16.msra.mxu0 %v7217
    %7293 = vmatprep.subr.bf16.mxu0 %v7216
    %7294 = vmatpush2.bf16.msra.mxu0 %v7215
    %7295 = vmatprep.mubr.bf16.mxu0 %v7100
    %7296 = vmatmul.mubr.bf16.gmra.mxu0 %v7099
    %v7297 = vpop.f32.mrf.mxu0
    %v7298 = vadd.f32 0.0, %v7297
    %v7299 = vpop.f32.mrf.mxu0
    %v7300 = vadd.f32 0.0, %v7299
    %v7301 = vpop.f32.mrf.mxu0
    %v7302 = vpop.f32.mrf.mxu0
    %7303 = vdwg.mxu0
    %v7304 = vpack.c.b16 %v5374, %v5374
    %v7305 = vpack.c.b16 %v5375, %v5375
    %v7340 = vunpack.c.l.b16 %v5632
    %v7341 = vunpack.c.h.b16 %v5632
    %v7342 = vunpack.c.l.b16 %v5633
    %v7343 = vunpack.c.h.b16 %v5633
    %v7344 = vunpack.c.l.b16 %v5634
    %v7345 = vunpack.c.h.b16 %v5634
    %v7346 = vunpack.c.l.b16 %v5635
    %v7347 = vunpack.c.h.b16 %v5635
    %v7348 = vunpack.c.l.b16 %v5636
    %v7349 = vunpack.c.h.b16 %v5636
    %v7350 = vunpack.c.l.b16 %v5637
    %v7351 = vunpack.c.h.b16 %v5637
    %v7352 = vunpack.c.l.b16 %v5638
    %v7353 = vunpack.c.h.b16 %v5638
    %v7354 = vunpack.c.l.b16 %v5639
    %v7355 = vunpack.c.h.b16 %v5639
    %v7356 = vunpack.c.l.b16 %v5640
    %v7357 = vunpack.c.h.b16 %v5640
    %v7358 = vunpack.c.l.b16 %v5641
    %v7359 = vunpack.c.h.b16 %v5641
    %v7360 = vunpack.c.l.b16 %v5642
    %v7361 = vunpack.c.h.b16 %v5642
    %v7362 = vunpack.c.l.b16 %v5643
    %v7363 = vunpack.c.h.b16 %v5643
    %v7364 = vunpack.c.l.b16 %v5644
    %v7365 = vunpack.c.h.b16 %v5644
    %v7366 = vunpack.c.l.b16 %v5645
    %v7367 = vunpack.c.h.b16 %v5645
    %v7368 = vunpack.c.l.b16 %v5646
    %v7369 = vunpack.c.h.b16 %v5646
    %v7370 = vunpack.c.l.b16 %v5647
    %v7371 = vunpack.c.h.b16 %v5647
    %v7372 = vunpack.c.l.b16 %v5648
    %v7373 = vunpack.c.h.b16 %v5648
    %v7374 = vunpack.c.l.b16 %v5649
    %v7375 = vunpack.c.h.b16 %v5649
    %v7376 = vunpack.c.l.b16 %v5650
    %v7377 = vunpack.c.h.b16 %v5650
    %v7378 = vunpack.c.l.b16 %v5651
    %v7379 = vunpack.c.h.b16 %v5651
    %v7380 = vunpack.c.l.b16 %v5652
    %v7381 = vunpack.c.h.b16 %v5652
    %v7382 = vunpack.c.l.b16 %v5653
    %v7383 = vunpack.c.h.b16 %v5653
    %v7384 = vunpack.c.l.b16 %v5654
    %v7385 = vunpack.c.h.b16 %v5654
    %v7386 = vunpack.c.l.b16 %v5655
    %v7387 = vunpack.c.h.b16 %v5655
    %v7388 = vunpack.c.l.b16 %v5656
    %v7389 = vunpack.c.h.b16 %v5656
    %v7390 = vunpack.c.l.b16 %v5657
    %v7391 = vunpack.c.h.b16 %v5657
    %v7392 = vunpack.c.l.b16 %v5658
    %v7393 = vunpack.c.h.b16 %v5658
    %v7394 = vunpack.c.l.b16 %v5659
    %v7395 = vunpack.c.h.b16 %v5659
    %v7396 = vunpack.c.l.b16 %v5660
    %v7397 = vunpack.c.h.b16 %v5660
    %v7398 = vunpack.c.l.b16 %v5661
    %v7399 = vunpack.c.h.b16 %v5661
    %v7400 = vunpack.c.l.b16 %v5662
    %v7401 = vunpack.c.h.b16 %v5662
    %v7402 = vunpack.c.l.b16 %v5663
    %v7403 = vunpack.c.h.b16 %v5663
    %v7404 = vpack.c.b16 %v7342, %v7340
    %v7405 = vpack.c.b16 %v7343, %v7341
    %v7406 = vpack.c.b16 %v7346, %v7344
    %v7407 = vpack.c.b16 %v7347, %v7345
    %v7408 = vpack.c.b16 %v7350, %v7348
    %v7409 = vpack.c.b16 %v7351, %v7349
    %v7410 = vpack.c.b16 %v7354, %v7352
    %v7411 = vpack.c.b16 %v7355, %v7353
    %v7412 = vpack.c.b16 %v7358, %v7356
    %v7413 = vpack.c.b16 %v7359, %v7357
    %v7414 = vpack.c.b16 %v7362, %v7360
    %v7415 = vpack.c.b16 %v7363, %v7361
    %v7416 = vpack.c.b16 %v7366, %v7364
    %v7417 = vpack.c.b16 %v7367, %v7365
    %v7418 = vpack.c.b16 %v7370, %v7368
    %v7419 = vpack.c.b16 %v7371, %v7369
    %v7420 = vpack.c.b16 %v7374, %v7372
    %v7421 = vpack.c.b16 %v7375, %v7373
    %v7422 = vpack.c.b16 %v7378, %v7376
    %v7423 = vpack.c.b16 %v7379, %v7377
    %v7424 = vpack.c.b16 %v7382, %v7380
    %v7425 = vpack.c.b16 %v7383, %v7381
    %v7426 = vpack.c.b16 %v7386, %v7384
    %v7427 = vpack.c.b16 %v7387, %v7385
    %v7428 = vpack.c.b16 %v7390, %v7388
    %v7429 = vpack.c.b16 %v7391, %v7389
    %v7430 = vpack.c.b16 %v7394, %v7392
    %v7431 = vpack.c.b16 %v7395, %v7393
    %v7432 = vpack.c.b16 %v7398, %v7396
    %v7433 = vpack.c.b16 %v7399, %v7397
    %v7434 = vpack.c.b16 %v7402, %v7400
    %v7435 = vpack.c.b16 %v7403, %v7401
    %7468 = vmatprep.subr.bf16.mxu0 %v7419
    %7469 = vmatpush1.bf16.msra.mxu0 %v7418
    %7470 = vmatprep.subr.bf16.mxu0 %v7417
    %7471 = vmatpush1.bf16.msra.mxu0 %v7416
    %7472 = vmatprep.subr.bf16.mxu0 %v7415
    %7473 = vmatpush1.bf16.msra.mxu0 %v7414
    %7474 = vmatprep.subr.bf16.mxu0 %v7413
    %7475 = vmatpush1.bf16.msra.mxu0 %v7412
    %7476 = vmatprep.subr.bf16.mxu0 %v7411
    %7477 = vmatpush1.bf16.msra.mxu0 %v7410
    %7478 = vmatprep.subr.bf16.mxu0 %v7409
    %7479 = vmatpush1.bf16.msra.mxu0 %v7408
    %7480 = vmatprep.subr.bf16.mxu0 %v7407
    %7481 = vmatpush1.bf16.msra.mxu0 %v7406
    %7482 = vmatprep.subr.bf16.mxu0 %v7405
    %7483 = vmatpush1.bf16.msra.mxu0 %v7404
    %7484 = vmatprep.subr.bf16.mxu0 %v7435
    %7485 = vmatpush2.bf16.msra.mxu0 %v7434
    %7486 = vmatprep.subr.bf16.mxu0 %v7433
    %7487 = vmatpush2.bf16.msra.mxu0 %v7432
    %7488 = vmatprep.subr.bf16.mxu0 %v7431
    %7489 = vmatpush2.bf16.msra.mxu0 %v7430
    %7490 = vmatprep.subr.bf16.mxu0 %v7429
    %7491 = vmatpush2.bf16.msra.mxu0 %v7428
    %7492 = vmatprep.subr.bf16.mxu0 %v7427
    %7493 = vmatpush2.bf16.msra.mxu0 %v7426
    %7494 = vmatprep.subr.bf16.mxu0 %v7425
    %7495 = vmatpush2.bf16.msra.mxu0 %v7424
    %7496 = vmatprep.subr.bf16.mxu0 %v7423
    %7497 = vmatpush2.bf16.msra.mxu0 %v7422
    %7498 = vmatprep.subr.bf16.mxu0 %v7421
    %7499 = vmatpush2.bf16.msra.mxu0 %v7420
    %7500 = vmatprep.mubr.bf16.mxu0 %v7305
    %7501 = vmatmul.mubr.bf16.gmra.mxu0 %v7304
    %v7502 = vpop.f32.mrf.mxu0
    %v7503 = vadd.f32 0.0, %v7502
    %v7504 = vpop.f32.mrf.mxu0
    %v7505 = vadd.f32 0.0, %v7504
    %v7506 = vpop.f32.mrf.mxu0
    %v7507 = vpop.f32.mrf.mxu0
    %7508 = vdwg.mxu0
    %v7509 = vadd.f32 %v5863, %v6068
    %v7510 = vadd.f32 %v7509, %v6273
    %v7511 = vadd.f32 %v7510, %v6478
    %v7512 = vadd.f32 %v7511, %v6683
    %v7513 = vadd.f32 %v7512, %v6888
    %v7514 = vadd.f32 %v7513, %v7093
    %v7515 = vadd.f32 %v7514, %v7298
    %v7516 = vadd.f32 %v7515, %v7503
    %v7517 = vadd.f32 %v5865, %v6070
    %v7518 = vadd.f32 %v7517, %v6275
    %v7519 = vadd.f32 %v7518, %v6480
    %v7520 = vadd.f32 %v7519, %v6685
    %v7521 = vadd.f32 %v7520, %v6890
    %v7522 = vadd.f32 %v7521, %v7095
    %v7523 = vadd.f32 %v7522, %v7300
    %v7524 = vadd.f32 %v7523, %v7505
    %v7525 = vld [vmem:[%s9] sm:$0x3]
    %v7527 = vlaneseq
    %v7528 = vshrl.u32 %v7527, 7
    %v7529 = vsub.s32 0, %v7528
    %v7530 = vrot.slane %v7525, %v7529
    %v7531 = vlaneseq
    %v7532 = vshrl.u32 %v7531, 7
    %v7533 = vsub.s32 1, %v7532
    %v7534 = vrot.slane %v7525, %v7533
    %v7537 = vadd.f32 %v7516, %v7530
    %v7538 = vadd.f32 %v7524, %v7534
    %v7539 = vmax.f32 %v7537, 0.0
    %v7540 = vmax.f32 %v7538, 0.0
    %v7541 = vpack.c.bf16 %v7539, %v7539
    %v7542 = vpack.c.bf16 %v7540, %v7540
    %v7543 = vld [vmem:[#allocation12] sm:$0xf]
    %v7544 = vld [vmem:[#allocation12 + $0x4] sm:$0xf]
    %v7545 = vld [vmem:[#allocation12 + $0x8] sm:$0xf]
    %v7546 = vld [vmem:[#allocation12 + $0xc] sm:$0xf]
    %v7547 = vld [vmem:[#allocation12 + $0x10] sm:$0xf]
    %v7548 = vld [vmem:[#allocation12 + $0x14] sm:$0xf]
    %v7549 = vld [vmem:[#allocation12 + $0x18] sm:$0xf]
    %v7550 = vld [vmem:[#allocation12 + $0x1c] sm:$0xf]
    %v7551 = vld [vmem:[#allocation12 + $0x20] sm:$0xf]
    %v7561 = vunpack.c.l.b16 %v7543
    %v7562 = vunpack.c.l.b16 %v7544
    %v7563 = vunpack.c.l.b16 %v7545
    %v7564 = vunpack.c.l.b16 %v7546
    %v7565 = vunpack.c.l.b16 %v7547
    %v7566 = vunpack.c.l.b16 %v7548
    %v7567 = vunpack.c.l.b16 %v7549
    %v7568 = vunpack.c.l.b16 %v7550
    %v7569 = vunpack.c.l.b16 %v7551
    %v7570 = vpack.c.b16 %v7562, %v7561
    %v7571 = vpack.c.b16 %v7564, %v7563
    %v7572 = vpack.c.b16 %v7566, %v7565
    %v7573 = vpack.c.b16 %v7568, %v7567
    %v7574 = vpack.c.b16 %v7569, %v7569
    %vm7575 = vcmask 64512
    %v7577 = vsel %vm7575, %v7570, 0
    %v7580 = vsel %vm7575, %v7571, 0
    %v7583 = vsel %vm7575, %v7572, 0
    %v7586 = vsel %vm7575, %v7573, 0
    %v7589 = vsel %vm7575, %v7574, 0
    %vm7591 = vcmask 1043456
    %v7593 = vsel %vm7591, %v7541, 0
    %v7596 = vsel %vm7591, %v7542, 0
    %7598 = vmatprep.subr.bf16.mxu0 0
    %7599 = vmatpush1.bf16.msra.mxu0 0
    %7600 = vmatprep.subr.bf16.mxu0 0
    %7601 = vmatpush1.bf16.msra.mxu0 0
    %7602 = vmatprep.subr.bf16.mxu0 0
    %7603 = vmatpush1.bf16.msra.mxu0 0
    %7604 = vmatprep.subr.bf16.mxu0 0
    %7605 = vmatpush1.bf16.msra.mxu0 0
    %7606 = vmatprep.subr.bf16.mxu0 0
    %7607 = vmatpush1.bf16.msra.mxu0 0
    %7608 = vmatprep.subr.bf16.mxu0 0
    %7609 = vmatpush1.bf16.msra.mxu0 0
    %7610 = vmatprep.subr.bf16.mxu0 0
    %7611 = vmatpush1.bf16.msra.mxu0 0
    %7612 = vmatprep.subr.bf16.mxu0 %v7596
    %7613 = vmatpush1.bf16.msra.mxu0 %v7593
    %7614 = vmatprep.subr.bf16.mxu0 0
    %7615 = vmatpush2.bf16.msra.mxu0 0
    %7616 = vmatprep.subr.bf16.mxu0 0
    %7617 = vmatpush2.bf16.msra.mxu0 0
    %7618 = vmatprep.subr.bf16.mxu0 0
    %7619 = vmatpush2.bf16.msra.mxu0 0
    %7620 = vmatprep.subr.bf16.mxu0 0
    %7621 = vmatpush2.bf16.msra.mxu0 0
    %7622 = vmatprep.subr.bf16.mxu0 0
    %7623 = vmatpush2.bf16.msra.mxu0 0
    %7624 = vmatprep.subr.bf16.mxu0 0
    %7625 = vmatpush2.bf16.msra.mxu0 0
    %7626 = vmatprep.subr.bf16.mxu0 0
    %7627 = vmatpush2.bf16.msra.mxu0 0
    %7628 = vmatprep.subr.bf16.mxu0 0
    %7629 = vmatpush2.bf16.msra.mxu0 0
    %7630 = vmatprep.mubr.bf16.mxu0 0
    %7631 = vmatmul.mubr.bf16.gmra.mxu0 %v7577
    %v7632 = vpop.f32.mrf.mxu0
    %v7633 = vadd.f32 0.0, %v7632
    %v7634 = vpop.f32.mrf.mxu0
    %v7635 = vadd.f32 0.0, %v7634
    %v7636 = vpop.f32.mrf.mxu0
    %v7637 = vadd.f32 0.0, %v7636
    %v7638 = vpop.f32.mrf.mxu0
    %v7639 = vadd.f32 0.0, %v7638
    %7640 = vmatprep.mubr.bf16.mxu0 0
    %7641 = vmatmul.mubr.bf16.gmra.mxu0 %v7580
    %v7642 = vpop.f32.mrf.mxu0
    %v7643 = vadd.f32 0.0, %v7642
    %v7644 = vpop.f32.mrf.mxu0
    %v7645 = vadd.f32 0.0, %v7644
    %v7646 = vpop.f32.mrf.mxu0
    %v7647 = vadd.f32 0.0, %v7646
    %v7648 = vpop.f32.mrf.mxu0
    %v7649 = vadd.f32 0.0, %v7648
    %7650 = vmatprep.mubr.bf16.mxu0 0
    %7651 = vmatmul.mubr.bf16.gmra.mxu0 %v7583
    %v7652 = vpop.f32.mrf.mxu0
    %v7653 = vadd.f32 0.0, %v7652
    %v7654 = vpop.f32.mrf.mxu0
    %v7655 = vadd.f32 0.0, %v7654
    %v7656 = vpop.f32.mrf.mxu0
    %v7657 = vadd.f32 0.0, %v7656
    %v7658 = vpop.f32.mrf.mxu0
    %v7659 = vadd.f32 0.0, %v7658
    %7660 = vmatprep.mubr.bf16.mxu0 0
    %7661 = vmatmul.mubr.bf16.gmra.mxu0 %v7586
    %v7662 = vpop.f32.mrf.mxu0
    %v7663 = vadd.f32 0.0, %v7662
    %v7664 = vpop.f32.mrf.mxu0
    %v7665 = vadd.f32 0.0, %v7664
    %v7666 = vpop.f32.mrf.mxu0
    %v7667 = vadd.f32 0.0, %v7666
    %v7668 = vpop.f32.mrf.mxu0
    %v7669 = vadd.f32 0.0, %v7668
    %7670 = vmatprep.mubr.bf16.mxu0 0
    %7671 = vmatmul.mubr.bf16.gmra.mxu0 %v7589
    %v7672 = vpop.f32.mrf.mxu0
    %v7673 = vadd.f32 0.0, %v7672
    %v7674 = vpop.f32.mrf.mxu0
    %v7675 = vadd.f32 0.0, %v7674
    %v7676 = vpop.f32.mrf.mxu0
    %v7677 = vpop.f32.mrf.mxu0
    %7678 = vdwg.mxu0
    %v7679 = vpack.c.bf16 %v7637, %v7633
    %v7680 = vpack.c.bf16 %v7639, %v7635
    %v7681 = vpack.c.bf16 %v7647, %v7643
    %v7682 = vpack.c.bf16 %v7649, %v7645
    %v7683 = vpack.c.bf16 %v7657, %v7653
    %v7684 = vpack.c.bf16 %v7659, %v7655
    %v7685 = vpack.c.bf16 %v7667, %v7663
    %v7686 = vpack.c.bf16 %v7669, %v7665
    %v7687 = vpack.c.bf16 %v7673, %v7673
    %v7688 = vpack.c.bf16 %v7675, %v7675
    %v7699 = vunpack.c.l.b16 %v7679
    %v7700 = vunpack.c.l.b16 %v7680
    %v7701 = vunpack.c.h.b16 %v7679
    %v7702 = vunpack.c.h.b16 %v7680
    %v7703 = vunpack.c.l.b16 %v7681
    %v7704 = vunpack.c.l.b16 %v7682
    %v7705 = vunpack.c.h.b16 %v7681
    %v7706 = vunpack.c.h.b16 %v7682
    %v7707 = vunpack.c.l.b16 %v7683
    %v7708 = vunpack.c.l.b16 %v7684
    %v7709 = vunpack.c.h.b16 %v7683
    %v7710 = vunpack.c.h.b16 %v7684
    %v7711 = vunpack.c.l.b16 %v7685
    %v7712 = vunpack.c.l.b16 %v7686
    %v7713 = vunpack.c.h.b16 %v7685
    %v7714 = vunpack.c.h.b16 %v7686
    %v7715 = vunpack.c.l.b16 %v7687
    %v7716 = vunpack.c.l.b16 %v7688
    %v7717 = vld [vmem:[#allocation13] sm:$0xff]
    %v7718 = vld [vmem:[#allocation13 + $0x8] sm:$0xff]
    %v7719 = vld [vmem:[#allocation13 + $0x10] sm:$0xff]
    %v7720 = vld [vmem:[#allocation13 + $0x18] sm:$0xff]
    %v7721 = vld [vmem:[#allocation13 + $0x20] sm:$0xff]
    %v7722 = vld [vmem:[#allocation13 + $0x28] sm:$0xff]
    %v7723 = vld [vmem:[#allocation13 + $0x30] sm:$0xff]
    %v7724 = vld [vmem:[#allocation13 + $0x38] sm:$0xff]
    %v7725 = vld [vmem:[#allocation13 + $0x40] sm:$0xff]
    %v7726 = vld [vmem:[#allocation13 + $0x48] sm:$0xff]
    %v7727 = vld [vmem:[#allocation13 + $0x50] sm:$0xff]
    %v7728 = vld [vmem:[#allocation13 + $0x58] sm:$0xff]
    %v7729 = vld [vmem:[#allocation13 + $0x60] sm:$0xff]
    %v7730 = vld [vmem:[#allocation13 + $0x68] sm:$0xff]
    %v7731 = vld [vmem:[#allocation13 + $0x70] sm:$0xff]
    %v7732 = vld [vmem:[#allocation13 + $0x78] sm:$0xff]
    %v7733 = vld [vmem:[#allocation13 + $0x80] sm:$0xff]
    %v7734 = vld [vmem:[#allocation13 + $0x88] sm:$0xff]
    %v7735 = vld [vmem:[#allocation13 + $0x90] sm:$0xff]
    %v7736 = vld [vmem:[#allocation13 + $0x98] sm:$0xff]
    %v7737 = vld [vmem:[#allocation13 + $0xa0] sm:$0xff]
    %v7738 = vld [vmem:[#allocation13 + $0xa8] sm:$0xff]
    %v7739 = vld [vmem:[#allocation13 + $0xb0] sm:$0xff]
    %v7740 = vld [vmem:[#allocation13 + $0xb8] sm:$0xff]
    %v7741 = vld [vmem:[#allocation13 + $0xc0] sm:$0xff]
    %v7742 = vld [vmem:[#allocation13 + $0xc8] sm:$0xff]
    %v7743 = vld [vmem:[#allocation13 + $0xd0] sm:$0xff]
    %v7744 = vld [vmem:[#allocation13 + $0xd8] sm:$0xff]
    %v7745 = vld [vmem:[#allocation13 + $0xe0] sm:$0xff]
    %v7746 = vld [vmem:[#allocation13 + $0xe8] sm:$0xff]
    %v7747 = vld [vmem:[#allocation13 + $0xf0] sm:$0xff]
    %v7748 = vld [vmem:[#allocation13 + $0xf8] sm:$0xff]
    %v7749 = vld [vmem:[#allocation13 + $0x100] sm:$0xff]
    %v7750 = vld [vmem:[#allocation13 + $0x108] sm:$0xff]
    %v7751 = vld [vmem:[#allocation13 + $0x110] sm:$0xff]
    %v7752 = vld [vmem:[#allocation13 + $0x118] sm:$0xff]
    %v7753 = vld [vmem:[#allocation13 + $0x120] sm:$0xff]
    %v7754 = vld [vmem:[#allocation13 + $0x128] sm:$0xff]
    %v7755 = vld [vmem:[#allocation13 + $0x130] sm:$0xff]
    %v7756 = vld [vmem:[#allocation13 + $0x138] sm:$0xff]
    %v7757 = vld [vmem:[#allocation13 + $0x140] sm:$0xff]
    %v7758 = vld [vmem:[#allocation13 + $0x148] sm:$0xff]
    %v7759 = vld [vmem:[#allocation13 + $0x150] sm:$0xff]
    %v7760 = vld [vmem:[#allocation13 + $0x158] sm:$0xff]
    %v7761 = vld [vmem:[#allocation13 + $0x160] sm:$0xff]
    %v7762 = vld [vmem:[#allocation13 + $0x168] sm:$0xff]
    %v7763 = vld [vmem:[#allocation13 + $0x170] sm:$0xff]
    %v7764 = vld [vmem:[#allocation13 + $0x178] sm:$0xff]
    %v7765 = vld [vmem:[#allocation13 + $0x180] sm:$0xff]
    %v7766 = vld [vmem:[#allocation13 + $0x188] sm:$0xff]
    %v7767 = vld [vmem:[#allocation13 + $0x190] sm:$0xff]
    %v7768 = vld [vmem:[#allocation13 + $0x198] sm:$0xff]
    %v7769 = vld [vmem:[#allocation13 + $0x1a0] sm:$0xff]
    %v7770 = vld [vmem:[#allocation13 + $0x1a8] sm:$0xff]
    %v7771 = vld [vmem:[#allocation13 + $0x1b0] sm:$0xff]
    %v7772 = vld [vmem:[#allocation13 + $0x1b8] sm:$0xff]
    %v7773 = vld [vmem:[#allocation13 + $0x1c0] sm:$0xff]
    %v7774 = vld [vmem:[#allocation13 + $0x1c8] sm:$0xff]
    %v7775 = vld [vmem:[#allocation13 + $0x1d0] sm:$0xff]
    %v7776 = vld [vmem:[#allocation13 + $0x1d8] sm:$0xff]
    %v7777 = vld [vmem:[#allocation13 + $0x1e0] sm:$0xff]
    %v7778 = vld [vmem:[#allocation13 + $0x1e8] sm:$0xff]
    %v7779 = vld [vmem:[#allocation13 + $0x1f0] sm:$0xff]
    %v7780 = vld [vmem:[#allocation13 + $0x1f8] sm:$0xff]
    %v7781 = vld [vmem:[#allocation13 + $0x200] sm:$0xff]
    %v7782 = vld [vmem:[#allocation13 + $0x208] sm:$0xff]
    %v7783 = vld [vmem:[#allocation13 + $0x210] sm:$0xff]
    %v7784 = vld [vmem:[#allocation13 + $0x218] sm:$0xff]
    %v7785 = vld [vmem:[#allocation13 + $0x220] sm:$0xff]
    %v7786 = vld [vmem:[#allocation13 + $0x228] sm:$0xff]
    %v7787 = vld [vmem:[#allocation13 + $0x230] sm:$0xff]
    %v7788 = vld [vmem:[#allocation13 + $0x238] sm:$0xff]
    %v7789 = vld [vmem:[#allocation13 + $0x240] sm:$0xff]
    %v7790 = vld [vmem:[#allocation13 + $0x248] sm:$0xff]
    %v7791 = vld [vmem:[#allocation13 + $0x250] sm:$0xff]
    %v7792 = vld [vmem:[#allocation13 + $0x258] sm:$0xff]
    %v7793 = vld [vmem:[#allocation13 + $0x260] sm:$0xff]
    %v7794 = vld [vmem:[#allocation13 + $0x268] sm:$0xff]
    %v7795 = vld [vmem:[#allocation13 + $0x270] sm:$0xff]
    %v7796 = vld [vmem:[#allocation13 + $0x278] sm:$0xff]
    %v7797 = vld [vmem:[#allocation13 + $0x280] sm:$0xff]
    %v7798 = vld [vmem:[#allocation13 + $0x288] sm:$0xff]
    %v7799 = vld [vmem:[#allocation13 + $0x290] sm:$0xff]
    %v7800 = vld [vmem:[#allocation13 + $0x298] sm:$0xff]
    %v7801 = vld [vmem:[#allocation13 + $0x2a0] sm:$0xff]
    %v7802 = vld [vmem:[#allocation13 + $0x2a8] sm:$0xff]
    %v7803 = vld [vmem:[#allocation13 + $0x2b0] sm:$0xff]
    %v7804 = vld [vmem:[#allocation13 + $0x2b8] sm:$0xff]
    %v7805 = vld [vmem:[#allocation13 + $0x2c0] sm:$0xff]
    %v7806 = vld [vmem:[#allocation13 + $0x2c8] sm:$0xff]
    %v7807 = vld [vmem:[#allocation13 + $0x2d0] sm:$0xff]
    %v7808 = vld [vmem:[#allocation13 + $0x2d8] sm:$0xff]
    %v7809 = vld [vmem:[#allocation13 + $0x2e0] sm:$0xff]
    %v7810 = vld [vmem:[#allocation13 + $0x2e8] sm:$0xff]
    %v7811 = vld [vmem:[#allocation13 + $0x2f0] sm:$0xff]
    %v7812 = vld [vmem:[#allocation13 + $0x2f8] sm:$0xff]
    %v7813 = vld [vmem:[#allocation13 + $0x300] sm:$0xff]
    %v7814 = vld [vmem:[#allocation13 + $0x308] sm:$0xff]
    %v7815 = vld [vmem:[#allocation13 + $0x310] sm:$0xff]
    %v7816 = vld [vmem:[#allocation13 + $0x318] sm:$0xff]
    %v7817 = vld [vmem:[#allocation13 + $0x320] sm:$0xff]
    %v7818 = vld [vmem:[#allocation13 + $0x328] sm:$0xff]
    %v7819 = vld [vmem:[#allocation13 + $0x330] sm:$0xff]
    %v7820 = vld [vmem:[#allocation13 + $0x338] sm:$0xff]
    %v7821 = vld [vmem:[#allocation13 + $0x340] sm:$0xff]
    %v7822 = vld [vmem:[#allocation13 + $0x348] sm:$0xff]
    %v7823 = vld [vmem:[#allocation13 + $0x350] sm:$0xff]
    %v7824 = vld [vmem:[#allocation13 + $0x358] sm:$0xff]
    %v7825 = vld [vmem:[#allocation13 + $0x360] sm:$0xff]
    %v7826 = vld [vmem:[#allocation13 + $0x368] sm:$0xff]
    %v7827 = vld [vmem:[#allocation13 + $0x370] sm:$0xff]
    %v7828 = vld [vmem:[#allocation13 + $0x378] sm:$0xff]
    %v7829 = vld [vmem:[#allocation13 + $0x380] sm:$0xff]
    %v7830 = vld [vmem:[#allocation13 + $0x388] sm:$0xff]
    %v7831 = vld [vmem:[#allocation13 + $0x390] sm:$0xff]
    %v7832 = vld [vmem:[#allocation13 + $0x398] sm:$0xff]
    %v7833 = vld [vmem:[#allocation13 + $0x3a0] sm:$0xff]
    %v7834 = vld [vmem:[#allocation13 + $0x3a8] sm:$0xff]
    %v7835 = vld [vmem:[#allocation13 + $0x3b0] sm:$0xff]
    %v7836 = vld [vmem:[#allocation13 + $0x3b8] sm:$0xff]
    %v7837 = vld [vmem:[#allocation13 + $0x3c0] sm:$0xff]
    %v7838 = vld [vmem:[#allocation13 + $0x3c8] sm:$0xff]
    %v7839 = vld [vmem:[#allocation13 + $0x3d0] sm:$0xff]
    %v7840 = vld [vmem:[#allocation13 + $0x3d8] sm:$0xff]
    %v7841 = vld [vmem:[#allocation13 + $0x3e0] sm:$0xff]
    %v7842 = vld [vmem:[#allocation13 + $0x3e8] sm:$0xff]
    %v7843 = vld [vmem:[#allocation13 + $0x3f0] sm:$0xff]
    %v7844 = vld [vmem:[#allocation13 + $0x3f8] sm:$0xff]
    %v7845 = vld [vmem:[#allocation13 + $0x400] sm:$0xff]
    %v7846 = vld [vmem:[#allocation13 + $0x408] sm:$0xff]
    %v7847 = vld [vmem:[#allocation13 + $0x410] sm:$0xff]
    %v7848 = vld [vmem:[#allocation13 + $0x418] sm:$0xff]
    %v7849 = vld [vmem:[#allocation13 + $0x420] sm:$0xff]
    %v7850 = vld [vmem:[#allocation13 + $0x428] sm:$0xff]
    %v7851 = vld [vmem:[#allocation13 + $0x430] sm:$0xff]
    %v7852 = vld [vmem:[#allocation13 + $0x438] sm:$0xff]
    %v7853 = vld [vmem:[#allocation13 + $0x440] sm:$0xff]
    %v7854 = vld [vmem:[#allocation13 + $0x448] sm:$0xff]
    %v7855 = vld [vmem:[#allocation13 + $0x450] sm:$0xff]
    %v7856 = vld [vmem:[#allocation13 + $0x458] sm:$0xff]
    %v7857 = vld [vmem:[#allocation13 + $0x460] sm:$0xff]
    %v7858 = vld [vmem:[#allocation13 + $0x468] sm:$0xff]
    %v7859 = vld [vmem:[#allocation13 + $0x470] sm:$0xff]
    %v7860 = vld [vmem:[#allocation13 + $0x478] sm:$0xff]
    %v7861 = vld [vmem:[#allocation13 + $0x480] sm:$0xff]
    %v7862 = vld [vmem:[#allocation13 + $0x488] sm:$0xff]
    %v7863 = vld [vmem:[#allocation13 + $0x490] sm:$0xff]
    %v7864 = vld [vmem:[#allocation13 + $0x498] sm:$0xff]
    %v7865 = vld [vmem:[#allocation13 + $0x4a0] sm:$0xff]
    %v7866 = vld [vmem:[#allocation13 + $0x4a8] sm:$0xff]
    %v7867 = vld [vmem:[#allocation13 + $0x4b0] sm:$0xff]
    %v7868 = vld [vmem:[#allocation13 + $0x4b8] sm:$0xff]
    %v7869 = vld [vmem:[#allocation13 + $0x4c0] sm:$0xff]
    %v7870 = vld [vmem:[#allocation13 + $0x4c8] sm:$0xff]
    %v7871 = vld [vmem:[#allocation13 + $0x4d0] sm:$0xff]
    %v7872 = vld [vmem:[#allocation13 + $0x4d8] sm:$0xff]
    %v7873 = vld [vmem:[#allocation13 + $0x4e0] sm:$0xff]
    %v7874 = vld [vmem:[#allocation13 + $0x4e8] sm:$0xff]
    %v7875 = vld [vmem:[#allocation13 + $0x4f0] sm:$0xff]
    %v7876 = vld [vmem:[#allocation13 + $0x4f8] sm:$0xff]
    %v7877 = vld [vmem:[#allocation13 + $0x500] sm:$0xff]
    %v7878 = vld [vmem:[#allocation13 + $0x508] sm:$0xff]
    %v7879 = vld [vmem:[#allocation13 + $0x510] sm:$0xff]
    %v7880 = vld [vmem:[#allocation13 + $0x518] sm:$0xff]
    %v7881 = vld [vmem:[#allocation13 + $0x520] sm:$0xff]
    %v7882 = vld [vmem:[#allocation13 + $0x528] sm:$0xff]
    %v7883 = vld [vmem:[#allocation13 + $0x530] sm:$0xff]
    %v7884 = vld [vmem:[#allocation13 + $0x538] sm:$0xff]
    %v7885 = vld [vmem:[#allocation13 + $0x540] sm:$0xff]
    %v7886 = vld [vmem:[#allocation13 + $0x548] sm:$0xff]
    %v7887 = vld [vmem:[#allocation13 + $0x550] sm:$0xff]
    %v7888 = vld [vmem:[#allocation13 + $0x558] sm:$0xff]
    %v7889 = vld [vmem:[#allocation13 + $0x560] sm:$0xff]
    %v7890 = vld [vmem:[#allocation13 + $0x568] sm:$0xff]
    %v7891 = vld [vmem:[#allocation13 + $0x570] sm:$0xff]
    %v7892 = vld [vmem:[#allocation13 + $0x578] sm:$0xff]
    %v7893 = vld [vmem:[#allocation13 + $0x580] sm:$0xff]
    %v7894 = vld [vmem:[#allocation13 + $0x588] sm:$0xff]
    %v7895 = vld [vmem:[#allocation13 + $0x590] sm:$0xff]
    %v7896 = vld [vmem:[#allocation13 + $0x598] sm:$0xff]
    %v7897 = vld [vmem:[#allocation13 + $0x5a0] sm:$0xff]
    %v7898 = vld [vmem:[#allocation13 + $0x5a8] sm:$0xff]
    %v7899 = vld [vmem:[#allocation13 + $0x5b0] sm:$0xff]
    %v7900 = vld [vmem:[#allocation13 + $0x5b8] sm:$0xff]
    %v7901 = vld [vmem:[#allocation13 + $0x5c0] sm:$0xff]
    %v7902 = vld [vmem:[#allocation13 + $0x5c8] sm:$0xff]
    %v7903 = vld [vmem:[#allocation13 + $0x5d0] sm:$0xff]
    %v7904 = vld [vmem:[#allocation13 + $0x5d8] sm:$0xff]
    %v7905 = vld [vmem:[#allocation13 + $0x5e0] sm:$0xff]
    %v7906 = vld [vmem:[#allocation13 + $0x5e8] sm:$0xff]
    %v7907 = vld [vmem:[#allocation13 + $0x5f0] sm:$0xff]
    %v7908 = vld [vmem:[#allocation13 + $0x5f8] sm:$0xff]
    %v7909 = vld [vmem:[#allocation13 + $0x600] sm:$0xff]
    %v7910 = vld [vmem:[#allocation13 + $0x608] sm:$0xff]
    %v7911 = vld [vmem:[#allocation13 + $0x610] sm:$0xff]
    %v7912 = vld [vmem:[#allocation13 + $0x618] sm:$0xff]
    %v7913 = vld [vmem:[#allocation13 + $0x620] sm:$0xff]
    %v7914 = vld [vmem:[#allocation13 + $0x628] sm:$0xff]
    %v7915 = vld [vmem:[#allocation13 + $0x630] sm:$0xff]
    %v7916 = vld [vmem:[#allocation13 + $0x638] sm:$0xff]
    %v7917 = vld [vmem:[#allocation13 + $0x640] sm:$0xff]
    %v7918 = vld [vmem:[#allocation13 + $0x648] sm:$0xff]
    %v7919 = vld [vmem:[#allocation13 + $0x650] sm:$0xff]
    %v7920 = vld [vmem:[#allocation13 + $0x658] sm:$0xff]
    %v7921 = vld [vmem:[#allocation13 + $0x660] sm:$0xff]
    %v7922 = vld [vmem:[#allocation13 + $0x668] sm:$0xff]
    %v7923 = vld [vmem:[#allocation13 + $0x670] sm:$0xff]
    %v7924 = vld [vmem:[#allocation13 + $0x678] sm:$0xff]
    %v7925 = vld [vmem:[#allocation13 + $0x680] sm:$0xff]
    %v7926 = vld [vmem:[#allocation13 + $0x688] sm:$0xff]
    %v7927 = vld [vmem:[#allocation13 + $0x690] sm:$0xff]
    %v7928 = vld [vmem:[#allocation13 + $0x698] sm:$0xff]
    %v7929 = vld [vmem:[#allocation13 + $0x6a0] sm:$0xff]
    %v7930 = vld [vmem:[#allocation13 + $0x6a8] sm:$0xff]
    %v7931 = vld [vmem:[#allocation13 + $0x6b0] sm:$0xff]
    %v7932 = vld [vmem:[#allocation13 + $0x6b8] sm:$0xff]
    %v7933 = vld [vmem:[#allocation13 + $0x6c0] sm:$0xff]
    %v7934 = vld [vmem:[#allocation13 + $0x6c8] sm:$0xff]
    %v7935 = vld [vmem:[#allocation13 + $0x6d0] sm:$0xff]
    %v7936 = vld [vmem:[#allocation13 + $0x6d8] sm:$0xff]
    %v7937 = vld [vmem:[#allocation13 + $0x6e0] sm:$0xff]
    %v7938 = vld [vmem:[#allocation13 + $0x6e8] sm:$0xff]
    %v7939 = vld [vmem:[#allocation13 + $0x6f0] sm:$0xff]
    %v7940 = vld [vmem:[#allocation13 + $0x6f8] sm:$0xff]
    %v7941 = vld [vmem:[#allocation13 + $0x700] sm:$0xff]
    %v7942 = vld [vmem:[#allocation13 + $0x708] sm:$0xff]
    %v7943 = vld [vmem:[#allocation13 + $0x710] sm:$0xff]
    %v7944 = vld [vmem:[#allocation13 + $0x718] sm:$0xff]
    %v7945 = vld [vmem:[#allocation13 + $0x720] sm:$0xff]
    %v7946 = vld [vmem:[#allocation13 + $0x728] sm:$0xff]
    %v7947 = vld [vmem:[#allocation13 + $0x730] sm:$0xff]
    %v7948 = vld [vmem:[#allocation13 + $0x738] sm:$0xff]
    %v7949 = vld [vmem:[#allocation13 + $0x740] sm:$0xff]
    %v7950 = vld [vmem:[#allocation13 + $0x748] sm:$0xff]
    %v7951 = vld [vmem:[#allocation13 + $0x750] sm:$0xff]
    %v7952 = vld [vmem:[#allocation13 + $0x758] sm:$0xff]
    %v7953 = vld [vmem:[#allocation13 + $0x760] sm:$0xff]
    %v7954 = vld [vmem:[#allocation13 + $0x768] sm:$0xff]
    %v7955 = vld [vmem:[#allocation13 + $0x770] sm:$0xff]
    %v7956 = vld [vmem:[#allocation13 + $0x778] sm:$0xff]
    %v7957 = vld [vmem:[#allocation13 + $0x780] sm:$0xff]
    %v7958 = vld [vmem:[#allocation13 + $0x788] sm:$0xff]
    %v7959 = vld [vmem:[#allocation13 + $0x790] sm:$0xff]
    %v7960 = vld [vmem:[#allocation13 + $0x798] sm:$0xff]
    %v7961 = vld [vmem:[#allocation13 + $0x7a0] sm:$0xff]
    %v7962 = vld [vmem:[#allocation13 + $0x7a8] sm:$0xff]
    %v7963 = vld [vmem:[#allocation13 + $0x7b0] sm:$0xff]
    %v7964 = vld [vmem:[#allocation13 + $0x7b8] sm:$0xff]
    %v7965 = vld [vmem:[#allocation13 + $0x7c0] sm:$0xff]
    %v7966 = vld [vmem:[#allocation13 + $0x7c8] sm:$0xff]
    %v7967 = vld [vmem:[#allocation13 + $0x7d0] sm:$0xff]
    %v7968 = vld [vmem:[#allocation13 + $0x7d8] sm:$0xff]
    %v7969 = vld [vmem:[#allocation13 + $0x7e0] sm:$0xff]
    %v7970 = vld [vmem:[#allocation13 + $0x7e8] sm:$0xff]
    %v7971 = vld [vmem:[#allocation13 + $0x7f0] sm:$0xff]
    %v7972 = vld [vmem:[#allocation13 + $0x7f8] sm:$0xff]
    %v7973 = vld [vmem:[#allocation13 + $0x800] sm:$0xff]
    %v7974 = vld [vmem:[#allocation13 + $0x808] sm:$0xff]
    %v7975 = vld [vmem:[#allocation13 + $0x810] sm:$0xff]
    %v7976 = vld [vmem:[#allocation13 + $0x818] sm:$0xff]
    %v7977 = vld [vmem:[#allocation13 + $0x820] sm:$0xff]
    %v7978 = vld [vmem:[#allocation13 + $0x828] sm:$0xff]
    %v7979 = vld [vmem:[#allocation13 + $0x830] sm:$0xff]
    %v7980 = vld [vmem:[#allocation13 + $0x838] sm:$0xff]
    %v7981 = vld [vmem:[#allocation13 + $0x840] sm:$0xff]
    %v7982 = vld [vmem:[#allocation13 + $0x848] sm:$0xff]
    %v7983 = vld [vmem:[#allocation13 + $0x850] sm:$0xff]
    %v7984 = vld [vmem:[#allocation13 + $0x858] sm:$0xff]
    %v7985 = vld [vmem:[#allocation13 + $0x860] sm:$0xff]
    %v7986 = vld [vmem:[#allocation13 + $0x868] sm:$0xff]
    %v7987 = vld [vmem:[#allocation13 + $0x870] sm:$0xff]
    %v7988 = vld [vmem:[#allocation13 + $0x878] sm:$0xff]
    %v7989 = vld [vmem:[#allocation13 + $0x880] sm:$0xff]
    %v7990 = vld [vmem:[#allocation13 + $0x888] sm:$0xff]
    %v7991 = vld [vmem:[#allocation13 + $0x890] sm:$0xff]
    %v7992 = vld [vmem:[#allocation13 + $0x898] sm:$0xff]
    %v7993 = vld [vmem:[#allocation13 + $0x8a0] sm:$0xff]
    %v7994 = vld [vmem:[#allocation13 + $0x8a8] sm:$0xff]
    %v7995 = vld [vmem:[#allocation13 + $0x8b0] sm:$0xff]
    %v7996 = vld [vmem:[#allocation13 + $0x8b8] sm:$0xff]
    %v7997 = vld [vmem:[#allocation13 + $0x8c0] sm:$0xff]
    %v7998 = vld [vmem:[#allocation13 + $0x8c8] sm:$0xff]
    %v7999 = vld [vmem:[#allocation13 + $0x8d0] sm:$0xff]
    %v8000 = vld [vmem:[#allocation13 + $0x8d8] sm:$0xff]
    %v8001 = vld [vmem:[#allocation13 + $0x8e0] sm:$0xff]
    %v8002 = vld [vmem:[#allocation13 + $0x8e8] sm:$0xff]
    %v8003 = vld [vmem:[#allocation13 + $0x8f0] sm:$0xff]
    %v8004 = vld [vmem:[#allocation13 + $0x8f8] sm:$0xff]
    %v8005 = vpack.c.b16 %v7699, %v7699
    %v8006 = vpack.c.b16 %v7700, %v7700
    %v8041 = vunpack.c.l.b16 %v7717
    %v8042 = vunpack.c.h.b16 %v7717
    %v8043 = vunpack.c.l.b16 %v7718
    %v8044 = vunpack.c.h.b16 %v7718
    %v8045 = vunpack.c.l.b16 %v7719
    %v8046 = vunpack.c.h.b16 %v7719
    %v8047 = vunpack.c.l.b16 %v7720
    %v8048 = vunpack.c.h.b16 %v7720
    %v8049 = vunpack.c.l.b16 %v7721
    %v8050 = vunpack.c.h.b16 %v7721
    %v8051 = vunpack.c.l.b16 %v7722
    %v8052 = vunpack.c.h.b16 %v7722
    %v8053 = vunpack.c.l.b16 %v7723
    %v8054 = vunpack.c.h.b16 %v7723
    %v8055 = vunpack.c.l.b16 %v7724
    %v8056 = vunpack.c.h.b16 %v7724
    %v8057 = vunpack.c.l.b16 %v7725
    %v8058 = vunpack.c.h.b16 %v7725
    %v8059 = vunpack.c.l.b16 %v7726
    %v8060 = vunpack.c.h.b16 %v7726
    %v8061 = vunpack.c.l.b16 %v7727
    %v8062 = vunpack.c.h.b16 %v7727
    %v8063 = vunpack.c.l.b16 %v7728
    %v8064 = vunpack.c.h.b16 %v7728
    %v8065 = vunpack.c.l.b16 %v7729
    %v8066 = vunpack.c.h.b16 %v7729
    %v8067 = vunpack.c.l.b16 %v7730
    %v8068 = vunpack.c.h.b16 %v7730
    %v8069 = vunpack.c.l.b16 %v7731
    %v8070 = vunpack.c.h.b16 %v7731
    %v8071 = vunpack.c.l.b16 %v7732
    %v8072 = vunpack.c.h.b16 %v7732
    %v8073 = vunpack.c.l.b16 %v7733
    %v8074 = vunpack.c.h.b16 %v7733
    %v8075 = vunpack.c.l.b16 %v7734
    %v8076 = vunpack.c.h.b16 %v7734
    %v8077 = vunpack.c.l.b16 %v7735
    %v8078 = vunpack.c.h.b16 %v7735
    %v8079 = vunpack.c.l.b16 %v7736
    %v8080 = vunpack.c.h.b16 %v7736
    %v8081 = vunpack.c.l.b16 %v7737
    %v8082 = vunpack.c.h.b16 %v7737
    %v8083 = vunpack.c.l.b16 %v7738
    %v8084 = vunpack.c.h.b16 %v7738
    %v8085 = vunpack.c.l.b16 %v7739
    %v8086 = vunpack.c.h.b16 %v7739
    %v8087 = vunpack.c.l.b16 %v7740
    %v8088 = vunpack.c.h.b16 %v7740
    %v8089 = vunpack.c.l.b16 %v7741
    %v8090 = vunpack.c.h.b16 %v7741
    %v8091 = vunpack.c.l.b16 %v7742
    %v8092 = vunpack.c.h.b16 %v7742
    %v8093 = vunpack.c.l.b16 %v7743
    %v8094 = vunpack.c.h.b16 %v7743
    %v8095 = vunpack.c.l.b16 %v7744
    %v8096 = vunpack.c.h.b16 %v7744
    %v8097 = vunpack.c.l.b16 %v7745
    %v8098 = vunpack.c.h.b16 %v7745
    %v8099 = vunpack.c.l.b16 %v7746
    %v8100 = vunpack.c.h.b16 %v7746
    %v8101 = vunpack.c.l.b16 %v7747
    %v8102 = vunpack.c.h.b16 %v7747
    %v8103 = vunpack.c.l.b16 %v7748
    %v8104 = vunpack.c.h.b16 %v7748
    %v8105 = vpack.c.b16 %v8043, %v8041
    %v8106 = vpack.c.b16 %v8044, %v8042
    %v8107 = vpack.c.b16 %v8047, %v8045
    %v8108 = vpack.c.b16 %v8048, %v8046
    %v8109 = vpack.c.b16 %v8051, %v8049
    %v8110 = vpack.c.b16 %v8052, %v8050
    %v8111 = vpack.c.b16 %v8055, %v8053
    %v8112 = vpack.c.b16 %v8056, %v8054
    %v8113 = vpack.c.b16 %v8059, %v8057
    %v8114 = vpack.c.b16 %v8060, %v8058
    %v8115 = vpack.c.b16 %v8063, %v8061
    %v8116 = vpack.c.b16 %v8064, %v8062
    %v8117 = vpack.c.b16 %v8067, %v8065
    %v8118 = vpack.c.b16 %v8068, %v8066
    %v8119 = vpack.c.b16 %v8071, %v8069
    %v8120 = vpack.c.b16 %v8072, %v8070
    %v8121 = vpack.c.b16 %v8075, %v8073
    %v8122 = vpack.c.b16 %v8076, %v8074
    %v8123 = vpack.c.b16 %v8079, %v8077
    %v8124 = vpack.c.b16 %v8080, %v8078
    %v8125 = vpack.c.b16 %v8083, %v8081
    %v8126 = vpack.c.b16 %v8084, %v8082
    %v8127 = vpack.c.b16 %v8087, %v8085
    %v8128 = vpack.c.b16 %v8088, %v8086
    %v8129 = vpack.c.b16 %v8091, %v8089
    %v8130 = vpack.c.b16 %v8092, %v8090
    %v8131 = vpack.c.b16 %v8095, %v8093
    %v8132 = vpack.c.b16 %v8096, %v8094
    %v8133 = vpack.c.b16 %v8099, %v8097
    %v8134 = vpack.c.b16 %v8100, %v8098
    %v8135 = vpack.c.b16 %v8103, %v8101
    %v8136 = vpack.c.b16 %v8104, %v8102
    %8169 = vmatprep.subr.bf16.mxu0 %v8120
    %8170 = vmatpush1.bf16.msra.mxu0 %v8119
    %8171 = vmatprep.subr.bf16.mxu0 %v8118
    %8172 = vmatpush1.bf16.msra.mxu0 %v8117
    %8173 = vmatprep.subr.bf16.mxu0 %v8116
    %8174 = vmatpush1.bf16.msra.mxu0 %v8115
    %8175 = vmatprep.subr.bf16.mxu0 %v8114
    %8176 = vmatpush1.bf16.msra.mxu0 %v8113
    %8177 = vmatprep.subr.bf16.mxu0 %v8112
    %8178 = vmatpush1.bf16.msra.mxu0 %v8111
    %8179 = vmatprep.subr.bf16.mxu0 %v8110
    %8180 = vmatpush1.bf16.msra.mxu0 %v8109
    %8181 = vmatprep.subr.bf16.mxu0 %v8108
    %8182 = vmatpush1.bf16.msra.mxu0 %v8107
    %8183 = vmatprep.subr.bf16.mxu0 %v8106
    %8184 = vmatpush1.bf16.msra.mxu0 %v8105
    %8185 = vmatprep.subr.bf16.mxu0 %v8136
    %8186 = vmatpush2.bf16.msra.mxu0 %v8135
    %8187 = vmatprep.subr.bf16.mxu0 %v8134
    %8188 = vmatpush2.bf16.msra.mxu0 %v8133
    %8189 = vmatprep.subr.bf16.mxu0 %v8132
    %8190 = vmatpush2.bf16.msra.mxu0 %v8131
    %8191 = vmatprep.subr.bf16.mxu0 %v8130
    %8192 = vmatpush2.bf16.msra.mxu0 %v8129
    %8193 = vmatprep.subr.bf16.mxu0 %v8128
    %8194 = vmatpush2.bf16.msra.mxu0 %v8127
    %8195 = vmatprep.subr.bf16.mxu0 %v8126
    %8196 = vmatpush2.bf16.msra.mxu0 %v8125
    %8197 = vmatprep.subr.bf16.mxu0 %v8124
    %8198 = vmatpush2.bf16.msra.mxu0 %v8123
    %8199 = vmatprep.subr.bf16.mxu0 %v8122
    %8200 = vmatpush2.bf16.msra.mxu0 %v8121
    %8201 = vmatprep.mubr.bf16.mxu0 %v8006
    %8202 = vmatmul.mubr.bf16.gmra.mxu0 %v8005
    %v8203 = vpop.f32.mrf.mxu0
    %v8204 = vadd.f32 0.0, %v8203
    %v8205 = vpop.f32.mrf.mxu0
    %v8206 = vadd.f32 0.0, %v8205
    %v8207 = vpop.f32.mrf.mxu0
    %v8208 = vpop.f32.mrf.mxu0
    %8209 = vdwg.mxu0
    %v8210 = vpack.c.b16 %v7701, %v7701
    %v8211 = vpack.c.b16 %v7702, %v7702
    %v8246 = vunpack.c.l.b16 %v7749
    %v8247 = vunpack.c.h.b16 %v7749
    %v8248 = vunpack.c.l.b16 %v7750
    %v8249 = vunpack.c.h.b16 %v7750
    %v8250 = vunpack.c.l.b16 %v7751
    %v8251 = vunpack.c.h.b16 %v7751
    %v8252 = vunpack.c.l.b16 %v7752
    %v8253 = vunpack.c.h.b16 %v7752
    %v8254 = vunpack.c.l.b16 %v7753
    %v8255 = vunpack.c.h.b16 %v7753
    %v8256 = vunpack.c.l.b16 %v7754
    %v8257 = vunpack.c.h.b16 %v7754
    %v8258 = vunpack.c.l.b16 %v7755
    %v8259 = vunpack.c.h.b16 %v7755
    %v8260 = vunpack.c.l.b16 %v7756
    %v8261 = vunpack.c.h.b16 %v7756
    %v8262 = vunpack.c.l.b16 %v7757
    %v8263 = vunpack.c.h.b16 %v7757
    %v8264 = vunpack.c.l.b16 %v7758
    %v8265 = vunpack.c.h.b16 %v7758
    %v8266 = vunpack.c.l.b16 %v7759
    %v8267 = vunpack.c.h.b16 %v7759
    %v8268 = vunpack.c.l.b16 %v7760
    %v8269 = vunpack.c.h.b16 %v7760
    %v8270 = vunpack.c.l.b16 %v7761
    %v8271 = vunpack.c.h.b16 %v7761
    %v8272 = vunpack.c.l.b16 %v7762
    %v8273 = vunpack.c.h.b16 %v7762
    %v8274 = vunpack.c.l.b16 %v7763
    %v8275 = vunpack.c.h.b16 %v7763
    %v8276 = vunpack.c.l.b16 %v7764
    %v8277 = vunpack.c.h.b16 %v7764
    %v8278 = vunpack.c.l.b16 %v7765
    %v8279 = vunpack.c.h.b16 %v7765
    %v8280 = vunpack.c.l.b16 %v7766
    %v8281 = vunpack.c.h.b16 %v7766
    %v8282 = vunpack.c.l.b16 %v7767
    %v8283 = vunpack.c.h.b16 %v7767
    %v8284 = vunpack.c.l.b16 %v7768
    %v8285 = vunpack.c.h.b16 %v7768
    %v8286 = vunpack.c.l.b16 %v7769
    %v8287 = vunpack.c.h.b16 %v7769
    %v8288 = vunpack.c.l.b16 %v7770
    %v8289 = vunpack.c.h.b16 %v7770
    %v8290 = vunpack.c.l.b16 %v7771
    %v8291 = vunpack.c.h.b16 %v7771
    %v8292 = vunpack.c.l.b16 %v7772
    %v8293 = vunpack.c.h.b16 %v7772
    %v8294 = vunpack.c.l.b16 %v7773
    %v8295 = vunpack.c.h.b16 %v7773
    %v8296 = vunpack.c.l.b16 %v7774
    %v8297 = vunpack.c.h.b16 %v7774
    %v8298 = vunpack.c.l.b16 %v7775
    %v8299 = vunpack.c.h.b16 %v7775
    %v8300 = vunpack.c.l.b16 %v7776
    %v8301 = vunpack.c.h.b16 %v7776
    %v8302 = vunpack.c.l.b16 %v7777
    %v8303 = vunpack.c.h.b16 %v7777
    %v8304 = vunpack.c.l.b16 %v7778
    %v8305 = vunpack.c.h.b16 %v7778
    %v8306 = vunpack.c.l.b16 %v7779
    %v8307 = vunpack.c.h.b16 %v7779
    %v8308 = vunpack.c.l.b16 %v7780
    %v8309 = vunpack.c.h.b16 %v7780
    %v8310 = vpack.c.b16 %v8248, %v8246
    %v8311 = vpack.c.b16 %v8249, %v8247
    %v8312 = vpack.c.b16 %v8252, %v8250
    %v8313 = vpack.c.b16 %v8253, %v8251
    %v8314 = vpack.c.b16 %v8256, %v8254
    %v8315 = vpack.c.b16 %v8257, %v8255
    %v8316 = vpack.c.b16 %v8260, %v8258
    %v8317 = vpack.c.b16 %v8261, %v8259
    %v8318 = vpack.c.b16 %v8264, %v8262
    %v8319 = vpack.c.b16 %v8265, %v8263
    %v8320 = vpack.c.b16 %v8268, %v8266
    %v8321 = vpack.c.b16 %v8269, %v8267
    %v8322 = vpack.c.b16 %v8272, %v8270
    %v8323 = vpack.c.b16 %v8273, %v8271
    %v8324 = vpack.c.b16 %v8276, %v8274
    %v8325 = vpack.c.b16 %v8277, %v8275
    %v8326 = vpack.c.b16 %v8280, %v8278
    %v8327 = vpack.c.b16 %v8281, %v8279
    %v8328 = vpack.c.b16 %v8284, %v8282
    %v8329 = vpack.c.b16 %v8285, %v8283
    %v8330 = vpack.c.b16 %v8288, %v8286
    %v8331 = vpack.c.b16 %v8289, %v8287
    %v8332 = vpack.c.b16 %v8292, %v8290
    %v8333 = vpack.c.b16 %v8293, %v8291
    %v8334 = vpack.c.b16 %v8296, %v8294
    %v8335 = vpack.c.b16 %v8297, %v8295
    %v8336 = vpack.c.b16 %v8300, %v8298
    %v8337 = vpack.c.b16 %v8301, %v8299
    %v8338 = vpack.c.b16 %v8304, %v8302
    %v8339 = vpack.c.b16 %v8305, %v8303
    %v8340 = vpack.c.b16 %v8308, %v8306
    %v8341 = vpack.c.b16 %v8309, %v8307
    %8374 = vmatprep.subr.bf16.mxu0 %v8325
    %8375 = vmatpush1.bf16.msra.mxu0 %v8324
    %8376 = vmatprep.subr.bf16.mxu0 %v8323
    %8377 = vmatpush1.bf16.msra.mxu0 %v8322
    %8378 = vmatprep.subr.bf16.mxu0 %v8321
    %8379 = vmatpush1.bf16.msra.mxu0 %v8320
    %8380 = vmatprep.subr.bf16.mxu0 %v8319
    %8381 = vmatpush1.bf16.msra.mxu0 %v8318
    %8382 = vmatprep.subr.bf16.mxu0 %v8317
    %8383 = vmatpush1.bf16.msra.mxu0 %v8316
    %8384 = vmatprep.subr.bf16.mxu0 %v8315
    %8385 = vmatpush1.bf16.msra.mxu0 %v8314
    %8386 = vmatprep.subr.bf16.mxu0 %v8313
    %8387 = vmatpush1.bf16.msra.mxu0 %v8312
    %8388 = vmatprep.subr.bf16.mxu0 %v8311
    %8389 = vmatpush1.bf16.msra.mxu0 %v8310
    %8390 = vmatprep.subr.bf16.mxu0 %v8341
    %8391 = vmatpush2.bf16.msra.mxu0 %v8340
    %8392 = vmatprep.subr.bf16.mxu0 %v8339
    %8393 = vmatpush2.bf16.msra.mxu0 %v8338
    %8394 = vmatprep.subr.bf16.mxu0 %v8337
    %8395 = vmatpush2.bf16.msra.mxu0 %v8336
    %8396 = vmatprep.subr.bf16.mxu0 %v8335
    %8397 = vmatpush2.bf16.msra.mxu0 %v8334
    %8398 = vmatprep.subr.bf16.mxu0 %v8333
    %8399 = vmatpush2.bf16.msra.mxu0 %v8332
    %8400 = vmatprep.subr.bf16.mxu0 %v8331
    %8401 = vmatpush2.bf16.msra.mxu0 %v8330
    %8402 = vmatprep.subr.bf16.mxu0 %v8329
    %8403 = vmatpush2.bf16.msra.mxu0 %v8328
    %8404 = vmatprep.subr.bf16.mxu0 %v8327
    %8405 = vmatpush2.bf16.msra.mxu0 %v8326
    %8406 = vmatprep.mubr.bf16.mxu0 %v8211
    %8407 = vmatmul.mubr.bf16.gmra.mxu0 %v8210
    %v8408 = vpop.f32.mrf.mxu0
    %v8409 = vadd.f32 0.0, %v8408
    %v8410 = vpop.f32.mrf.mxu0
    %v8411 = vadd.f32 0.0, %v8410
    %v8412 = vpop.f32.mrf.mxu0
    %v8413 = vpop.f32.mrf.mxu0
    %8414 = vdwg.mxu0
    %v8415 = vpack.c.b16 %v7703, %v7703
    %v8416 = vpack.c.b16 %v7704, %v7704
    %v8451 = vunpack.c.l.b16 %v7781
    %v8452 = vunpack.c.h.b16 %v7781
    %v8453 = vunpack.c.l.b16 %v7782
    %v8454 = vunpack.c.h.b16 %v7782
    %v8455 = vunpack.c.l.b16 %v7783
    %v8456 = vunpack.c.h.b16 %v7783
    %v8457 = vunpack.c.l.b16 %v7784
    %v8458 = vunpack.c.h.b16 %v7784
    %v8459 = vunpack.c.l.b16 %v7785
    %v8460 = vunpack.c.h.b16 %v7785
    %v8461 = vunpack.c.l.b16 %v7786
    %v8462 = vunpack.c.h.b16 %v7786
    %v8463 = vunpack.c.l.b16 %v7787
    %v8464 = vunpack.c.h.b16 %v7787
    %v8465 = vunpack.c.l.b16 %v7788
    %v8466 = vunpack.c.h.b16 %v7788
    %v8467 = vunpack.c.l.b16 %v7789
    %v8468 = vunpack.c.h.b16 %v7789
    %v8469 = vunpack.c.l.b16 %v7790
    %v8470 = vunpack.c.h.b16 %v7790
    %v8471 = vunpack.c.l.b16 %v7791
    %v8472 = vunpack.c.h.b16 %v7791
    %v8473 = vunpack.c.l.b16 %v7792
    %v8474 = vunpack.c.h.b16 %v7792
    %v8475 = vunpack.c.l.b16 %v7793
    %v8476 = vunpack.c.h.b16 %v7793
    %v8477 = vunpack.c.l.b16 %v7794
    %v8478 = vunpack.c.h.b16 %v7794
    %v8479 = vunpack.c.l.b16 %v7795
    %v8480 = vunpack.c.h.b16 %v7795
    %v8481 = vunpack.c.l.b16 %v7796
    %v8482 = vunpack.c.h.b16 %v7796
    %v8483 = vunpack.c.l.b16 %v7797
    %v8484 = vunpack.c.h.b16 %v7797
    %v8485 = vunpack.c.l.b16 %v7798
    %v8486 = vunpack.c.h.b16 %v7798
    %v8487 = vunpack.c.l.b16 %v7799
    %v8488 = vunpack.c.h.b16 %v7799
    %v8489 = vunpack.c.l.b16 %v7800
    %v8490 = vunpack.c.h.b16 %v7800
    %v8491 = vunpack.c.l.b16 %v7801
    %v8492 = vunpack.c.h.b16 %v7801
    %v8493 = vunpack.c.l.b16 %v7802
    %v8494 = vunpack.c.h.b16 %v7802
    %v8495 = vunpack.c.l.b16 %v7803
    %v8496 = vunpack.c.h.b16 %v7803
    %v8497 = vunpack.c.l.b16 %v7804
    %v8498 = vunpack.c.h.b16 %v7804
    %v8499 = vunpack.c.l.b16 %v7805
    %v8500 = vunpack.c.h.b16 %v7805
    %v8501 = vunpack.c.l.b16 %v7806
    %v8502 = vunpack.c.h.b16 %v7806
    %v8503 = vunpack.c.l.b16 %v7807
    %v8504 = vunpack.c.h.b16 %v7807
    %v8505 = vunpack.c.l.b16 %v7808
    %v8506 = vunpack.c.h.b16 %v7808
    %v8507 = vunpack.c.l.b16 %v7809
    %v8508 = vunpack.c.h.b16 %v7809
    %v8509 = vunpack.c.l.b16 %v7810
    %v8510 = vunpack.c.h.b16 %v7810
    %v8511 = vunpack.c.l.b16 %v7811
    %v8512 = vunpack.c.h.b16 %v7811
    %v8513 = vunpack.c.l.b16 %v7812
    %v8514 = vunpack.c.h.b16 %v7812
    %v8515 = vpack.c.b16 %v8453, %v8451
    %v8516 = vpack.c.b16 %v8454, %v8452
    %v8517 = vpack.c.b16 %v8457, %v8455
    %v8518 = vpack.c.b16 %v8458, %v8456
    %v8519 = vpack.c.b16 %v8461, %v8459
    %v8520 = vpack.c.b16 %v8462, %v8460
    %v8521 = vpack.c.b16 %v8465, %v8463
    %v8522 = vpack.c.b16 %v8466, %v8464
    %v8523 = vpack.c.b16 %v8469, %v8467
    %v8524 = vpack.c.b16 %v8470, %v8468
    %v8525 = vpack.c.b16 %v8473, %v8471
    %v8526 = vpack.c.b16 %v8474, %v8472
    %v8527 = vpack.c.b16 %v8477, %v8475
    %v8528 = vpack.c.b16 %v8478, %v8476
    %v8529 = vpack.c.b16 %v8481, %v8479
    %v8530 = vpack.c.b16 %v8482, %v8480
    %v8531 = vpack.c.b16 %v8485, %v8483
    %v8532 = vpack.c.b16 %v8486, %v8484
    %v8533 = vpack.c.b16 %v8489, %v8487
    %v8534 = vpack.c.b16 %v8490, %v8488
    %v8535 = vpack.c.b16 %v8493, %v8491
    %v8536 = vpack.c.b16 %v8494, %v8492
    %v8537 = vpack.c.b16 %v8497, %v8495
    %v8538 = vpack.c.b16 %v8498, %v8496
    %v8539 = vpack.c.b16 %v8501, %v8499
    %v8540 = vpack.c.b16 %v8502, %v8500
    %v8541 = vpack.c.b16 %v8505, %v8503
    %v8542 = vpack.c.b16 %v8506, %v8504
    %v8543 = vpack.c.b16 %v8509, %v8507
    %v8544 = vpack.c.b16 %v8510, %v8508
    %v8545 = vpack.c.b16 %v8513, %v8511
    %v8546 = vpack.c.b16 %v8514, %v8512
    %8579 = vmatprep.subr.bf16.mxu0 %v8530
    %8580 = vmatpush1.bf16.msra.mxu0 %v8529
    %8581 = vmatprep.subr.bf16.mxu0 %v8528
    %8582 = vmatpush1.bf16.msra.mxu0 %v8527
    %8583 = vmatprep.subr.bf16.mxu0 %v8526
    %8584 = vmatpush1.bf16.msra.mxu0 %v8525
    %8585 = vmatprep.subr.bf16.mxu0 %v8524
    %8586 = vmatpush1.bf16.msra.mxu0 %v8523
    %8587 = vmatprep.subr.bf16.mxu0 %v8522
    %8588 = vmatpush1.bf16.msra.mxu0 %v8521
    %8589 = vmatprep.subr.bf16.mxu0 %v8520
    %8590 = vmatpush1.bf16.msra.mxu0 %v8519
    %8591 = vmatprep.subr.bf16.mxu0 %v8518
    %8592 = vmatpush1.bf16.msra.mxu0 %v8517
    %8593 = vmatprep.subr.bf16.mxu0 %v8516
    %8594 = vmatpush1.bf16.msra.mxu0 %v8515
    %8595 = vmatprep.subr.bf16.mxu0 %v8546
    %8596 = vmatpush2.bf16.msra.mxu0 %v8545
    %8597 = vmatprep.subr.bf16.mxu0 %v8544
    %8598 = vmatpush2.bf16.msra.mxu0 %v8543
    %8599 = vmatprep.subr.bf16.mxu0 %v8542
    %8600 = vmatpush2.bf16.msra.mxu0 %v8541
    %8601 = vmatprep.subr.bf16.mxu0 %v8540
    %8602 = vmatpush2.bf16.msra.mxu0 %v8539
    %8603 = vmatprep.subr.bf16.mxu0 %v8538
    %8604 = vmatpush2.bf16.msra.mxu0 %v8537
    %8605 = vmatprep.subr.bf16.mxu0 %v8536
    %8606 = vmatpush2.bf16.msra.mxu0 %v8535
    %8607 = vmatprep.subr.bf16.mxu0 %v8534
    %8608 = vmatpush2.bf16.msra.mxu0 %v8533
    %8609 = vmatprep.subr.bf16.mxu0 %v8532
    %8610 = vmatpush2.bf16.msra.mxu0 %v8531
    %8611 = vmatprep.mubr.bf16.mxu0 %v8416
    %8612 = vmatmul.mubr.bf16.gmra.mxu0 %v8415
    %v8613 = vpop.f32.mrf.mxu0
    %v8614 = vadd.f32 0.0, %v8613
    %v8615 = vpop.f32.mrf.mxu0
    %v8616 = vadd.f32 0.0, %v8615
    %v8617 = vpop.f32.mrf.mxu0
    %v8618 = vpop.f32.mrf.mxu0
    %8619 = vdwg.mxu0
    %v8620 = vpack.c.b16 %v7705, %v7705
    %v8621 = vpack.c.b16 %v7706, %v7706
    %v8656 = vunpack.c.l.b16 %v7813
    %v8657 = vunpack.c.h.b16 %v7813
    %v8658 = vunpack.c.l.b16 %v7814
    %v8659 = vunpack.c.h.b16 %v7814
    %v8660 = vunpack.c.l.b16 %v7815
    %v8661 = vunpack.c.h.b16 %v7815
    %v8662 = vunpack.c.l.b16 %v7816
    %v8663 = vunpack.c.h.b16 %v7816
    %v8664 = vunpack.c.l.b16 %v7817
    %v8665 = vunpack.c.h.b16 %v7817
    %v8666 = vunpack.c.l.b16 %v7818
    %v8667 = vunpack.c.h.b16 %v7818
    %v8668 = vunpack.c.l.b16 %v7819
    %v8669 = vunpack.c.h.b16 %v7819
    %v8670 = vunpack.c.l.b16 %v7820
    %v8671 = vunpack.c.h.b16 %v7820
    %v8672 = vunpack.c.l.b16 %v7821
    %v8673 = vunpack.c.h.b16 %v7821
    %v8674 = vunpack.c.l.b16 %v7822
    %v8675 = vunpack.c.h.b16 %v7822
    %v8676 = vunpack.c.l.b16 %v7823
    %v8677 = vunpack.c.h.b16 %v7823
    %v8678 = vunpack.c.l.b16 %v7824
    %v8679 = vunpack.c.h.b16 %v7824
    %v8680 = vunpack.c.l.b16 %v7825
    %v8681 = vunpack.c.h.b16 %v7825
    %v8682 = vunpack.c.l.b16 %v7826
    %v8683 = vunpack.c.h.b16 %v7826
    %v8684 = vunpack.c.l.b16 %v7827
    %v8685 = vunpack.c.h.b16 %v7827
    %v8686 = vunpack.c.l.b16 %v7828
    %v8687 = vunpack.c.h.b16 %v7828
    %v8688 = vunpack.c.l.b16 %v7829
    %v8689 = vunpack.c.h.b16 %v7829
    %v8690 = vunpack.c.l.b16 %v7830
    %v8691 = vunpack.c.h.b16 %v7830
    %v8692 = vunpack.c.l.b16 %v7831
    %v8693 = vunpack.c.h.b16 %v7831
    %v8694 = vunpack.c.l.b16 %v7832
    %v8695 = vunpack.c.h.b16 %v7832
    %v8696 = vunpack.c.l.b16 %v7833
    %v8697 = vunpack.c.h.b16 %v7833
    %v8698 = vunpack.c.l.b16 %v7834
    %v8699 = vunpack.c.h.b16 %v7834
    %v8700 = vunpack.c.l.b16 %v7835
    %v8701 = vunpack.c.h.b16 %v7835
    %v8702 = vunpack.c.l.b16 %v7836
    %v8703 = vunpack.c.h.b16 %v7836
    %v8704 = vunpack.c.l.b16 %v7837
    %v8705 = vunpack.c.h.b16 %v7837
    %v8706 = vunpack.c.l.b16 %v7838
    %v8707 = vunpack.c.h.b16 %v7838
    %v8708 = vunpack.c.l.b16 %v7839
    %v8709 = vunpack.c.h.b16 %v7839
    %v8710 = vunpack.c.l.b16 %v7840
    %v8711 = vunpack.c.h.b16 %v7840
    %v8712 = vunpack.c.l.b16 %v7841
    %v8713 = vunpack.c.h.b16 %v7841
    %v8714 = vunpack.c.l.b16 %v7842
    %v8715 = vunpack.c.h.b16 %v7842
    %v8716 = vunpack.c.l.b16 %v7843
    %v8717 = vunpack.c.h.b16 %v7843
    %v8718 = vunpack.c.l.b16 %v7844
    %v8719 = vunpack.c.h.b16 %v7844
    %v8720 = vpack.c.b16 %v8658, %v8656
    %v8721 = vpack.c.b16 %v8659, %v8657
    %v8722 = vpack.c.b16 %v8662, %v8660
    %v8723 = vpack.c.b16 %v8663, %v8661
    %v8724 = vpack.c.b16 %v8666, %v8664
    %v8725 = vpack.c.b16 %v8667, %v8665
    %v8726 = vpack.c.b16 %v8670, %v8668
    %v8727 = vpack.c.b16 %v8671, %v8669
    %v8728 = vpack.c.b16 %v8674, %v8672
    %v8729 = vpack.c.b16 %v8675, %v8673
    %v8730 = vpack.c.b16 %v8678, %v8676
    %v8731 = vpack.c.b16 %v8679, %v8677
    %v8732 = vpack.c.b16 %v8682, %v8680
    %v8733 = vpack.c.b16 %v8683, %v8681
    %v8734 = vpack.c.b16 %v8686, %v8684
    %v8735 = vpack.c.b16 %v8687, %v8685
    %v8736 = vpack.c.b16 %v8690, %v8688
    %v8737 = vpack.c.b16 %v8691, %v8689
    %v8738 = vpack.c.b16 %v8694, %v8692
    %v8739 = vpack.c.b16 %v8695, %v8693
    %v8740 = vpack.c.b16 %v8698, %v8696
    %v8741 = vpack.c.b16 %v8699, %v8697
    %v8742 = vpack.c.b16 %v8702, %v8700
    %v8743 = vpack.c.b16 %v8703, %v8701
    %v8744 = vpack.c.b16 %v8706, %v8704
    %v8745 = vpack.c.b16 %v8707, %v8705
    %v8746 = vpack.c.b16 %v8710, %v8708
    %v8747 = vpack.c.b16 %v8711, %v8709
    %v8748 = vpack.c.b16 %v8714, %v8712
    %v8749 = vpack.c.b16 %v8715, %v8713
    %v8750 = vpack.c.b16 %v8718, %v8716
    %v8751 = vpack.c.b16 %v8719, %v8717
    %8784 = vmatprep.subr.bf16.mxu0 %v8735
    %8785 = vmatpush1.bf16.msra.mxu0 %v8734
    %8786 = vmatprep.subr.bf16.mxu0 %v8733
    %8787 = vmatpush1.bf16.msra.mxu0 %v8732
    %8788 = vmatprep.subr.bf16.mxu0 %v8731
    %8789 = vmatpush1.bf16.msra.mxu0 %v8730
    %8790 = vmatprep.subr.bf16.mxu0 %v8729
    %8791 = vmatpush1.bf16.msra.mxu0 %v8728
    %8792 = vmatprep.subr.bf16.mxu0 %v8727
    %8793 = vmatpush1.bf16.msra.mxu0 %v8726
    %8794 = vmatprep.subr.bf16.mxu0 %v8725
    %8795 = vmatpush1.bf16.msra.mxu0 %v8724
    %8796 = vmatprep.subr.bf16.mxu0 %v8723
    %8797 = vmatpush1.bf16.msra.mxu0 %v8722
    %8798 = vmatprep.subr.bf16.mxu0 %v8721
    %8799 = vmatpush1.bf16.msra.mxu0 %v8720
    %8800 = vmatprep.subr.bf16.mxu0 %v8751
    %8801 = vmatpush2.bf16.msra.mxu0 %v8750
    %8802 = vmatprep.subr.bf16.mxu0 %v8749
    %8803 = vmatpush2.bf16.msra.mxu0 %v8748
    %8804 = vmatprep.subr.bf16.mxu0 %v8747
    %8805 = vmatpush2.bf16.msra.mxu0 %v8746
    %8806 = vmatprep.subr.bf16.mxu0 %v8745
    %8807 = vmatpush2.bf16.msra.mxu0 %v8744
    %8808 = vmatprep.subr.bf16.mxu0 %v8743
    %8809 = vmatpush2.bf16.msra.mxu0 %v8742
    %8810 = vmatprep.subr.bf16.mxu0 %v8741
    %8811 = vmatpush2.bf16.msra.mxu0 %v8740
    %8812 = vmatprep.subr.bf16.mxu0 %v8739
    %8813 = vmatpush2.bf16.msra.mxu0 %v8738
    %8814 = vmatprep.subr.bf16.mxu0 %v8737
    %8815 = vmatpush2.bf16.msra.mxu0 %v8736
    %8816 = vmatprep.mubr.bf16.mxu0 %v8621
    %8817 = vmatmul.mubr.bf16.gmra.mxu0 %v8620
    %v8818 = vpop.f32.mrf.mxu0
    %v8819 = vadd.f32 0.0, %v8818
    %v8820 = vpop.f32.mrf.mxu0
    %v8821 = vadd.f32 0.0, %v8820
    %v8822 = vpop.f32.mrf.mxu0
    %v8823 = vpop.f32.mrf.mxu0
    %8824 = vdwg.mxu0
    %v8825 = vpack.c.b16 %v7707, %v7707
    %v8826 = vpack.c.b16 %v7708, %v7708
    %v8861 = vunpack.c.l.b16 %v7845
    %v8862 = vunpack.c.h.b16 %v7845
    %v8863 = vunpack.c.l.b16 %v7846
    %v8864 = vunpack.c.h.b16 %v7846
    %v8865 = vunpack.c.l.b16 %v7847
    %v8866 = vunpack.c.h.b16 %v7847
    %v8867 = vunpack.c.l.b16 %v7848
    %v8868 = vunpack.c.h.b16 %v7848
    %v8869 = vunpack.c.l.b16 %v7849
    %v8870 = vunpack.c.h.b16 %v7849
    %v8871 = vunpack.c.l.b16 %v7850
    %v8872 = vunpack.c.h.b16 %v7850
    %v8873 = vunpack.c.l.b16 %v7851
    %v8874 = vunpack.c.h.b16 %v7851
    %v8875 = vunpack.c.l.b16 %v7852
    %v8876 = vunpack.c.h.b16 %v7852
    %v8877 = vunpack.c.l.b16 %v7853
    %v8878 = vunpack.c.h.b16 %v7853
    %v8879 = vunpack.c.l.b16 %v7854
    %v8880 = vunpack.c.h.b16 %v7854
    %v8881 = vunpack.c.l.b16 %v7855
    %v8882 = vunpack.c.h.b16 %v7855
    %v8883 = vunpack.c.l.b16 %v7856
    %v8884 = vunpack.c.h.b16 %v7856
    %v8885 = vunpack.c.l.b16 %v7857
    %v8886 = vunpack.c.h.b16 %v7857
    %v8887 = vunpack.c.l.b16 %v7858
    %v8888 = vunpack.c.h.b16 %v7858
    %v8889 = vunpack.c.l.b16 %v7859
    %v8890 = vunpack.c.h.b16 %v7859
    %v8891 = vunpack.c.l.b16 %v7860
    %v8892 = vunpack.c.h.b16 %v7860
    %v8893 = vunpack.c.l.b16 %v7861
    %v8894 = vunpack.c.h.b16 %v7861
    %v8895 = vunpack.c.l.b16 %v7862
    %v8896 = vunpack.c.h.b16 %v7862
    %v8897 = vunpack.c.l.b16 %v7863
    %v8898 = vunpack.c.h.b16 %v7863
    %v8899 = vunpack.c.l.b16 %v7864
    %v8900 = vunpack.c.h.b16 %v7864
    %v8901 = vunpack.c.l.b16 %v7865
    %v8902 = vunpack.c.h.b16 %v7865
    %v8903 = vunpack.c.l.b16 %v7866
    %v8904 = vunpack.c.h.b16 %v7866
    %v8905 = vunpack.c.l.b16 %v7867
    %v8906 = vunpack.c.h.b16 %v7867
    %v8907 = vunpack.c.l.b16 %v7868
    %v8908 = vunpack.c.h.b16 %v7868
    %v8909 = vunpack.c.l.b16 %v7869
    %v8910 = vunpack.c.h.b16 %v7869
    %v8911 = vunpack.c.l.b16 %v7870
    %v8912 = vunpack.c.h.b16 %v7870
    %v8913 = vunpack.c.l.b16 %v7871
    %v8914 = vunpack.c.h.b16 %v7871
    %v8915 = vunpack.c.l.b16 %v7872
    %v8916 = vunpack.c.h.b16 %v7872
    %v8917 = vunpack.c.l.b16 %v7873
    %v8918 = vunpack.c.h.b16 %v7873
    %v8919 = vunpack.c.l.b16 %v7874
    %v8920 = vunpack.c.h.b16 %v7874
    %v8921 = vunpack.c.l.b16 %v7875
    %v8922 = vunpack.c.h.b16 %v7875
    %v8923 = vunpack.c.l.b16 %v7876
    %v8924 = vunpack.c.h.b16 %v7876
    %v8925 = vpack.c.b16 %v8863, %v8861
    %v8926 = vpack.c.b16 %v8864, %v8862
    %v8927 = vpack.c.b16 %v8867, %v8865
    %v8928 = vpack.c.b16 %v8868, %v8866
    %v8929 = vpack.c.b16 %v8871, %v8869
    %v8930 = vpack.c.b16 %v8872, %v8870
    %v8931 = vpack.c.b16 %v8875, %v8873
    %v8932 = vpack.c.b16 %v8876, %v8874
    %v8933 = vpack.c.b16 %v8879, %v8877
    %v8934 = vpack.c.b16 %v8880, %v8878
    %v8935 = vpack.c.b16 %v8883, %v8881
    %v8936 = vpack.c.b16 %v8884, %v8882
    %v8937 = vpack.c.b16 %v8887, %v8885
    %v8938 = vpack.c.b16 %v8888, %v8886
    %v8939 = vpack.c.b16 %v8891, %v8889
    %v8940 = vpack.c.b16 %v8892, %v8890
    %v8941 = vpack.c.b16 %v8895, %v8893
    %v8942 = vpack.c.b16 %v8896, %v8894
    %v8943 = vpack.c.b16 %v8899, %v8897
    %v8944 = vpack.c.b16 %v8900, %v8898
    %v8945 = vpack.c.b16 %v8903, %v8901
    %v8946 = vpack.c.b16 %v8904, %v8902
    %v8947 = vpack.c.b16 %v8907, %v8905
    %v8948 = vpack.c.b16 %v8908, %v8906
    %v8949 = vpack.c.b16 %v8911, %v8909
    %v8950 = vpack.c.b16 %v8912, %v8910
    %v8951 = vpack.c.b16 %v8915, %v8913
    %v8952 = vpack.c.b16 %v8916, %v8914
    %v8953 = vpack.c.b16 %v8919, %v8917
    %v8954 = vpack.c.b16 %v8920, %v8918
    %v8955 = vpack.c.b16 %v8923, %v8921
    %v8956 = vpack.c.b16 %v8924, %v8922
    %8989 = vmatprep.subr.bf16.mxu0 %v8940
    %8990 = vmatpush1.bf16.msra.mxu0 %v8939
    %8991 = vmatprep.subr.bf16.mxu0 %v8938
    %8992 = vmatpush1.bf16.msra.mxu0 %v8937
    %8993 = vmatprep.subr.bf16.mxu0 %v8936
    %8994 = vmatpush1.bf16.msra.mxu0 %v8935
    %8995 = vmatprep.subr.bf16.mxu0 %v8934
    %8996 = vmatpush1.bf16.msra.mxu0 %v8933
    %8997 = vmatprep.subr.bf16.mxu0 %v8932
    %8998 = vmatpush1.bf16.msra.mxu0 %v8931
    %8999 = vmatprep.subr.bf16.mxu0 %v8930
    %9000 = vmatpush1.bf16.msra.mxu0 %v8929
    %9001 = vmatprep.subr.bf16.mxu0 %v8928
    %9002 = vmatpush1.bf16.msra.mxu0 %v8927
    %9003 = vmatprep.subr.bf16.mxu0 %v8926
    %9004 = vmatpush1.bf16.msra.mxu0 %v8925
    %9005 = vmatprep.subr.bf16.mxu0 %v8956
    %9006 = vmatpush2.bf16.msra.mxu0 %v8955
    %9007 = vmatprep.subr.bf16.mxu0 %v8954
    %9008 = vmatpush2.bf16.msra.mxu0 %v8953
    %9009 = vmatprep.subr.bf16.mxu0 %v8952
    %9010 = vmatpush2.bf16.msra.mxu0 %v8951
    %9011 = vmatprep.subr.bf16.mxu0 %v8950
    %9012 = vmatpush2.bf16.msra.mxu0 %v8949
    %9013 = vmatprep.subr.bf16.mxu0 %v8948
    %9014 = vmatpush2.bf16.msra.mxu0 %v8947
    %9015 = vmatprep.subr.bf16.mxu0 %v8946
    %9016 = vmatpush2.bf16.msra.mxu0 %v8945
    %9017 = vmatprep.subr.bf16.mxu0 %v8944
    %9018 = vmatpush2.bf16.msra.mxu0 %v8943
    %9019 = vmatprep.subr.bf16.mxu0 %v8942
    %9020 = vmatpush2.bf16.msra.mxu0 %v8941
    %9021 = vmatprep.mubr.bf16.mxu0 %v8826
    %9022 = vmatmul.mubr.bf16.gmra.mxu0 %v8825
    %v9023 = vpop.f32.mrf.mxu0
    %v9024 = vadd.f32 0.0, %v9023
    %v9025 = vpop.f32.mrf.mxu0
    %v9026 = vadd.f32 0.0, %v9025
    %v9027 = vpop.f32.mrf.mxu0
    %v9028 = vpop.f32.mrf.mxu0
    %9029 = vdwg.mxu0
    %v9030 = vpack.c.b16 %v7709, %v7709
    %v9031 = vpack.c.b16 %v7710, %v7710
    %v9066 = vunpack.c.l.b16 %v7877
    %v9067 = vunpack.c.h.b16 %v7877
    %v9068 = vunpack.c.l.b16 %v7878
    %v9069 = vunpack.c.h.b16 %v7878
    %v9070 = vunpack.c.l.b16 %v7879
    %v9071 = vunpack.c.h.b16 %v7879
    %v9072 = vunpack.c.l.b16 %v7880
    %v9073 = vunpack.c.h.b16 %v7880
    %v9074 = vunpack.c.l.b16 %v7881
    %v9075 = vunpack.c.h.b16 %v7881
    %v9076 = vunpack.c.l.b16 %v7882
    %v9077 = vunpack.c.h.b16 %v7882
    %v9078 = vunpack.c.l.b16 %v7883
    %v9079 = vunpack.c.h.b16 %v7883
    %v9080 = vunpack.c.l.b16 %v7884
    %v9081 = vunpack.c.h.b16 %v7884
    %v9082 = vunpack.c.l.b16 %v7885
    %v9083 = vunpack.c.h.b16 %v7885
    %v9084 = vunpack.c.l.b16 %v7886
    %v9085 = vunpack.c.h.b16 %v7886
    %v9086 = vunpack.c.l.b16 %v7887
    %v9087 = vunpack.c.h.b16 %v7887
    %v9088 = vunpack.c.l.b16 %v7888
    %v9089 = vunpack.c.h.b16 %v7888
    %v9090 = vunpack.c.l.b16 %v7889
    %v9091 = vunpack.c.h.b16 %v7889
    %v9092 = vunpack.c.l.b16 %v7890
    %v9093 = vunpack.c.h.b16 %v7890
    %v9094 = vunpack.c.l.b16 %v7891
    %v9095 = vunpack.c.h.b16 %v7891
    %v9096 = vunpack.c.l.b16 %v7892
    %v9097 = vunpack.c.h.b16 %v7892
    %v9098 = vunpack.c.l.b16 %v7893
    %v9099 = vunpack.c.h.b16 %v7893
    %v9100 = vunpack.c.l.b16 %v7894
    %v9101 = vunpack.c.h.b16 %v7894
    %v9102 = vunpack.c.l.b16 %v7895
    %v9103 = vunpack.c.h.b16 %v7895
    %v9104 = vunpack.c.l.b16 %v7896
    %v9105 = vunpack.c.h.b16 %v7896
    %v9106 = vunpack.c.l.b16 %v7897
    %v9107 = vunpack.c.h.b16 %v7897
    %v9108 = vunpack.c.l.b16 %v7898
    %v9109 = vunpack.c.h.b16 %v7898
    %v9110 = vunpack.c.l.b16 %v7899
    %v9111 = vunpack.c.h.b16 %v7899
    %v9112 = vunpack.c.l.b16 %v7900
    %v9113 = vunpack.c.h.b16 %v7900
    %v9114 = vunpack.c.l.b16 %v7901
    %v9115 = vunpack.c.h.b16 %v7901
    %v9116 = vunpack.c.l.b16 %v7902
    %v9117 = vunpack.c.h.b16 %v7902
    %v9118 = vunpack.c.l.b16 %v7903
    %v9119 = vunpack.c.h.b16 %v7903
    %v9120 = vunpack.c.l.b16 %v7904
    %v9121 = vunpack.c.h.b16 %v7904
    %v9122 = vunpack.c.l.b16 %v7905
    %v9123 = vunpack.c.h.b16 %v7905
    %v9124 = vunpack.c.l.b16 %v7906
    %v9125 = vunpack.c.h.b16 %v7906
    %v9126 = vunpack.c.l.b16 %v7907
    %v9127 = vunpack.c.h.b16 %v7907
    %v9128 = vunpack.c.l.b16 %v7908
    %v9129 = vunpack.c.h.b16 %v7908
    %v9130 = vpack.c.b16 %v9068, %v9066
    %v9131 = vpack.c.b16 %v9069, %v9067
    %v9132 = vpack.c.b16 %v9072, %v9070
    %v9133 = vpack.c.b16 %v9073, %v9071
    %v9134 = vpack.c.b16 %v9076, %v9074
    %v9135 = vpack.c.b16 %v9077, %v9075
    %v9136 = vpack.c.b16 %v9080, %v9078
    %v9137 = vpack.c.b16 %v9081, %v9079
    %v9138 = vpack.c.b16 %v9084, %v9082
    %v9139 = vpack.c.b16 %v9085, %v9083
    %v9140 = vpack.c.b16 %v9088, %v9086
    %v9141 = vpack.c.b16 %v9089, %v9087
    %v9142 = vpack.c.b16 %v9092, %v9090
    %v9143 = vpack.c.b16 %v9093, %v9091
    %v9144 = vpack.c.b16 %v9096, %v9094
    %v9145 = vpack.c.b16 %v9097, %v9095
    %v9146 = vpack.c.b16 %v9100, %v9098
    %v9147 = vpack.c.b16 %v9101, %v9099
    %v9148 = vpack.c.b16 %v9104, %v9102
    %v9149 = vpack.c.b16 %v9105, %v9103
    %v9150 = vpack.c.b16 %v9108, %v9106
    %v9151 = vpack.c.b16 %v9109, %v9107
    %v9152 = vpack.c.b16 %v9112, %v9110
    %v9153 = vpack.c.b16 %v9113, %v9111
    %v9154 = vpack.c.b16 %v9116, %v9114
    %v9155 = vpack.c.b16 %v9117, %v9115
    %v9156 = vpack.c.b16 %v9120, %v9118
    %v9157 = vpack.c.b16 %v9121, %v9119
    %v9158 = vpack.c.b16 %v9124, %v9122
    %v9159 = vpack.c.b16 %v9125, %v9123
    %v9160 = vpack.c.b16 %v9128, %v9126
    %v9161 = vpack.c.b16 %v9129, %v9127
    %9194 = vmatprep.subr.bf16.mxu0 %v9145
    %9195 = vmatpush1.bf16.msra.mxu0 %v9144
    %9196 = vmatprep.subr.bf16.mxu0 %v9143
    %9197 = vmatpush1.bf16.msra.mxu0 %v9142
    %9198 = vmatprep.subr.bf16.mxu0 %v9141
    %9199 = vmatpush1.bf16.msra.mxu0 %v9140
    %9200 = vmatprep.subr.bf16.mxu0 %v9139
    %9201 = vmatpush1.bf16.msra.mxu0 %v9138
    %9202 = vmatprep.subr.bf16.mxu0 %v9137
    %9203 = vmatpush1.bf16.msra.mxu0 %v9136
    %9204 = vmatprep.subr.bf16.mxu0 %v9135
    %9205 = vmatpush1.bf16.msra.mxu0 %v9134
    %9206 = vmatprep.subr.bf16.mxu0 %v9133
    %9207 = vmatpush1.bf16.msra.mxu0 %v9132
    %9208 = vmatprep.subr.bf16.mxu0 %v9131
    %9209 = vmatpush1.bf16.msra.mxu0 %v9130
    %9210 = vmatprep.subr.bf16.mxu0 %v9161
    %9211 = vmatpush2.bf16.msra.mxu0 %v9160
    %9212 = vmatprep.subr.bf16.mxu0 %v9159
    %9213 = vmatpush2.bf16.msra.mxu0 %v9158
    %9214 = vmatprep.subr.bf16.mxu0 %v9157
    %9215 = vmatpush2.bf16.msra.mxu0 %v9156
    %9216 = vmatprep.subr.bf16.mxu0 %v9155
    %9217 = vmatpush2.bf16.msra.mxu0 %v9154
    %9218 = vmatprep.subr.bf16.mxu0 %v9153
    %9219 = vmatpush2.bf16.msra.mxu0 %v9152
    %9220 = vmatprep.subr.bf16.mxu0 %v9151
    %9221 = vmatpush2.bf16.msra.mxu0 %v9150
    %9222 = vmatprep.subr.bf16.mxu0 %v9149
    %9223 = vmatpush2.bf16.msra.mxu0 %v9148
    %9224 = vmatprep.subr.bf16.mxu0 %v9147
    %9225 = vmatpush2.bf16.msra.mxu0 %v9146
    %9226 = vmatprep.mubr.bf16.mxu0 %v9031
    %9227 = vmatmul.mubr.bf16.gmra.mxu0 %v9030
    %v9228 = vpop.f32.mrf.mxu0
    %v9229 = vadd.f32 0.0, %v9228
    %v9230 = vpop.f32.mrf.mxu0
    %v9231 = vadd.f32 0.0, %v9230
    %v9232 = vpop.f32.mrf.mxu0
    %v9233 = vpop.f32.mrf.mxu0
    %9234 = vdwg.mxu0
    %v9235 = vpack.c.b16 %v7711, %v7711
    %v9236 = vpack.c.b16 %v7712, %v7712
    %v9271 = vunpack.c.l.b16 %v7909
    %v9272 = vunpack.c.h.b16 %v7909
    %v9273 = vunpack.c.l.b16 %v7910
    %v9274 = vunpack.c.h.b16 %v7910
    %v9275 = vunpack.c.l.b16 %v7911
    %v9276 = vunpack.c.h.b16 %v7911
    %v9277 = vunpack.c.l.b16 %v7912
    %v9278 = vunpack.c.h.b16 %v7912
    %v9279 = vunpack.c.l.b16 %v7913
    %v9280 = vunpack.c.h.b16 %v7913
    %v9281 = vunpack.c.l.b16 %v7914
    %v9282 = vunpack.c.h.b16 %v7914
    %v9283 = vunpack.c.l.b16 %v7915
    %v9284 = vunpack.c.h.b16 %v7915
    %v9285 = vunpack.c.l.b16 %v7916
    %v9286 = vunpack.c.h.b16 %v7916
    %v9287 = vunpack.c.l.b16 %v7917
    %v9288 = vunpack.c.h.b16 %v7917
    %v9289 = vunpack.c.l.b16 %v7918
    %v9290 = vunpack.c.h.b16 %v7918
    %v9291 = vunpack.c.l.b16 %v7919
    %v9292 = vunpack.c.h.b16 %v7919
    %v9293 = vunpack.c.l.b16 %v7920
    %v9294 = vunpack.c.h.b16 %v7920
    %v9295 = vunpack.c.l.b16 %v7921
    %v9296 = vunpack.c.h.b16 %v7921
    %v9297 = vunpack.c.l.b16 %v7922
    %v9298 = vunpack.c.h.b16 %v7922
    %v9299 = vunpack.c.l.b16 %v7923
    %v9300 = vunpack.c.h.b16 %v7923
    %v9301 = vunpack.c.l.b16 %v7924
    %v9302 = vunpack.c.h.b16 %v7924
    %v9303 = vunpack.c.l.b16 %v7925
    %v9304 = vunpack.c.h.b16 %v7925
    %v9305 = vunpack.c.l.b16 %v7926
    %v9306 = vunpack.c.h.b16 %v7926
    %v9307 = vunpack.c.l.b16 %v7927
    %v9308 = vunpack.c.h.b16 %v7927
    %v9309 = vunpack.c.l.b16 %v7928
    %v9310 = vunpack.c.h.b16 %v7928
    %v9311 = vunpack.c.l.b16 %v7929
    %v9312 = vunpack.c.h.b16 %v7929
    %v9313 = vunpack.c.l.b16 %v7930
    %v9314 = vunpack.c.h.b16 %v7930
    %v9315 = vunpack.c.l.b16 %v7931
    %v9316 = vunpack.c.h.b16 %v7931
    %v9317 = vunpack.c.l.b16 %v7932
    %v9318 = vunpack.c.h.b16 %v7932
    %v9319 = vunpack.c.l.b16 %v7933
    %v9320 = vunpack.c.h.b16 %v7933
    %v9321 = vunpack.c.l.b16 %v7934
    %v9322 = vunpack.c.h.b16 %v7934
    %v9323 = vunpack.c.l.b16 %v7935
    %v9324 = vunpack.c.h.b16 %v7935
    %v9325 = vunpack.c.l.b16 %v7936
    %v9326 = vunpack.c.h.b16 %v7936
    %v9327 = vunpack.c.l.b16 %v7937
    %v9328 = vunpack.c.h.b16 %v7937
    %v9329 = vunpack.c.l.b16 %v7938
    %v9330 = vunpack.c.h.b16 %v7938
    %v9331 = vunpack.c.l.b16 %v7939
    %v9332 = vunpack.c.h.b16 %v7939
    %v9333 = vunpack.c.l.b16 %v7940
    %v9334 = vunpack.c.h.b16 %v7940
    %v9335 = vpack.c.b16 %v9273, %v9271
    %v9336 = vpack.c.b16 %v9274, %v9272
    %v9337 = vpack.c.b16 %v9277, %v9275
    %v9338 = vpack.c.b16 %v9278, %v9276
    %v9339 = vpack.c.b16 %v9281, %v9279
    %v9340 = vpack.c.b16 %v9282, %v9280
    %v9341 = vpack.c.b16 %v9285, %v9283
    %v9342 = vpack.c.b16 %v9286, %v9284
    %v9343 = vpack.c.b16 %v9289, %v9287
    %v9344 = vpack.c.b16 %v9290, %v9288
    %v9345 = vpack.c.b16 %v9293, %v9291
    %v9346 = vpack.c.b16 %v9294, %v9292
    %v9347 = vpack.c.b16 %v9297, %v9295
    %v9348 = vpack.c.b16 %v9298, %v9296
    %v9349 = vpack.c.b16 %v9301, %v9299
    %v9350 = vpack.c.b16 %v9302, %v9300
    %v9351 = vpack.c.b16 %v9305, %v9303
    %v9352 = vpack.c.b16 %v9306, %v9304
    %v9353 = vpack.c.b16 %v9309, %v9307
    %v9354 = vpack.c.b16 %v9310, %v9308
    %v9355 = vpack.c.b16 %v9313, %v9311
    %v9356 = vpack.c.b16 %v9314, %v9312
    %v9357 = vpack.c.b16 %v9317, %v9315
    %v9358 = vpack.c.b16 %v9318, %v9316
    %v9359 = vpack.c.b16 %v9321, %v9319
    %v9360 = vpack.c.b16 %v9322, %v9320
    %v9361 = vpack.c.b16 %v9325, %v9323
    %v9362 = vpack.c.b16 %v9326, %v9324
    %v9363 = vpack.c.b16 %v9329, %v9327
    %v9364 = vpack.c.b16 %v9330, %v9328
    %v9365 = vpack.c.b16 %v9333, %v9331
    %v9366 = vpack.c.b16 %v9334, %v9332
    %9399 = vmatprep.subr.bf16.mxu0 %v9350
    %9400 = vmatpush1.bf16.msra.mxu0 %v9349
    %9401 = vmatprep.subr.bf16.mxu0 %v9348
    %9402 = vmatpush1.bf16.msra.mxu0 %v9347
    %9403 = vmatprep.subr.bf16.mxu0 %v9346
    %9404 = vmatpush1.bf16.msra.mxu0 %v9345
    %9405 = vmatprep.subr.bf16.mxu0 %v9344
    %9406 = vmatpush1.bf16.msra.mxu0 %v9343
    %9407 = vmatprep.subr.bf16.mxu0 %v9342
    %9408 = vmatpush1.bf16.msra.mxu0 %v9341
    %9409 = vmatprep.subr.bf16.mxu0 %v9340
    %9410 = vmatpush1.bf16.msra.mxu0 %v9339
    %9411 = vmatprep.subr.bf16.mxu0 %v9338
    %9412 = vmatpush1.bf16.msra.mxu0 %v9337
    %9413 = vmatprep.subr.bf16.mxu0 %v9336
    %9414 = vmatpush1.bf16.msra.mxu0 %v9335
    %9415 = vmatprep.subr.bf16.mxu0 %v9366
    %9416 = vmatpush2.bf16.msra.mxu0 %v9365
    %9417 = vmatprep.subr.bf16.mxu0 %v9364
    %9418 = vmatpush2.bf16.msra.mxu0 %v9363
    %9419 = vmatprep.subr.bf16.mxu0 %v9362
    %9420 = vmatpush2.bf16.msra.mxu0 %v9361
    %9421 = vmatprep.subr.bf16.mxu0 %v9360
    %9422 = vmatpush2.bf16.msra.mxu0 %v9359
    %9423 = vmatprep.subr.bf16.mxu0 %v9358
    %9424 = vmatpush2.bf16.msra.mxu0 %v9357
    %9425 = vmatprep.subr.bf16.mxu0 %v9356
    %9426 = vmatpush2.bf16.msra.mxu0 %v9355
    %9427 = vmatprep.subr.bf16.mxu0 %v9354
    %9428 = vmatpush2.bf16.msra.mxu0 %v9353
    %9429 = vmatprep.subr.bf16.mxu0 %v9352
    %9430 = vmatpush2.bf16.msra.mxu0 %v9351
    %9431 = vmatprep.mubr.bf16.mxu0 %v9236
    %9432 = vmatmul.mubr.bf16.gmra.mxu0 %v9235
    %v9433 = vpop.f32.mrf.mxu0
    %v9434 = vadd.f32 0.0, %v9433
    %v9435 = vpop.f32.mrf.mxu0
    %v9436 = vadd.f32 0.0, %v9435
    %v9437 = vpop.f32.mrf.mxu0
    %v9438 = vpop.f32.mrf.mxu0
    %9439 = vdwg.mxu0
    %v9440 = vpack.c.b16 %v7713, %v7713
    %v9441 = vpack.c.b16 %v7714, %v7714
    %v9476 = vunpack.c.l.b16 %v7941
    %v9477 = vunpack.c.h.b16 %v7941
    %v9478 = vunpack.c.l.b16 %v7942
    %v9479 = vunpack.c.h.b16 %v7942
    %v9480 = vunpack.c.l.b16 %v7943
    %v9481 = vunpack.c.h.b16 %v7943
    %v9482 = vunpack.c.l.b16 %v7944
    %v9483 = vunpack.c.h.b16 %v7944
    %v9484 = vunpack.c.l.b16 %v7945
    %v9485 = vunpack.c.h.b16 %v7945
    %v9486 = vunpack.c.l.b16 %v7946
    %v9487 = vunpack.c.h.b16 %v7946
    %v9488 = vunpack.c.l.b16 %v7947
    %v9489 = vunpack.c.h.b16 %v7947
    %v9490 = vunpack.c.l.b16 %v7948
    %v9491 = vunpack.c.h.b16 %v7948
    %v9492 = vunpack.c.l.b16 %v7949
    %v9493 = vunpack.c.h.b16 %v7949
    %v9494 = vunpack.c.l.b16 %v7950
    %v9495 = vunpack.c.h.b16 %v7950
    %v9496 = vunpack.c.l.b16 %v7951
    %v9497 = vunpack.c.h.b16 %v7951
    %v9498 = vunpack.c.l.b16 %v7952
    %v9499 = vunpack.c.h.b16 %v7952
    %v9500 = vunpack.c.l.b16 %v7953
    %v9501 = vunpack.c.h.b16 %v7953
    %v9502 = vunpack.c.l.b16 %v7954
    %v9503 = vunpack.c.h.b16 %v7954
    %v9504 = vunpack.c.l.b16 %v7955
    %v9505 = vunpack.c.h.b16 %v7955
    %v9506 = vunpack.c.l.b16 %v7956
    %v9507 = vunpack.c.h.b16 %v7956
    %v9508 = vunpack.c.l.b16 %v7957
    %v9509 = vunpack.c.h.b16 %v7957
    %v9510 = vunpack.c.l.b16 %v7958
    %v9511 = vunpack.c.h.b16 %v7958
    %v9512 = vunpack.c.l.b16 %v7959
    %v9513 = vunpack.c.h.b16 %v7959
    %v9514 = vunpack.c.l.b16 %v7960
    %v9515 = vunpack.c.h.b16 %v7960
    %v9516 = vunpack.c.l.b16 %v7961
    %v9517 = vunpack.c.h.b16 %v7961
    %v9518 = vunpack.c.l.b16 %v7962
    %v9519 = vunpack.c.h.b16 %v7962
    %v9520 = vunpack.c.l.b16 %v7963
    %v9521 = vunpack.c.h.b16 %v7963
    %v9522 = vunpack.c.l.b16 %v7964
    %v9523 = vunpack.c.h.b16 %v7964
    %v9524 = vunpack.c.l.b16 %v7965
    %v9525 = vunpack.c.h.b16 %v7965
    %v9526 = vunpack.c.l.b16 %v7966
    %v9527 = vunpack.c.h.b16 %v7966
    %v9528 = vunpack.c.l.b16 %v7967
    %v9529 = vunpack.c.h.b16 %v7967
    %v9530 = vunpack.c.l.b16 %v7968
    %v9531 = vunpack.c.h.b16 %v7968
    %v9532 = vunpack.c.l.b16 %v7969
    %v9533 = vunpack.c.h.b16 %v7969
    %v9534 = vunpack.c.l.b16 %v7970
    %v9535 = vunpack.c.h.b16 %v7970
    %v9536 = vunpack.c.l.b16 %v7971
    %v9537 = vunpack.c.h.b16 %v7971
    %v9538 = vunpack.c.l.b16 %v7972
    %v9539 = vunpack.c.h.b16 %v7972
    %v9540 = vpack.c.b16 %v9478, %v9476
    %v9541 = vpack.c.b16 %v9479, %v9477
    %v9542 = vpack.c.b16 %v9482, %v9480
    %v9543 = vpack.c.b16 %v9483, %v9481
    %v9544 = vpack.c.b16 %v9486, %v9484
    %v9545 = vpack.c.b16 %v9487, %v9485
    %v9546 = vpack.c.b16 %v9490, %v9488
    %v9547 = vpack.c.b16 %v9491, %v9489
    %v9548 = vpack.c.b16 %v9494, %v9492
    %v9549 = vpack.c.b16 %v9495, %v9493
    %v9550 = vpack.c.b16 %v9498, %v9496
    %v9551 = vpack.c.b16 %v9499, %v9497
    %v9552 = vpack.c.b16 %v9502, %v9500
    %v9553 = vpack.c.b16 %v9503, %v9501
    %v9554 = vpack.c.b16 %v9506, %v9504
    %v9555 = vpack.c.b16 %v9507, %v9505
    %v9556 = vpack.c.b16 %v9510, %v9508
    %v9557 = vpack.c.b16 %v9511, %v9509
    %v9558 = vpack.c.b16 %v9514, %v9512
    %v9559 = vpack.c.b16 %v9515, %v9513
    %v9560 = vpack.c.b16 %v9518, %v9516
    %v9561 = vpack.c.b16 %v9519, %v9517
    %v9562 = vpack.c.b16 %v9522, %v9520
    %v9563 = vpack.c.b16 %v9523, %v9521
    %v9564 = vpack.c.b16 %v9526, %v9524
    %v9565 = vpack.c.b16 %v9527, %v9525
    %v9566 = vpack.c.b16 %v9530, %v9528
    %v9567 = vpack.c.b16 %v9531, %v9529
    %v9568 = vpack.c.b16 %v9534, %v9532
    %v9569 = vpack.c.b16 %v9535, %v9533
    %v9570 = vpack.c.b16 %v9538, %v9536
    %v9571 = vpack.c.b16 %v9539, %v9537
    %9604 = vmatprep.subr.bf16.mxu0 %v9555
    %9605 = vmatpush1.bf16.msra.mxu0 %v9554
    %9606 = vmatprep.subr.bf16.mxu0 %v9553
    %9607 = vmatpush1.bf16.msra.mxu0 %v9552
    %9608 = vmatprep.subr.bf16.mxu0 %v9551
    %9609 = vmatpush1.bf16.msra.mxu0 %v9550
    %9610 = vmatprep.subr.bf16.mxu0 %v9549
    %9611 = vmatpush1.bf16.msra.mxu0 %v9548
    %9612 = vmatprep.subr.bf16.mxu0 %v9547
    %9613 = vmatpush1.bf16.msra.mxu0 %v9546
    %9614 = vmatprep.subr.bf16.mxu0 %v9545
    %9615 = vmatpush1.bf16.msra.mxu0 %v9544
    %9616 = vmatprep.subr.bf16.mxu0 %v9543
    %9617 = vmatpush1.bf16.msra.mxu0 %v9542
    %9618 = vmatprep.subr.bf16.mxu0 %v9541
    %9619 = vmatpush1.bf16.msra.mxu0 %v9540
    %9620 = vmatprep.subr.bf16.mxu0 %v9571
    %9621 = vmatpush2.bf16.msra.mxu0 %v9570
    %9622 = vmatprep.subr.bf16.mxu0 %v9569
    %9623 = vmatpush2.bf16.msra.mxu0 %v9568
    %9624 = vmatprep.subr.bf16.mxu0 %v9567
    %9625 = vmatpush2.bf16.msra.mxu0 %v9566
    %9626 = vmatprep.subr.bf16.mxu0 %v9565
    %9627 = vmatpush2.bf16.msra.mxu0 %v9564
    %9628 = vmatprep.subr.bf16.mxu0 %v9563
    %9629 = vmatpush2.bf16.msra.mxu0 %v9562
    %9630 = vmatprep.subr.bf16.mxu0 %v9561
    %9631 = vmatpush2.bf16.msra.mxu0 %v9560
    %9632 = vmatprep.subr.bf16.mxu0 %v9559
    %9633 = vmatpush2.bf16.msra.mxu0 %v9558
    %9634 = vmatprep.subr.bf16.mxu0 %v9557
    %9635 = vmatpush2.bf16.msra.mxu0 %v9556
    %9636 = vmatprep.mubr.bf16.mxu0 %v9441
    %9637 = vmatmul.mubr.bf16.gmra.mxu0 %v9440
    %v9638 = vpop.f32.mrf.mxu0
    %v9639 = vadd.f32 0.0, %v9638
    %v9640 = vpop.f32.mrf.mxu0
    %v9641 = vadd.f32 0.0, %v9640
    %v9642 = vpop.f32.mrf.mxu0
    %v9643 = vpop.f32.mrf.mxu0
    %9644 = vdwg.mxu0
    %v9645 = vpack.c.b16 %v7715, %v7715
    %v9646 = vpack.c.b16 %v7716, %v7716
    %v9681 = vunpack.c.l.b16 %v7973
    %v9682 = vunpack.c.h.b16 %v7973
    %v9683 = vunpack.c.l.b16 %v7974
    %v9684 = vunpack.c.h.b16 %v7974
    %v9685 = vunpack.c.l.b16 %v7975
    %v9686 = vunpack.c.h.b16 %v7975
    %v9687 = vunpack.c.l.b16 %v7976
    %v9688 = vunpack.c.h.b16 %v7976
    %v9689 = vunpack.c.l.b16 %v7977
    %v9690 = vunpack.c.h.b16 %v7977
    %v9691 = vunpack.c.l.b16 %v7978
    %v9692 = vunpack.c.h.b16 %v7978
    %v9693 = vunpack.c.l.b16 %v7979
    %v9694 = vunpack.c.h.b16 %v7979
    %v9695 = vunpack.c.l.b16 %v7980
    %v9696 = vunpack.c.h.b16 %v7980
    %v9697 = vunpack.c.l.b16 %v7981
    %v9698 = vunpack.c.h.b16 %v7981
    %v9699 = vunpack.c.l.b16 %v7982
    %v9700 = vunpack.c.h.b16 %v7982
    %v9701 = vunpack.c.l.b16 %v7983
    %v9702 = vunpack.c.h.b16 %v7983
    %v9703 = vunpack.c.l.b16 %v7984
    %v9704 = vunpack.c.h.b16 %v7984
    %v9705 = vunpack.c.l.b16 %v7985
    %v9706 = vunpack.c.h.b16 %v7985
    %v9707 = vunpack.c.l.b16 %v7986
    %v9708 = vunpack.c.h.b16 %v7986
    %v9709 = vunpack.c.l.b16 %v7987
    %v9710 = vunpack.c.h.b16 %v7987
    %v9711 = vunpack.c.l.b16 %v7988
    %v9712 = vunpack.c.h.b16 %v7988
    %v9713 = vunpack.c.l.b16 %v7989
    %v9714 = vunpack.c.h.b16 %v7989
    %v9715 = vunpack.c.l.b16 %v7990
    %v9716 = vunpack.c.h.b16 %v7990
    %v9717 = vunpack.c.l.b16 %v7991
    %v9718 = vunpack.c.h.b16 %v7991
    %v9719 = vunpack.c.l.b16 %v7992
    %v9720 = vunpack.c.h.b16 %v7992
    %v9721 = vunpack.c.l.b16 %v7993
    %v9722 = vunpack.c.h.b16 %v7993
    %v9723 = vunpack.c.l.b16 %v7994
    %v9724 = vunpack.c.h.b16 %v7994
    %v9725 = vunpack.c.l.b16 %v7995
    %v9726 = vunpack.c.h.b16 %v7995
    %v9727 = vunpack.c.l.b16 %v7996
    %v9728 = vunpack.c.h.b16 %v7996
    %v9729 = vunpack.c.l.b16 %v7997
    %v9730 = vunpack.c.h.b16 %v7997
    %v9731 = vunpack.c.l.b16 %v7998
    %v9732 = vunpack.c.h.b16 %v7998
    %v9733 = vunpack.c.l.b16 %v7999
    %v9734 = vunpack.c.h.b16 %v7999
    %v9735 = vunpack.c.l.b16 %v8000
    %v9736 = vunpack.c.h.b16 %v8000
    %v9737 = vunpack.c.l.b16 %v8001
    %v9738 = vunpack.c.h.b16 %v8001
    %v9739 = vunpack.c.l.b16 %v8002
    %v9740 = vunpack.c.h.b16 %v8002
    %v9741 = vunpack.c.l.b16 %v8003
    %v9742 = vunpack.c.h.b16 %v8003
    %v9743 = vunpack.c.l.b16 %v8004
    %v9744 = vunpack.c.h.b16 %v8004
    %v9745 = vpack.c.b16 %v9683, %v9681
    %v9746 = vpack.c.b16 %v9684, %v9682
    %v9747 = vpack.c.b16 %v9687, %v9685
    %v9748 = vpack.c.b16 %v9688, %v9686
    %v9749 = vpack.c.b16 %v9691, %v9689
    %v9750 = vpack.c.b16 %v9692, %v9690
    %v9751 = vpack.c.b16 %v9695, %v9693
    %v9752 = vpack.c.b16 %v9696, %v9694
    %v9753 = vpack.c.b16 %v9699, %v9697
    %v9754 = vpack.c.b16 %v9700, %v9698
    %v9755 = vpack.c.b16 %v9703, %v9701
    %v9756 = vpack.c.b16 %v9704, %v9702
    %v9757 = vpack.c.b16 %v9707, %v9705
    %v9758 = vpack.c.b16 %v9708, %v9706
    %v9759 = vpack.c.b16 %v9711, %v9709
    %v9760 = vpack.c.b16 %v9712, %v9710
    %v9761 = vpack.c.b16 %v9715, %v9713
    %v9762 = vpack.c.b16 %v9716, %v9714
    %v9763 = vpack.c.b16 %v9719, %v9717
    %v9764 = vpack.c.b16 %v9720, %v9718
    %v9765 = vpack.c.b16 %v9723, %v9721
    %v9766 = vpack.c.b16 %v9724, %v9722
    %v9767 = vpack.c.b16 %v9727, %v9725
    %v9768 = vpack.c.b16 %v9728, %v9726
    %v9769 = vpack.c.b16 %v9731, %v9729
    %v9770 = vpack.c.b16 %v9732, %v9730
    %v9771 = vpack.c.b16 %v9735, %v9733
    %v9772 = vpack.c.b16 %v9736, %v9734
    %v9773 = vpack.c.b16 %v9739, %v9737
    %v9774 = vpack.c.b16 %v9740, %v9738
    %v9775 = vpack.c.b16 %v9743, %v9741
    %v9776 = vpack.c.b16 %v9744, %v9742
    %9809 = vmatprep.subr.bf16.mxu0 %v9760
    %9810 = vmatpush1.bf16.msra.mxu0 %v9759
    %9811 = vmatprep.subr.bf16.mxu0 %v9758
    %9812 = vmatpush1.bf16.msra.mxu0 %v9757
    %9813 = vmatprep.subr.bf16.mxu0 %v9756
    %9814 = vmatpush1.bf16.msra.mxu0 %v9755
    %9815 = vmatprep.subr.bf16.mxu0 %v9754
    %9816 = vmatpush1.bf16.msra.mxu0 %v9753
    %9817 = vmatprep.subr.bf16.mxu0 %v9752
    %9818 = vmatpush1.bf16.msra.mxu0 %v9751
    %9819 = vmatprep.subr.bf16.mxu0 %v9750
    %9820 = vmatpush1.bf16.msra.mxu0 %v9749
    %9821 = vmatprep.subr.bf16.mxu0 %v9748
    %9822 = vmatpush1.bf16.msra.mxu0 %v9747
    %9823 = vmatprep.subr.bf16.mxu0 %v9746
    %9824 = vmatpush1.bf16.msra.mxu0 %v9745
    %9825 = vmatprep.subr.bf16.mxu0 %v9776
    %9826 = vmatpush2.bf16.msra.mxu0 %v9775
    %9827 = vmatprep.subr.bf16.mxu0 %v9774
    %9828 = vmatpush2.bf16.msra.mxu0 %v9773
    %9829 = vmatprep.subr.bf16.mxu0 %v9772
    %9830 = vmatpush2.bf16.msra.mxu0 %v9771
    %9831 = vmatprep.subr.bf16.mxu0 %v9770
    %9832 = vmatpush2.bf16.msra.mxu0 %v9769
    %9833 = vmatprep.subr.bf16.mxu0 %v9768
    %9834 = vmatpush2.bf16.msra.mxu0 %v9767
    %9835 = vmatprep.subr.bf16.mxu0 %v9766
    %9836 = vmatpush2.bf16.msra.mxu0 %v9765
    %9837 = vmatprep.subr.bf16.mxu0 %v9764
    %9838 = vmatpush2.bf16.msra.mxu0 %v9763
    %9839 = vmatprep.subr.bf16.mxu0 %v9762
    %9840 = vmatpush2.bf16.msra.mxu0 %v9761
    %9841 = vmatprep.mubr.bf16.mxu0 %v9646
    %9842 = vmatmul.mubr.bf16.gmra.mxu0 %v9645
    %v9843 = vpop.f32.mrf.mxu0
    %v9844 = vadd.f32 0.0, %v9843
    %v9845 = vpop.f32.mrf.mxu0
    %v9846 = vadd.f32 0.0, %v9845
    %v9847 = vpop.f32.mrf.mxu0
    %v9848 = vpop.f32.mrf.mxu0
    %9849 = vdwg.mxu0
    %v9850 = vadd.f32 %v8204, %v8409
    %v9851 = vadd.f32 %v9850, %v8614
    %v9852 = vadd.f32 %v9851, %v8819
    %v9853 = vadd.f32 %v9852, %v9024
    %v9854 = vadd.f32 %v9853, %v9229
    %v9855 = vadd.f32 %v9854, %v9434
    %v9856 = vadd.f32 %v9855, %v9639
    %v9857 = vadd.f32 %v9856, %v9844
    %v9858 = vadd.f32 %v8206, %v8411
    %v9859 = vadd.f32 %v9858, %v8616
    %v9860 = vadd.f32 %v9859, %v8821
    %v9861 = vadd.f32 %v9860, %v9026
    %v9862 = vadd.f32 %v9861, %v9231
    %v9863 = vadd.f32 %v9862, %v9436
    %v9864 = vadd.f32 %v9863, %v9641
    %v9865 = vadd.f32 %v9864, %v9846
    %v9866 = vld [vmem:[%s12] sm:$0x3]
    %v9868 = vlaneseq
    %v9869 = vshrl.u32 %v9868, 7
    %v9870 = vsub.s32 0, %v9869
    %v9871 = vrot.slane %v9866, %v9870
    %v9872 = vlaneseq
    %v9873 = vshrl.u32 %v9872, 7
    %v9874 = vsub.s32 1, %v9873
    %v9875 = vrot.slane %v9866, %v9874
    %v9878 = vadd.f32 %v9857, %v9871
    %v9879 = vadd.f32 %v9865, %v9875
    %v9880 = vmax.f32 %v9878, 0.0
    %v9881 = vmax.f32 %v9879, 0.0
    %v9882 = vpack.c.bf16 %v9880, %v9880
    %v9883 = vpack.c.bf16 %v9881, %v9881
    %v9884 = vld [vmem:[#allocation15] sm:$0xf]
    %v9885 = vld [vmem:[#allocation15 + $0x4] sm:$0xf]
    %v9886 = vld [vmem:[#allocation15 + $0x8] sm:$0xf]
    %v9887 = vld [vmem:[#allocation15 + $0xc] sm:$0xf]
    %v9888 = vld [vmem:[#allocation15 + $0x10] sm:$0xf]
    %v9889 = vld [vmem:[#allocation15 + $0x14] sm:$0xf]
    %v9890 = vld [vmem:[#allocation15 + $0x18] sm:$0xf]
    %v9891 = vld [vmem:[#allocation15 + $0x1c] sm:$0xf]
    %v9892 = vld [vmem:[#allocation15 + $0x20] sm:$0xf]
    %v9902 = vunpack.c.l.b16 %v9884
    %v9903 = vunpack.c.l.b16 %v9885
    %v9904 = vunpack.c.l.b16 %v9886
    %v9905 = vunpack.c.l.b16 %v9887
    %v9906 = vunpack.c.l.b16 %v9888
    %v9907 = vunpack.c.l.b16 %v9889
    %v9908 = vunpack.c.l.b16 %v9890
    %v9909 = vunpack.c.l.b16 %v9891
    %v9910 = vunpack.c.l.b16 %v9892
    %v9911 = vpack.c.b16 %v9903, %v9902
    %v9912 = vpack.c.b16 %v9905, %v9904
    %v9913 = vpack.c.b16 %v9907, %v9906
    %v9914 = vpack.c.b16 %v9909, %v9908
    %v9915 = vpack.c.b16 %v9910, %v9910
    %v9917 = vsel %vm7575, %v9911, 0
    %v9920 = vsel %vm7575, %v9912, 0
    %v9923 = vsel %vm7575, %v9913, 0
    %v9926 = vsel %vm7575, %v9914, 0
    %v9929 = vsel %vm7575, %v9915, 0
    %v9932 = vsel %vm7591, %v9882, 0
    %v9935 = vsel %vm7591, %v9883, 0
    %9937 = vmatprep.subr.bf16.mxu0 0
    %9938 = vmatpush1.bf16.msra.mxu0 0
    %9939 = vmatprep.subr.bf16.mxu0 0
    %9940 = vmatpush1.bf16.msra.mxu0 0
    %9941 = vmatprep.subr.bf16.mxu0 0
    %9942 = vmatpush1.bf16.msra.mxu0 0
    %9943 = vmatprep.subr.bf16.mxu0 0
    %9944 = vmatpush1.bf16.msra.mxu0 0
    %9945 = vmatprep.subr.bf16.mxu0 0
    %9946 = vmatpush1.bf16.msra.mxu0 0
    %9947 = vmatprep.subr.bf16.mxu0 0
    %9948 = vmatpush1.bf16.msra.mxu0 0
    %9949 = vmatprep.subr.bf16.mxu0 0
    %9950 = vmatpush1.bf16.msra.mxu0 0
    %9951 = vmatprep.subr.bf16.mxu0 %v9935
    %9952 = vmatpush1.bf16.msra.mxu0 %v9932
    %9953 = vmatprep.subr.bf16.mxu0 0
    %9954 = vmatpush2.bf16.msra.mxu0 0
    %9955 = vmatprep.subr.bf16.mxu0 0
    %9956 = vmatpush2.bf16.msra.mxu0 0
    %9957 = vmatprep.subr.bf16.mxu0 0
    %9958 = vmatpush2.bf16.msra.mxu0 0
    %9959 = vmatprep.subr.bf16.mxu0 0
    %9960 = vmatpush2.bf16.msra.mxu0 0
    %9961 = vmatprep.subr.bf16.mxu0 0
    %9962 = vmatpush2.bf16.msra.mxu0 0
    %9963 = vmatprep.subr.bf16.mxu0 0
    %9964 = vmatpush2.bf16.msra.mxu0 0
    %9965 = vmatprep.subr.bf16.mxu0 0
    %9966 = vmatpush2.bf16.msra.mxu0 0
    %9967 = vmatprep.subr.bf16.mxu0 0
    %9968 = vmatpush2.bf16.msra.mxu0 0
    %9969 = vmatprep.mubr.bf16.mxu0 0
    %9970 = vmatmul.mubr.bf16.gmra.mxu0 %v9917
    %v9971 = vpop.f32.mrf.mxu0
    %v9972 = vadd.f32 0.0, %v9971
    %v9973 = vpop.f32.mrf.mxu0
    %v9974 = vadd.f32 0.0, %v9973
    %v9975 = vpop.f32.mrf.mxu0
    %v9976 = vadd.f32 0.0, %v9975
    %v9977 = vpop.f32.mrf.mxu0
    %v9978 = vadd.f32 0.0, %v9977
    %9979 = vmatprep.mubr.bf16.mxu0 0
    %9980 = vmatmul.mubr.bf16.gmra.mxu0 %v9920
    %v9981 = vpop.f32.mrf.mxu0
    %v9982 = vadd.f32 0.0, %v9981
    %v9983 = vpop.f32.mrf.mxu0
    %v9984 = vadd.f32 0.0, %v9983
    %v9985 = vpop.f32.mrf.mxu0
    %v9986 = vadd.f32 0.0, %v9985
    %v9987 = vpop.f32.mrf.mxu0
    %v9988 = vadd.f32 0.0, %v9987
    %9989 = vmatprep.mubr.bf16.mxu0 0
    %9990 = vmatmul.mubr.bf16.gmra.mxu0 %v9923
    %v9991 = vpop.f32.mrf.mxu0
    %v9992 = vadd.f32 0.0, %v9991
    %v9993 = vpop.f32.mrf.mxu0
    %v9994 = vadd.f32 0.0, %v9993
    %v9995 = vpop.f32.mrf.mxu0
    %v9996 = vadd.f32 0.0, %v9995
    %v9997 = vpop.f32.mrf.mxu0
    %v9998 = vadd.f32 0.0, %v9997
    %9999 = vmatprep.mubr.bf16.mxu0 0
    %10000 = vmatmul.mubr.bf16.gmra.mxu0 %v9926
    %v10001 = vpop.f32.mrf.mxu0
    %v10002 = vadd.f32 0.0, %v10001
    %v10003 = vpop.f32.mrf.mxu0
    %v10004 = vadd.f32 0.0, %v10003
    %v10005 = vpop.f32.mrf.mxu0
    %v10006 = vadd.f32 0.0, %v10005
    %v10007 = vpop.f32.mrf.mxu0
    %v10008 = vadd.f32 0.0, %v10007
    %10009 = vmatprep.mubr.bf16.mxu0 0
    %10010 = vmatmul.mubr.bf16.gmra.mxu0 %v9929
    %v10011 = vpop.f32.mrf.mxu0
    %v10012 = vadd.f32 0.0, %v10011
    %v10013 = vpop.f32.mrf.mxu0
    %v10014 = vadd.f32 0.0, %v10013
    %v10015 = vpop.f32.mrf.mxu0
    %v10016 = vpop.f32.mrf.mxu0
    %10017 = vdwg.mxu0
    %v10018 = vpack.c.bf16 %v9976, %v9972
    %v10019 = vpack.c.bf16 %v9978, %v9974
    %v10020 = vpack.c.bf16 %v9986, %v9982
    %v10021 = vpack.c.bf16 %v9988, %v9984
    %v10022 = vpack.c.bf16 %v9996, %v9992
    %v10023 = vpack.c.bf16 %v9998, %v9994
    %v10024 = vpack.c.bf16 %v10006, %v10002
    %v10025 = vpack.c.bf16 %v10008, %v10004
    %v10026 = vpack.c.bf16 %v10012, %v10012
    %v10027 = vpack.c.bf16 %v10014, %v10014
    %v10038 = vunpack.c.l.b16 %v10018
    %v10039 = vunpack.c.l.b16 %v10019
    %v10040 = vunpack.c.h.b16 %v10018
    %v10041 = vunpack.c.h.b16 %v10019
    %v10042 = vunpack.c.l.b16 %v10020
    %v10043 = vunpack.c.l.b16 %v10021
    %v10044 = vunpack.c.h.b16 %v10020
    %v10045 = vunpack.c.h.b16 %v10021
    %v10046 = vunpack.c.l.b16 %v10022
    %v10047 = vunpack.c.l.b16 %v10023
    %v10048 = vunpack.c.h.b16 %v10022
    %v10049 = vunpack.c.h.b16 %v10023
    %v10050 = vunpack.c.l.b16 %v10024
    %v10051 = vunpack.c.l.b16 %v10025
    %v10052 = vunpack.c.h.b16 %v10024
    %v10053 = vunpack.c.h.b16 %v10025
    %v10054 = vunpack.c.l.b16 %v10026
    %v10055 = vunpack.c.l.b16 %v10027
    %v10056 = vld [vmem:[#allocation16] sm:$0xff]
    %v10057 = vld [vmem:[#allocation16 + $0x8] sm:$0xff]
    %v10058 = vld [vmem:[#allocation16 + $0x10] sm:$0xff]
    %v10059 = vld [vmem:[#allocation16 + $0x18] sm:$0xff]
    %v10060 = vld [vmem:[#allocation16 + $0x20] sm:$0xff]
    %v10061 = vld [vmem:[#allocation16 + $0x28] sm:$0xff]
    %v10062 = vld [vmem:[#allocation16 + $0x30] sm:$0xff]
    %v10063 = vld [vmem:[#allocation16 + $0x38] sm:$0xff]
    %v10064 = vld [vmem:[#allocation16 + $0x40] sm:$0xff]
    %v10065 = vld [vmem:[#allocation16 + $0x48] sm:$0xff]
    %v10066 = vld [vmem:[#allocation16 + $0x50] sm:$0xff]
    %v10067 = vld [vmem:[#allocation16 + $0x58] sm:$0xff]
    %v10068 = vld [vmem:[#allocation16 + $0x60] sm:$0xff]
    %v10069 = vld [vmem:[#allocation16 + $0x68] sm:$0xff]
    %v10070 = vld [vmem:[#allocation16 + $0x70] sm:$0xff]
    %v10071 = vld [vmem:[#allocation16 + $0x78] sm:$0xff]
    %v10072 = vld [vmem:[#allocation16 + $0x80] sm:$0xff]
    %v10073 = vld [vmem:[#allocation16 + $0x88] sm:$0xff]
    %v10074 = vld [vmem:[#allocation16 + $0x90] sm:$0xff]
    %v10075 = vld [vmem:[#allocation16 + $0x98] sm:$0xff]
    %v10076 = vld [vmem:[#allocation16 + $0xa0] sm:$0xff]
    %v10077 = vld [vmem:[#allocation16 + $0xa8] sm:$0xff]
    %v10078 = vld [vmem:[#allocation16 + $0xb0] sm:$0xff]
    %v10079 = vld [vmem:[#allocation16 + $0xb8] sm:$0xff]
    %v10080 = vld [vmem:[#allocation16 + $0xc0] sm:$0xff]
    %v10081 = vld [vmem:[#allocation16 + $0xc8] sm:$0xff]
    %v10082 = vld [vmem:[#allocation16 + $0xd0] sm:$0xff]
    %v10083 = vld [vmem:[#allocation16 + $0xd8] sm:$0xff]
    %v10084 = vld [vmem:[#allocation16 + $0xe0] sm:$0xff]
    %v10085 = vld [vmem:[#allocation16 + $0xe8] sm:$0xff]
    %v10086 = vld [vmem:[#allocation16 + $0xf0] sm:$0xff]
    %v10087 = vld [vmem:[#allocation16 + $0xf8] sm:$0xff]
    %v10088 = vld [vmem:[#allocation16 + $0x100] sm:$0xff]
    %v10089 = vld [vmem:[#allocation16 + $0x108] sm:$0xff]
    %v10090 = vld [vmem:[#allocation16 + $0x110] sm:$0xff]
    %v10091 = vld [vmem:[#allocation16 + $0x118] sm:$0xff]
    %v10092 = vld [vmem:[#allocation16 + $0x120] sm:$0xff]
    %v10093 = vld [vmem:[#allocation16 + $0x128] sm:$0xff]
    %v10094 = vld [vmem:[#allocation16 + $0x130] sm:$0xff]
    %v10095 = vld [vmem:[#allocation16 + $0x138] sm:$0xff]
    %v10096 = vld [vmem:[#allocation16 + $0x140] sm:$0xff]
    %v10097 = vld [vmem:[#allocation16 + $0x148] sm:$0xff]
    %v10098 = vld [vmem:[#allocation16 + $0x150] sm:$0xff]
    %v10099 = vld [vmem:[#allocation16 + $0x158] sm:$0xff]
    %v10100 = vld [vmem:[#allocation16 + $0x160] sm:$0xff]
    %v10101 = vld [vmem:[#allocation16 + $0x168] sm:$0xff]
    %v10102 = vld [vmem:[#allocation16 + $0x170] sm:$0xff]
    %v10103 = vld [vmem:[#allocation16 + $0x178] sm:$0xff]
    %v10104 = vld [vmem:[#allocation16 + $0x180] sm:$0xff]
    %v10105 = vld [vmem:[#allocation16 + $0x188] sm:$0xff]
    %v10106 = vld [vmem:[#allocation16 + $0x190] sm:$0xff]
    %v10107 = vld [vmem:[#allocation16 + $0x198] sm:$0xff]
    %v10108 = vld [vmem:[#allocation16 + $0x1a0] sm:$0xff]
    %v10109 = vld [vmem:[#allocation16 + $0x1a8] sm:$0xff]
    %v10110 = vld [vmem:[#allocation16 + $0x1b0] sm:$0xff]
    %v10111 = vld [vmem:[#allocation16 + $0x1b8] sm:$0xff]
    %v10112 = vld [vmem:[#allocation16 + $0x1c0] sm:$0xff]
    %v10113 = vld [vmem:[#allocation16 + $0x1c8] sm:$0xff]
    %v10114 = vld [vmem:[#allocation16 + $0x1d0] sm:$0xff]
    %v10115 = vld [vmem:[#allocation16 + $0x1d8] sm:$0xff]
    %v10116 = vld [vmem:[#allocation16 + $0x1e0] sm:$0xff]
    %v10117 = vld [vmem:[#allocation16 + $0x1e8] sm:$0xff]
    %v10118 = vld [vmem:[#allocation16 + $0x1f0] sm:$0xff]
    %v10119 = vld [vmem:[#allocation16 + $0x1f8] sm:$0xff]
    %v10120 = vld [vmem:[#allocation16 + $0x200] sm:$0xff]
    %v10121 = vld [vmem:[#allocation16 + $0x208] sm:$0xff]
    %v10122 = vld [vmem:[#allocation16 + $0x210] sm:$0xff]
    %v10123 = vld [vmem:[#allocation16 + $0x218] sm:$0xff]
    %v10124 = vld [vmem:[#allocation16 + $0x220] sm:$0xff]
    %v10125 = vld [vmem:[#allocation16 + $0x228] sm:$0xff]
    %v10126 = vld [vmem:[#allocation16 + $0x230] sm:$0xff]
    %v10127 = vld [vmem:[#allocation16 + $0x238] sm:$0xff]
    %v10128 = vld [vmem:[#allocation16 + $0x240] sm:$0xff]
    %v10129 = vld [vmem:[#allocation16 + $0x248] sm:$0xff]
    %v10130 = vld [vmem:[#allocation16 + $0x250] sm:$0xff]
    %v10131 = vld [vmem:[#allocation16 + $0x258] sm:$0xff]
    %v10132 = vld [vmem:[#allocation16 + $0x260] sm:$0xff]
    %v10133 = vld [vmem:[#allocation16 + $0x268] sm:$0xff]
    %v10134 = vld [vmem:[#allocation16 + $0x270] sm:$0xff]
    %v10135 = vld [vmem:[#allocation16 + $0x278] sm:$0xff]
    %v10136 = vld [vmem:[#allocation16 + $0x280] sm:$0xff]
    %v10137 = vld [vmem:[#allocation16 + $0x288] sm:$0xff]
    %v10138 = vld [vmem:[#allocation16 + $0x290] sm:$0xff]
    %v10139 = vld [vmem:[#allocation16 + $0x298] sm:$0xff]
    %v10140 = vld [vmem:[#allocation16 + $0x2a0] sm:$0xff]
    %v10141 = vld [vmem:[#allocation16 + $0x2a8] sm:$0xff]
    %v10142 = vld [vmem:[#allocation16 + $0x2b0] sm:$0xff]
    %v10143 = vld [vmem:[#allocation16 + $0x2b8] sm:$0xff]
    %v10144 = vld [vmem:[#allocation16 + $0x2c0] sm:$0xff]
    %v10145 = vld [vmem:[#allocation16 + $0x2c8] sm:$0xff]
    %v10146 = vld [vmem:[#allocation16 + $0x2d0] sm:$0xff]
    %v10147 = vld [vmem:[#allocation16 + $0x2d8] sm:$0xff]
    %v10148 = vld [vmem:[#allocation16 + $0x2e0] sm:$0xff]
    %v10149 = vld [vmem:[#allocation16 + $0x2e8] sm:$0xff]
    %v10150 = vld [vmem:[#allocation16 + $0x2f0] sm:$0xff]
    %v10151 = vld [vmem:[#allocation16 + $0x2f8] sm:$0xff]
    %v10152 = vld [vmem:[#allocation16 + $0x300] sm:$0xff]
    %v10153 = vld [vmem:[#allocation16 + $0x308] sm:$0xff]
    %v10154 = vld [vmem:[#allocation16 + $0x310] sm:$0xff]
    %v10155 = vld [vmem:[#allocation16 + $0x318] sm:$0xff]
    %v10156 = vld [vmem:[#allocation16 + $0x320] sm:$0xff]
    %v10157 = vld [vmem:[#allocation16 + $0x328] sm:$0xff]
    %v10158 = vld [vmem:[#allocation16 + $0x330] sm:$0xff]
    %v10159 = vld [vmem:[#allocation16 + $0x338] sm:$0xff]
    %v10160 = vld [vmem:[#allocation16 + $0x340] sm:$0xff]
    %v10161 = vld [vmem:[#allocation16 + $0x348] sm:$0xff]
    %v10162 = vld [vmem:[#allocation16 + $0x350] sm:$0xff]
    %v10163 = vld [vmem:[#allocation16 + $0x358] sm:$0xff]
    %v10164 = vld [vmem:[#allocation16 + $0x360] sm:$0xff]
    %v10165 = vld [vmem:[#allocation16 + $0x368] sm:$0xff]
    %v10166 = vld [vmem:[#allocation16 + $0x370] sm:$0xff]
    %v10167 = vld [vmem:[#allocation16 + $0x378] sm:$0xff]
    %v10168 = vld [vmem:[#allocation16 + $0x380] sm:$0xff]
    %v10169 = vld [vmem:[#allocation16 + $0x388] sm:$0xff]
    %v10170 = vld [vmem:[#allocation16 + $0x390] sm:$0xff]
    %v10171 = vld [vmem:[#allocation16 + $0x398] sm:$0xff]
    %v10172 = vld [vmem:[#allocation16 + $0x3a0] sm:$0xff]
    %v10173 = vld [vmem:[#allocation16 + $0x3a8] sm:$0xff]
    %v10174 = vld [vmem:[#allocation16 + $0x3b0] sm:$0xff]
    %v10175 = vld [vmem:[#allocation16 + $0x3b8] sm:$0xff]
    %v10176 = vld [vmem:[#allocation16 + $0x3c0] sm:$0xff]
    %v10177 = vld [vmem:[#allocation16 + $0x3c8] sm:$0xff]
    %v10178 = vld [vmem:[#allocation16 + $0x3d0] sm:$0xff]
    %v10179 = vld [vmem:[#allocation16 + $0x3d8] sm:$0xff]
    %v10180 = vld [vmem:[#allocation16 + $0x3e0] sm:$0xff]
    %v10181 = vld [vmem:[#allocation16 + $0x3e8] sm:$0xff]
    %v10182 = vld [vmem:[#allocation16 + $0x3f0] sm:$0xff]
    %v10183 = vld [vmem:[#allocation16 + $0x3f8] sm:$0xff]
    %v10184 = vld [vmem:[#allocation16 + $0x400] sm:$0xff]
    %v10185 = vld [vmem:[#allocation16 + $0x408] sm:$0xff]
    %v10186 = vld [vmem:[#allocation16 + $0x410] sm:$0xff]
    %v10187 = vld [vmem:[#allocation16 + $0x418] sm:$0xff]
    %v10188 = vld [vmem:[#allocation16 + $0x420] sm:$0xff]
    %v10189 = vld [vmem:[#allocation16 + $0x428] sm:$0xff]
    %v10190 = vld [vmem:[#allocation16 + $0x430] sm:$0xff]
    %v10191 = vld [vmem:[#allocation16 + $0x438] sm:$0xff]
    %v10192 = vld [vmem:[#allocation16 + $0x440] sm:$0xff]
    %v10193 = vld [vmem:[#allocation16 + $0x448] sm:$0xff]
    %v10194 = vld [vmem:[#allocation16 + $0x450] sm:$0xff]
    %v10195 = vld [vmem:[#allocation16 + $0x458] sm:$0xff]
    %v10196 = vld [vmem:[#allocation16 + $0x460] sm:$0xff]
    %v10197 = vld [vmem:[#allocation16 + $0x468] sm:$0xff]
    %v10198 = vld [vmem:[#allocation16 + $0x470] sm:$0xff]
    %v10199 = vld [vmem:[#allocation16 + $0x478] sm:$0xff]
    %v10200 = vld [vmem:[#allocation16 + $0x480] sm:$0xff]
    %v10201 = vld [vmem:[#allocation16 + $0x488] sm:$0xff]
    %v10202 = vld [vmem:[#allocation16 + $0x490] sm:$0xff]
    %v10203 = vld [vmem:[#allocation16 + $0x498] sm:$0xff]
    %v10204 = vld [vmem:[#allocation16 + $0x4a0] sm:$0xff]
    %v10205 = vld [vmem:[#allocation16 + $0x4a8] sm:$0xff]
    %v10206 = vld [vmem:[#allocation16 + $0x4b0] sm:$0xff]
    %v10207 = vld [vmem:[#allocation16 + $0x4b8] sm:$0xff]
    %v10208 = vld [vmem:[#allocation16 + $0x4c0] sm:$0xff]
    %v10209 = vld [vmem:[#allocation16 + $0x4c8] sm:$0xff]
    %v10210 = vld [vmem:[#allocation16 + $0x4d0] sm:$0xff]
    %v10211 = vld [vmem:[#allocation16 + $0x4d8] sm:$0xff]
    %v10212 = vld [vmem:[#allocation16 + $0x4e0] sm:$0xff]
    %v10213 = vld [vmem:[#allocation16 + $0x4e8] sm:$0xff]
    %v10214 = vld [vmem:[#allocation16 + $0x4f0] sm:$0xff]
    %v10215 = vld [vmem:[#allocation16 + $0x4f8] sm:$0xff]
    %v10216 = vld [vmem:[#allocation16 + $0x500] sm:$0xff]
    %v10217 = vld [vmem:[#allocation16 + $0x508] sm:$0xff]
    %v10218 = vld [vmem:[#allocation16 + $0x510] sm:$0xff]
    %v10219 = vld [vmem:[#allocation16 + $0x518] sm:$0xff]
    %v10220 = vld [vmem:[#allocation16 + $0x520] sm:$0xff]
    %v10221 = vld [vmem:[#allocation16 + $0x528] sm:$0xff]
    %v10222 = vld [vmem:[#allocation16 + $0x530] sm:$0xff]
    %v10223 = vld [vmem:[#allocation16 + $0x538] sm:$0xff]
    %v10224 = vld [vmem:[#allocation16 + $0x540] sm:$0xff]
    %v10225 = vld [vmem:[#allocation16 + $0x548] sm:$0xff]
    %v10226 = vld [vmem:[#allocation16 + $0x550] sm:$0xff]
    %v10227 = vld [vmem:[#allocation16 + $0x558] sm:$0xff]
    %v10228 = vld [vmem:[#allocation16 + $0x560] sm:$0xff]
    %v10229 = vld [vmem:[#allocation16 + $0x568] sm:$0xff]
    %v10230 = vld [vmem:[#allocation16 + $0x570] sm:$0xff]
    %v10231 = vld [vmem:[#allocation16 + $0x578] sm:$0xff]
    %v10232 = vld [vmem:[#allocation16 + $0x580] sm:$0xff]
    %v10233 = vld [vmem:[#allocation16 + $0x588] sm:$0xff]
    %v10234 = vld [vmem:[#allocation16 + $0x590] sm:$0xff]
    %v10235 = vld [vmem:[#allocation16 + $0x598] sm:$0xff]
    %v10236 = vld [vmem:[#allocation16 + $0x5a0] sm:$0xff]
    %v10237 = vld [vmem:[#allocation16 + $0x5a8] sm:$0xff]
    %v10238 = vld [vmem:[#allocation16 + $0x5b0] sm:$0xff]
    %v10239 = vld [vmem:[#allocation16 + $0x5b8] sm:$0xff]
    %v10240 = vld [vmem:[#allocation16 + $0x5c0] sm:$0xff]
    %v10241 = vld [vmem:[#allocation16 + $0x5c8] sm:$0xff]
    %v10242 = vld [vmem:[#allocation16 + $0x5d0] sm:$0xff]
    %v10243 = vld [vmem:[#allocation16 + $0x5d8] sm:$0xff]
    %v10244 = vld [vmem:[#allocation16 + $0x5e0] sm:$0xff]
    %v10245 = vld [vmem:[#allocation16 + $0x5e8] sm:$0xff]
    %v10246 = vld [vmem:[#allocation16 + $0x5f0] sm:$0xff]
    %v10247 = vld [vmem:[#allocation16 + $0x5f8] sm:$0xff]
    %v10248 = vld [vmem:[#allocation16 + $0x600] sm:$0xff]
    %v10249 = vld [vmem:[#allocation16 + $0x608] sm:$0xff]
    %v10250 = vld [vmem:[#allocation16 + $0x610] sm:$0xff]
    %v10251 = vld [vmem:[#allocation16 + $0x618] sm:$0xff]
    %v10252 = vld [vmem:[#allocation16 + $0x620] sm:$0xff]
    %v10253 = vld [vmem:[#allocation16 + $0x628] sm:$0xff]
    %v10254 = vld [vmem:[#allocation16 + $0x630] sm:$0xff]
    %v10255 = vld [vmem:[#allocation16 + $0x638] sm:$0xff]
    %v10256 = vld [vmem:[#allocation16 + $0x640] sm:$0xff]
    %v10257 = vld [vmem:[#allocation16 + $0x648] sm:$0xff]
    %v10258 = vld [vmem:[#allocation16 + $0x650] sm:$0xff]
    %v10259 = vld [vmem:[#allocation16 + $0x658] sm:$0xff]
    %v10260 = vld [vmem:[#allocation16 + $0x660] sm:$0xff]
    %v10261 = vld [vmem:[#allocation16 + $0x668] sm:$0xff]
    %v10262 = vld [vmem:[#allocation16 + $0x670] sm:$0xff]
    %v10263 = vld [vmem:[#allocation16 + $0x678] sm:$0xff]
    %v10264 = vld [vmem:[#allocation16 + $0x680] sm:$0xff]
    %v10265 = vld [vmem:[#allocation16 + $0x688] sm:$0xff]
    %v10266 = vld [vmem:[#allocation16 + $0x690] sm:$0xff]
    %v10267 = vld [vmem:[#allocation16 + $0x698] sm:$0xff]
    %v10268 = vld [vmem:[#allocation16 + $0x6a0] sm:$0xff]
    %v10269 = vld [vmem:[#allocation16 + $0x6a8] sm:$0xff]
    %v10270 = vld [vmem:[#allocation16 + $0x6b0] sm:$0xff]
    %v10271 = vld [vmem:[#allocation16 + $0x6b8] sm:$0xff]
    %v10272 = vld [vmem:[#allocation16 + $0x6c0] sm:$0xff]
    %v10273 = vld [vmem:[#allocation16 + $0x6c8] sm:$0xff]
    %v10274 = vld [vmem:[#allocation16 + $0x6d0] sm:$0xff]
    %v10275 = vld [vmem:[#allocation16 + $0x6d8] sm:$0xff]
    %v10276 = vld [vmem:[#allocation16 + $0x6e0] sm:$0xff]
    %v10277 = vld [vmem:[#allocation16 + $0x6e8] sm:$0xff]
    %v10278 = vld [vmem:[#allocation16 + $0x6f0] sm:$0xff]
    %v10279 = vld [vmem:[#allocation16 + $0x6f8] sm:$0xff]
    %v10280 = vld [vmem:[#allocation16 + $0x700] sm:$0xff]
    %v10281 = vld [vmem:[#allocation16 + $0x708] sm:$0xff]
    %v10282 = vld [vmem:[#allocation16 + $0x710] sm:$0xff]
    %v10283 = vld [vmem:[#allocation16 + $0x718] sm:$0xff]
    %v10284 = vld [vmem:[#allocation16 + $0x720] sm:$0xff]
    %v10285 = vld [vmem:[#allocation16 + $0x728] sm:$0xff]
    %v10286 = vld [vmem:[#allocation16 + $0x730] sm:$0xff]
    %v10287 = vld [vmem:[#allocation16 + $0x738] sm:$0xff]
    %v10288 = vld [vmem:[#allocation16 + $0x740] sm:$0xff]
    %v10289 = vld [vmem:[#allocation16 + $0x748] sm:$0xff]
    %v10290 = vld [vmem:[#allocation16 + $0x750] sm:$0xff]
    %v10291 = vld [vmem:[#allocation16 + $0x758] sm:$0xff]
    %v10292 = vld [vmem:[#allocation16 + $0x760] sm:$0xff]
    %v10293 = vld [vmem:[#allocation16 + $0x768] sm:$0xff]
    %v10294 = vld [vmem:[#allocation16 + $0x770] sm:$0xff]
    %v10295 = vld [vmem:[#allocation16 + $0x778] sm:$0xff]
    %v10296 = vld [vmem:[#allocation16 + $0x780] sm:$0xff]
    %v10297 = vld [vmem:[#allocation16 + $0x788] sm:$0xff]
    %v10298 = vld [vmem:[#allocation16 + $0x790] sm:$0xff]
    %v10299 = vld [vmem:[#allocation16 + $0x798] sm:$0xff]
    %v10300 = vld [vmem:[#allocation16 + $0x7a0] sm:$0xff]
    %v10301 = vld [vmem:[#allocation16 + $0x7a8] sm:$0xff]
    %v10302 = vld [vmem:[#allocation16 + $0x7b0] sm:$0xff]
    %v10303 = vld [vmem:[#allocation16 + $0x7b8] sm:$0xff]
    %v10304 = vld [vmem:[#allocation16 + $0x7c0] sm:$0xff]
    %v10305 = vld [vmem:[#allocation16 + $0x7c8] sm:$0xff]
    %v10306 = vld [vmem:[#allocation16 + $0x7d0] sm:$0xff]
    %v10307 = vld [vmem:[#allocation16 + $0x7d8] sm:$0xff]
    %v10308 = vld [vmem:[#allocation16 + $0x7e0] sm:$0xff]
    %v10309 = vld [vmem:[#allocation16 + $0x7e8] sm:$0xff]
    %v10310 = vld [vmem:[#allocation16 + $0x7f0] sm:$0xff]
    %v10311 = vld [vmem:[#allocation16 + $0x7f8] sm:$0xff]
    %v10312 = vld [vmem:[#allocation16 + $0x800] sm:$0xff]
    %v10313 = vld [vmem:[#allocation16 + $0x808] sm:$0xff]
    %v10314 = vld [vmem:[#allocation16 + $0x810] sm:$0xff]
    %v10315 = vld [vmem:[#allocation16 + $0x818] sm:$0xff]
    %v10316 = vld [vmem:[#allocation16 + $0x820] sm:$0xff]
    %v10317 = vld [vmem:[#allocation16 + $0x828] sm:$0xff]
    %v10318 = vld [vmem:[#allocation16 + $0x830] sm:$0xff]
    %v10319 = vld [vmem:[#allocation16 + $0x838] sm:$0xff]
    %v10320 = vld [vmem:[#allocation16 + $0x840] sm:$0xff]
    %v10321 = vld [vmem:[#allocation16 + $0x848] sm:$0xff]
    %v10322 = vld [vmem:[#allocation16 + $0x850] sm:$0xff]
    %v10323 = vld [vmem:[#allocation16 + $0x858] sm:$0xff]
    %v10324 = vld [vmem:[#allocation16 + $0x860] sm:$0xff]
    %v10325 = vld [vmem:[#allocation16 + $0x868] sm:$0xff]
    %v10326 = vld [vmem:[#allocation16 + $0x870] sm:$0xff]
    %v10327 = vld [vmem:[#allocation16 + $0x878] sm:$0xff]
    %v10328 = vld [vmem:[#allocation16 + $0x880] sm:$0xff]
    %v10329 = vld [vmem:[#allocation16 + $0x888] sm:$0xff]
    %v10330 = vld [vmem:[#allocation16 + $0x890] sm:$0xff]
    %v10331 = vld [vmem:[#allocation16 + $0x898] sm:$0xff]
    %v10332 = vld [vmem:[#allocation16 + $0x8a0] sm:$0xff]
    %v10333 = vld [vmem:[#allocation16 + $0x8a8] sm:$0xff]
    %v10334 = vld [vmem:[#allocation16 + $0x8b0] sm:$0xff]
    %v10335 = vld [vmem:[#allocation16 + $0x8b8] sm:$0xff]
    %v10336 = vld [vmem:[#allocation16 + $0x8c0] sm:$0xff]
    %v10337 = vld [vmem:[#allocation16 + $0x8c8] sm:$0xff]
    %v10338 = vld [vmem:[#allocation16 + $0x8d0] sm:$0xff]
    %v10339 = vld [vmem:[#allocation16 + $0x8d8] sm:$0xff]
    %v10340 = vld [vmem:[#allocation16 + $0x8e0] sm:$0xff]
    %v10341 = vld [vmem:[#allocation16 + $0x8e8] sm:$0xff]
    %v10342 = vld [vmem:[#allocation16 + $0x8f0] sm:$0xff]
    %v10343 = vld [vmem:[#allocation16 + $0x8f8] sm:$0xff]
    %v10344 = vpack.c.b16 %v10038, %v10038
    %v10345 = vpack.c.b16 %v10039, %v10039
    %v10380 = vunpack.c.l.b16 %v10056
    %v10381 = vunpack.c.h.b16 %v10056
    %v10382 = vunpack.c.l.b16 %v10057
    %v10383 = vunpack.c.h.b16 %v10057
    %v10384 = vunpack.c.l.b16 %v10058
    %v10385 = vunpack.c.h.b16 %v10058
    %v10386 = vunpack.c.l.b16 %v10059
    %v10387 = vunpack.c.h.b16 %v10059
    %v10388 = vunpack.c.l.b16 %v10060
    %v10389 = vunpack.c.h.b16 %v10060
    %v10390 = vunpack.c.l.b16 %v10061
    %v10391 = vunpack.c.h.b16 %v10061
    %v10392 = vunpack.c.l.b16 %v10062
    %v10393 = vunpack.c.h.b16 %v10062
    %v10394 = vunpack.c.l.b16 %v10063
    %v10395 = vunpack.c.h.b16 %v10063
    %v10396 = vunpack.c.l.b16 %v10064
    %v10397 = vunpack.c.h.b16 %v10064
    %v10398 = vunpack.c.l.b16 %v10065
    %v10399 = vunpack.c.h.b16 %v10065
    %v10400 = vunpack.c.l.b16 %v10066
    %v10401 = vunpack.c.h.b16 %v10066
    %v10402 = vunpack.c.l.b16 %v10067
    %v10403 = vunpack.c.h.b16 %v10067
    %v10404 = vunpack.c.l.b16 %v10068
    %v10405 = vunpack.c.h.b16 %v10068
    %v10406 = vunpack.c.l.b16 %v10069
    %v10407 = vunpack.c.h.b16 %v10069
    %v10408 = vunpack.c.l.b16 %v10070
    %v10409 = vunpack.c.h.b16 %v10070
    %v10410 = vunpack.c.l.b16 %v10071
    %v10411 = vunpack.c.h.b16 %v10071
    %v10412 = vunpack.c.l.b16 %v10072
    %v10413 = vunpack.c.h.b16 %v10072
    %v10414 = vunpack.c.l.b16 %v10073
    %v10415 = vunpack.c.h.b16 %v10073
    %v10416 = vunpack.c.l.b16 %v10074
    %v10417 = vunpack.c.h.b16 %v10074
    %v10418 = vunpack.c.l.b16 %v10075
    %v10419 = vunpack.c.h.b16 %v10075
    %v10420 = vunpack.c.l.b16 %v10076
    %v10421 = vunpack.c.h.b16 %v10076
    %v10422 = vunpack.c.l.b16 %v10077
    %v10423 = vunpack.c.h.b16 %v10077
    %v10424 = vunpack.c.l.b16 %v10078
    %v10425 = vunpack.c.h.b16 %v10078
    %v10426 = vunpack.c.l.b16 %v10079
    %v10427 = vunpack.c.h.b16 %v10079
    %v10428 = vunpack.c.l.b16 %v10080
    %v10429 = vunpack.c.h.b16 %v10080
    %v10430 = vunpack.c.l.b16 %v10081
    %v10431 = vunpack.c.h.b16 %v10081
    %v10432 = vunpack.c.l.b16 %v10082
    %v10433 = vunpack.c.h.b16 %v10082
    %v10434 = vunpack.c.l.b16 %v10083
    %v10435 = vunpack.c.h.b16 %v10083
    %v10436 = vunpack.c.l.b16 %v10084
    %v10437 = vunpack.c.h.b16 %v10084
    %v10438 = vunpack.c.l.b16 %v10085
    %v10439 = vunpack.c.h.b16 %v10085
    %v10440 = vunpack.c.l.b16 %v10086
    %v10441 = vunpack.c.h.b16 %v10086
    %v10442 = vunpack.c.l.b16 %v10087
    %v10443 = vunpack.c.h.b16 %v10087
    %v10444 = vpack.c.b16 %v10382, %v10380
    %v10445 = vpack.c.b16 %v10383, %v10381
    %v10446 = vpack.c.b16 %v10386, %v10384
    %v10447 = vpack.c.b16 %v10387, %v10385
    %v10448 = vpack.c.b16 %v10390, %v10388
    %v10449 = vpack.c.b16 %v10391, %v10389
    %v10450 = vpack.c.b16 %v10394, %v10392
    %v10451 = vpack.c.b16 %v10395, %v10393
    %v10452 = vpack.c.b16 %v10398, %v10396
    %v10453 = vpack.c.b16 %v10399, %v10397
    %v10454 = vpack.c.b16 %v10402, %v10400
    %v10455 = vpack.c.b16 %v10403, %v10401
    %v10456 = vpack.c.b16 %v10406, %v10404
    %v10457 = vpack.c.b16 %v10407, %v10405
    %v10458 = vpack.c.b16 %v10410, %v10408
    %v10459 = vpack.c.b16 %v10411, %v10409
    %v10460 = vpack.c.b16 %v10414, %v10412
    %v10461 = vpack.c.b16 %v10415, %v10413
    %v10462 = vpack.c.b16 %v10418, %v10416
    %v10463 = vpack.c.b16 %v10419, %v10417
    %v10464 = vpack.c.b16 %v10422, %v10420
    %v10465 = vpack.c.b16 %v10423, %v10421
    %v10466 = vpack.c.b16 %v10426, %v10424
    %v10467 = vpack.c.b16 %v10427, %v10425
    %v10468 = vpack.c.b16 %v10430, %v10428
    %v10469 = vpack.c.b16 %v10431, %v10429
    %v10470 = vpack.c.b16 %v10434, %v10432
    %v10471 = vpack.c.b16 %v10435, %v10433
    %v10472 = vpack.c.b16 %v10438, %v10436
    %v10473 = vpack.c.b16 %v10439, %v10437
    %v10474 = vpack.c.b16 %v10442, %v10440
    %v10475 = vpack.c.b16 %v10443, %v10441
    %10508 = vmatprep.subr.bf16.mxu0 %v10459
    %10509 = vmatpush1.bf16.msra.mxu0 %v10458
    %10510 = vmatprep.subr.bf16.mxu0 %v10457
    %10511 = vmatpush1.bf16.msra.mxu0 %v10456
    %10512 = vmatprep.subr.bf16.mxu0 %v10455
    %10513 = vmatpush1.bf16.msra.mxu0 %v10454
    %10514 = vmatprep.subr.bf16.mxu0 %v10453
    %10515 = vmatpush1.bf16.msra.mxu0 %v10452
    %10516 = vmatprep.subr.bf16.mxu0 %v10451
    %10517 = vmatpush1.bf16.msra.mxu0 %v10450
    %10518 = vmatprep.subr.bf16.mxu0 %v10449
    %10519 = vmatpush1.bf16.msra.mxu0 %v10448
    %10520 = vmatprep.subr.bf16.mxu0 %v10447
    %10521 = vmatpush1.bf16.msra.mxu0 %v10446
    %10522 = vmatprep.subr.bf16.mxu0 %v10445
    %10523 = vmatpush1.bf16.msra.mxu0 %v10444
    %10524 = vmatprep.subr.bf16.mxu0 %v10475
    %10525 = vmatpush2.bf16.msra.mxu0 %v10474
    %10526 = vmatprep.subr.bf16.mxu0 %v10473
    %10527 = vmatpush2.bf16.msra.mxu0 %v10472
    %10528 = vmatprep.subr.bf16.mxu0 %v10471
    %10529 = vmatpush2.bf16.msra.mxu0 %v10470
    %10530 = vmatprep.subr.bf16.mxu0 %v10469
    %10531 = vmatpush2.bf16.msra.mxu0 %v10468
    %10532 = vmatprep.subr.bf16.mxu0 %v10467
    %10533 = vmatpush2.bf16.msra.mxu0 %v10466
    %10534 = vmatprep.subr.bf16.mxu0 %v10465
    %10535 = vmatpush2.bf16.msra.mxu0 %v10464
    %10536 = vmatprep.subr.bf16.mxu0 %v10463
    %10537 = vmatpush2.bf16.msra.mxu0 %v10462
    %10538 = vmatprep.subr.bf16.mxu0 %v10461
    %10539 = vmatpush2.bf16.msra.mxu0 %v10460
    %10540 = vmatprep.mubr.bf16.mxu0 %v10345
    %10541 = vmatmul.mubr.bf16.gmra.mxu0 %v10344
    %v10542 = vpop.f32.mrf.mxu0
    %v10543 = vadd.f32 0.0, %v10542
    %v10544 = vpop.f32.mrf.mxu0
    %v10545 = vadd.f32 0.0, %v10544
    %v10546 = vpop.f32.mrf.mxu0
    %v10547 = vpop.f32.mrf.mxu0
    %10548 = vdwg.mxu0
    %v10549 = vpack.c.b16 %v10040, %v10040
    %v10550 = vpack.c.b16 %v10041, %v10041
    %v10585 = vunpack.c.l.b16 %v10088
    %v10586 = vunpack.c.h.b16 %v10088
    %v10587 = vunpack.c.l.b16 %v10089
    %v10588 = vunpack.c.h.b16 %v10089
    %v10589 = vunpack.c.l.b16 %v10090
    %v10590 = vunpack.c.h.b16 %v10090
    %v10591 = vunpack.c.l.b16 %v10091
    %v10592 = vunpack.c.h.b16 %v10091
    %v10593 = vunpack.c.l.b16 %v10092
    %v10594 = vunpack.c.h.b16 %v10092
    %v10595 = vunpack.c.l.b16 %v10093
    %v10596 = vunpack.c.h.b16 %v10093
    %v10597 = vunpack.c.l.b16 %v10094
    %v10598 = vunpack.c.h.b16 %v10094
    %v10599 = vunpack.c.l.b16 %v10095
    %v10600 = vunpack.c.h.b16 %v10095
    %v10601 = vunpack.c.l.b16 %v10096
    %v10602 = vunpack.c.h.b16 %v10096
    %v10603 = vunpack.c.l.b16 %v10097
    %v10604 = vunpack.c.h.b16 %v10097
    %v10605 = vunpack.c.l.b16 %v10098
    %v10606 = vunpack.c.h.b16 %v10098
    %v10607 = vunpack.c.l.b16 %v10099
    %v10608 = vunpack.c.h.b16 %v10099
    %v10609 = vunpack.c.l.b16 %v10100
    %v10610 = vunpack.c.h.b16 %v10100
    %v10611 = vunpack.c.l.b16 %v10101
    %v10612 = vunpack.c.h.b16 %v10101
    %v10613 = vunpack.c.l.b16 %v10102
    %v10614 = vunpack.c.h.b16 %v10102
    %v10615 = vunpack.c.l.b16 %v10103
    %v10616 = vunpack.c.h.b16 %v10103
    %v10617 = vunpack.c.l.b16 %v10104
    %v10618 = vunpack.c.h.b16 %v10104
    %v10619 = vunpack.c.l.b16 %v10105
    %v10620 = vunpack.c.h.b16 %v10105
    %v10621 = vunpack.c.l.b16 %v10106
    %v10622 = vunpack.c.h.b16 %v10106
    %v10623 = vunpack.c.l.b16 %v10107
    %v10624 = vunpack.c.h.b16 %v10107
    %v10625 = vunpack.c.l.b16 %v10108
    %v10626 = vunpack.c.h.b16 %v10108
    %v10627 = vunpack.c.l.b16 %v10109
    %v10628 = vunpack.c.h.b16 %v10109
    %v10629 = vunpack.c.l.b16 %v10110
    %v10630 = vunpack.c.h.b16 %v10110
    %v10631 = vunpack.c.l.b16 %v10111
    %v10632 = vunpack.c.h.b16 %v10111
    %v10633 = vunpack.c.l.b16 %v10112
    %v10634 = vunpack.c.h.b16 %v10112
    %v10635 = vunpack.c.l.b16 %v10113
    %v10636 = vunpack.c.h.b16 %v10113
    %v10637 = vunpack.c.l.b16 %v10114
    %v10638 = vunpack.c.h.b16 %v10114
    %v10639 = vunpack.c.l.b16 %v10115
    %v10640 = vunpack.c.h.b16 %v10115
    %v10641 = vunpack.c.l.b16 %v10116
    %v10642 = vunpack.c.h.b16 %v10116
    %v10643 = vunpack.c.l.b16 %v10117
    %v10644 = vunpack.c.h.b16 %v10117
    %v10645 = vunpack.c.l.b16 %v10118
    %v10646 = vunpack.c.h.b16 %v10118
    %v10647 = vunpack.c.l.b16 %v10119
    %v10648 = vunpack.c.h.b16 %v10119
    %v10649 = vpack.c.b16 %v10587, %v10585
    %v10650 = vpack.c.b16 %v10588, %v10586
    %v10651 = vpack.c.b16 %v10591, %v10589
    %v10652 = vpack.c.b16 %v10592, %v10590
    %v10653 = vpack.c.b16 %v10595, %v10593
    %v10654 = vpack.c.b16 %v10596, %v10594
    %v10655 = vpack.c.b16 %v10599, %v10597
    %v10656 = vpack.c.b16 %v10600, %v10598
    %v10657 = vpack.c.b16 %v10603, %v10601
    %v10658 = vpack.c.b16 %v10604, %v10602
    %v10659 = vpack.c.b16 %v10607, %v10605
    %v10660 = vpack.c.b16 %v10608, %v10606
    %v10661 = vpack.c.b16 %v10611, %v10609
    %v10662 = vpack.c.b16 %v10612, %v10610
    %v10663 = vpack.c.b16 %v10615, %v10613
    %v10664 = vpack.c.b16 %v10616, %v10614
    %v10665 = vpack.c.b16 %v10619, %v10617
    %v10666 = vpack.c.b16 %v10620, %v10618
    %v10667 = vpack.c.b16 %v10623, %v10621
    %v10668 = vpack.c.b16 %v10624, %v10622
    %v10669 = vpack.c.b16 %v10627, %v10625
    %v10670 = vpack.c.b16 %v10628, %v10626
    %v10671 = vpack.c.b16 %v10631, %v10629
    %v10672 = vpack.c.b16 %v10632, %v10630
    %v10673 = vpack.c.b16 %v10635, %v10633
    %v10674 = vpack.c.b16 %v10636, %v10634
    %v10675 = vpack.c.b16 %v10639, %v10637
    %v10676 = vpack.c.b16 %v10640, %v10638
    %v10677 = vpack.c.b16 %v10643, %v10641
    %v10678 = vpack.c.b16 %v10644, %v10642
    %v10679 = vpack.c.b16 %v10647, %v10645
    %v10680 = vpack.c.b16 %v10648, %v10646
    %10713 = vmatprep.subr.bf16.mxu0 %v10664
    %10714 = vmatpush1.bf16.msra.mxu0 %v10663
    %10715 = vmatprep.subr.bf16.mxu0 %v10662
    %10716 = vmatpush1.bf16.msra.mxu0 %v10661
    %10717 = vmatprep.subr.bf16.mxu0 %v10660
    %10718 = vmatpush1.bf16.msra.mxu0 %v10659
    %10719 = vmatprep.subr.bf16.mxu0 %v10658
    %10720 = vmatpush1.bf16.msra.mxu0 %v10657
    %10721 = vmatprep.subr.bf16.mxu0 %v10656
    %10722 = vmatpush1.bf16.msra.mxu0 %v10655
    %10723 = vmatprep.subr.bf16.mxu0 %v10654
    %10724 = vmatpush1.bf16.msra.mxu0 %v10653
    %10725 = vmatprep.subr.bf16.mxu0 %v10652
    %10726 = vmatpush1.bf16.msra.mxu0 %v10651
    %10727 = vmatprep.subr.bf16.mxu0 %v10650
    %10728 = vmatpush1.bf16.msra.mxu0 %v10649
    %10729 = vmatprep.subr.bf16.mxu0 %v10680
    %10730 = vmatpush2.bf16.msra.mxu0 %v10679
    %10731 = vmatprep.subr.bf16.mxu0 %v10678
    %10732 = vmatpush2.bf16.msra.mxu0 %v10677
    %10733 = vmatprep.subr.bf16.mxu0 %v10676
    %10734 = vmatpush2.bf16.msra.mxu0 %v10675
    %10735 = vmatprep.subr.bf16.mxu0 %v10674
    %10736 = vmatpush2.bf16.msra.mxu0 %v10673
    %10737 = vmatprep.subr.bf16.mxu0 %v10672
    %10738 = vmatpush2.bf16.msra.mxu0 %v10671
    %10739 = vmatprep.subr.bf16.mxu0 %v10670
    %10740 = vmatpush2.bf16.msra.mxu0 %v10669
    %10741 = vmatprep.subr.bf16.mxu0 %v10668
    %10742 = vmatpush2.bf16.msra.mxu0 %v10667
    %10743 = vmatprep.subr.bf16.mxu0 %v10666
    %10744 = vmatpush2.bf16.msra.mxu0 %v10665
    %10745 = vmatprep.mubr.bf16.mxu0 %v10550
    %10746 = vmatmul.mubr.bf16.gmra.mxu0 %v10549
    %v10747 = vpop.f32.mrf.mxu0
    %v10748 = vadd.f32 0.0, %v10747
    %v10749 = vpop.f32.mrf.mxu0
    %v10750 = vadd.f32 0.0, %v10749
    %v10751 = vpop.f32.mrf.mxu0
    %v10752 = vpop.f32.mrf.mxu0
    %10753 = vdwg.mxu0
    %v10754 = vpack.c.b16 %v10042, %v10042
    %v10755 = vpack.c.b16 %v10043, %v10043
    %v10790 = vunpack.c.l.b16 %v10120
    %v10791 = vunpack.c.h.b16 %v10120
    %v10792 = vunpack.c.l.b16 %v10121
    %v10793 = vunpack.c.h.b16 %v10121
    %v10794 = vunpack.c.l.b16 %v10122
    %v10795 = vunpack.c.h.b16 %v10122
    %v10796 = vunpack.c.l.b16 %v10123
    %v10797 = vunpack.c.h.b16 %v10123
    %v10798 = vunpack.c.l.b16 %v10124
    %v10799 = vunpack.c.h.b16 %v10124
    %v10800 = vunpack.c.l.b16 %v10125
    %v10801 = vunpack.c.h.b16 %v10125
    %v10802 = vunpack.c.l.b16 %v10126
    %v10803 = vunpack.c.h.b16 %v10126
    %v10804 = vunpack.c.l.b16 %v10127
    %v10805 = vunpack.c.h.b16 %v10127
    %v10806 = vunpack.c.l.b16 %v10128
    %v10807 = vunpack.c.h.b16 %v10128
    %v10808 = vunpack.c.l.b16 %v10129
    %v10809 = vunpack.c.h.b16 %v10129
    %v10810 = vunpack.c.l.b16 %v10130
    %v10811 = vunpack.c.h.b16 %v10130
    %v10812 = vunpack.c.l.b16 %v10131
    %v10813 = vunpack.c.h.b16 %v10131
    %v10814 = vunpack.c.l.b16 %v10132
    %v10815 = vunpack.c.h.b16 %v10132
    %v10816 = vunpack.c.l.b16 %v10133
    %v10817 = vunpack.c.h.b16 %v10133
    %v10818 = vunpack.c.l.b16 %v10134
    %v10819 = vunpack.c.h.b16 %v10134
    %v10820 = vunpack.c.l.b16 %v10135
    %v10821 = vunpack.c.h.b16 %v10135
    %v10822 = vunpack.c.l.b16 %v10136
    %v10823 = vunpack.c.h.b16 %v10136
    %v10824 = vunpack.c.l.b16 %v10137
    %v10825 = vunpack.c.h.b16 %v10137
    %v10826 = vunpack.c.l.b16 %v10138
    %v10827 = vunpack.c.h.b16 %v10138
    %v10828 = vunpack.c.l.b16 %v10139
    %v10829 = vunpack.c.h.b16 %v10139
    %v10830 = vunpack.c.l.b16 %v10140
    %v10831 = vunpack.c.h.b16 %v10140
    %v10832 = vunpack.c.l.b16 %v10141
    %v10833 = vunpack.c.h.b16 %v10141
    %v10834 = vunpack.c.l.b16 %v10142
    %v10835 = vunpack.c.h.b16 %v10142
    %v10836 = vunpack.c.l.b16 %v10143
    %v10837 = vunpack.c.h.b16 %v10143
    %v10838 = vunpack.c.l.b16 %v10144
    %v10839 = vunpack.c.h.b16 %v10144
    %v10840 = vunpack.c.l.b16 %v10145
    %v10841 = vunpack.c.h.b16 %v10145
    %v10842 = vunpack.c.l.b16 %v10146
    %v10843 = vunpack.c.h.b16 %v10146
    %v10844 = vunpack.c.l.b16 %v10147
    %v10845 = vunpack.c.h.b16 %v10147
    %v10846 = vunpack.c.l.b16 %v10148
    %v10847 = vunpack.c.h.b16 %v10148
    %v10848 = vunpack.c.l.b16 %v10149
    %v10849 = vunpack.c.h.b16 %v10149
    %v10850 = vunpack.c.l.b16 %v10150
    %v10851 = vunpack.c.h.b16 %v10150
    %v10852 = vunpack.c.l.b16 %v10151
    %v10853 = vunpack.c.h.b16 %v10151
    %v10854 = vpack.c.b16 %v10792, %v10790
    %v10855 = vpack.c.b16 %v10793, %v10791
    %v10856 = vpack.c.b16 %v10796, %v10794
    %v10857 = vpack.c.b16 %v10797, %v10795
    %v10858 = vpack.c.b16 %v10800, %v10798
    %v10859 = vpack.c.b16 %v10801, %v10799
    %v10860 = vpack.c.b16 %v10804, %v10802
    %v10861 = vpack.c.b16 %v10805, %v10803
    %v10862 = vpack.c.b16 %v10808, %v10806
    %v10863 = vpack.c.b16 %v10809, %v10807
    %v10864 = vpack.c.b16 %v10812, %v10810
    %v10865 = vpack.c.b16 %v10813, %v10811
    %v10866 = vpack.c.b16 %v10816, %v10814
    %v10867 = vpack.c.b16 %v10817, %v10815
    %v10868 = vpack.c.b16 %v10820, %v10818
    %v10869 = vpack.c.b16 %v10821, %v10819
    %v10870 = vpack.c.b16 %v10824, %v10822
    %v10871 = vpack.c.b16 %v10825, %v10823
    %v10872 = vpack.c.b16 %v10828, %v10826
    %v10873 = vpack.c.b16 %v10829, %v10827
    %v10874 = vpack.c.b16 %v10832, %v10830
    %v10875 = vpack.c.b16 %v10833, %v10831
    %v10876 = vpack.c.b16 %v10836, %v10834
    %v10877 = vpack.c.b16 %v10837, %v10835
    %v10878 = vpack.c.b16 %v10840, %v10838
    %v10879 = vpack.c.b16 %v10841, %v10839
    %v10880 = vpack.c.b16 %v10844, %v10842
    %v10881 = vpack.c.b16 %v10845, %v10843
    %v10882 = vpack.c.b16 %v10848, %v10846
    %v10883 = vpack.c.b16 %v10849, %v10847
    %v10884 = vpack.c.b16 %v10852, %v10850
    %v10885 = vpack.c.b16 %v10853, %v10851
    %10918 = vmatprep.subr.bf16.mxu0 %v10869
    %10919 = vmatpush1.bf16.msra.mxu0 %v10868
    %10920 = vmatprep.subr.bf16.mxu0 %v10867
    %10921 = vmatpush1.bf16.msra.mxu0 %v10866
    %10922 = vmatprep.subr.bf16.mxu0 %v10865
    %10923 = vmatpush1.bf16.msra.mxu0 %v10864
    %10924 = vmatprep.subr.bf16.mxu0 %v10863
    %10925 = vmatpush1.bf16.msra.mxu0 %v10862
    %10926 = vmatprep.subr.bf16.mxu0 %v10861
    %10927 = vmatpush1.bf16.msra.mxu0 %v10860
    %10928 = vmatprep.subr.bf16.mxu0 %v10859
    %10929 = vmatpush1.bf16.msra.mxu0 %v10858
    %10930 = vmatprep.subr.bf16.mxu0 %v10857
    %10931 = vmatpush1.bf16.msra.mxu0 %v10856
    %10932 = vmatprep.subr.bf16.mxu0 %v10855
    %10933 = vmatpush1.bf16.msra.mxu0 %v10854
    %10934 = vmatprep.subr.bf16.mxu0 %v10885
    %10935 = vmatpush2.bf16.msra.mxu0 %v10884
    %10936 = vmatprep.subr.bf16.mxu0 %v10883
    %10937 = vmatpush2.bf16.msra.mxu0 %v10882
    %10938 = vmatprep.subr.bf16.mxu0 %v10881
    %10939 = vmatpush2.bf16.msra.mxu0 %v10880
    %10940 = vmatprep.subr.bf16.mxu0 %v10879
    %10941 = vmatpush2.bf16.msra.mxu0 %v10878
    %10942 = vmatprep.subr.bf16.mxu0 %v10877
    %10943 = vmatpush2.bf16.msra.mxu0 %v10876
    %10944 = vmatprep.subr.bf16.mxu0 %v10875
    %10945 = vmatpush2.bf16.msra.mxu0 %v10874
    %10946 = vmatprep.subr.bf16.mxu0 %v10873
    %10947 = vmatpush2.bf16.msra.mxu0 %v10872
    %10948 = vmatprep.subr.bf16.mxu0 %v10871
    %10949 = vmatpush2.bf16.msra.mxu0 %v10870
    %10950 = vmatprep.mubr.bf16.mxu0 %v10755
    %10951 = vmatmul.mubr.bf16.gmra.mxu0 %v10754
    %v10952 = vpop.f32.mrf.mxu0
    %v10953 = vadd.f32 0.0, %v10952
    %v10954 = vpop.f32.mrf.mxu0
    %v10955 = vadd.f32 0.0, %v10954
    %v10956 = vpop.f32.mrf.mxu0
    %v10957 = vpop.f32.mrf.mxu0
    %10958 = vdwg.mxu0
    %v10959 = vpack.c.b16 %v10044, %v10044
    %v10960 = vpack.c.b16 %v10045, %v10045
    %v10995 = vunpack.c.l.b16 %v10152
    %v10996 = vunpack.c.h.b16 %v10152
    %v10997 = vunpack.c.l.b16 %v10153
    %v10998 = vunpack.c.h.b16 %v10153
    %v10999 = vunpack.c.l.b16 %v10154
    %v11000 = vunpack.c.h.b16 %v10154
    %v11001 = vunpack.c.l.b16 %v10155
    %v11002 = vunpack.c.h.b16 %v10155
    %v11003 = vunpack.c.l.b16 %v10156
    %v11004 = vunpack.c.h.b16 %v10156
    %v11005 = vunpack.c.l.b16 %v10157
    %v11006 = vunpack.c.h.b16 %v10157
    %v11007 = vunpack.c.l.b16 %v10158
    %v11008 = vunpack.c.h.b16 %v10158
    %v11009 = vunpack.c.l.b16 %v10159
    %v11010 = vunpack.c.h.b16 %v10159
    %v11011 = vunpack.c.l.b16 %v10160
    %v11012 = vunpack.c.h.b16 %v10160
    %v11013 = vunpack.c.l.b16 %v10161
    %v11014 = vunpack.c.h.b16 %v10161
    %v11015 = vunpack.c.l.b16 %v10162
    %v11016 = vunpack.c.h.b16 %v10162
    %v11017 = vunpack.c.l.b16 %v10163
    %v11018 = vunpack.c.h.b16 %v10163
    %v11019 = vunpack.c.l.b16 %v10164
    %v11020 = vunpack.c.h.b16 %v10164
    %v11021 = vunpack.c.l.b16 %v10165
    %v11022 = vunpack.c.h.b16 %v10165
    %v11023 = vunpack.c.l.b16 %v10166
    %v11024 = vunpack.c.h.b16 %v10166
    %v11025 = vunpack.c.l.b16 %v10167
    %v11026 = vunpack.c.h.b16 %v10167
    %v11027 = vunpack.c.l.b16 %v10168
    %v11028 = vunpack.c.h.b16 %v10168
    %v11029 = vunpack.c.l.b16 %v10169
    %v11030 = vunpack.c.h.b16 %v10169
    %v11031 = vunpack.c.l.b16 %v10170
    %v11032 = vunpack.c.h.b16 %v10170
    %v11033 = vunpack.c.l.b16 %v10171
    %v11034 = vunpack.c.h.b16 %v10171
    %v11035 = vunpack.c.l.b16 %v10172
    %v11036 = vunpack.c.h.b16 %v10172
    %v11037 = vunpack.c.l.b16 %v10173
    %v11038 = vunpack.c.h.b16 %v10173
    %v11039 = vunpack.c.l.b16 %v10174
    %v11040 = vunpack.c.h.b16 %v10174
    %v11041 = vunpack.c.l.b16 %v10175
    %v11042 = vunpack.c.h.b16 %v10175
    %v11043 = vunpack.c.l.b16 %v10176
    %v11044 = vunpack.c.h.b16 %v10176
    %v11045 = vunpack.c.l.b16 %v10177
    %v11046 = vunpack.c.h.b16 %v10177
    %v11047 = vunpack.c.l.b16 %v10178
    %v11048 = vunpack.c.h.b16 %v10178
    %v11049 = vunpack.c.l.b16 %v10179
    %v11050 = vunpack.c.h.b16 %v10179
    %v11051 = vunpack.c.l.b16 %v10180
    %v11052 = vunpack.c.h.b16 %v10180
    %v11053 = vunpack.c.l.b16 %v10181
    %v11054 = vunpack.c.h.b16 %v10181
    %v11055 = vunpack.c.l.b16 %v10182
    %v11056 = vunpack.c.h.b16 %v10182
    %v11057 = vunpack.c.l.b16 %v10183
    %v11058 = vunpack.c.h.b16 %v10183
    %v11059 = vpack.c.b16 %v10997, %v10995
    %v11060 = vpack.c.b16 %v10998, %v10996
    %v11061 = vpack.c.b16 %v11001, %v10999
    %v11062 = vpack.c.b16 %v11002, %v11000
    %v11063 = vpack.c.b16 %v11005, %v11003
    %v11064 = vpack.c.b16 %v11006, %v11004
    %v11065 = vpack.c.b16 %v11009, %v11007
    %v11066 = vpack.c.b16 %v11010, %v11008
    %v11067 = vpack.c.b16 %v11013, %v11011
    %v11068 = vpack.c.b16 %v11014, %v11012
    %v11069 = vpack.c.b16 %v11017, %v11015
    %v11070 = vpack.c.b16 %v11018, %v11016
    %v11071 = vpack.c.b16 %v11021, %v11019
    %v11072 = vpack.c.b16 %v11022, %v11020
    %v11073 = vpack.c.b16 %v11025, %v11023
    %v11074 = vpack.c.b16 %v11026, %v11024
    %v11075 = vpack.c.b16 %v11029, %v11027
    %v11076 = vpack.c.b16 %v11030, %v11028
    %v11077 = vpack.c.b16 %v11033, %v11031
    %v11078 = vpack.c.b16 %v11034, %v11032
    %v11079 = vpack.c.b16 %v11037, %v11035
    %v11080 = vpack.c.b16 %v11038, %v11036
    %v11081 = vpack.c.b16 %v11041, %v11039
    %v11082 = vpack.c.b16 %v11042, %v11040
    %v11083 = vpack.c.b16 %v11045, %v11043
    %v11084 = vpack.c.b16 %v11046, %v11044
    %v11085 = vpack.c.b16 %v11049, %v11047
    %v11086 = vpack.c.b16 %v11050, %v11048
    %v11087 = vpack.c.b16 %v11053, %v11051
    %v11088 = vpack.c.b16 %v11054, %v11052
    %v11089 = vpack.c.b16 %v11057, %v11055
    %v11090 = vpack.c.b16 %v11058, %v11056
    %11123 = vmatprep.subr.bf16.mxu0 %v11074
    %11124 = vmatpush1.bf16.msra.mxu0 %v11073
    %11125 = vmatprep.subr.bf16.mxu0 %v11072
    %11126 = vmatpush1.bf16.msra.mxu0 %v11071
    %11127 = vmatprep.subr.bf16.mxu0 %v11070
    %11128 = vmatpush1.bf16.msra.mxu0 %v11069
    %11129 = vmatprep.subr.bf16.mxu0 %v11068
    %11130 = vmatpush1.bf16.msra.mxu0 %v11067
    %11131 = vmatprep.subr.bf16.mxu0 %v11066
    %11132 = vmatpush1.bf16.msra.mxu0 %v11065
    %11133 = vmatprep.subr.bf16.mxu0 %v11064
    %11134 = vmatpush1.bf16.msra.mxu0 %v11063
    %11135 = vmatprep.subr.bf16.mxu0 %v11062
    %11136 = vmatpush1.bf16.msra.mxu0 %v11061
    %11137 = vmatprep.subr.bf16.mxu0 %v11060
    %11138 = vmatpush1.bf16.msra.mxu0 %v11059
    %11139 = vmatprep.subr.bf16.mxu0 %v11090
    %11140 = vmatpush2.bf16.msra.mxu0 %v11089
    %11141 = vmatprep.subr.bf16.mxu0 %v11088
    %11142 = vmatpush2.bf16.msra.mxu0 %v11087
    %11143 = vmatprep.subr.bf16.mxu0 %v11086
    %11144 = vmatpush2.bf16.msra.mxu0 %v11085
    %11145 = vmatprep.subr.bf16.mxu0 %v11084
    %11146 = vmatpush2.bf16.msra.mxu0 %v11083
    %11147 = vmatprep.subr.bf16.mxu0 %v11082
    %11148 = vmatpush2.bf16.msra.mxu0 %v11081
    %11149 = vmatprep.subr.bf16.mxu0 %v11080
    %11150 = vmatpush2.bf16.msra.mxu0 %v11079
    %11151 = vmatprep.subr.bf16.mxu0 %v11078
    %11152 = vmatpush2.bf16.msra.mxu0 %v11077
    %11153 = vmatprep.subr.bf16.mxu0 %v11076
    %11154 = vmatpush2.bf16.msra.mxu0 %v11075
    %11155 = vmatprep.mubr.bf16.mxu0 %v10960
    %11156 = vmatmul.mubr.bf16.gmra.mxu0 %v10959
    %v11157 = vpop.f32.mrf.mxu0
    %v11158 = vadd.f32 0.0, %v11157
    %v11159 = vpop.f32.mrf.mxu0
    %v11160 = vadd.f32 0.0, %v11159
    %v11161 = vpop.f32.mrf.mxu0
    %v11162 = vpop.f32.mrf.mxu0
    %11163 = vdwg.mxu0
    %v11164 = vpack.c.b16 %v10046, %v10046
    %v11165 = vpack.c.b16 %v10047, %v10047
    %v11200 = vunpack.c.l.b16 %v10184
    %v11201 = vunpack.c.h.b16 %v10184
    %v11202 = vunpack.c.l.b16 %v10185
    %v11203 = vunpack.c.h.b16 %v10185
    %v11204 = vunpack.c.l.b16 %v10186
    %v11205 = vunpack.c.h.b16 %v10186
    %v11206 = vunpack.c.l.b16 %v10187
    %v11207 = vunpack.c.h.b16 %v10187
    %v11208 = vunpack.c.l.b16 %v10188
    %v11209 = vunpack.c.h.b16 %v10188
    %v11210 = vunpack.c.l.b16 %v10189
    %v11211 = vunpack.c.h.b16 %v10189
    %v11212 = vunpack.c.l.b16 %v10190
    %v11213 = vunpack.c.h.b16 %v10190
    %v11214 = vunpack.c.l.b16 %v10191
    %v11215 = vunpack.c.h.b16 %v10191
    %v11216 = vunpack.c.l.b16 %v10192
    %v11217 = vunpack.c.h.b16 %v10192
    %v11218 = vunpack.c.l.b16 %v10193
    %v11219 = vunpack.c.h.b16 %v10193
    %v11220 = vunpack.c.l.b16 %v10194
    %v11221 = vunpack.c.h.b16 %v10194
    %v11222 = vunpack.c.l.b16 %v10195
    %v11223 = vunpack.c.h.b16 %v10195
    %v11224 = vunpack.c.l.b16 %v10196
    %v11225 = vunpack.c.h.b16 %v10196
    %v11226 = vunpack.c.l.b16 %v10197
    %v11227 = vunpack.c.h.b16 %v10197
    %v11228 = vunpack.c.l.b16 %v10198
    %v11229 = vunpack.c.h.b16 %v10198
    %v11230 = vunpack.c.l.b16 %v10199
    %v11231 = vunpack.c.h.b16 %v10199
    %v11232 = vunpack.c.l.b16 %v10200
    %v11233 = vunpack.c.h.b16 %v10200
    %v11234 = vunpack.c.l.b16 %v10201
    %v11235 = vunpack.c.h.b16 %v10201
    %v11236 = vunpack.c.l.b16 %v10202
    %v11237 = vunpack.c.h.b16 %v10202
    %v11238 = vunpack.c.l.b16 %v10203
    %v11239 = vunpack.c.h.b16 %v10203
    %v11240 = vunpack.c.l.b16 %v10204
    %v11241 = vunpack.c.h.b16 %v10204
    %v11242 = vunpack.c.l.b16 %v10205
    %v11243 = vunpack.c.h.b16 %v10205
    %v11244 = vunpack.c.l.b16 %v10206
    %v11245 = vunpack.c.h.b16 %v10206
    %v11246 = vunpack.c.l.b16 %v10207
    %v11247 = vunpack.c.h.b16 %v10207
    %v11248 = vunpack.c.l.b16 %v10208
    %v11249 = vunpack.c.h.b16 %v10208
    %v11250 = vunpack.c.l.b16 %v10209
    %v11251 = vunpack.c.h.b16 %v10209
    %v11252 = vunpack.c.l.b16 %v10210
    %v11253 = vunpack.c.h.b16 %v10210
    %v11254 = vunpack.c.l.b16 %v10211
    %v11255 = vunpack.c.h.b16 %v10211
    %v11256 = vunpack.c.l.b16 %v10212
    %v11257 = vunpack.c.h.b16 %v10212
    %v11258 = vunpack.c.l.b16 %v10213
    %v11259 = vunpack.c.h.b16 %v10213
    %v11260 = vunpack.c.l.b16 %v10214
    %v11261 = vunpack.c.h.b16 %v10214
    %v11262 = vunpack.c.l.b16 %v10215
    %v11263 = vunpack.c.h.b16 %v10215
    %v11264 = vpack.c.b16 %v11202, %v11200
    %v11265 = vpack.c.b16 %v11203, %v11201
    %v11266 = vpack.c.b16 %v11206, %v11204
    %v11267 = vpack.c.b16 %v11207, %v11205
    %v11268 = vpack.c.b16 %v11210, %v11208
    %v11269 = vpack.c.b16 %v11211, %v11209
    %v11270 = vpack.c.b16 %v11214, %v11212
    %v11271 = vpack.c.b16 %v11215, %v11213
    %v11272 = vpack.c.b16 %v11218, %v11216
    %v11273 = vpack.c.b16 %v11219, %v11217
    %v11274 = vpack.c.b16 %v11222, %v11220
    %v11275 = vpack.c.b16 %v11223, %v11221
    %v11276 = vpack.c.b16 %v11226, %v11224
    %v11277 = vpack.c.b16 %v11227, %v11225
    %v11278 = vpack.c.b16 %v11230, %v11228
    %v11279 = vpack.c.b16 %v11231, %v11229
    %v11280 = vpack.c.b16 %v11234, %v11232
    %v11281 = vpack.c.b16 %v11235, %v11233
    %v11282 = vpack.c.b16 %v11238, %v11236
    %v11283 = vpack.c.b16 %v11239, %v11237
    %v11284 = vpack.c.b16 %v11242, %v11240
    %v11285 = vpack.c.b16 %v11243, %v11241
    %v11286 = vpack.c.b16 %v11246, %v11244
    %v11287 = vpack.c.b16 %v11247, %v11245
    %v11288 = vpack.c.b16 %v11250, %v11248
    %v11289 = vpack.c.b16 %v11251, %v11249
    %v11290 = vpack.c.b16 %v11254, %v11252
    %v11291 = vpack.c.b16 %v11255, %v11253
    %v11292 = vpack.c.b16 %v11258, %v11256
    %v11293 = vpack.c.b16 %v11259, %v11257
    %v11294 = vpack.c.b16 %v11262, %v11260
    %v11295 = vpack.c.b16 %v11263, %v11261
    %11328 = vmatprep.subr.bf16.mxu0 %v11279
    %11329 = vmatpush1.bf16.msra.mxu0 %v11278
    %11330 = vmatprep.subr.bf16.mxu0 %v11277
    %11331 = vmatpush1.bf16.msra.mxu0 %v11276
    %11332 = vmatprep.subr.bf16.mxu0 %v11275
    %11333 = vmatpush1.bf16.msra.mxu0 %v11274
    %11334 = vmatprep.subr.bf16.mxu0 %v11273
    %11335 = vmatpush1.bf16.msra.mxu0 %v11272
    %11336 = vmatprep.subr.bf16.mxu0 %v11271
    %11337 = vmatpush1.bf16.msra.mxu0 %v11270
    %11338 = vmatprep.subr.bf16.mxu0 %v11269
    %11339 = vmatpush1.bf16.msra.mxu0 %v11268
    %11340 = vmatprep.subr.bf16.mxu0 %v11267
    %11341 = vmatpush1.bf16.msra.mxu0 %v11266
    %11342 = vmatprep.subr.bf16.mxu0 %v11265
    %11343 = vmatpush1.bf16.msra.mxu0 %v11264
    %11344 = vmatprep.subr.bf16.mxu0 %v11295
    %11345 = vmatpush2.bf16.msra.mxu0 %v11294
    %11346 = vmatprep.subr.bf16.mxu0 %v11293
    %11347 = vmatpush2.bf16.msra.mxu0 %v11292
    %11348 = vmatprep.subr.bf16.mxu0 %v11291
    %11349 = vmatpush2.bf16.msra.mxu0 %v11290
    %11350 = vmatprep.subr.bf16.mxu0 %v11289
    %11351 = vmatpush2.bf16.msra.mxu0 %v11288
    %11352 = vmatprep.subr.bf16.mxu0 %v11287
    %11353 = vmatpush2.bf16.msra.mxu0 %v11286
    %11354 = vmatprep.subr.bf16.mxu0 %v11285
    %11355 = vmatpush2.bf16.msra.mxu0 %v11284
    %11356 = vmatprep.subr.bf16.mxu0 %v11283
    %11357 = vmatpush2.bf16.msra.mxu0 %v11282
    %11358 = vmatprep.subr.bf16.mxu0 %v11281
    %11359 = vmatpush2.bf16.msra.mxu0 %v11280
    %11360 = vmatprep.mubr.bf16.mxu0 %v11165
    %11361 = vmatmul.mubr.bf16.gmra.mxu0 %v11164
    %v11362 = vpop.f32.mrf.mxu0
    %v11363 = vadd.f32 0.0, %v11362
    %v11364 = vpop.f32.mrf.mxu0
    %v11365 = vadd.f32 0.0, %v11364
    %v11366 = vpop.f32.mrf.mxu0
    %v11367 = vpop.f32.mrf.mxu0
    %11368 = vdwg.mxu0
    %v11369 = vpack.c.b16 %v10048, %v10048
    %v11370 = vpack.c.b16 %v10049, %v10049
    %v11405 = vunpack.c.l.b16 %v10216
    %v11406 = vunpack.c.h.b16 %v10216
    %v11407 = vunpack.c.l.b16 %v10217
    %v11408 = vunpack.c.h.b16 %v10217
    %v11409 = vunpack.c.l.b16 %v10218
    %v11410 = vunpack.c.h.b16 %v10218
    %v11411 = vunpack.c.l.b16 %v10219
    %v11412 = vunpack.c.h.b16 %v10219
    %v11413 = vunpack.c.l.b16 %v10220
    %v11414 = vunpack.c.h.b16 %v10220
    %v11415 = vunpack.c.l.b16 %v10221
    %v11416 = vunpack.c.h.b16 %v10221
    %v11417 = vunpack.c.l.b16 %v10222
    %v11418 = vunpack.c.h.b16 %v10222
    %v11419 = vunpack.c.l.b16 %v10223
    %v11420 = vunpack.c.h.b16 %v10223
    %v11421 = vunpack.c.l.b16 %v10224
    %v11422 = vunpack.c.h.b16 %v10224
    %v11423 = vunpack.c.l.b16 %v10225
    %v11424 = vunpack.c.h.b16 %v10225
    %v11425 = vunpack.c.l.b16 %v10226
    %v11426 = vunpack.c.h.b16 %v10226
    %v11427 = vunpack.c.l.b16 %v10227
    %v11428 = vunpack.c.h.b16 %v10227
    %v11429 = vunpack.c.l.b16 %v10228
    %v11430 = vunpack.c.h.b16 %v10228
    %v11431 = vunpack.c.l.b16 %v10229
    %v11432 = vunpack.c.h.b16 %v10229
    %v11433 = vunpack.c.l.b16 %v10230
    %v11434 = vunpack.c.h.b16 %v10230
    %v11435 = vunpack.c.l.b16 %v10231
    %v11436 = vunpack.c.h.b16 %v10231
    %v11437 = vunpack.c.l.b16 %v10232
    %v11438 = vunpack.c.h.b16 %v10232
    %v11439 = vunpack.c.l.b16 %v10233
    %v11440 = vunpack.c.h.b16 %v10233
    %v11441 = vunpack.c.l.b16 %v10234
    %v11442 = vunpack.c.h.b16 %v10234
    %v11443 = vunpack.c.l.b16 %v10235
    %v11444 = vunpack.c.h.b16 %v10235
    %v11445 = vunpack.c.l.b16 %v10236
    %v11446 = vunpack.c.h.b16 %v10236
    %v11447 = vunpack.c.l.b16 %v10237
    %v11448 = vunpack.c.h.b16 %v10237
    %v11449 = vunpack.c.l.b16 %v10238
    %v11450 = vunpack.c.h.b16 %v10238
    %v11451 = vunpack.c.l.b16 %v10239
    %v11452 = vunpack.c.h.b16 %v10239
    %v11453 = vunpack.c.l.b16 %v10240
    %v11454 = vunpack.c.h.b16 %v10240
    %v11455 = vunpack.c.l.b16 %v10241
    %v11456 = vunpack.c.h.b16 %v10241
    %v11457 = vunpack.c.l.b16 %v10242
    %v11458 = vunpack.c.h.b16 %v10242
    %v11459 = vunpack.c.l.b16 %v10243
    %v11460 = vunpack.c.h.b16 %v10243
    %v11461 = vunpack.c.l.b16 %v10244
    %v11462 = vunpack.c.h.b16 %v10244
    %v11463 = vunpack.c.l.b16 %v10245
    %v11464 = vunpack.c.h.b16 %v10245
    %v11465 = vunpack.c.l.b16 %v10246
    %v11466 = vunpack.c.h.b16 %v10246
    %v11467 = vunpack.c.l.b16 %v10247
    %v11468 = vunpack.c.h.b16 %v10247
    %v11469 = vpack.c.b16 %v11407, %v11405
    %v11470 = vpack.c.b16 %v11408, %v11406
    %v11471 = vpack.c.b16 %v11411, %v11409
    %v11472 = vpack.c.b16 %v11412, %v11410
    %v11473 = vpack.c.b16 %v11415, %v11413
    %v11474 = vpack.c.b16 %v11416, %v11414
    %v11475 = vpack.c.b16 %v11419, %v11417
    %v11476 = vpack.c.b16 %v11420, %v11418
    %v11477 = vpack.c.b16 %v11423, %v11421
    %v11478 = vpack.c.b16 %v11424, %v11422
    %v11479 = vpack.c.b16 %v11427, %v11425
    %v11480 = vpack.c.b16 %v11428, %v11426
    %v11481 = vpack.c.b16 %v11431, %v11429
    %v11482 = vpack.c.b16 %v11432, %v11430
    %v11483 = vpack.c.b16 %v11435, %v11433
    %v11484 = vpack.c.b16 %v11436, %v11434
    %v11485 = vpack.c.b16 %v11439, %v11437
    %v11486 = vpack.c.b16 %v11440, %v11438
    %v11487 = vpack.c.b16 %v11443, %v11441
    %v11488 = vpack.c.b16 %v11444, %v11442
    %v11489 = vpack.c.b16 %v11447, %v11445
    %v11490 = vpack.c.b16 %v11448, %v11446
    %v11491 = vpack.c.b16 %v11451, %v11449
    %v11492 = vpack.c.b16 %v11452, %v11450
    %v11493 = vpack.c.b16 %v11455, %v11453
    %v11494 = vpack.c.b16 %v11456, %v11454
    %v11495 = vpack.c.b16 %v11459, %v11457
    %v11496 = vpack.c.b16 %v11460, %v11458
    %v11497 = vpack.c.b16 %v11463, %v11461
    %v11498 = vpack.c.b16 %v11464, %v11462
    %v11499 = vpack.c.b16 %v11467, %v11465
    %v11500 = vpack.c.b16 %v11468, %v11466
    %11533 = vmatprep.subr.bf16.mxu0 %v11484
    %11534 = vmatpush1.bf16.msra.mxu0 %v11483
    %11535 = vmatprep.subr.bf16.mxu0 %v11482
    %11536 = vmatpush1.bf16.msra.mxu0 %v11481
    %11537 = vmatprep.subr.bf16.mxu0 %v11480
    %11538 = vmatpush1.bf16.msra.mxu0 %v11479
    %11539 = vmatprep.subr.bf16.mxu0 %v11478
    %11540 = vmatpush1.bf16.msra.mxu0 %v11477
    %11541 = vmatprep.subr.bf16.mxu0 %v11476
    %11542 = vmatpush1.bf16.msra.mxu0 %v11475
    %11543 = vmatprep.subr.bf16.mxu0 %v11474
    %11544 = vmatpush1.bf16.msra.mxu0 %v11473
    %11545 = vmatprep.subr.bf16.mxu0 %v11472
    %11546 = vmatpush1.bf16.msra.mxu0 %v11471
    %11547 = vmatprep.subr.bf16.mxu0 %v11470
    %11548 = vmatpush1.bf16.msra.mxu0 %v11469
    %11549 = vmatprep.subr.bf16.mxu0 %v11500
    %11550 = vmatpush2.bf16.msra.mxu0 %v11499
    %11551 = vmatprep.subr.bf16.mxu0 %v11498
    %11552 = vmatpush2.bf16.msra.mxu0 %v11497
    %11553 = vmatprep.subr.bf16.mxu0 %v11496
    %11554 = vmatpush2.bf16.msra.mxu0 %v11495
    %11555 = vmatprep.subr.bf16.mxu0 %v11494
    %11556 = vmatpush2.bf16.msra.mxu0 %v11493
    %11557 = vmatprep.subr.bf16.mxu0 %v11492
    %11558 = vmatpush2.bf16.msra.mxu0 %v11491
    %11559 = vmatprep.subr.bf16.mxu0 %v11490
    %11560 = vmatpush2.bf16.msra.mxu0 %v11489
    %11561 = vmatprep.subr.bf16.mxu0 %v11488
    %11562 = vmatpush2.bf16.msra.mxu0 %v11487
    %11563 = vmatprep.subr.bf16.mxu0 %v11486
    %11564 = vmatpush2.bf16.msra.mxu0 %v11485
    %11565 = vmatprep.mubr.bf16.mxu0 %v11370
    %11566 = vmatmul.mubr.bf16.gmra.mxu0 %v11369
    %v11567 = vpop.f32.mrf.mxu0
    %v11568 = vadd.f32 0.0, %v11567
    %v11569 = vpop.f32.mrf.mxu0
    %v11570 = vadd.f32 0.0, %v11569
    %v11571 = vpop.f32.mrf.mxu0
    %v11572 = vpop.f32.mrf.mxu0
    %11573 = vdwg.mxu0
    %v11574 = vpack.c.b16 %v10050, %v10050
    %v11575 = vpack.c.b16 %v10051, %v10051
    %v11610 = vunpack.c.l.b16 %v10248
    %v11611 = vunpack.c.h.b16 %v10248
    %v11612 = vunpack.c.l.b16 %v10249
    %v11613 = vunpack.c.h.b16 %v10249
    %v11614 = vunpack.c.l.b16 %v10250
    %v11615 = vunpack.c.h.b16 %v10250
    %v11616 = vunpack.c.l.b16 %v10251
    %v11617 = vunpack.c.h.b16 %v10251
    %v11618 = vunpack.c.l.b16 %v10252
    %v11619 = vunpack.c.h.b16 %v10252
    %v11620 = vunpack.c.l.b16 %v10253
    %v11621 = vunpack.c.h.b16 %v10253
    %v11622 = vunpack.c.l.b16 %v10254
    %v11623 = vunpack.c.h.b16 %v10254
    %v11624 = vunpack.c.l.b16 %v10255
    %v11625 = vunpack.c.h.b16 %v10255
    %v11626 = vunpack.c.l.b16 %v10256
    %v11627 = vunpack.c.h.b16 %v10256
    %v11628 = vunpack.c.l.b16 %v10257
    %v11629 = vunpack.c.h.b16 %v10257
    %v11630 = vunpack.c.l.b16 %v10258
    %v11631 = vunpack.c.h.b16 %v10258
    %v11632 = vunpack.c.l.b16 %v10259
    %v11633 = vunpack.c.h.b16 %v10259
    %v11634 = vunpack.c.l.b16 %v10260
    %v11635 = vunpack.c.h.b16 %v10260
    %v11636 = vunpack.c.l.b16 %v10261
    %v11637 = vunpack.c.h.b16 %v10261
    %v11638 = vunpack.c.l.b16 %v10262
    %v11639 = vunpack.c.h.b16 %v10262
    %v11640 = vunpack.c.l.b16 %v10263
    %v11641 = vunpack.c.h.b16 %v10263
    %v11642 = vunpack.c.l.b16 %v10264
    %v11643 = vunpack.c.h.b16 %v10264
    %v11644 = vunpack.c.l.b16 %v10265
    %v11645 = vunpack.c.h.b16 %v10265
    %v11646 = vunpack.c.l.b16 %v10266
    %v11647 = vunpack.c.h.b16 %v10266
    %v11648 = vunpack.c.l.b16 %v10267
    %v11649 = vunpack.c.h.b16 %v10267
    %v11650 = vunpack.c.l.b16 %v10268
    %v11651 = vunpack.c.h.b16 %v10268
    %v11652 = vunpack.c.l.b16 %v10269
    %v11653 = vunpack.c.h.b16 %v10269
    %v11654 = vunpack.c.l.b16 %v10270
    %v11655 = vunpack.c.h.b16 %v10270
    %v11656 = vunpack.c.l.b16 %v10271
    %v11657 = vunpack.c.h.b16 %v10271
    %v11658 = vunpack.c.l.b16 %v10272
    %v11659 = vunpack.c.h.b16 %v10272
    %v11660 = vunpack.c.l.b16 %v10273
    %v11661 = vunpack.c.h.b16 %v10273
    %v11662 = vunpack.c.l.b16 %v10274
    %v11663 = vunpack.c.h.b16 %v10274
    %v11664 = vunpack.c.l.b16 %v10275
    %v11665 = vunpack.c.h.b16 %v10275
    %v11666 = vunpack.c.l.b16 %v10276
    %v11667 = vunpack.c.h.b16 %v10276
    %v11668 = vunpack.c.l.b16 %v10277
    %v11669 = vunpack.c.h.b16 %v10277
    %v11670 = vunpack.c.l.b16 %v10278
    %v11671 = vunpack.c.h.b16 %v10278
    %v11672 = vunpack.c.l.b16 %v10279
    %v11673 = vunpack.c.h.b16 %v10279
    %v11674 = vpack.c.b16 %v11612, %v11610
    %v11675 = vpack.c.b16 %v11613, %v11611
    %v11676 = vpack.c.b16 %v11616, %v11614
    %v11677 = vpack.c.b16 %v11617, %v11615
    %v11678 = vpack.c.b16 %v11620, %v11618
    %v11679 = vpack.c.b16 %v11621, %v11619
    %v11680 = vpack.c.b16 %v11624, %v11622
    %v11681 = vpack.c.b16 %v11625, %v11623
    %v11682 = vpack.c.b16 %v11628, %v11626
    %v11683 = vpack.c.b16 %v11629, %v11627
    %v11684 = vpack.c.b16 %v11632, %v11630
    %v11685 = vpack.c.b16 %v11633, %v11631
    %v11686 = vpack.c.b16 %v11636, %v11634
    %v11687 = vpack.c.b16 %v11637, %v11635
    %v11688 = vpack.c.b16 %v11640, %v11638
    %v11689 = vpack.c.b16 %v11641, %v11639
    %v11690 = vpack.c.b16 %v11644, %v11642
    %v11691 = vpack.c.b16 %v11645, %v11643
    %v11692 = vpack.c.b16 %v11648, %v11646
    %v11693 = vpack.c.b16 %v11649, %v11647
    %v11694 = vpack.c.b16 %v11652, %v11650
    %v11695 = vpack.c.b16 %v11653, %v11651
    %v11696 = vpack.c.b16 %v11656, %v11654
    %v11697 = vpack.c.b16 %v11657, %v11655
    %v11698 = vpack.c.b16 %v11660, %v11658
    %v11699 = vpack.c.b16 %v11661, %v11659
    %v11700 = vpack.c.b16 %v11664, %v11662
    %v11701 = vpack.c.b16 %v11665, %v11663
    %v11702 = vpack.c.b16 %v11668, %v11666
    %v11703 = vpack.c.b16 %v11669, %v11667
    %v11704 = vpack.c.b16 %v11672, %v11670
    %v11705 = vpack.c.b16 %v11673, %v11671
    %11738 = vmatprep.subr.bf16.mxu0 %v11689
    %11739 = vmatpush1.bf16.msra.mxu0 %v11688
    %11740 = vmatprep.subr.bf16.mxu0 %v11687
    %11741 = vmatpush1.bf16.msra.mxu0 %v11686
    %11742 = vmatprep.subr.bf16.mxu0 %v11685
    %11743 = vmatpush1.bf16.msra.mxu0 %v11684
    %11744 = vmatprep.subr.bf16.mxu0 %v11683
    %11745 = vmatpush1.bf16.msra.mxu0 %v11682
    %11746 = vmatprep.subr.bf16.mxu0 %v11681
    %11747 = vmatpush1.bf16.msra.mxu0 %v11680
    %11748 = vmatprep.subr.bf16.mxu0 %v11679
    %11749 = vmatpush1.bf16.msra.mxu0 %v11678
    %11750 = vmatprep.subr.bf16.mxu0 %v11677
    %11751 = vmatpush1.bf16.msra.mxu0 %v11676
    %11752 = vmatprep.subr.bf16.mxu0 %v11675
    %11753 = vmatpush1.bf16.msra.mxu0 %v11674
    %11754 = vmatprep.subr.bf16.mxu0 %v11705
    %11755 = vmatpush2.bf16.msra.mxu0 %v11704
    %11756 = vmatprep.subr.bf16.mxu0 %v11703
    %11757 = vmatpush2.bf16.msra.mxu0 %v11702
    %11758 = vmatprep.subr.bf16.mxu0 %v11701
    %11759 = vmatpush2.bf16.msra.mxu0 %v11700
    %11760 = vmatprep.subr.bf16.mxu0 %v11699
    %11761 = vmatpush2.bf16.msra.mxu0 %v11698
    %11762 = vmatprep.subr.bf16.mxu0 %v11697
    %11763 = vmatpush2.bf16.msra.mxu0 %v11696
    %11764 = vmatprep.subr.bf16.mxu0 %v11695
    %11765 = vmatpush2.bf16.msra.mxu0 %v11694
    %11766 = vmatprep.subr.bf16.mxu0 %v11693
    %11767 = vmatpush2.bf16.msra.mxu0 %v11692
    %11768 = vmatprep.subr.bf16.mxu0 %v11691
    %11769 = vmatpush2.bf16.msra.mxu0 %v11690
    %11770 = vmatprep.mubr.bf16.mxu0 %v11575
    %11771 = vmatmul.mubr.bf16.gmra.mxu0 %v11574
    %v11772 = vpop.f32.mrf.mxu0
    %v11773 = vadd.f32 0.0, %v11772
    %v11774 = vpop.f32.mrf.mxu0
    %v11775 = vadd.f32 0.0, %v11774
    %v11776 = vpop.f32.mrf.mxu0
    %v11777 = vpop.f32.mrf.mxu0
    %11778 = vdwg.mxu0
    %v11779 = vpack.c.b16 %v10052, %v10052
    %v11780 = vpack.c.b16 %v10053, %v10053
    %v11815 = vunpack.c.l.b16 %v10280
    %v11816 = vunpack.c.h.b16 %v10280
    %v11817 = vunpack.c.l.b16 %v10281
    %v11818 = vunpack.c.h.b16 %v10281
    %v11819 = vunpack.c.l.b16 %v10282
    %v11820 = vunpack.c.h.b16 %v10282
    %v11821 = vunpack.c.l.b16 %v10283
    %v11822 = vunpack.c.h.b16 %v10283
    %v11823 = vunpack.c.l.b16 %v10284
    %v11824 = vunpack.c.h.b16 %v10284
    %v11825 = vunpack.c.l.b16 %v10285
    %v11826 = vunpack.c.h.b16 %v10285
    %v11827 = vunpack.c.l.b16 %v10286
    %v11828 = vunpack.c.h.b16 %v10286
    %v11829 = vunpack.c.l.b16 %v10287
    %v11830 = vunpack.c.h.b16 %v10287
    %v11831 = vunpack.c.l.b16 %v10288
    %v11832 = vunpack.c.h.b16 %v10288
    %v11833 = vunpack.c.l.b16 %v10289
    %v11834 = vunpack.c.h.b16 %v10289
    %v11835 = vunpack.c.l.b16 %v10290
    %v11836 = vunpack.c.h.b16 %v10290
    %v11837 = vunpack.c.l.b16 %v10291
    %v11838 = vunpack.c.h.b16 %v10291
    %v11839 = vunpack.c.l.b16 %v10292
    %v11840 = vunpack.c.h.b16 %v10292
    %v11841 = vunpack.c.l.b16 %v10293
    %v11842 = vunpack.c.h.b16 %v10293
    %v11843 = vunpack.c.l.b16 %v10294
    %v11844 = vunpack.c.h.b16 %v10294
    %v11845 = vunpack.c.l.b16 %v10295
    %v11846 = vunpack.c.h.b16 %v10295
    %v11847 = vunpack.c.l.b16 %v10296
    %v11848 = vunpack.c.h.b16 %v10296
    %v11849 = vunpack.c.l.b16 %v10297
    %v11850 = vunpack.c.h.b16 %v10297
    %v11851 = vunpack.c.l.b16 %v10298
    %v11852 = vunpack.c.h.b16 %v10298
    %v11853 = vunpack.c.l.b16 %v10299
    %v11854 = vunpack.c.h.b16 %v10299
    %v11855 = vunpack.c.l.b16 %v10300
    %v11856 = vunpack.c.h.b16 %v10300
    %v11857 = vunpack.c.l.b16 %v10301
    %v11858 = vunpack.c.h.b16 %v10301
    %v11859 = vunpack.c.l.b16 %v10302
    %v11860 = vunpack.c.h.b16 %v10302
    %v11861 = vunpack.c.l.b16 %v10303
    %v11862 = vunpack.c.h.b16 %v10303
    %v11863 = vunpack.c.l.b16 %v10304
    %v11864 = vunpack.c.h.b16 %v10304
    %v11865 = vunpack.c.l.b16 %v10305
    %v11866 = vunpack.c.h.b16 %v10305
    %v11867 = vunpack.c.l.b16 %v10306
    %v11868 = vunpack.c.h.b16 %v10306
    %v11869 = vunpack.c.l.b16 %v10307
    %v11870 = vunpack.c.h.b16 %v10307
    %v11871 = vunpack.c.l.b16 %v10308
    %v11872 = vunpack.c.h.b16 %v10308
    %v11873 = vunpack.c.l.b16 %v10309
    %v11874 = vunpack.c.h.b16 %v10309
    %v11875 = vunpack.c.l.b16 %v10310
    %v11876 = vunpack.c.h.b16 %v10310
    %v11877 = vunpack.c.l.b16 %v10311
    %v11878 = vunpack.c.h.b16 %v10311
    %v11879 = vpack.c.b16 %v11817, %v11815
    %v11880 = vpack.c.b16 %v11818, %v11816
    %v11881 = vpack.c.b16 %v11821, %v11819
    %v11882 = vpack.c.b16 %v11822, %v11820
    %v11883 = vpack.c.b16 %v11825, %v11823
    %v11884 = vpack.c.b16 %v11826, %v11824
    %v11885 = vpack.c.b16 %v11829, %v11827
    %v11886 = vpack.c.b16 %v11830, %v11828
    %v11887 = vpack.c.b16 %v11833, %v11831
    %v11888 = vpack.c.b16 %v11834, %v11832
    %v11889 = vpack.c.b16 %v11837, %v11835
    %v11890 = vpack.c.b16 %v11838, %v11836
    %v11891 = vpack.c.b16 %v11841, %v11839
    %v11892 = vpack.c.b16 %v11842, %v11840
    %v11893 = vpack.c.b16 %v11845, %v11843
    %v11894 = vpack.c.b16 %v11846, %v11844
    %v11895 = vpack.c.b16 %v11849, %v11847
    %v11896 = vpack.c.b16 %v11850, %v11848
    %v11897 = vpack.c.b16 %v11853, %v11851
    %v11898 = vpack.c.b16 %v11854, %v11852
    %v11899 = vpack.c.b16 %v11857, %v11855
    %v11900 = vpack.c.b16 %v11858, %v11856
    %v11901 = vpack.c.b16 %v11861, %v11859
    %v11902 = vpack.c.b16 %v11862, %v11860
    %v11903 = vpack.c.b16 %v11865, %v11863
    %v11904 = vpack.c.b16 %v11866, %v11864
    %v11905 = vpack.c.b16 %v11869, %v11867
    %v11906 = vpack.c.b16 %v11870, %v11868
    %v11907 = vpack.c.b16 %v11873, %v11871
    %v11908 = vpack.c.b16 %v11874, %v11872
    %v11909 = vpack.c.b16 %v11877, %v11875
    %v11910 = vpack.c.b16 %v11878, %v11876
    %11943 = vmatprep.subr.bf16.mxu0 %v11894
    %11944 = vmatpush1.bf16.msra.mxu0 %v11893
    %11945 = vmatprep.subr.bf16.mxu0 %v11892
    %11946 = vmatpush1.bf16.msra.mxu0 %v11891
    %11947 = vmatprep.subr.bf16.mxu0 %v11890
    %11948 = vmatpush1.bf16.msra.mxu0 %v11889
    %11949 = vmatprep.subr.bf16.mxu0 %v11888
    %11950 = vmatpush1.bf16.msra.mxu0 %v11887
    %11951 = vmatprep.subr.bf16.mxu0 %v11886
    %11952 = vmatpush1.bf16.msra.mxu0 %v11885
    %11953 = vmatprep.subr.bf16.mxu0 %v11884
    %11954 = vmatpush1.bf16.msra.mxu0 %v11883
    %11955 = vmatprep.subr.bf16.mxu0 %v11882
    %11956 = vmatpush1.bf16.msra.mxu0 %v11881
    %11957 = vmatprep.subr.bf16.mxu0 %v11880
    %11958 = vmatpush1.bf16.msra.mxu0 %v11879
    %11959 = vmatprep.subr.bf16.mxu0 %v11910
    %11960 = vmatpush2.bf16.msra.mxu0 %v11909
    %11961 = vmatprep.subr.bf16.mxu0 %v11908
    %11962 = vmatpush2.bf16.msra.mxu0 %v11907
    %11963 = vmatprep.subr.bf16.mxu0 %v11906
    %11964 = vmatpush2.bf16.msra.mxu0 %v11905
    %11965 = vmatprep.subr.bf16.mxu0 %v11904
    %11966 = vmatpush2.bf16.msra.mxu0 %v11903
    %11967 = vmatprep.subr.bf16.mxu0 %v11902
    %11968 = vmatpush2.bf16.msra.mxu0 %v11901
    %11969 = vmatprep.subr.bf16.mxu0 %v11900
    %11970 = vmatpush2.bf16.msra.mxu0 %v11899
    %11971 = vmatprep.subr.bf16.mxu0 %v11898
    %11972 = vmatpush2.bf16.msra.mxu0 %v11897
    %11973 = vmatprep.subr.bf16.mxu0 %v11896
    %11974 = vmatpush2.bf16.msra.mxu0 %v11895
    %11975 = vmatprep.mubr.bf16.mxu0 %v11780
    %11976 = vmatmul.mubr.bf16.gmra.mxu0 %v11779
    %v11977 = vpop.f32.mrf.mxu0
    %v11978 = vadd.f32 0.0, %v11977
    %v11979 = vpop.f32.mrf.mxu0
    %v11980 = vadd.f32 0.0, %v11979
    %v11981 = vpop.f32.mrf.mxu0
    %v11982 = vpop.f32.mrf.mxu0
    %11983 = vdwg.mxu0
    %v11984 = vpack.c.b16 %v10054, %v10054
    %v11985 = vpack.c.b16 %v10055, %v10055
    %v12020 = vunpack.c.l.b16 %v10312
    %v12021 = vunpack.c.h.b16 %v10312
    %v12022 = vunpack.c.l.b16 %v10313
    %v12023 = vunpack.c.h.b16 %v10313
    %v12024 = vunpack.c.l.b16 %v10314
    %v12025 = vunpack.c.h.b16 %v10314
    %v12026 = vunpack.c.l.b16 %v10315
    %v12027 = vunpack.c.h.b16 %v10315
    %v12028 = vunpack.c.l.b16 %v10316
    %v12029 = vunpack.c.h.b16 %v10316
    %v12030 = vunpack.c.l.b16 %v10317
    %v12031 = vunpack.c.h.b16 %v10317
    %v12032 = vunpack.c.l.b16 %v10318
    %v12033 = vunpack.c.h.b16 %v10318
    %v12034 = vunpack.c.l.b16 %v10319
    %v12035 = vunpack.c.h.b16 %v10319
    %v12036 = vunpack.c.l.b16 %v10320
    %v12037 = vunpack.c.h.b16 %v10320
    %v12038 = vunpack.c.l.b16 %v10321
    %v12039 = vunpack.c.h.b16 %v10321
    %v12040 = vunpack.c.l.b16 %v10322
    %v12041 = vunpack.c.h.b16 %v10322
    %v12042 = vunpack.c.l.b16 %v10323
    %v12043 = vunpack.c.h.b16 %v10323
    %v12044 = vunpack.c.l.b16 %v10324
    %v12045 = vunpack.c.h.b16 %v10324
    %v12046 = vunpack.c.l.b16 %v10325
    %v12047 = vunpack.c.h.b16 %v10325
    %v12048 = vunpack.c.l.b16 %v10326
    %v12049 = vunpack.c.h.b16 %v10326
    %v12050 = vunpack.c.l.b16 %v10327
    %v12051 = vunpack.c.h.b16 %v10327
    %v12052 = vunpack.c.l.b16 %v10328
    %v12053 = vunpack.c.h.b16 %v10328
    %v12054 = vunpack.c.l.b16 %v10329
    %v12055 = vunpack.c.h.b16 %v10329
    %v12056 = vunpack.c.l.b16 %v10330
    %v12057 = vunpack.c.h.b16 %v10330
    %v12058 = vunpack.c.l.b16 %v10331
    %v12059 = vunpack.c.h.b16 %v10331
    %v12060 = vunpack.c.l.b16 %v10332
    %v12061 = vunpack.c.h.b16 %v10332
    %v12062 = vunpack.c.l.b16 %v10333
    %v12063 = vunpack.c.h.b16 %v10333
    %v12064 = vunpack.c.l.b16 %v10334
    %v12065 = vunpack.c.h.b16 %v10334
    %v12066 = vunpack.c.l.b16 %v10335
    %v12067 = vunpack.c.h.b16 %v10335
    %v12068 = vunpack.c.l.b16 %v10336
    %v12069 = vunpack.c.h.b16 %v10336
    %v12070 = vunpack.c.l.b16 %v10337
    %v12071 = vunpack.c.h.b16 %v10337
    %v12072 = vunpack.c.l.b16 %v10338
    %v12073 = vunpack.c.h.b16 %v10338
    %v12074 = vunpack.c.l.b16 %v10339
    %v12075 = vunpack.c.h.b16 %v10339
    %v12076 = vunpack.c.l.b16 %v10340
    %v12077 = vunpack.c.h.b16 %v10340
    %v12078 = vunpack.c.l.b16 %v10341
    %v12079 = vunpack.c.h.b16 %v10341
    %v12080 = vunpack.c.l.b16 %v10342
    %v12081 = vunpack.c.h.b16 %v10342
    %v12082 = vunpack.c.l.b16 %v10343
    %v12083 = vunpack.c.h.b16 %v10343
    %v12084 = vpack.c.b16 %v12022, %v12020
    %v12085 = vpack.c.b16 %v12023, %v12021
    %v12086 = vpack.c.b16 %v12026, %v12024
    %v12087 = vpack.c.b16 %v12027, %v12025
    %v12088 = vpack.c.b16 %v12030, %v12028
    %v12089 = vpack.c.b16 %v12031, %v12029
    %v12090 = vpack.c.b16 %v12034, %v12032
    %v12091 = vpack.c.b16 %v12035, %v12033
    %v12092 = vpack.c.b16 %v12038, %v12036
    %v12093 = vpack.c.b16 %v12039, %v12037
    %v12094 = vpack.c.b16 %v12042, %v12040
    %v12095 = vpack.c.b16 %v12043, %v12041
    %v12096 = vpack.c.b16 %v12046, %v12044
    %v12097 = vpack.c.b16 %v12047, %v12045
    %v12098 = vpack.c.b16 %v12050, %v12048
    %v12099 = vpack.c.b16 %v12051, %v12049
    %v12100 = vpack.c.b16 %v12054, %v12052
    %v12101 = vpack.c.b16 %v12055, %v12053
    %v12102 = vpack.c.b16 %v12058, %v12056
    %v12103 = vpack.c.b16 %v12059, %v12057
    %v12104 = vpack.c.b16 %v12062, %v12060
    %v12105 = vpack.c.b16 %v12063, %v12061
    %v12106 = vpack.c.b16 %v12066, %v12064
    %v12107 = vpack.c.b16 %v12067, %v12065
    %v12108 = vpack.c.b16 %v12070, %v12068
    %v12109 = vpack.c.b16 %v12071, %v12069
    %v12110 = vpack.c.b16 %v12074, %v12072
    %v12111 = vpack.c.b16 %v12075, %v12073
    %v12112 = vpack.c.b16 %v12078, %v12076
    %v12113 = vpack.c.b16 %v12079, %v12077
    %v12114 = vpack.c.b16 %v12082, %v12080
    %v12115 = vpack.c.b16 %v12083, %v12081
    %12148 = vmatprep.subr.bf16.mxu0 %v12099
    %12149 = vmatpush1.bf16.msra.mxu0 %v12098
    %12150 = vmatprep.subr.bf16.mxu0 %v12097
    %12151 = vmatpush1.bf16.msra.mxu0 %v12096
    %12152 = vmatprep.subr.bf16.mxu0 %v12095
    %12153 = vmatpush1.bf16.msra.mxu0 %v12094
    %12154 = vmatprep.subr.bf16.mxu0 %v12093
    %12155 = vmatpush1.bf16.msra.mxu0 %v12092
    %12156 = vmatprep.subr.bf16.mxu0 %v12091
    %12157 = vmatpush1.bf16.msra.mxu0 %v12090
    %12158 = vmatprep.subr.bf16.mxu0 %v12089
    %12159 = vmatpush1.bf16.msra.mxu0 %v12088
    %12160 = vmatprep.subr.bf16.mxu0 %v12087
    %12161 = vmatpush1.bf16.msra.mxu0 %v12086
    %12162 = vmatprep.subr.bf16.mxu0 %v12085
    %12163 = vmatpush1.bf16.msra.mxu0 %v12084
    %12164 = vmatprep.subr.bf16.mxu0 %v12115
    %12165 = vmatpush2.bf16.msra.mxu0 %v12114
    %12166 = vmatprep.subr.bf16.mxu0 %v12113
    %12167 = vmatpush2.bf16.msra.mxu0 %v12112
    %12168 = vmatprep.subr.bf16.mxu0 %v12111
    %12169 = vmatpush2.bf16.msra.mxu0 %v12110
    %12170 = vmatprep.subr.bf16.mxu0 %v12109
    %12171 = vmatpush2.bf16.msra.mxu0 %v12108
    %12172 = vmatprep.subr.bf16.mxu0 %v12107
    %12173 = vmatpush2.bf16.msra.mxu0 %v12106
    %12174 = vmatprep.subr.bf16.mxu0 %v12105
    %12175 = vmatpush2.bf16.msra.mxu0 %v12104
    %12176 = vmatprep.subr.bf16.mxu0 %v12103
    %12177 = vmatpush2.bf16.msra.mxu0 %v12102
    %12178 = vmatprep.subr.bf16.mxu0 %v12101
    %12179 = vmatpush2.bf16.msra.mxu0 %v12100
    %12180 = vmatprep.mubr.bf16.mxu0 %v11985
    %12181 = vmatmul.mubr.bf16.gmra.mxu0 %v11984
    %v12182 = vpop.f32.mrf.mxu0
    %v12183 = vadd.f32 0.0, %v12182
    %v12184 = vpop.f32.mrf.mxu0
    %v12185 = vadd.f32 0.0, %v12184
    %v12186 = vpop.f32.mrf.mxu0
    %v12187 = vpop.f32.mrf.mxu0
    %12188 = vdwg.mxu0
    %v12189 = vadd.f32 %v10543, %v10748
    %v12190 = vadd.f32 %v12189, %v10953
    %v12191 = vadd.f32 %v12190, %v11158
    %v12192 = vadd.f32 %v12191, %v11363
    %v12193 = vadd.f32 %v12192, %v11568
    %v12194 = vadd.f32 %v12193, %v11773
    %v12195 = vadd.f32 %v12194, %v11978
    %v12196 = vadd.f32 %v12195, %v12183
    %v12197 = vadd.f32 %v10545, %v10750
    %v12198 = vadd.f32 %v12197, %v10955
    %v12199 = vadd.f32 %v12198, %v11160
    %v12200 = vadd.f32 %v12199, %v11365
    %v12201 = vadd.f32 %v12200, %v11570
    %v12202 = vadd.f32 %v12201, %v11775
    %v12203 = vadd.f32 %v12202, %v11980
    %v12204 = vadd.f32 %v12203, %v12185
    %v12205 = vld [vmem:[%s15] sm:$0x3]
    %v12207 = vlaneseq
    %v12208 = vshrl.u32 %v12207, 7
    %v12209 = vsub.s32 0, %v12208
    %v12210 = vrot.slane %v12205, %v12209
    %v12211 = vlaneseq
    %v12212 = vshrl.u32 %v12211, 7
    %v12213 = vsub.s32 1, %v12212
    %v12214 = vrot.slane %v12205, %v12213
    %v12217 = vadd.f32 %v12196, %v12210
    %v12218 = vadd.f32 %v12204, %v12214
    %v12219 = vmax.f32 %v12217, 0.0
    %v12220 = vmax.f32 %v12218, 0.0
    %12221 = vst [vmem:[%s16] sm:$0xff] %v12219
    %12222 = vst [vmem:[%s16 + $0x8] sm:$0xff] %v12220
    // Predicated region
    $region106: #{forward.1} parent=1 // pred_check
      _
    $region107: #{forward.1} parent=1 // pred_check_branch
      %12224 = sbr.rel (0) target = $region109
    $region108: #{forward.1} parent=1 // pred_region
      _
    $region109: #{forward.1} parent=1 // pred_fallthru
      _
    // Predicated region
    $region110: #{forward.1} parent=1 // pred_check
      _
    $region111: #{forward.1} parent=1 // pred_check_branch
      %12226 = sbr.rel (0) target = $region113
    $region112: #{forward.1} parent=1 // pred_region
      _
    $region113: #{forward.1} parent=1 // pred_fallthru
      _
    %12227 = vsyncpa [#allocation3], 1
    %12228 = vsyncpa [#allocation5], 1
    %12229 = vsyncpa [#allocation8], 1
    %12230 = vsyncpa [#allocation11], 1
    %12231 = vsyncpa [#allocation14], 1
    %12232 = vsyncpa [#allocation17], 1

</llo_original>
